<compile_context>
chip_gen: v5e
topology: v5e:2x2
jax: 0.10.0
libtpu: 0.0.40
codegen_flags: <defaults>
</compile_context>

<pallas_src>
import numpy as np

import jax
import jax.numpy as jnp
from jax.experimental import pallas as pl
from jax.experimental.pallas import tpu as pltpu

LEAKY_SLOPE = 0.1
BN_EPS = 1e-5
_BF16 = jnp.bfloat16
_F32 = jnp.float32

_ANCHORS = [(10, 13), (16, 30), (33, 23), (30, 61), (62, 45), (59, 119)]

MODEL_DEFS = [
    {"type": "convolutional", "filters": 8, "size": 3, "stride": 1, "batch_normalize": 1, "activation": "leaky"},
    {"type": "convolutional", "filters": 16, "size": 3, "stride": 2, "batch_normalize": 1, "activation": "mish"},
    {"type": "convolutional", "filters": 16, "size": 1, "stride": 1, "batch_normalize": 1, "activation": "leaky"},
    {"type": "shortcut", "from": -2},
    {"type": "convolutional", "filters": 18, "size": 1, "stride": 1, "batch_normalize": 0, "activation": "linear"},
    {"type": "yolo", "mask": [3, 4, 5], "anchors": _ANCHORS},
    {"type": "route", "layers": [-3]},
    {"type": "convolutional", "filters": 8, "size": 1, "stride": 1, "batch_normalize": 1, "activation": "leaky"},
    {"type": "upsample", "stride": 2},
    {"type": "route", "layers": [-1, -9]},
    {"type": "convolutional", "filters": 12, "size": 3, "stride": 1, "batch_normalize": 1, "activation": "leaky"},
    {"type": "convolutional", "filters": 18, "size": 1, "stride": 1, "batch_normalize": 0, "activation": "linear"},
    {"type": "yolo", "mask": [0, 1, 2], "anchors": _ANCHORS},
]


# ---------------------------------------------------------------------------
# In-kernel helpers
# ---------------------------------------------------------------------------
def _leaky(y):
    return jnp.where(y > 0, y, LEAKY_SLOPE * y)


def _mish(y):
    # mish(y) = y * tanh(softplus(y)) = y * ((1+e)^2 - 1) / ((1+e)^2 + 1), e=exp(y)
    e = jnp.exp(jnp.minimum(y, 20.0))
    t = (1.0 + e) * (1.0 + e)
    return y * (t - 1.0) * pl.reciprocal(t + 1.0, approx=False)


def _sigmoid(y):
    return pl.reciprocal(1.0 + jnp.exp(-y), approx=False)


def _dot(a, b):
    return jnp.dot(a, b, preferred_element_type=jnp.float32)


# ---------------------------------------------------------------------------
# The fused whole-network kernel.
# Activation layout everywhere: (C, M) with M = B*H*W on the lane axis.
# ---------------------------------------------------------------------------
def _darknet_kernel(
        # input-derived patches / masks / gather matrices
        p0c_ref, m1_ref, p0s_ref, m0s_ref, u10_ref,
        # conv weights (bf16) and BN-folded shifts / biases (f32)
        w0_ref, b0_ref, w1_ref, b1_ref, w2_ref, b2_ref, w4_ref, b4_ref,
        w7_ref, b7_ref, w10u_ref, w10y_ref, b10_ref, w11_ref, b11_ref,
        # YOLO decode tables, head 0 (coarse grid) and head 1 (fine grid)
        d0_sig_ref, d0_whm_ref, d0_anc_ref, d0_grid_ref,
        d1_sig_ref, d1_whm_ref, d1_anc_ref, d1_grid_ref,
        # outputs (decoded heads, lane-dense)
        out0_ref, out1_ref):
    m_lo = p0c_ref.shape[-1]      # lanes of the low-res (stride-2) feature map
    m_hi = p0s_ref.shape[-1]      # lanes of the full-res feature map

    w0 = w0_ref[...]              # (8, Cin*9) bf16
    b0 = b0_ref[...]              # (8, 1)     f32

    # ---- L0 (3x3 s1, leaky) fused into L1 (3x3 s2, mish): L0 is re-evaluated
    #      at L1's gathered tap positions (host-composed im2col), masked where
    #      the tap falls in L1's zero padding, then accumulated per tap.
    acc1 = jnp.zeros((b1_ref.shape[0], m_lo), jnp.float32)
    for k in range(9):
        t = _leaky(_dot(w0, p0c_ref[k]) + b0) * m1_ref[k]      # (8, m_lo)
        acc1 = acc1 + _dot(w1_ref[k], t.astype(_BF16))
    y1 = _mish(acc1 + b1_ref[...])                             # (16, m_lo)

    # ---- L2 (1x1, leaky) + L3 (shortcut add)
    y2 = _leaky(_dot(w2_ref[...], y1.astype(_BF16)) + b2_ref[...])
    y3 = y1 + y2                                               # (16, m_lo)

    # ---- L4 (1x1 head conv) + L5 (YOLO decode, coarse grid)
    h0 = _dot(w4_ref[...], y3.astype(_BF16)) + b4_ref[...]     # (18, m_lo)
    out0_ref[...] = (d0_sig_ref[...] * _sigmoid(h0)
                     + d0_anc_ref[...] * jnp.exp(h0 * d0_whm_ref[...])
                     + d0_grid_ref[...]).astype(out0_ref.dtype)

    # ---- L6 route(-3) = y3 ; L7 (1x1, leaky)
    y7 = _leaky(_dot(w7_ref[...], y3.astype(_BF16)) + b7_ref[...]).astype(_BF16)

    # ---- L8 upsample(x2) + L9 route([-1,-9]) + L10 (3x3 s1, leaky), per tap:
    #      * upsample∘shift of y7 via exact 0/1 gather matmuls,
    #      * the L0-output half of the route re-evaluated at shifted positions.
    acc10 = jnp.zeros((b10_ref.shape[0], m_hi), jnp.float32)
    for k in range(9):
        u_s = _dot(y7, u10_ref[k])                             # (8, m_hi)
        t = _leaky(_dot(w0, p0s_ref[k]) + b0) * m0s_ref[k]     # (8, m_hi)
        acc10 = acc10 + _dot(w10u_ref[k], u_s.astype(_BF16))
        acc10 = acc10 + _dot(w10y_ref[k], t.astype(_BF16))
    y10 = _leaky(acc10 + b10_ref[...])                         # (12, m_hi)

    # ---- L11 (1x1 head conv) + L12 (YOLO decode, fine grid)
    h1 = _dot(w11_ref[...], y10.astype(_BF16)) + b11_ref[...]  # (18, m_hi)
    out1_ref[...] = (d1_sig_ref[...] * _sigmoid(h1)
                     + d1_anc_ref[...] * jnp.exp(h1 * d1_whm_ref[...])
                     + d1_grid_ref[...]).astype(out1_ref.dtype)


# ---------------------------------------------------------------------------
# Trace-time (numpy) builders for gather indices, masks and decode tables.
# ---------------------------------------------------------------------------
def _conv_tap_targets(B, H, W, Ho, Wo, stride):
    """Per-tap source coords (into the HxW L0-output map) for a 3x3/pad-1 conv
    with `stride`; output flat index m = b*Ho*Wo + i*Wo + j."""
    m = np.arange(B * Ho * Wo)
    b = m // (Ho * Wo)
    i = (m // Wo) % Ho
    j = m % Wo
    b_t = np.zeros((9, m.size), np.int64)
    h_t = np.zeros((9, m.size), np.int64)
    w_t = np.zeros((9, m.size), np.int64)
    outer = np.zeros((9, m.size), np.float32)
    for di in range(3):
        for dj in range(3):
            k = di * 3 + dj
            h = stride * i + di - 1
            w = stride * j + dj - 1
            ok = (h >= 0) & (h < H) & (w >= 0) & (w < W)
            outer[k] = ok
            b_t[k] = b
            h_t[k] = np.clip(h, 0, H - 1)
            w_t[k] = np.clip(w, 0, W - 1)
    return b_t, h_t, w_t, outer


def _l0_eval_inputs(xf, b_t, h_t, w_t, outer, H, W):
    """Im2col patches of the network input for evaluating conv L0 (3x3 s1 p1)
    at the given target positions, plus the post-activation validity mask.
    Returns patches (9, Cin*9, M) bf16 and mask (9, 1, M) f32."""
    srcs, inner = [], []
    for d0 in range(3):
        for e0 in range(3):
            hh = h_t + d0 - 1
            ww = w_t + e0 - 1
            ok = (hh >= 0) & (hh < H) & (ww >= 0) & (ww < W)
            srcs.append(b_t * (H * W) + np.clip(hh, 0, H - 1) * W
                        + np.clip(ww, 0, W - 1))
            inner.append(ok.astype(np.float32))
    src = np.stack(srcs)                       # (9[k0], 9[tap], M)
    inner = np.stack(inner)                    # (9[k0], 9[tap], M)
    cin = xf.shape[0]
    g = xf[:, src] * jnp.asarray(inner)        # (Cin, 9[k0], 9[tap], M)
    g = jnp.transpose(g, (2, 0, 1, 3)).reshape(9, cin * 9, src.shape[-1])
    mask = jnp.asarray(outer.reshape(9, 1, -1), _F32)
    return g.astype(_BF16), mask


def _upsample_shift_mats(B, H, W):
    """0/1 gather matrices (9, B*(H//2)*(W//2), B*H*W): tap k of a 3x3/pad-1
    conv reading the x2-nearest-upsampled low-res map; zero columns = padding."""
    Hh, Wh = H // 2, W // 2
    Ml, Mh = B * Hh * Wh, B * H * W
    m = np.arange(Mh)
    b = m // (H * W)
    i = (m // W) % H
    j = m % W
    u = np.zeros((9, Ml, Mh), np.float32)
    for di in range(3):
        for dj in range(3):
            k = di * 3 + dj
            h = i + di - 1
            w = j + dj - 1
            ok = (h >= 0) & (h < H) & (w >= 0) & (w < W)
            src = (b * (Hh * Wh) + (np.clip(h, 0, H - 1) // 2) * Wh
                   + (np.clip(w, 0, W - 1) // 2))
            u[k, src[ok], m[ok]] = 1.0
    return u


def _decode_tables(anchors, na, no, nx, ny, stride, M):
    """Static YOLO decode tables: out = sig_mul*sigmoid(h) + anch*exp(h*whm) + grid."""
    cout = na * no
    c = np.arange(cout)
    a = c // no
    r = c % no
    sig_mul = np.where(r < 2, float(stride),
                       np.where(r < 4, 0.0, 1.0)).astype(np.float32).reshape(cout, 1)
    wh_mask = ((r == 2) | (r == 3)).astype(np.float32).reshape(cout, 1)
    anch = np.zeros((cout, 1), np.float32)
    anch[r == 2, 0] = anchors[a[r == 2], 0]
    anch[r == 3, 0] = anchors[a[r == 3], 1]
    m = np.arange(M)
    j = m % ny                     # fast spatial axis (W / ny)
    i = (m // ny) % nx             # slow spatial axis (H / nx)
    grid = np.zeros((cout, M), np.float32)
    grid[r == 0, :] = (j * stride).astype(np.float32)[None, :]
    grid[r == 1, :] = (i * stride).astype(np.float32)[None, :]
    return (jnp.asarray(sig_mul), jnp.asarray(wh_mask),
            jnp.asarray(anch), jnp.asarray(grid))


# ---------------------------------------------------------------------------
# Parameter init (eval-mode BN scale folded into conv weights)
# ---------------------------------------------------------------------------
def init_params(key, model_defs, in_channels):
    params = []
    layer_filters = []
    prev_filters = in_channels
    for d in model_defs:
        t = d["type"]
        p = None
        if t == "convolutional":
            cin, cout, k = prev_filters, d["filters"], d["size"]
            key, k1, k2, k3, k4, k5, k6 = jax.random.split(key, 7)
            w = 0.1 * jax.random.normal(k1, (cout, cin, k, k), jnp.float32)
            if d["batch_normalize"]:
                gamma = 1.0 + 0.1 * jax.random.normal(k2, (cout,), jnp.float32)
                beta = 0.1 * jax.random.normal(k3, (cout,), jnp.float32)
                rmean = 0.1 * jax.random.normal(k4, (cout,), jnp.float32)
                rvar = jnp.abs(jax.random.normal(k5, (cout,), jnp.float32)) + 0.5
                scale = gamma / jnp.sqrt(rvar + BN_EPS)
                shift = beta - rmean * scale
            else:
                bias = 0.1 * jax.random.normal(k6, (cout,), jnp.float32)
                scale = jnp.ones((cout,), jnp.float32)
                shift = bias
            w = w * scale[:, None, None, None]      # fold BN scale
            p = {"weight": w, "shift": shift}
            f = cout
        elif t == "shortcut":
            f = layer_filters[d["from"]]
        elif t == "route":
            f = sum(layer_filters[l] for l in d["layers"])
        elif t == "upsample":
            f = layer_filters[-1]
        elif t == "yolo":
            f = layer_filters[-1]
        else:
            raise ValueError(t)
        layer_filters.append(f)
        prev_filters = f
        params.append(p)
    return params


# ---------------------------------------------------------------------------
# Forward pass: one pallas_call + tiny input/output formatting glue.
# ---------------------------------------------------------------------------
def _as_taps(w):   # (Co, Ci, 3, 3) -> (9, Co, Ci) bf16, tap k = di*3+dj
    co, ci = w.shape[0], w.shape[1]
    return jnp.transpose(w, (2, 3, 0, 1)).reshape(9, co, ci).astype(_BF16)


def _as_mat(w):    # (Co, Ci, k, k) -> (Co, Ci*k*k) bf16 (row-major (c, ki, kj))
    return w.reshape(w.shape[0], -1).astype(_BF16)


def _as_col(s):    # (Co,) -> (Co, 1) f32
    return s.reshape(-1, 1).astype(_F32)


def darknet_forward(x, params):
    """x: NCHW input. Returns [decoded_head0, decoded_head1] (inference mode)."""
    B, Cin, H, W = x.shape
    assert H == W and H % 2 == 0, "this topology assumes a square, even input"
    img_size = H
    Hh, Wh = H // 2, W // 2
    M0 = B * H * W
    M1 = B * Hh * Wh

    conv_idx = [i for i, d in enumerate(MODEL_DEFS) if d["type"] == "convolutional"]
    p0, p1, p2, p4, p7, p10, p11 = (params[i] for i in conv_idx)
    yolo_defs = [d for d in MODEL_DEFS if d["type"] == "yolo"]
    na = len(yolo_defs[0]["mask"])
    n_head = p4["weight"].shape[0]
    no = n_head // na

    # Channel-major flat input (Cin, B*H*W); lane axis = spatial M everywhere.
    xf = jnp.transpose(x, (1, 0, 2, 3)).reshape(Cin, M0).astype(_F32)

    # Host-built (trace-time numpy indices) composed im2col patches of x:
    #   * for L1's 9 stride-2 taps (evaluate L0 at the gathered positions),
    #   * for L10's 9 stride-1 taps (the L0-output half of the route).
    b1_t, h1_t, w1_t, outer1 = _conv_tap_targets(B, H, W, Hh, Wh, stride=2)
    p0c, m1 = _l0_eval_inputs(xf, b1_t, h1_t, w1_t, outer1, H, W)
    b2_t, h2_t, w2_t, outer2 = _conv_tap_targets(B, H, W, H, W, stride=1)
    p0s, m0s = _l0_eval_inputs(xf, b2_t, h2_t, w2_t, outer2, H, W)

    # Exact 0/1 upsample∘shift gather matrices (constants).
    u10 = jnp.asarray(_upsample_shift_mats(B, H, W), _BF16)

    # YOLO decode tables.
    anch_a = np.array([_ANCHORS[i] for i in yolo_defs[0]["mask"]], np.float32)
    anch_b = np.array([_ANCHORS[i] for i in yolo_defs[1]["mask"]], np.float32)
    dec0 = _decode_tables(anch_a, na, no, Hh, Wh, img_size // Hh, M1)
    dec1 = _decode_tables(anch_b, na, no, H, W, img_size // H, M0)

    # Weights reshaped for the kernel (BN scale already folded at init).
    w0, b0 = _as_mat(p0["weight"]), _as_col(p0["shift"])
    w1, b1 = _as_taps(p1["weight"]), _as_col(p1["shift"])
    w2, b2 = _as_mat(p2["weight"]), _as_col(p2["shift"])
    w4, b4 = _as_mat(p4["weight"]), _as_col(p4["shift"])
    w7, b7 = _as_mat(p7["weight"]), _as_col(p7["shift"])
    n_up = p7["weight"].shape[0]                      # route: [upsample | L0]
    w10u = _as_taps(p10["weight"][:, :n_up])
    w10y = _as_taps(p10["weight"][:, n_up:])
    b10 = _as_col(p10["shift"])
    w11, b11 = _as_mat(p11["weight"]), _as_col(p11["shift"])

    inputs = [p0c, m1, p0s, m0s, u10,
              w0, b0, w1, b1, w2, b2, w4, b4, w7, b7,
              w10u, w10y, b10, w11, b11,
              *dec0, *dec1]

    out_shapes = (jax.ShapeDtypeStruct((n_head, M1), _F32),
                  jax.ShapeDtypeStruct((n_head, M0), _F32))

    def _zmap(nd):
        return lambda i, _n=nd: (0,) * _n

    out0, out1 = pl.pallas_call(
        _darknet_kernel,
        out_shape=out_shapes,
        grid=(1,),
        in_specs=[pl.BlockSpec(a.shape, _zmap(a.ndim)) for a in inputs],
        out_specs=[pl.BlockSpec(s.shape, _zmap(len(s.shape))) for s in out_shapes],
        compiler_params=pltpu.CompilerParams(dimension_semantics=("arbitrary",)),
    )(*inputs)

    # (na*no, B*nx*ny) -> (B, na*ny*nx, no); same ordering as PyTorch's
    # view(b, na, no, nx, ny).permute(0,1,4,3,2).view(b, -1, no) decode output.
    def _fmt(o2d, nx, ny):
        return o2d.reshape(na, no, B, nx, ny).transpose(2, 0, 4, 3, 1).reshape(
            B, na * ny * nx, no)

    return [_fmt(out0, Hh, Wh), _fmt(out1, H, W)]


# ---------------------------------------------------------------------------
if __name__ == "__main__":
    key = jax.random.PRNGKey(0)
    key, xk = jax.random.split(key)
    # batch=2, channels=4, spatial=16x16 (NCHW, matching the PyTorch module)
    x = jax.random.normal(xk, (2, 4, 16, 16), jnp.float32)

    params = init_params(key, MODEL_DEFS, in_channels=4)
    fwd = jax.jit(darknet_forward)
    outs = fwd(x, params)
    outs = jax.block_until_ready(outs)

    # sanity: two yolo heads, (B, na*H*W, 5+nc) each, finite values
    assert len(outs) == 2
    assert outs[0].shape == (2, 3 * 8 * 8, 6), outs[0].shape
    assert outs[1].shape == (2, 3 * 16 * 16, 6), outs[1].shape
    assert all(bool(jnp.isfinite(o).all()) for o in outs)
    print("KERNEL_OK")
</pallas_src>

<mosaic_0001>
module attributes {stable_mosaic.version = 11 : i64} {
  func.func @_darknet_kernel(%arg0: i32, %arg1: memref<9x36x128xbf16, #tpu.memory_space<vmem>>, %arg2: memref<9x1x128xf32, #tpu.memory_space<vmem>>, %arg3: memref<9x36x512xbf16, #tpu.memory_space<vmem>>, %arg4: memref<9x1x512xf32, #tpu.memory_space<vmem>>, %arg5: memref<9x128x512xbf16, #tpu.memory_space<vmem>>, %arg6: memref<8x36xbf16, #tpu.memory_space<vmem>>, %arg7: memref<8x1xf32, #tpu.memory_space<vmem>>, %arg8: memref<9x16x8xbf16, #tpu.memory_space<vmem>>, %arg9: memref<16x1xf32, #tpu.memory_space<vmem>>, %arg10: memref<16x16xbf16, #tpu.memory_space<vmem>>, %arg11: memref<16x1xf32, #tpu.memory_space<vmem>>, %arg12: memref<18x16xbf16, #tpu.memory_space<vmem>>, %arg13: memref<18x1xf32, #tpu.memory_space<vmem>>, %arg14: memref<8x16xbf16, #tpu.memory_space<vmem>>, %arg15: memref<8x1xf32, #tpu.memory_space<vmem>>, %arg16: memref<9x12x8xbf16, #tpu.memory_space<vmem>>, %arg17: memref<9x12x8xbf16, #tpu.memory_space<vmem>>, %arg18: memref<12x1xf32, #tpu.memory_space<vmem>>, %arg19: memref<18x12xbf16, #tpu.memory_space<vmem>>, %arg20: memref<18x1xf32, #tpu.memory_space<vmem>>, %arg21: memref<18x1xf32, #tpu.memory_space<vmem>>, %arg22: memref<18x1xf32, #tpu.memory_space<vmem>>, %arg23: memref<18x1xf32, #tpu.memory_space<vmem>>, %arg24: memref<18x128xf32, #tpu.memory_space<vmem>>, %arg25: memref<18x1xf32, #tpu.memory_space<vmem>>, %arg26: memref<18x1xf32, #tpu.memory_space<vmem>>, %arg27: memref<18x1xf32, #tpu.memory_space<vmem>>, %arg28: memref<18x512xf32, #tpu.memory_space<vmem>>, %arg29: memref<18x128xf32, #tpu.memory_space<vmem>>, %arg30: memref<18x512xf32, #tpu.memory_space<vmem>>) attributes {dimension_semantics = [#tpu.dimension_semantics<arbitrary>], iteration_bounds = array<i64: 1>, scalar_prefetch = 0 : i64, scratch_operands = 0 : i64, tpu.core_type = #tpu.core_type<tc>, window_params = [{pipeline_mode = #tpu.pipeline_mode<synchronous>, transform_indices = @transform_0, window_bounds = array<i64: 9, 36, 128>}, {pipeline_mode = #tpu.pipeline_mode<synchronous>, transform_indices = @transform_1, window_bounds = array<i64: 9, 1, 128>}, {pipeline_mode = #tpu.pipeline_mode<synchronous>, transform_indices = @transform_2, window_bounds = array<i64: 9, 36, 512>}, {pipeline_mode = #tpu.pipeline_mode<synchronous>, transform_indices = @transform_3, window_bounds = array<i64: 9, 1, 512>}, {pipeline_mode = #tpu.pipeline_mode<synchronous>, transform_indices = @transform_4, window_bounds = array<i64: 9, 128, 512>}, {pipeline_mode = #tpu.pipeline_mode<synchronous>, transform_indices = @transform_5, window_bounds = array<i64: 8, 36>}, {pipeline_mode = #tpu.pipeline_mode<synchronous>, transform_indices = @transform_6, window_bounds = array<i64: 8, 1>}, {pipeline_mode = #tpu.pipeline_mode<synchronous>, transform_indices = @transform_7, window_bounds = array<i64: 9, 16, 8>}, {pipeline_mode = #tpu.pipeline_mode<synchronous>, transform_indices = @transform_8, window_bounds = array<i64: 16, 1>}, {pipeline_mode = #tpu.pipeline_mode<synchronous>, transform_indices = @transform_9, window_bounds = array<i64: 16, 16>}, {pipeline_mode = #tpu.pipeline_mode<synchronous>, transform_indices = @transform_10, window_bounds = array<i64: 16, 1>}, {pipeline_mode = #tpu.pipeline_mode<synchronous>, transform_indices = @transform_11, window_bounds = array<i64: 18, 16>}, {pipeline_mode = #tpu.pipeline_mode<synchronous>, transform_indices = @transform_12, window_bounds = array<i64: 18, 1>}, {pipeline_mode = #tpu.pipeline_mode<synchronous>, transform_indices = @transform_13, window_bounds = array<i64: 8, 16>}, {pipeline_mode = #tpu.pipeline_mode<synchronous>, transform_indices = @transform_14, window_bounds = array<i64: 8, 1>}, {pipeline_mode = #tpu.pipeline_mode<synchronous>, transform_indices = @transform_15, window_bounds = array<i64: 9, 12, 8>}, {pipeline_mode = #tpu.pipeline_mode<synchronous>, transform_indices = @transform_16, window_bounds = array<i64: 9, 12, 8>}, {pipeline_mode = #tpu.pipeline_mode<synchronous>, transform_indices = @transform_17, window_bounds = array<i64: 12, 1>}, {pipeline_mode = #tpu.pipeline_mode<synchronous>, transform_indices = @transform_18, window_bounds = array<i64: 18, 12>}, {pipeline_mode = #tpu.pipeline_mode<synchronous>, transform_indices = @transform_19, window_bounds = array<i64: 18, 1>}, {pipeline_mode = #tpu.pipeline_mode<synchronous>, transform_indices = @transform_20, window_bounds = array<i64: 18, 1>}, {pipeline_mode = #tpu.pipeline_mode<synchronous>, transform_indices = @transform_21, window_bounds = array<i64: 18, 1>}, {pipeline_mode = #tpu.pipeline_mode<synchronous>, transform_indices = @transform_22, window_bounds = array<i64: 18, 1>}, {pipeline_mode = #tpu.pipeline_mode<synchronous>, transform_indices = @transform_23, window_bounds = array<i64: 18, 128>}, {pipeline_mode = #tpu.pipeline_mode<synchronous>, transform_indices = @transform_24, window_bounds = array<i64: 18, 1>}, {pipeline_mode = #tpu.pipeline_mode<synchronous>, transform_indices = @transform_25, window_bounds = array<i64: 18, 1>}, {pipeline_mode = #tpu.pipeline_mode<synchronous>, transform_indices = @transform_26, window_bounds = array<i64: 18, 1>}, {pipeline_mode = #tpu.pipeline_mode<synchronous>, transform_indices = @transform_27, window_bounds = array<i64: 18, 512>}, {pipeline_mode = #tpu.pipeline_mode<synchronous>, transform_indices = @transform_28, window_bounds = array<i64: 18, 128>}, {pipeline_mode = #tpu.pipeline_mode<synchronous>, transform_indices = @transform_29, window_bounds = array<i64: 18, 512>}]} {
    %c0 = arith.constant 0 : index
    %c0_0 = arith.constant 0 : index
    %0 = vector.load %arg6[%c0, %c0_0] : memref<8x36xbf16, #tpu.memory_space<vmem>>, vector<8x36xbf16>
    %c0_1 = arith.constant 0 : index
    %c0_2 = arith.constant 0 : index
    %1 = vector.load %arg7[%c0_1, %c0_2] : memref<8x1xf32, #tpu.memory_space<vmem>>, vector<8x1xf32>
    %cst = arith.constant 0.000000e+00 : f32
    %2 = vector.broadcast %cst : f32 to vector<16x128xf32>
    %c0_3 = arith.constant 0 : index
    %c0_4 = arith.constant 0 : index
    %c0_5 = arith.constant 0 : index
    %3 = vector.load %arg1[%c0_3, %c0_4, %c0_5] : memref<9x36x128xbf16, #tpu.memory_space<vmem>>, vector<1x36x128xbf16>
    %4 = vector.shape_cast %3 : vector<1x36x128xbf16> to vector<36x128xbf16>
    %cst_6 = arith.constant dense<0.000000e+00> : vector<8x128xf32>
    %5 = tpu.matmul %0, %4, %cst_6 {dimension_numbers = #tpu.dot_dimension_numbers<[1], [0], [0], [1], [0, 0, 1, 1], [], []>} : vector<8x36xbf16>, vector<36x128xbf16>, vector<8x128xf32> -> vector<8x128xf32>
    %6 = vector.broadcast %1 : vector<8x1xf32> to vector<8x128xf32>
    %7 = arith.addf %5, %6 : vector<8x128xf32>
    %cst_7 = arith.constant 0.000000e+00 : f32
    %8 = vector.broadcast %cst_7 : f32 to vector<8x128xf32>
    %9 = arith.cmpf ogt, %7, %8 : vector<8x128xf32>
    %cst_8 = arith.constant 1.000000e-01 : f32
    %10 = vector.broadcast %cst_8 : f32 to vector<8x128xf32>
    %11 = arith.mulf %10, %7 : vector<8x128xf32>
    %12 = arith.select %9, %7, %11 : vector<8x128xi1>, vector<8x128xf32>
    %c0_9 = arith.constant 0 : index
    %c0_10 = arith.constant 0 : index
    %c0_11 = arith.constant 0 : index
    %13 = vector.load %arg2[%c0_9, %c0_10, %c0_11] : memref<9x1x128xf32, #tpu.memory_space<vmem>>, vector<1x1x128xf32>
    %14 = vector.shape_cast %13 : vector<1x1x128xf32> to vector<1x128xf32>
    %15 = vector.broadcast %14 : vector<1x128xf32> to vector<8x128xf32>
    %16 = arith.mulf %12, %15 : vector<8x128xf32>
    %c0_12 = arith.constant 0 : index
    %c0_13 = arith.constant 0 : index
    %c0_14 = arith.constant 0 : index
    %17 = vector.load %arg8[%c0_12, %c0_13, %c0_14] : memref<9x16x8xbf16, #tpu.memory_space<vmem>>, vector<1x16x8xbf16>
    %18 = vector.shape_cast %17 : vector<1x16x8xbf16> to vector<16x8xbf16>
    %19 = arith.truncf %16 : vector<8x128xf32> to vector<8x128xbf16>
    %cst_15 = arith.constant dense<0.000000e+00> : vector<16x128xf32>
    %20 = tpu.matmul %18, %19, %cst_15 {dimension_numbers = #tpu.dot_dimension_numbers<[1], [0], [0], [1], [0, 0, 1, 1], [], []>} : vector<16x8xbf16>, vector<8x128xbf16>, vector<16x128xf32> -> vector<16x128xf32>
    %21 = arith.addf %2, %20 : vector<16x128xf32>
    %c1 = arith.constant 1 : index
    %c0_16 = arith.constant 0 : index
    %c0_17 = arith.constant 0 : index
    %22 = vector.load %arg1[%c1, %c0_16, %c0_17] : memref<9x36x128xbf16, #tpu.memory_space<vmem>>, vector<1x36x128xbf16>
    %23 = vector.shape_cast %22 : vector<1x36x128xbf16> to vector<36x128xbf16>
    %cst_18 = arith.constant dense<0.000000e+00> : vector<8x128xf32>
    %24 = tpu.matmul %0, %23, %cst_18 {dimension_numbers = #tpu.dot_dimension_numbers<[1], [0], [0], [1], [0, 0, 1, 1], [], []>} : vector<8x36xbf16>, vector<36x128xbf16>, vector<8x128xf32> -> vector<8x128xf32>
    %25 = vector.broadcast %1 : vector<8x1xf32> to vector<8x128xf32>
    %26 = arith.addf %24, %25 : vector<8x128xf32>
    %cst_19 = arith.constant 0.000000e+00 : f32
    %27 = vector.broadcast %cst_19 : f32 to vector<8x128xf32>
    %28 = arith.cmpf ogt, %26, %27 : vector<8x128xf32>
    %cst_20 = arith.constant 1.000000e-01 : f32
    %29 = vector.broadcast %cst_20 : f32 to vector<8x128xf32>
    %30 = arith.mulf %29, %26 : vector<8x128xf32>
    %31 = arith.select %28, %26, %30 : vector<8x128xi1>, vector<8x128xf32>
    %c1_21 = arith.constant 1 : index
    %c0_22 = arith.constant 0 : index
    %c0_23 = arith.constant 0 : index
    %32 = vector.load %arg2[%c1_21, %c0_22, %c0_23] : memref<9x1x128xf32, #tpu.memory_space<vmem>>, vector<1x1x128xf32>
    %33 = vector.shape_cast %32 : vector<1x1x128xf32> to vector<1x128xf32>
    %34 = vector.broadcast %33 : vector<1x128xf32> to vector<8x128xf32>
    %35 = arith.mulf %31, %34 : vector<8x128xf32>
    %c1_24 = arith.constant 1 : index
    %c0_25 = arith.constant 0 : index
    %c0_26 = arith.constant 0 : index
    %36 = vector.load %arg8[%c1_24, %c0_25, %c0_26] : memref<9x16x8xbf16, #tpu.memory_space<vmem>>, vector<1x16x8xbf16>
    %37 = vector.shape_cast %36 : vector<1x16x8xbf16> to vector<16x8xbf16>
    %38 = arith.truncf %35 : vector<8x128xf32> to vector<8x128xbf16>
    %cst_27 = arith.constant dense<0.000000e+00> : vector<16x128xf32>
    %39 = tpu.matmul %37, %38, %cst_27 {dimension_numbers = #tpu.dot_dimension_numbers<[1], [0], [0], [1], [0, 0, 1, 1], [], []>} : vector<16x8xbf16>, vector<8x128xbf16>, vector<16x128xf32> -> vector<16x128xf32>
    %40 = arith.addf %21, %39 : vector<16x128xf32>
    %c2 = arith.constant 2 : index
    %c0_28 = arith.constant 0 : index
    %c0_29 = arith.constant 0 : index
    %41 = vector.load %arg1[%c2, %c0_28, %c0_29] : memref<9x36x128xbf16, #tpu.memory_space<vmem>>, vector<1x36x128xbf16>
    %42 = vector.shape_cast %41 : vector<1x36x128xbf16> to vector<36x128xbf16>
    %cst_30 = arith.constant dense<0.000000e+00> : vector<8x128xf32>
    %43 = tpu.matmul %0, %42, %cst_30 {dimension_numbers = #tpu.dot_dimension_numbers<[1], [0], [0], [1], [0, 0, 1, 1], [], []>} : vector<8x36xbf16>, vector<36x128xbf16>, vector<8x128xf32> -> vector<8x128xf32>
    %44 = vector.broadcast %1 : vector<8x1xf32> to vector<8x128xf32>
    %45 = arith.addf %43, %44 : vector<8x128xf32>
    %cst_31 = arith.constant 0.000000e+00 : f32
    %46 = vector.broadcast %cst_31 : f32 to vector<8x128xf32>
    %47 = arith.cmpf ogt, %45, %46 : vector<8x128xf32>
    %cst_32 = arith.constant 1.000000e-01 : f32
    %48 = vector.broadcast %cst_32 : f32 to vector<8x128xf32>
    %49 = arith.mulf %48, %45 : vector<8x128xf32>
    %50 = arith.select %47, %45, %49 : vector<8x128xi1>, vector<8x128xf32>
    %c2_33 = arith.constant 2 : index
    %c0_34 = arith.constant 0 : index
    %c0_35 = arith.constant 0 : index
    %51 = vector.load %arg2[%c2_33, %c0_34, %c0_35] : memref<9x1x128xf32, #tpu.memory_space<vmem>>, vector<1x1x128xf32>
    %52 = vector.shape_cast %51 : vector<1x1x128xf32> to vector<1x128xf32>
    %53 = vector.broadcast %52 : vector<1x128xf32> to vector<8x128xf32>
    %54 = arith.mulf %50, %53 : vector<8x128xf32>
    %c2_36 = arith.constant 2 : index
    %c0_37 = arith.constant 0 : index
    %c0_38 = arith.constant 0 : index
    %55 = vector.load %arg8[%c2_36, %c0_37, %c0_38] : memref<9x16x8xbf16, #tpu.memory_space<vmem>>, vector<1x16x8xbf16>
    %56 = vector.shape_cast %55 : vector<1x16x8xbf16> to vector<16x8xbf16>
    %57 = arith.truncf %54 : vector<8x128xf32> to vector<8x128xbf16>
    %cst_39 = arith.constant dense<0.000000e+00> : vector<16x128xf32>
    %58 = tpu.matmul %56, %57, %cst_39 {dimension_numbers = #tpu.dot_dimension_numbers<[1], [0], [0], [1], [0, 0, 1, 1], [], []>} : vector<16x8xbf16>, vector<8x128xbf16>, vector<16x128xf32> -> vector<16x128xf32>
    %59 = arith.addf %40, %58 : vector<16x128xf32>
    %c3 = arith.constant 3 : index
    %c0_40 = arith.constant 0 : index
    %c0_41 = arith.constant 0 : index
    %60 = vector.load %arg1[%c3, %c0_40, %c0_41] : memref<9x36x128xbf16, #tpu.memory_space<vmem>>, vector<1x36x128xbf16>
    %61 = vector.shape_cast %60 : vector<1x36x128xbf16> to vector<36x128xbf16>
    %cst_42 = arith.constant dense<0.000000e+00> : vector<8x128xf32>
    %62 = tpu.matmul %0, %61, %cst_42 {dimension_numbers = #tpu.dot_dimension_numbers<[1], [0], [0], [1], [0, 0, 1, 1], [], []>} : vector<8x36xbf16>, vector<36x128xbf16>, vector<8x128xf32> -> vector<8x128xf32>
    %63 = vector.broadcast %1 : vector<8x1xf32> to vector<8x128xf32>
    %64 = arith.addf %62, %63 : vector<8x128xf32>
    %cst_43 = arith.constant 0.000000e+00 : f32
    %65 = vector.broadcast %cst_43 : f32 to vector<8x128xf32>
    %66 = arith.cmpf ogt, %64, %65 : vector<8x128xf32>
    %cst_44 = arith.constant 1.000000e-01 : f32
    %67 = vector.broadcast %cst_44 : f32 to vector<8x128xf32>
    %68 = arith.mulf %67, %64 : vector<8x128xf32>
    %69 = arith.select %66, %64, %68 : vector<8x128xi1>, vector<8x128xf32>
    %c3_45 = arith.constant 3 : index
    %c0_46 = arith.constant 0 : index
    %c0_47 = arith.constant 0 : index
    %70 = vector.load %arg2[%c3_45, %c0_46, %c0_47] : memref<9x1x128xf32, #tpu.memory_space<vmem>>, vector<1x1x128xf32>
    %71 = vector.shape_cast %70 : vector<1x1x128xf32> to vector<1x128xf32>
    %72 = vector.broadcast %71 : vector<1x128xf32> to vector<8x128xf32>
    %73 = arith.mulf %69, %72 : vector<8x128xf32>
    %c3_48 = arith.constant 3 : index
    %c0_49 = arith.constant 0 : index
    %c0_50 = arith.constant 0 : index
    %74 = vector.load %arg8[%c3_48, %c0_49, %c0_50] : memref<9x16x8xbf16, #tpu.memory_space<vmem>>, vector<1x16x8xbf16>
    %75 = vector.shape_cast %74 : vector<1x16x8xbf16> to vector<16x8xbf16>
    %76 = arith.truncf %73 : vector<8x128xf32> to vector<8x128xbf16>
    %cst_51 = arith.constant dense<0.000000e+00> : vector<16x128xf32>
    %77 = tpu.matmul %75, %76, %cst_51 {dimension_numbers = #tpu.dot_dimension_numbers<[1], [0], [0], [1], [0, 0, 1, 1], [], []>} : vector<16x8xbf16>, vector<8x128xbf16>, vector<16x128xf32> -> vector<16x128xf32>
    %78 = arith.addf %59, %77 : vector<16x128xf32>
    %c4 = arith.constant 4 : index
    %c0_52 = arith.constant 0 : index
    %c0_53 = arith.constant 0 : index
    %79 = vector.load %arg1[%c4, %c0_52, %c0_53] : memref<9x36x128xbf16, #tpu.memory_space<vmem>>, vector<1x36x128xbf16>
    %80 = vector.shape_cast %79 : vector<1x36x128xbf16> to vector<36x128xbf16>
    %cst_54 = arith.constant dense<0.000000e+00> : vector<8x128xf32>
    %81 = tpu.matmul %0, %80, %cst_54 {dimension_numbers = #tpu.dot_dimension_numbers<[1], [0], [0], [1], [0, 0, 1, 1], [], []>} : vector<8x36xbf16>, vector<36x128xbf16>, vector<8x128xf32> -> vector<8x128xf32>
    %82 = vector.broadcast %1 : vector<8x1xf32> to vector<8x128xf32>
    %83 = arith.addf %81, %82 : vector<8x128xf32>
    %cst_55 = arith.constant 0.000000e+00 : f32
    %84 = vector.broadcast %cst_55 : f32 to vector<8x128xf32>
    %85 = arith.cmpf ogt, %83, %84 : vector<8x128xf32>
    %cst_56 = arith.constant 1.000000e-01 : f32
    %86 = vector.broadcast %cst_56 : f32 to vector<8x128xf32>
    %87 = arith.mulf %86, %83 : vector<8x128xf32>
    %88 = arith.select %85, %83, %87 : vector<8x128xi1>, vector<8x128xf32>
    %c4_57 = arith.constant 4 : index
    %c0_58 = arith.constant 0 : index
    %c0_59 = arith.constant 0 : index
    %89 = vector.load %arg2[%c4_57, %c0_58, %c0_59] : memref<9x1x128xf32, #tpu.memory_space<vmem>>, vector<1x1x128xf32>
    %90 = vector.shape_cast %89 : vector<1x1x128xf32> to vector<1x128xf32>
    %91 = vector.broadcast %90 : vector<1x128xf32> to vector<8x128xf32>
    %92 = arith.mulf %88, %91 : vector<8x128xf32>
    %c4_60 = arith.constant 4 : index
    %c0_61 = arith.constant 0 : index
    %c0_62 = arith.constant 0 : index
    %93 = vector.load %arg8[%c4_60, %c0_61, %c0_62] : memref<9x16x8xbf16, #tpu.memory_space<vmem>>, vector<1x16x8xbf16>
    %94 = vector.shape_cast %93 : vector<1x16x8xbf16> to vector<16x8xbf16>
    %95 = arith.truncf %92 : vector<8x128xf32> to vector<8x128xbf16>
    %cst_63 = arith.constant dense<0.000000e+00> : vector<16x128xf32>
    %96 = tpu.matmul %94, %95, %cst_63 {dimension_numbers = #tpu.dot_dimension_numbers<[1], [0], [0], [1], [0, 0, 1, 1], [], []>} : vector<16x8xbf16>, vector<8x128xbf16>, vector<16x128xf32> -> vector<16x128xf32>
    %97 = arith.addf %78, %96 : vector<16x128xf32>
    %c5 = arith.constant 5 : index
    %c0_64 = arith.constant 0 : index
    %c0_65 = arith.constant 0 : index
    %98 = vector.load %arg1[%c5, %c0_64, %c0_65] : memref<9x36x128xbf16, #tpu.memory_space<vmem>>, vector<1x36x128xbf16>
    %99 = vector.shape_cast %98 : vector<1x36x128xbf16> to vector<36x128xbf16>
    %cst_66 = arith.constant dense<0.000000e+00> : vector<8x128xf32>
    %100 = tpu.matmul %0, %99, %cst_66 {dimension_numbers = #tpu.dot_dimension_numbers<[1], [0], [0], [1], [0, 0, 1, 1], [], []>} : vector<8x36xbf16>, vector<36x128xbf16>, vector<8x128xf32> -> vector<8x128xf32>
    %101 = vector.broadcast %1 : vector<8x1xf32> to vector<8x128xf32>
    %102 = arith.addf %100, %101 : vector<8x128xf32>
    %cst_67 = arith.constant 0.000000e+00 : f32
    %103 = vector.broadcast %cst_67 : f32 to vector<8x128xf32>
    %104 = arith.cmpf ogt, %102, %103 : vector<8x128xf32>
    %cst_68 = arith.constant 1.000000e-01 : f32
    %105 = vector.broadcast %cst_68 : f32 to vector<8x128xf32>
    %106 = arith.mulf %105, %102 : vector<8x128xf32>
    %107 = arith.select %104, %102, %106 : vector<8x128xi1>, vector<8x128xf32>
    %c5_69 = arith.constant 5 : index
    %c0_70 = arith.constant 0 : index
    %c0_71 = arith.constant 0 : index
    %108 = vector.load %arg2[%c5_69, %c0_70, %c0_71] : memref<9x1x128xf32, #tpu.memory_space<vmem>>, vector<1x1x128xf32>
    %109 = vector.shape_cast %108 : vector<1x1x128xf32> to vector<1x128xf32>
    %110 = vector.broadcast %109 : vector<1x128xf32> to vector<8x128xf32>
    %111 = arith.mulf %107, %110 : vector<8x128xf32>
    %c5_72 = arith.constant 5 : index
    %c0_73 = arith.constant 0 : index
    %c0_74 = arith.constant 0 : index
    %112 = vector.load %arg8[%c5_72, %c0_73, %c0_74] : memref<9x16x8xbf16, #tpu.memory_space<vmem>>, vector<1x16x8xbf16>
    %113 = vector.shape_cast %112 : vector<1x16x8xbf16> to vector<16x8xbf16>
    %114 = arith.truncf %111 : vector<8x128xf32> to vector<8x128xbf16>
    %cst_75 = arith.constant dense<0.000000e+00> : vector<16x128xf32>
    %115 = tpu.matmul %113, %114, %cst_75 {dimension_numbers = #tpu.dot_dimension_numbers<[1], [0], [0], [1], [0, 0, 1, 1], [], []>} : vector<16x8xbf16>, vector<8x128xbf16>, vector<16x128xf32> -> vector<16x128xf32>
    %116 = arith.addf %97, %115 : vector<16x128xf32>
    %c6 = arith.constant 6 : index
    %c0_76 = arith.constant 0 : index
    %c0_77 = arith.constant 0 : index
    %117 = vector.load %arg1[%c6, %c0_76, %c0_77] : memref<9x36x128xbf16, #tpu.memory_space<vmem>>, vector<1x36x128xbf16>
    %118 = vector.shape_cast %117 : vector<1x36x128xbf16> to vector<36x128xbf16>
    %cst_78 = arith.constant dense<0.000000e+00> : vector<8x128xf32>
    %119 = tpu.matmul %0, %118, %cst_78 {dimension_numbers = #tpu.dot_dimension_numbers<[1], [0], [0], [1], [0, 0, 1, 1], [], []>} : vector<8x36xbf16>, vector<36x128xbf16>, vector<8x128xf32> -> vector<8x128xf32>
    %120 = vector.broadcast %1 : vector<8x1xf32> to vector<8x128xf32>
    %121 = arith.addf %119, %120 : vector<8x128xf32>
    %cst_79 = arith.constant 0.000000e+00 : f32
    %122 = vector.broadcast %cst_79 : f32 to vector<8x128xf32>
    %123 = arith.cmpf ogt, %121, %122 : vector<8x128xf32>
    %cst_80 = arith.constant 1.000000e-01 : f32
    %124 = vector.broadcast %cst_80 : f32 to vector<8x128xf32>
    %125 = arith.mulf %124, %121 : vector<8x128xf32>
    %126 = arith.select %123, %121, %125 : vector<8x128xi1>, vector<8x128xf32>
    %c6_81 = arith.constant 6 : index
    %c0_82 = arith.constant 0 : index
    %c0_83 = arith.constant 0 : index
    %127 = vector.load %arg2[%c6_81, %c0_82, %c0_83] : memref<9x1x128xf32, #tpu.memory_space<vmem>>, vector<1x1x128xf32>
    %128 = vector.shape_cast %127 : vector<1x1x128xf32> to vector<1x128xf32>
    %129 = vector.broadcast %128 : vector<1x128xf32> to vector<8x128xf32>
    %130 = arith.mulf %126, %129 : vector<8x128xf32>
    %c6_84 = arith.constant 6 : index
    %c0_85 = arith.constant 0 : index
    %c0_86 = arith.constant 0 : index
    %131 = vector.load %arg8[%c6_84, %c0_85, %c0_86] : memref<9x16x8xbf16, #tpu.memory_space<vmem>>, vector<1x16x8xbf16>
    %132 = vector.shape_cast %131 : vector<1x16x8xbf16> to vector<16x8xbf16>
    %133 = arith.truncf %130 : vector<8x128xf32> to vector<8x128xbf16>
    %cst_87 = arith.constant dense<0.000000e+00> : vector<16x128xf32>
    %134 = tpu.matmul %132, %133, %cst_87 {dimension_numbers = #tpu.dot_dimension_numbers<[1], [0], [0], [1], [0, 0, 1, 1], [], []>} : vector<16x8xbf16>, vector<8x128xbf16>, vector<16x128xf32> -> vector<16x128xf32>
    %135 = arith.addf %116, %134 : vector<16x128xf32>
    %c7 = arith.constant 7 : index
    %c0_88 = arith.constant 0 : index
    %c0_89 = arith.constant 0 : index
    %136 = vector.load %arg1[%c7, %c0_88, %c0_89] : memref<9x36x128xbf16, #tpu.memory_space<vmem>>, vector<1x36x128xbf16>
    %137 = vector.shape_cast %136 : vector<1x36x128xbf16> to vector<36x128xbf16>
    %cst_90 = arith.constant dense<0.000000e+00> : vector<8x128xf32>
    %138 = tpu.matmul %0, %137, %cst_90 {dimension_numbers = #tpu.dot_dimension_numbers<[1], [0], [0], [1], [0, 0, 1, 1], [], []>} : vector<8x36xbf16>, vector<36x128xbf16>, vector<8x128xf32> -> vector<8x128xf32>
    %139 = vector.broadcast %1 : vector<8x1xf32> to vector<8x128xf32>
    %140 = arith.addf %138, %139 : vector<8x128xf32>
    %cst_91 = arith.constant 0.000000e+00 : f32
    %141 = vector.broadcast %cst_91 : f32 to vector<8x128xf32>
    %142 = arith.cmpf ogt, %140, %141 : vector<8x128xf32>
    %cst_92 = arith.constant 1.000000e-01 : f32
    %143 = vector.broadcast %cst_92 : f32 to vector<8x128xf32>
    %144 = arith.mulf %143, %140 : vector<8x128xf32>
    %145 = arith.select %142, %140, %144 : vector<8x128xi1>, vector<8x128xf32>
    %c7_93 = arith.constant 7 : index
    %c0_94 = arith.constant 0 : index
    %c0_95 = arith.constant 0 : index
    %146 = vector.load %arg2[%c7_93, %c0_94, %c0_95] : memref<9x1x128xf32, #tpu.memory_space<vmem>>, vector<1x1x128xf32>
    %147 = vector.shape_cast %146 : vector<1x1x128xf32> to vector<1x128xf32>
    %148 = vector.broadcast %147 : vector<1x128xf32> to vector<8x128xf32>
    %149 = arith.mulf %145, %148 : vector<8x128xf32>
    %c7_96 = arith.constant 7 : index
    %c0_97 = arith.constant 0 : index
    %c0_98 = arith.constant 0 : index
    %150 = vector.load %arg8[%c7_96, %c0_97, %c0_98] : memref<9x16x8xbf16, #tpu.memory_space<vmem>>, vector<1x16x8xbf16>
    %151 = vector.shape_cast %150 : vector<1x16x8xbf16> to vector<16x8xbf16>
    %152 = arith.truncf %149 : vector<8x128xf32> to vector<8x128xbf16>
    %cst_99 = arith.constant dense<0.000000e+00> : vector<16x128xf32>
    %153 = tpu.matmul %151, %152, %cst_99 {dimension_numbers = #tpu.dot_dimension_numbers<[1], [0], [0], [1], [0, 0, 1, 1], [], []>} : vector<16x8xbf16>, vector<8x128xbf16>, vector<16x128xf32> -> vector<16x128xf32>
    %154 = arith.addf %135, %153 : vector<16x128xf32>
    %c8 = arith.constant 8 : index
    %c0_100 = arith.constant 0 : index
    %c0_101 = arith.constant 0 : index
    %155 = vector.load %arg1[%c8, %c0_100, %c0_101] : memref<9x36x128xbf16, #tpu.memory_space<vmem>>, vector<1x36x128xbf16>
    %156 = vector.shape_cast %155 : vector<1x36x128xbf16> to vector<36x128xbf16>
    %cst_102 = arith.constant dense<0.000000e+00> : vector<8x128xf32>
    %157 = tpu.matmul %0, %156, %cst_102 {dimension_numbers = #tpu.dot_dimension_numbers<[1], [0], [0], [1], [0, 0, 1, 1], [], []>} : vector<8x36xbf16>, vector<36x128xbf16>, vector<8x128xf32> -> vector<8x128xf32>
    %158 = vector.broadcast %1 : vector<8x1xf32> to vector<8x128xf32>
    %159 = arith.addf %157, %158 : vector<8x128xf32>
    %cst_103 = arith.constant 0.000000e+00 : f32
    %160 = vector.broadcast %cst_103 : f32 to vector<8x128xf32>
    %161 = arith.cmpf ogt, %159, %160 : vector<8x128xf32>
    %cst_104 = arith.constant 1.000000e-01 : f32
    %162 = vector.broadcast %cst_104 : f32 to vector<8x128xf32>
    %163 = arith.mulf %162, %159 : vector<8x128xf32>
    %164 = arith.select %161, %159, %163 : vector<8x128xi1>, vector<8x128xf32>
    %c8_105 = arith.constant 8 : index
    %c0_106 = arith.constant 0 : index
    %c0_107 = arith.constant 0 : index
    %165 = vector.load %arg2[%c8_105, %c0_106, %c0_107] : memref<9x1x128xf32, #tpu.memory_space<vmem>>, vector<1x1x128xf32>
    %166 = vector.shape_cast %165 : vector<1x1x128xf32> to vector<1x128xf32>
    %167 = vector.broadcast %166 : vector<1x128xf32> to vector<8x128xf32>
    %168 = arith.mulf %164, %167 : vector<8x128xf32>
    %c8_108 = arith.constant 8 : index
    %c0_109 = arith.constant 0 : index
    %c0_110 = arith.constant 0 : index
    %169 = vector.load %arg8[%c8_108, %c0_109, %c0_110] : memref<9x16x8xbf16, #tpu.memory_space<vmem>>, vector<1x16x8xbf16>
    %170 = vector.shape_cast %169 : vector<1x16x8xbf16> to vector<16x8xbf16>
    %171 = arith.truncf %168 : vector<8x128xf32> to vector<8x128xbf16>
    %cst_111 = arith.constant dense<0.000000e+00> : vector<16x128xf32>
    %172 = tpu.matmul %170, %171, %cst_111 {dimension_numbers = #tpu.dot_dimension_numbers<[1], [0], [0], [1], [0, 0, 1, 1], [], []>} : vector<16x8xbf16>, vector<8x128xbf16>, vector<16x128xf32> -> vector<16x128xf32>
    %173 = arith.addf %154, %172 : vector<16x128xf32>
    %c0_112 = arith.constant 0 : index
    %c0_113 = arith.constant 0 : index
    %174 = vector.load %arg9[%c0_112, %c0_113] : memref<16x1xf32, #tpu.memory_space<vmem>>, vector<16x1xf32>
    %175 = vector.broadcast %174 : vector<16x1xf32> to vector<16x128xf32>
    %176 = arith.addf %173, %175 : vector<16x128xf32>
    %cst_114 = arith.constant 2.000000e+01 : f32
    %177 = vector.broadcast %cst_114 : f32 to vector<16x128xf32>
    %178 = arith.minimumf %176, %177 : vector<16x128xf32>
    %179 = math.exp %178 : vector<16x128xf32>
    %cst_115 = arith.constant 1.000000e+00 : f32
    %180 = vector.broadcast %cst_115 : f32 to vector<16x128xf32>
    %181 = arith.addf %180, %179 : vector<16x128xf32>
    %cst_116 = arith.constant 1.000000e+00 : f32
    %182 = vector.broadcast %cst_116 : f32 to vector<16x128xf32>
    %183 = arith.addf %182, %179 : vector<16x128xf32>
    %184 = arith.mulf %181, %183 : vector<16x128xf32>
    %cst_117 = arith.constant 1.000000e+00 : f32
    %185 = vector.broadcast %cst_117 : f32 to vector<16x128xf32>
    %186 = arith.subf %184, %185 : vector<16x128xf32>
    %187 = arith.mulf %176, %186 : vector<16x128xf32>
    %cst_118 = arith.constant 1.000000e+00 : f32
    %188 = vector.broadcast %cst_118 : f32 to vector<16x128xf32>
    %189 = arith.addf %184, %188 : vector<16x128xf32>
    %190 = tpu.reciprocal %189 : vector<16x128xf32> -> vector<16x128xf32>
    %191 = arith.mulf %187, %190 : vector<16x128xf32>
    %c0_119 = arith.constant 0 : index
    %c0_120 = arith.constant 0 : index
    %192 = vector.load %arg10[%c0_119, %c0_120] : memref<16x16xbf16, #tpu.memory_space<vmem>>, vector<16x16xbf16>
    %193 = arith.truncf %191 : vector<16x128xf32> to vector<16x128xbf16>
    %cst_121 = arith.constant dense<0.000000e+00> : vector<16x128xf32>
    %194 = tpu.matmul %192, %193, %cst_121 {dimension_numbers = #tpu.dot_dimension_numbers<[1], [0], [0], [1], [0, 0, 1, 1], [], []>} : vector<16x16xbf16>, vector<16x128xbf16>, vector<16x128xf32> -> vector<16x128xf32>
    %c0_122 = arith.constant 0 : index
    %c0_123 = arith.constant 0 : index
    %195 = vector.load %arg11[%c0_122, %c0_123] : memref<16x1xf32, #tpu.memory_space<vmem>>, vector<16x1xf32>
    %196 = vector.broadcast %195 : vector<16x1xf32> to vector<16x128xf32>
    %197 = arith.addf %194, %196 : vector<16x128xf32>
    %cst_124 = arith.constant 0.000000e+00 : f32
    %198 = vector.broadcast %cst_124 : f32 to vector<16x128xf32>
    %199 = arith.cmpf ogt, %197, %198 : vector<16x128xf32>
    %cst_125 = arith.constant 1.000000e-01 : f32
    %200 = vector.broadcast %cst_125 : f32 to vector<16x128xf32>
    %201 = arith.mulf %200, %197 : vector<16x128xf32>
    %202 = arith.select %199, %197, %201 : vector<16x128xi1>, vector<16x128xf32>
    %203 = arith.addf %191, %202 : vector<16x128xf32>
    %c0_126 = arith.constant 0 : index
    %c0_127 = arith.constant 0 : index
    %204 = vector.load %arg12[%c0_126, %c0_127] : memref<18x16xbf16, #tpu.memory_space<vmem>>, vector<18x16xbf16>
    %205 = arith.truncf %203 : vector<16x128xf32> to vector<16x128xbf16>
    %cst_128 = arith.constant dense<0.000000e+00> : vector<18x128xf32>
    %206 = tpu.matmul %204, %205, %cst_128 {dimension_numbers = #tpu.dot_dimension_numbers<[1], [0], [0], [1], [0, 0, 1, 1], [], []>} : vector<18x16xbf16>, vector<16x128xbf16>, vector<18x128xf32> -> vector<18x128xf32>
    %c0_129 = arith.constant 0 : index
    %c0_130 = arith.constant 0 : index
    %207 = vector.load %arg13[%c0_129, %c0_130] : memref<18x1xf32, #tpu.memory_space<vmem>>, vector<18x1xf32>
    %208 = vector.broadcast %207 : vector<18x1xf32> to vector<18x128xf32>
    %209 = arith.addf %206, %208 : vector<18x128xf32>
    %c0_131 = arith.constant 0 : index
    %c0_132 = arith.constant 0 : index
    %210 = vector.load %arg21[%c0_131, %c0_132] : memref<18x1xf32, #tpu.memory_space<vmem>>, vector<18x1xf32>
    %cst_133 = arith.constant 0.000000e+00 : f32
    %211 = vector.broadcast %cst_133 : f32 to vector<18x128xf32>
    %212 = arith.subf %211, %209 : vector<18x128xf32>
    %213 = math.exp %212 : vector<18x128xf32>
    %cst_134 = arith.constant 1.000000e+00 : f32
    %214 = vector.broadcast %cst_134 : f32 to vector<18x128xf32>
    %215 = arith.addf %214, %213 : vector<18x128xf32>
    %216 = tpu.reciprocal %215 : vector<18x128xf32> -> vector<18x128xf32>
    %217 = vector.broadcast %210 : vector<18x1xf32> to vector<18x128xf32>
    %218 = arith.mulf %217, %216 : vector<18x128xf32>
    %c0_135 = arith.constant 0 : index
    %c0_136 = arith.constant 0 : index
    %219 = vector.load %arg23[%c0_135, %c0_136] : memref<18x1xf32, #tpu.memory_space<vmem>>, vector<18x1xf32>
    %c0_137 = arith.constant 0 : index
    %c0_138 = arith.constant 0 : index
    %220 = vector.load %arg22[%c0_137, %c0_138] : memref<18x1xf32, #tpu.memory_space<vmem>>, vector<18x1xf32>
    %221 = vector.broadcast %220 : vector<18x1xf32> to vector<18x128xf32>
    %222 = arith.mulf %209, %221 : vector<18x128xf32>
    %223 = math.exp %222 : vector<18x128xf32>
    %224 = vector.broadcast %219 : vector<18x1xf32> to vector<18x128xf32>
    %225 = arith.mulf %224, %223 : vector<18x128xf32>
    %226 = arith.addf %218, %225 : vector<18x128xf32>
    %c0_139 = arith.constant 0 : index
    %c0_140 = arith.constant 0 : index
    %227 = vector.load %arg24[%c0_139, %c0_140] : memref<18x128xf32, #tpu.memory_space<vmem>>, vector<18x128xf32>
    %228 = arith.addf %226, %227 : vector<18x128xf32>
    %c0_141 = arith.constant 0 : index
    %c0_142 = arith.constant 0 : index
    %229 = vector.load %arg29[%c0_141, %c0_142] : memref<18x128xf32, #tpu.memory_space<vmem>>, vector<18x128xf32>
    tpu.vector_store %arg29[%c0_141, %c0_142], %228 {strides = array<i32>} : memref<18x128xf32, #tpu.memory_space<vmem>>, vector<18x128xf32>,
    %c0_143 = arith.constant 0 : index
    %c0_144 = arith.constant 0 : index
    %230 = vector.load %arg14[%c0_143, %c0_144] : memref<8x16xbf16, #tpu.memory_space<vmem>>, vector<8x16xbf16>
    %231 = arith.truncf %203 : vector<16x128xf32> to vector<16x128xbf16>
    %cst_145 = arith.constant dense<0.000000e+00> : vector<8x128xf32>
    %232 = tpu.matmul %230, %231, %cst_145 {dimension_numbers = #tpu.dot_dimension_numbers<[1], [0], [0], [1], [0, 0, 1, 1], [], []>} : vector<8x16xbf16>, vector<16x128xbf16>, vector<8x128xf32> -> vector<8x128xf32>
    %c0_146 = arith.constant 0 : index
    %c0_147 = arith.constant 0 : index
    %233 = vector.load %arg15[%c0_146, %c0_147] : memref<8x1xf32, #tpu.memory_space<vmem>>, vector<8x1xf32>
    %234 = vector.broadcast %233 : vector<8x1xf32> to vector<8x128xf32>
    %235 = arith.addf %232, %234 : vector<8x128xf32>
    %cst_148 = arith.constant 0.000000e+00 : f32
    %236 = vector.broadcast %cst_148 : f32 to vector<8x128xf32>
    %237 = arith.cmpf ogt, %235, %236 : vector<8x128xf32>
    %cst_149 = arith.constant 1.000000e-01 : f32
    %238 = vector.broadcast %cst_149 : f32 to vector<8x128xf32>
    %239 = arith.mulf %238, %235 : vector<8x128xf32>
    %240 = arith.select %237, %235, %239 : vector<8x128xi1>, vector<8x128xf32>
    %241 = arith.truncf %240 : vector<8x128xf32> to vector<8x128xbf16>
    %cst_150 = arith.constant 0.000000e+00 : f32
    %242 = vector.broadcast %cst_150 : f32 to vector<12x512xf32>
    %c0_151 = arith.constant 0 : index
    %c0_152 = arith.constant 0 : index
    %c0_153 = arith.constant 0 : index
    %243 = vector.load %arg5[%c0_151, %c0_152, %c0_153] : memref<9x128x512xbf16, #tpu.memory_space<vmem>>, vector<1x128x512xbf16>
    %244 = vector.shape_cast %243 : vector<1x128x512xbf16> to vector<128x512xbf16>
    %cst_154 = arith.constant dense<0.000000e+00> : vector<8x512xf32>
    %245 = tpu.matmul %241, %244, %cst_154 {dimension_numbers = #tpu.dot_dimension_numbers<[1], [0], [0], [1], [0, 0, 1, 1], [], []>} : vector<8x128xbf16>, vector<128x512xbf16>, vector<8x512xf32> -> vector<8x512xf32>
    %c0_155 = arith.constant 0 : index
    %c0_156 = arith.constant 0 : index
    %c0_157 = arith.constant 0 : index
    %246 = vector.load %arg3[%c0_155, %c0_156, %c0_157] : memref<9x36x512xbf16, #tpu.memory_space<vmem>>, vector<1x36x512xbf16>
    %247 = vector.shape_cast %246 : vector<1x36x512xbf16> to vector<36x512xbf16>
    %cst_158 = arith.constant dense<0.000000e+00> : vector<8x512xf32>
    %248 = tpu.matmul %0, %247, %cst_158 {dimension_numbers = #tpu.dot_dimension_numbers<[1], [0], [0], [1], [0, 0, 1, 1], [], []>} : vector<8x36xbf16>, vector<36x512xbf16>, vector<8x512xf32> -> vector<8x512xf32>
    %249 = vector.broadcast %1 : vector<8x1xf32> to vector<8x512xf32>
    %250 = arith.addf %248, %249 : vector<8x512xf32>
    %cst_159 = arith.constant 0.000000e+00 : f32
    %251 = vector.broadcast %cst_159 : f32 to vector<8x512xf32>
    %252 = arith.cmpf ogt, %250, %251 : vector<8x512xf32>
    %cst_160 = arith.constant 1.000000e-01 : f32
    %253 = vector.broadcast %cst_160 : f32 to vector<8x512xf32>
    %254 = arith.mulf %253, %250 : vector<8x512xf32>
    %255 = arith.select %252, %250, %254 : vector<8x512xi1>, vector<8x512xf32>
    %c0_161 = arith.constant 0 : index
    %c0_162 = arith.constant 0 : index
    %c0_163 = arith.constant 0 : index
    %256 = vector.load %arg4[%c0_161, %c0_162, %c0_163] : memref<9x1x512xf32, #tpu.memory_space<vmem>>, vector<1x1x512xf32>
    %257 = vector.shape_cast %256 : vector<1x1x512xf32> to vector<1x512xf32>
    %258 = vector.broadcast %257 : vector<1x512xf32> to vector<8x512xf32>
    %259 = arith.mulf %255, %258 : vector<8x512xf32>
    %c0_164 = arith.constant 0 : index
    %c0_165 = arith.constant 0 : index
    %c0_166 = arith.constant 0 : index
    %260 = vector.load %arg16[%c0_164, %c0_165, %c0_166] : memref<9x12x8xbf16, #tpu.memory_space<vmem>>, vector<1x12x8xbf16>
    %261 = vector.shape_cast %260 : vector<1x12x8xbf16> to vector<12x8xbf16>
    %262 = arith.truncf %245 : vector<8x512xf32> to vector<8x512xbf16>
    %cst_167 = arith.constant dense<0.000000e+00> : vector<12x512xf32>
    %263 = tpu.matmul %261, %262, %cst_167 {dimension_numbers = #tpu.dot_dimension_numbers<[1], [0], [0], [1], [0, 0, 1, 1], [], []>} : vector<12x8xbf16>, vector<8x512xbf16>, vector<12x512xf32> -> vector<12x512xf32>
    %264 = arith.addf %242, %263 : vector<12x512xf32>
    %c0_168 = arith.constant 0 : index
    %c0_169 = arith.constant 0 : index
    %c0_170 = arith.constant 0 : index
    %265 = vector.load %arg17[%c0_168, %c0_169, %c0_170] : memref<9x12x8xbf16, #tpu.memory_space<vmem>>, vector<1x12x8xbf16>
    %266 = vector.shape_cast %265 : vector<1x12x8xbf16> to vector<12x8xbf16>
    %267 = arith.truncf %259 : vector<8x512xf32> to vector<8x512xbf16>
    %cst_171 = arith.constant dense<0.000000e+00> : vector<12x512xf32>
    %268 = tpu.matmul %266, %267, %cst_171 {dimension_numbers = #tpu.dot_dimension_numbers<[1], [0], [0], [1], [0, 0, 1, 1], [], []>} : vector<12x8xbf16>, vector<8x512xbf16>, vector<12x512xf32> -> vector<12x512xf32>
    %269 = arith.addf %264, %268 : vector<12x512xf32>
    %c1_172 = arith.constant 1 : index
    %c0_173 = arith.constant 0 : index
    %c0_174 = arith.constant 0 : index
    %270 = vector.load %arg5[%c1_172, %c0_173, %c0_174] : memref<9x128x512xbf16, #tpu.memory_space<vmem>>, vector<1x128x512xbf16>
    %271 = vector.shape_cast %270 : vector<1x128x512xbf16> to vector<128x512xbf16>
    %cst_175 = arith.constant dense<0.000000e+00> : vector<8x512xf32>
    %272 = tpu.matmul %241, %271, %cst_175 {dimension_numbers = #tpu.dot_dimension_numbers<[1], [0], [0], [1], [0, 0, 1, 1], [], []>} : vector<8x128xbf16>, vector<128x512xbf16>, vector<8x512xf32> -> vector<8x512xf32>
    %c1_176 = arith.constant 1 : index
    %c0_177 = arith.constant 0 : index
    %c0_178 = arith.constant 0 : index
    %273 = vector.load %arg3[%c1_176, %c0_177, %c0_178] : memref<9x36x512xbf16, #tpu.memory_space<vmem>>, vector<1x36x512xbf16>
    %274 = vector.shape_cast %273 : vector<1x36x512xbf16> to vector<36x512xbf16>
    %cst_179 = arith.constant dense<0.000000e+00> : vector<8x512xf32>
    %275 = tpu.matmul %0, %274, %cst_179 {dimension_numbers = #tpu.dot_dimension_numbers<[1], [0], [0], [1], [0, 0, 1, 1], [], []>} : vector<8x36xbf16>, vector<36x512xbf16>, vector<8x512xf32> -> vector<8x512xf32>
    %276 = vector.broadcast %1 : vector<8x1xf32> to vector<8x512xf32>
    %277 = arith.addf %275, %276 : vector<8x512xf32>
    %cst_180 = arith.constant 0.000000e+00 : f32
    %278 = vector.broadcast %cst_180 : f32 to vector<8x512xf32>
    %279 = arith.cmpf ogt, %277, %278 : vector<8x512xf32>
    %cst_181 = arith.constant 1.000000e-01 : f32
    %280 = vector.broadcast %cst_181 : f32 to vector<8x512xf32>
    %281 = arith.mulf %280, %277 : vector<8x512xf32>
    %282 = arith.select %279, %277, %281 : vector<8x512xi1>, vector<8x512xf32>
    %c1_182 = arith.constant 1 : index
    %c0_183 = arith.constant 0 : index
    %c0_184 = arith.constant 0 : index
    %283 = vector.load %arg4[%c1_182, %c0_183, %c0_184] : memref<9x1x512xf32, #tpu.memory_space<vmem>>, vector<1x1x512xf32>
    %284 = vector.shape_cast %283 : vector<1x1x512xf32> to vector<1x512xf32>
    %285 = vector.broadcast %284 : vector<1x512xf32> to vector<8x512xf32>
    %286 = arith.mulf %282, %285 : vector<8x512xf32>
    %c1_185 = arith.constant 1 : index
    %c0_186 = arith.constant 0 : index
    %c0_187 = arith.constant 0 : index
    %287 = vector.load %arg16[%c1_185, %c0_186, %c0_187] : memref<9x12x8xbf16, #tpu.memory_space<vmem>>, vector<1x12x8xbf16>
    %288 = vector.shape_cast %287 : vector<1x12x8xbf16> to vector<12x8xbf16>
    %289 = arith.truncf %272 : vector<8x512xf32> to vector<8x512xbf16>
    %cst_188 = arith.constant dense<0.000000e+00> : vector<12x512xf32>
    %290 = tpu.matmul %288, %289, %cst_188 {dimension_numbers = #tpu.dot_dimension_numbers<[1], [0], [0], [1], [0, 0, 1, 1], [], []>} : vector<12x8xbf16>, vector<8x512xbf16>, vector<12x512xf32> -> vector<12x512xf32>
    %291 = arith.addf %269, %290 : vector<12x512xf32>
    %c1_189 = arith.constant 1 : index
    %c0_190 = arith.constant 0 : index
    %c0_191 = arith.constant 0 : index
    %292 = vector.load %arg17[%c1_189, %c0_190, %c0_191] : memref<9x12x8xbf16, #tpu.memory_space<vmem>>, vector<1x12x8xbf16>
    %293 = vector.shape_cast %292 : vector<1x12x8xbf16> to vector<12x8xbf16>
    %294 = arith.truncf %286 : vector<8x512xf32> to vector<8x512xbf16>
    %cst_192 = arith.constant dense<0.000000e+00> : vector<12x512xf32>
    %295 = tpu.matmul %293, %294, %cst_192 {dimension_numbers = #tpu.dot_dimension_numbers<[1], [0], [0], [1], [0, 0, 1, 1], [], []>} : vector<12x8xbf16>, vector<8x512xbf16>, vector<12x512xf32> -> vector<12x512xf32>
    %296 = arith.addf %291, %295 : vector<12x512xf32>
    %c2_193 = arith.constant 2 : index
    %c0_194 = arith.constant 0 : index
    %c0_195 = arith.constant 0 : index
    %297 = vector.load %arg5[%c2_193, %c0_194, %c0_195] : memref<9x128x512xbf16, #tpu.memory_space<vmem>>, vector<1x128x512xbf16>
    %298 = vector.shape_cast %297 : vector<1x128x512xbf16> to vector<128x512xbf16>
    %cst_196 = arith.constant dense<0.000000e+00> : vector<8x512xf32>
    %299 = tpu.matmul %241, %298, %cst_196 {dimension_numbers = #tpu.dot_dimension_numbers<[1], [0], [0], [1], [0, 0, 1, 1], [], []>} : vector<8x128xbf16>, vector<128x512xbf16>, vector<8x512xf32> -> vector<8x512xf32>
    %c2_197 = arith.constant 2 : index
    %c0_198 = arith.constant 0 : index
    %c0_199 = arith.constant 0 : index
    %300 = vector.load %arg3[%c2_197, %c0_198, %c0_199] : memref<9x36x512xbf16, #tpu.memory_space<vmem>>, vector<1x36x512xbf16>
    %301 = vector.shape_cast %300 : vector<1x36x512xbf16> to vector<36x512xbf16>
    %cst_200 = arith.constant dense<0.000000e+00> : vector<8x512xf32>
    %302 = tpu.matmul %0, %301, %cst_200 {dimension_numbers = #tpu.dot_dimension_numbers<[1], [0], [0], [1], [0, 0, 1, 1], [], []>} : vector<8x36xbf16>, vector<36x512xbf16>, vector<8x512xf32> -> vector<8x512xf32>
    %303 = vector.broadcast %1 : vector<8x1xf32> to vector<8x512xf32>
    %304 = arith.addf %302, %303 : vector<8x512xf32>
    %cst_201 = arith.constant 0.000000e+00 : f32
    %305 = vector.broadcast %cst_201 : f32 to vector<8x512xf32>
    %306 = arith.cmpf ogt, %304, %305 : vector<8x512xf32>
    %cst_202 = arith.constant 1.000000e-01 : f32
    %307 = vector.broadcast %cst_202 : f32 to vector<8x512xf32>
    %308 = arith.mulf %307, %304 : vector<8x512xf32>
    %309 = arith.select %306, %304, %308 : vector<8x512xi1>, vector<8x512xf32>
    %c2_203 = arith.constant 2 : index
    %c0_204 = arith.constant 0 : index
    %c0_205 = arith.constant 0 : index
    %310 = vector.load %arg4[%c2_203, %c0_204, %c0_205] : memref<9x1x512xf32, #tpu.memory_space<vmem>>, vector<1x1x512xf32>
    %311 = vector.shape_cast %310 : vector<1x1x512xf32> to vector<1x512xf32>
    %312 = vector.broadcast %311 : vector<1x512xf32> to vector<8x512xf32>
    %313 = arith.mulf %309, %312 : vector<8x512xf32>
    %c2_206 = arith.constant 2 : index
    %c0_207 = arith.constant 0 : index
    %c0_208 = arith.constant 0 : index
    %314 = vector.load %arg16[%c2_206, %c0_207, %c0_208] : memref<9x12x8xbf16, #tpu.memory_space<vmem>>, vector<1x12x8xbf16>
    %315 = vector.shape_cast %314 : vector<1x12x8xbf16> to vector<12x8xbf16>
    %316 = arith.truncf %299 : vector<8x512xf32> to vector<8x512xbf16>
    %cst_209 = arith.constant dense<0.000000e+00> : vector<12x512xf32>
    %317 = tpu.matmul %315, %316, %cst_209 {dimension_numbers = #tpu.dot_dimension_numbers<[1], [0], [0], [1], [0, 0, 1, 1], [], []>} : vector<12x8xbf16>, vector<8x512xbf16>, vector<12x512xf32> -> vector<12x512xf32>
    %318 = arith.addf %296, %317 : vector<12x512xf32>
    %c2_210 = arith.constant 2 : index
    %c0_211 = arith.constant 0 : index
    %c0_212 = arith.constant 0 : index
    %319 = vector.load %arg17[%c2_210, %c0_211, %c0_212] : memref<9x12x8xbf16, #tpu.memory_space<vmem>>, vector<1x12x8xbf16>
    %320 = vector.shape_cast %319 : vector<1x12x8xbf16> to vector<12x8xbf16>
    %321 = arith.truncf %313 : vector<8x512xf32> to vector<8x512xbf16>
    %cst_213 = arith.constant dense<0.000000e+00> : vector<12x512xf32>
    %322 = tpu.matmul %320, %321, %cst_213 {dimension_numbers = #tpu.dot_dimension_numbers<[1], [0], [0], [1], [0, 0, 1, 1], [], []>} : vector<12x8xbf16>, vector<8x512xbf16>, vector<12x512xf32> -> vector<12x512xf32>
    %323 = arith.addf %318, %322 : vector<12x512xf32>
    %c3_214 = arith.constant 3 : index
    %c0_215 = arith.constant 0 : index
    %c0_216 = arith.constant 0 : index
    %324 = vector.load %arg5[%c3_214, %c0_215, %c0_216] : memref<9x128x512xbf16, #tpu.memory_space<vmem>>, vector<1x128x512xbf16>
    %325 = vector.shape_cast %324 : vector<1x128x512xbf16> to vector<128x512xbf16>
    %cst_217 = arith.constant dense<0.000000e+00> : vector<8x512xf32>
    %326 = tpu.matmul %241, %325, %cst_217 {dimension_numbers = #tpu.dot_dimension_numbers<[1], [0], [0], [1], [0, 0, 1, 1], [], []>} : vector<8x128xbf16>, vector<128x512xbf16>, vector<8x512xf32> -> vector<8x512xf32>
    %c3_218 = arith.constant 3 : index
    %c0_219 = arith.constant 0 : index
    %c0_220 = arith.constant 0 : index
    %327 = vector.load %arg3[%c3_218, %c0_219, %c0_220] : memref<9x36x512xbf16, #tpu.memory_space<vmem>>, vector<1x36x512xbf16>
    %328 = vector.shape_cast %327 : vector<1x36x512xbf16> to vector<36x512xbf16>
    %cst_221 = arith.constant dense<0.000000e+00> : vector<8x512xf32>
    %329 = tpu.matmul %0, %328, %cst_221 {dimension_numbers = #tpu.dot_dimension_numbers<[1], [0], [0], [1], [0, 0, 1, 1], [], []>} : vector<8x36xbf16>, vector<36x512xbf16>, vector<8x512xf32> -> vector<8x512xf32>
    %330 = vector.broadcast %1 : vector<8x1xf32> to vector<8x512xf32>
    %331 = arith.addf %329, %330 : vector<8x512xf32>
    %cst_222 = arith.constant 0.000000e+00 : f32
    %332 = vector.broadcast %cst_222 : f32 to vector<8x512xf32>
    %333 = arith.cmpf ogt, %331, %332 : vector<8x512xf32>
    %cst_223 = arith.constant 1.000000e-01 : f32
    %334 = vector.broadcast %cst_223 : f32 to vector<8x512xf32>
    %335 = arith.mulf %334, %331 : vector<8x512xf32>
    %336 = arith.select %333, %331, %335 : vector<8x512xi1>, vector<8x512xf32>
    %c3_224 = arith.constant 3 : index
    %c0_225 = arith.constant 0 : index
    %c0_226 = arith.constant 0 : index
    %337 = vector.load %arg4[%c3_224, %c0_225, %c0_226] : memref<9x1x512xf32, #tpu.memory_space<vmem>>, vector<1x1x512xf32>
    %338 = vector.shape_cast %337 : vector<1x1x512xf32> to vector<1x512xf32>
    %339 = vector.broadcast %338 : vector<1x512xf32> to vector<8x512xf32>
    %340 = arith.mulf %336, %339 : vector<8x512xf32>
    %c3_227 = arith.constant 3 : index
    %c0_228 = arith.constant 0 : index
    %c0_229 = arith.constant 0 : index
    %341 = vector.load %arg16[%c3_227, %c0_228, %c0_229] : memref<9x12x8xbf16, #tpu.memory_space<vmem>>, vector<1x12x8xbf16>
    %342 = vector.shape_cast %341 : vector<1x12x8xbf16> to vector<12x8xbf16>
    %343 = arith.truncf %326 : vector<8x512xf32> to vector<8x512xbf16>
    %cst_230 = arith.constant dense<0.000000e+00> : vector<12x512xf32>
    %344 = tpu.matmul %342, %343, %cst_230 {dimension_numbers = #tpu.dot_dimension_numbers<[1], [0], [0], [1], [0, 0, 1, 1], [], []>} : vector<12x8xbf16>, vector<8x512xbf16>, vector<12x512xf32> -> vector<12x512xf32>
    %345 = arith.addf %323, %344 : vector<12x512xf32>
    %c3_231 = arith.constant 3 : index
    %c0_232 = arith.constant 0 : index
    %c0_233 = arith.constant 0 : index
    %346 = vector.load %arg17[%c3_231, %c0_232, %c0_233] : memref<9x12x8xbf16, #tpu.memory_space<vmem>>, vector<1x12x8xbf16>
    %347 = vector.shape_cast %346 : vector<1x12x8xbf16> to vector<12x8xbf16>
    %348 = arith.truncf %340 : vector<8x512xf32> to vector<8x512xbf16>
    %cst_234 = arith.constant dense<0.000000e+00> : vector<12x512xf32>
    %349 = tpu.matmul %347, %348, %cst_234 {dimension_numbers = #tpu.dot_dimension_numbers<[1], [0], [0], [1], [0, 0, 1, 1], [], []>} : vector<12x8xbf16>, vector<8x512xbf16>, vector<12x512xf32> -> vector<12x512xf32>
    %350 = arith.addf %345, %349 : vector<12x512xf32>
    %c4_235 = arith.constant 4 : index
    %c0_236 = arith.constant 0 : index
    %c0_237 = arith.constant 0 : index
    %351 = vector.load %arg5[%c4_235, %c0_236, %c0_237] : memref<9x128x512xbf16, #tpu.memory_space<vmem>>, vector<1x128x512xbf16>
    %352 = vector.shape_cast %351 : vector<1x128x512xbf16> to vector<128x512xbf16>
    %cst_238 = arith.constant dense<0.000000e+00> : vector<8x512xf32>
    %353 = tpu.matmul %241, %352, %cst_238 {dimension_numbers = #tpu.dot_dimension_numbers<[1], [0], [0], [1], [0, 0, 1, 1], [], []>} : vector<8x128xbf16>, vector<128x512xbf16>, vector<8x512xf32> -> vector<8x512xf32>
    %c4_239 = arith.constant 4 : index
    %c0_240 = arith.constant 0 : index
    %c0_241 = arith.constant 0 : index
    %354 = vector.load %arg3[%c4_239, %c0_240, %c0_241] : memref<9x36x512xbf16, #tpu.memory_space<vmem>>, vector<1x36x512xbf16>
    %355 = vector.shape_cast %354 : vector<1x36x512xbf16> to vector<36x512xbf16>
    %cst_242 = arith.constant dense<0.000000e+00> : vector<8x512xf32>
    %356 = tpu.matmul %0, %355, %cst_242 {dimension_numbers = #tpu.dot_dimension_numbers<[1], [0], [0], [1], [0, 0, 1, 1], [], []>} : vector<8x36xbf16>, vector<36x512xbf16>, vector<8x512xf32> -> vector<8x512xf32>
    %357 = vector.broadcast %1 : vector<8x1xf32> to vector<8x512xf32>
    %358 = arith.addf %356, %357 : vector<8x512xf32>
    %cst_243 = arith.constant 0.000000e+00 : f32
    %359 = vector.broadcast %cst_243 : f32 to vector<8x512xf32>
    %360 = arith.cmpf ogt, %358, %359 : vector<8x512xf32>
    %cst_244 = arith.constant 1.000000e-01 : f32
    %361 = vector.broadcast %cst_244 : f32 to vector<8x512xf32>
    %362 = arith.mulf %361, %358 : vector<8x512xf32>
    %363 = arith.select %360, %358, %362 : vector<8x512xi1>, vector<8x512xf32>
    %c4_245 = arith.constant 4 : index
    %c0_246 = arith.constant 0 : index
    %c0_247 = arith.constant 0 : index
    %364 = vector.load %arg4[%c4_245, %c0_246, %c0_247] : memref<9x1x512xf32, #tpu.memory_space<vmem>>, vector<1x1x512xf32>
    %365 = vector.shape_cast %364 : vector<1x1x512xf32> to vector<1x512xf32>
    %366 = vector.broadcast %365 : vector<1x512xf32> to vector<8x512xf32>
    %367 = arith.mulf %363, %366 : vector<8x512xf32>
    %c4_248 = arith.constant 4 : index
    %c0_249 = arith.constant 0 : index
    %c0_250 = arith.constant 0 : index
    %368 = vector.load %arg16[%c4_248, %c0_249, %c0_250] : memref<9x12x8xbf16, #tpu.memory_space<vmem>>, vector<1x12x8xbf16>
    %369 = vector.shape_cast %368 : vector<1x12x8xbf16> to vector<12x8xbf16>
    %370 = arith.truncf %353 : vector<8x512xf32> to vector<8x512xbf16>
    %cst_251 = arith.constant dense<0.000000e+00> : vector<12x512xf32>
    %371 = tpu.matmul %369, %370, %cst_251 {dimension_numbers = #tpu.dot_dimension_numbers<[1], [0], [0], [1], [0, 0, 1, 1], [], []>} : vector<12x8xbf16>, vector<8x512xbf16>, vector<12x512xf32> -> vector<12x512xf32>
    %372 = arith.addf %350, %371 : vector<12x512xf32>
    %c4_252 = arith.constant 4 : index
    %c0_253 = arith.constant 0 : index
    %c0_254 = arith.constant 0 : index
    %373 = vector.load %arg17[%c4_252, %c0_253, %c0_254] : memref<9x12x8xbf16, #tpu.memory_space<vmem>>, vector<1x12x8xbf16>
    %374 = vector.shape_cast %373 : vector<1x12x8xbf16> to vector<12x8xbf16>
    %375 = arith.truncf %367 : vector<8x512xf32> to vector<8x512xbf16>
    %cst_255 = arith.constant dense<0.000000e+00> : vector<12x512xf32>
    %376 = tpu.matmul %374, %375, %cst_255 {dimension_numbers = #tpu.dot_dimension_numbers<[1], [0], [0], [1], [0, 0, 1, 1], [], []>} : vector<12x8xbf16>, vector<8x512xbf16>, vector<12x512xf32> -> vector<12x512xf32>
    %377 = arith.addf %372, %376 : vector<12x512xf32>
    %c5_256 = arith.constant 5 : index
    %c0_257 = arith.constant 0 : index
    %c0_258 = arith.constant 0 : index
    %378 = vector.load %arg5[%c5_256, %c0_257, %c0_258] : memref<9x128x512xbf16, #tpu.memory_space<vmem>>, vector<1x128x512xbf16>
    %379 = vector.shape_cast %378 : vector<1x128x512xbf16> to vector<128x512xbf16>
    %cst_259 = arith.constant dense<0.000000e+00> : vector<8x512xf32>
    %380 = tpu.matmul %241, %379, %cst_259 {dimension_numbers = #tpu.dot_dimension_numbers<[1], [0], [0], [1], [0, 0, 1, 1], [], []>} : vector<8x128xbf16>, vector<128x512xbf16>, vector<8x512xf32> -> vector<8x512xf32>
    %c5_260 = arith.constant 5 : index
    %c0_261 = arith.constant 0 : index
    %c0_262 = arith.constant 0 : index
    %381 = vector.load %arg3[%c5_260, %c0_261, %c0_262] : memref<9x36x512xbf16, #tpu.memory_space<vmem>>, vector<1x36x512xbf16>
    %382 = vector.shape_cast %381 : vector<1x36x512xbf16> to vector<36x512xbf16>
    %cst_263 = arith.constant dense<0.000000e+00> : vector<8x512xf32>
    %383 = tpu.matmul %0, %382, %cst_263 {dimension_numbers = #tpu.dot_dimension_numbers<[1], [0], [0], [1], [0, 0, 1, 1], [], []>} : vector<8x36xbf16>, vector<36x512xbf16>, vector<8x512xf32> -> vector<8x512xf32>
    %384 = vector.broadcast %1 : vector<8x1xf32> to vector<8x512xf32>
    %385 = arith.addf %383, %384 : vector<8x512xf32>
    %cst_264 = arith.constant 0.000000e+00 : f32
    %386 = vector.broadcast %cst_264 : f32 to vector<8x512xf32>
    %387 = arith.cmpf ogt, %385, %386 : vector<8x512xf32>
    %cst_265 = arith.constant 1.000000e-01 : f32
    %388 = vector.broadcast %cst_265 : f32 to vector<8x512xf32>
    %389 = arith.mulf %388, %385 : vector<8x512xf32>
    %390 = arith.select %387, %385, %389 : vector<8x512xi1>, vector<8x512xf32>
    %c5_266 = arith.constant 5 : index
    %c0_267 = arith.constant 0 : index
    %c0_268 = arith.constant 0 : index
    %391 = vector.load %arg4[%c5_266, %c0_267, %c0_268] : memref<9x1x512xf32, #tpu.memory_space<vmem>>, vector<1x1x512xf32>
    %392 = vector.shape_cast %391 : vector<1x1x512xf32> to vector<1x512xf32>
    %393 = vector.broadcast %392 : vector<1x512xf32> to vector<8x512xf32>
    %394 = arith.mulf %390, %393 : vector<8x512xf32>
    %c5_269 = arith.constant 5 : index
    %c0_270 = arith.constant 0 : index
    %c0_271 = arith.constant 0 : index
    %395 = vector.load %arg16[%c5_269, %c0_270, %c0_271] : memref<9x12x8xbf16, #tpu.memory_space<vmem>>, vector<1x12x8xbf16>
    %396 = vector.shape_cast %395 : vector<1x12x8xbf16> to vector<12x8xbf16>
    %397 = arith.truncf %380 : vector<8x512xf32> to vector<8x512xbf16>
    %cst_272 = arith.constant dense<0.000000e+00> : vector<12x512xf32>
    %398 = tpu.matmul %396, %397, %cst_272 {dimension_numbers = #tpu.dot_dimension_numbers<[1], [0], [0], [1], [0, 0, 1, 1], [], []>} : vector<12x8xbf16>, vector<8x512xbf16>, vector<12x512xf32> -> vector<12x512xf32>
    %399 = arith.addf %377, %398 : vector<12x512xf32>
    %c5_273 = arith.constant 5 : index
    %c0_274 = arith.constant 0 : index
    %c0_275 = arith.constant 0 : index
    %400 = vector.load %arg17[%c5_273, %c0_274, %c0_275] : memref<9x12x8xbf16, #tpu.memory_space<vmem>>, vector<1x12x8xbf16>
    %401 = vector.shape_cast %400 : vector<1x12x8xbf16> to vector<12x8xbf16>
    %402 = arith.truncf %394 : vector<8x512xf32> to vector<8x512xbf16>
    %cst_276 = arith.constant dense<0.000000e+00> : vector<12x512xf32>
    %403 = tpu.matmul %401, %402, %cst_276 {dimension_numbers = #tpu.dot_dimension_numbers<[1], [0], [0], [1], [0, 0, 1, 1], [], []>} : vector<12x8xbf16>, vector<8x512xbf16>, vector<12x512xf32> -> vector<12x512xf32>
    %404 = arith.addf %399, %403 : vector<12x512xf32>
    %c6_277 = arith.constant 6 : index
    %c0_278 = arith.constant 0 : index
    %c0_279 = arith.constant 0 : index
    %405 = vector.load %arg5[%c6_277, %c0_278, %c0_279] : memref<9x128x512xbf16, #tpu.memory_space<vmem>>, vector<1x128x512xbf16>
    %406 = vector.shape_cast %405 : vector<1x128x512xbf16> to vector<128x512xbf16>
    %cst_280 = arith.constant dense<0.000000e+00> : vector<8x512xf32>
    %407 = tpu.matmul %241, %406, %cst_280 {dimension_numbers = #tpu.dot_dimension_numbers<[1], [0], [0], [1], [0, 0, 1, 1], [], []>} : vector<8x128xbf16>, vector<128x512xbf16>, vector<8x512xf32> -> vector<8x512xf32>
    %c6_281 = arith.constant 6 : index
    %c0_282 = arith.constant 0 : index
    %c0_283 = arith.constant 0 : index
    %408 = vector.load %arg3[%c6_281, %c0_282, %c0_283] : memref<9x36x512xbf16, #tpu.memory_space<vmem>>, vector<1x36x512xbf16>
    %409 = vector.shape_cast %408 : vector<1x36x512xbf16> to vector<36x512xbf16>
    %cst_284 = arith.constant dense<0.000000e+00> : vector<8x512xf32>
    %410 = tpu.matmul %0, %409, %cst_284 {dimension_numbers = #tpu.dot_dimension_numbers<[1], [0], [0], [1], [0, 0, 1, 1], [], []>} : vector<8x36xbf16>, vector<36x512xbf16>, vector<8x512xf32> -> vector<8x512xf32>
    %411 = vector.broadcast %1 : vector<8x1xf32> to vector<8x512xf32>
    %412 = arith.addf %410, %411 : vector<8x512xf32>
    %cst_285 = arith.constant 0.000000e+00 : f32
    %413 = vector.broadcast %cst_285 : f32 to vector<8x512xf32>
    %414 = arith.cmpf ogt, %412, %413 : vector<8x512xf32>
    %cst_286 = arith.constant 1.000000e-01 : f32
    %415 = vector.broadcast %cst_286 : f32 to vector<8x512xf32>
    %416 = arith.mulf %415, %412 : vector<8x512xf32>
    %417 = arith.select %414, %412, %416 : vector<8x512xi1>, vector<8x512xf32>
    %c6_287 = arith.constant 6 : index
    %c0_288 = arith.constant 0 : index
    %c0_289 = arith.constant 0 : index
    %418 = vector.load %arg4[%c6_287, %c0_288, %c0_289] : memref<9x1x512xf32, #tpu.memory_space<vmem>>, vector<1x1x512xf32>
    %419 = vector.shape_cast %418 : vector<1x1x512xf32> to vector<1x512xf32>
    %420 = vector.broadcast %419 : vector<1x512xf32> to vector<8x512xf32>
    %421 = arith.mulf %417, %420 : vector<8x512xf32>
    %c6_290 = arith.constant 6 : index
    %c0_291 = arith.constant 0 : index
    %c0_292 = arith.constant 0 : index
    %422 = vector.load %arg16[%c6_290, %c0_291, %c0_292] : memref<9x12x8xbf16, #tpu.memory_space<vmem>>, vector<1x12x8xbf16>
    %423 = vector.shape_cast %422 : vector<1x12x8xbf16> to vector<12x8xbf16>
    %424 = arith.truncf %407 : vector<8x512xf32> to vector<8x512xbf16>
    %cst_293 = arith.constant dense<0.000000e+00> : vector<12x512xf32>
    %425 = tpu.matmul %423, %424, %cst_293 {dimension_numbers = #tpu.dot_dimension_numbers<[1], [0], [0], [1], [0, 0, 1, 1], [], []>} : vector<12x8xbf16>, vector<8x512xbf16>, vector<12x512xf32> -> vector<12x512xf32>
    %426 = arith.addf %404, %425 : vector<12x512xf32>
    %c6_294 = arith.constant 6 : index
    %c0_295 = arith.constant 0 : index
    %c0_296 = arith.constant 0 : index
    %427 = vector.load %arg17[%c6_294, %c0_295, %c0_296] : memref<9x12x8xbf16, #tpu.memory_space<vmem>>, vector<1x12x8xbf16>
    %428 = vector.shape_cast %427 : vector<1x12x8xbf16> to vector<12x8xbf16>
    %429 = arith.truncf %421 : vector<8x512xf32> to vector<8x512xbf16>
    %cst_297 = arith.constant dense<0.000000e+00> : vector<12x512xf32>
    %430 = tpu.matmul %428, %429, %cst_297 {dimension_numbers = #tpu.dot_dimension_numbers<[1], [0], [0], [1], [0, 0, 1, 1], [], []>} : vector<12x8xbf16>, vector<8x512xbf16>, vector<12x512xf32> -> vector<12x512xf32>
    %431 = arith.addf %426, %430 : vector<12x512xf32>
    %c7_298 = arith.constant 7 : index
    %c0_299 = arith.constant 0 : index
    %c0_300 = arith.constant 0 : index
    %432 = vector.load %arg5[%c7_298, %c0_299, %c0_300] : memref<9x128x512xbf16, #tpu.memory_space<vmem>>, vector<1x128x512xbf16>
    %433 = vector.shape_cast %432 : vector<1x128x512xbf16> to vector<128x512xbf16>
    %cst_301 = arith.constant dense<0.000000e+00> : vector<8x512xf32>
    %434 = tpu.matmul %241, %433, %cst_301 {dimension_numbers = #tpu.dot_dimension_numbers<[1], [0], [0], [1], [0, 0, 1, 1], [], []>} : vector<8x128xbf16>, vector<128x512xbf16>, vector<8x512xf32> -> vector<8x512xf32>
    %c7_302 = arith.constant 7 : index
    %c0_303 = arith.constant 0 : index
    %c0_304 = arith.constant 0 : index
    %435 = vector.load %arg3[%c7_302, %c0_303, %c0_304] : memref<9x36x512xbf16, #tpu.memory_space<vmem>>, vector<1x36x512xbf16>
    %436 = vector.shape_cast %435 : vector<1x36x512xbf16> to vector<36x512xbf16>
    %cst_305 = arith.constant dense<0.000000e+00> : vector<8x512xf32>
    %437 = tpu.matmul %0, %436, %cst_305 {dimension_numbers = #tpu.dot_dimension_numbers<[1], [0], [0], [1], [0, 0, 1, 1], [], []>} : vector<8x36xbf16>, vector<36x512xbf16>, vector<8x512xf32> -> vector<8x512xf32>
    %438 = vector.broadcast %1 : vector<8x1xf32> to vector<8x512xf32>
    %439 = arith.addf %437, %438 : vector<8x512xf32>
    %cst_306 = arith.constant 0.000000e+00 : f32
    %440 = vector.broadcast %cst_306 : f32 to vector<8x512xf32>
    %441 = arith.cmpf ogt, %439, %440 : vector<8x512xf32>
    %cst_307 = arith.constant 1.000000e-01 : f32
    %442 = vector.broadcast %cst_307 : f32 to vector<8x512xf32>
    %443 = arith.mulf %442, %439 : vector<8x512xf32>
    %444 = arith.select %441, %439, %443 : vector<8x512xi1>, vector<8x512xf32>
    %c7_308 = arith.constant 7 : index
    %c0_309 = arith.constant 0 : index
    %c0_310 = arith.constant 0 : index
    %445 = vector.load %arg4[%c7_308, %c0_309, %c0_310] : memref<9x1x512xf32, #tpu.memory_space<vmem>>, vector<1x1x512xf32>
    %446 = vector.shape_cast %445 : vector<1x1x512xf32> to vector<1x512xf32>
    %447 = vector.broadcast %446 : vector<1x512xf32> to vector<8x512xf32>
    %448 = arith.mulf %444, %447 : vector<8x512xf32>
    %c7_311 = arith.constant 7 : index
    %c0_312 = arith.constant 0 : index
    %c0_313 = arith.constant 0 : index
    %449 = vector.load %arg16[%c7_311, %c0_312, %c0_313] : memref<9x12x8xbf16, #tpu.memory_space<vmem>>, vector<1x12x8xbf16>
    %450 = vector.shape_cast %449 : vector<1x12x8xbf16> to vector<12x8xbf16>
    %451 = arith.truncf %434 : vector<8x512xf32> to vector<8x512xbf16>
    %cst_314 = arith.constant dense<0.000000e+00> : vector<12x512xf32>
    %452 = tpu.matmul %450, %451, %cst_314 {dimension_numbers = #tpu.dot_dimension_numbers<[1], [0], [0], [1], [0, 0, 1, 1], [], []>} : vector<12x8xbf16>, vector<8x512xbf16>, vector<12x512xf32> -> vector<12x512xf32>
    %453 = arith.addf %431, %452 : vector<12x512xf32>
    %c7_315 = arith.constant 7 : index
    %c0_316 = arith.constant 0 : index
    %c0_317 = arith.constant 0 : index
    %454 = vector.load %arg17[%c7_315, %c0_316, %c0_317] : memref<9x12x8xbf16, #tpu.memory_space<vmem>>, vector<1x12x8xbf16>
    %455 = vector.shape_cast %454 : vector<1x12x8xbf16> to vector<12x8xbf16>
    %456 = arith.truncf %448 : vector<8x512xf32> to vector<8x512xbf16>
    %cst_318 = arith.constant dense<0.000000e+00> : vector<12x512xf32>
    %457 = tpu.matmul %455, %456, %cst_318 {dimension_numbers = #tpu.dot_dimension_numbers<[1], [0], [0], [1], [0, 0, 1, 1], [], []>} : vector<12x8xbf16>, vector<8x512xbf16>, vector<12x512xf32> -> vector<12x512xf32>
    %458 = arith.addf %453, %457 : vector<12x512xf32>
    %c8_319 = arith.constant 8 : index
    %c0_320 = arith.constant 0 : index
    %c0_321 = arith.constant 0 : index
    %459 = vector.load %arg5[%c8_319, %c0_320, %c0_321] : memref<9x128x512xbf16, #tpu.memory_space<vmem>>, vector<1x128x512xbf16>
    %460 = vector.shape_cast %459 : vector<1x128x512xbf16> to vector<128x512xbf16>
    %cst_322 = arith.constant dense<0.000000e+00> : vector<8x512xf32>
    %461 = tpu.matmul %241, %460, %cst_322 {dimension_numbers = #tpu.dot_dimension_numbers<[1], [0], [0], [1], [0, 0, 1, 1], [], []>} : vector<8x128xbf16>, vector<128x512xbf16>, vector<8x512xf32> -> vector<8x512xf32>
    %c8_323 = arith.constant 8 : index
    %c0_324 = arith.constant 0 : index
    %c0_325 = arith.constant 0 : index
    %462 = vector.load %arg3[%c8_323, %c0_324, %c0_325] : memref<9x36x512xbf16, #tpu.memory_space<vmem>>, vector<1x36x512xbf16>
    %463 = vector.shape_cast %462 : vector<1x36x512xbf16> to vector<36x512xbf16>
    %cst_326 = arith.constant dense<0.000000e+00> : vector<8x512xf32>
    %464 = tpu.matmul %0, %463, %cst_326 {dimension_numbers = #tpu.dot_dimension_numbers<[1], [0], [0], [1], [0, 0, 1, 1], [], []>} : vector<8x36xbf16>, vector<36x512xbf16>, vector<8x512xf32> -> vector<8x512xf32>
    %465 = vector.broadcast %1 : vector<8x1xf32> to vector<8x512xf32>
    %466 = arith.addf %464, %465 : vector<8x512xf32>
    %cst_327 = arith.constant 0.000000e+00 : f32
    %467 = vector.broadcast %cst_327 : f32 to vector<8x512xf32>
    %468 = arith.cmpf ogt, %466, %467 : vector<8x512xf32>
    %cst_328 = arith.constant 1.000000e-01 : f32
    %469 = vector.broadcast %cst_328 : f32 to vector<8x512xf32>
    %470 = arith.mulf %469, %466 : vector<8x512xf32>
    %471 = arith.select %468, %466, %470 : vector<8x512xi1>, vector<8x512xf32>
    %c8_329 = arith.constant 8 : index
    %c0_330 = arith.constant 0 : index
    %c0_331 = arith.constant 0 : index
    %472 = vector.load %arg4[%c8_329, %c0_330, %c0_331] : memref<9x1x512xf32, #tpu.memory_space<vmem>>, vector<1x1x512xf32>
    %473 = vector.shape_cast %472 : vector<1x1x512xf32> to vector<1x512xf32>
    %474 = vector.broadcast %473 : vector<1x512xf32> to vector<8x512xf32>
    %475 = arith.mulf %471, %474 : vector<8x512xf32>
    %c8_332 = arith.constant 8 : index
    %c0_333 = arith.constant 0 : index
    %c0_334 = arith.constant 0 : index
    %476 = vector.load %arg16[%c8_332, %c0_333, %c0_334] : memref<9x12x8xbf16, #tpu.memory_space<vmem>>, vector<1x12x8xbf16>
    %477 = vector.shape_cast %476 : vector<1x12x8xbf16> to vector<12x8xbf16>
    %478 = arith.truncf %461 : vector<8x512xf32> to vector<8x512xbf16>
    %cst_335 = arith.constant dense<0.000000e+00> : vector<12x512xf32>
    %479 = tpu.matmul %477, %478, %cst_335 {dimension_numbers = #tpu.dot_dimension_numbers<[1], [0], [0], [1], [0, 0, 1, 1], [], []>} : vector<12x8xbf16>, vector<8x512xbf16>, vector<12x512xf32> -> vector<12x512xf32>
    %480 = arith.addf %458, %479 : vector<12x512xf32>
    %c8_336 = arith.constant 8 : index
    %c0_337 = arith.constant 0 : index
    %c0_338 = arith.constant 0 : index
    %481 = vector.load %arg17[%c8_336, %c0_337, %c0_338] : memref<9x12x8xbf16, #tpu.memory_space<vmem>>, vector<1x12x8xbf16>
    %482 = vector.shape_cast %481 : vector<1x12x8xbf16> to vector<12x8xbf16>
    %483 = arith.truncf %475 : vector<8x512xf32> to vector<8x512xbf16>
    %cst_339 = arith.constant dense<0.000000e+00> : vector<12x512xf32>
    %484 = tpu.matmul %482, %483, %cst_339 {dimension_numbers = #tpu.dot_dimension_numbers<[1], [0], [0], [1], [0, 0, 1, 1], [], []>} : vector<12x8xbf16>, vector<8x512xbf16>, vector<12x512xf32> -> vector<12x512xf32>
    %485 = arith.addf %480, %484 : vector<12x512xf32>
    %c0_340 = arith.constant 0 : index
    %c0_341 = arith.constant 0 : index
    %486 = vector.load %arg18[%c0_340, %c0_341] : memref<12x1xf32, #tpu.memory_space<vmem>>, vector<12x1xf32>
    %487 = vector.broadcast %486 : vector<12x1xf32> to vector<12x512xf32>
    %488 = arith.addf %485, %487 : vector<12x512xf32>
    %cst_342 = arith.constant 0.000000e+00 : f32
    %489 = vector.broadcast %cst_342 : f32 to vector<12x512xf32>
    %490 = arith.cmpf ogt, %488, %489 : vector<12x512xf32>
    %cst_343 = arith.constant 1.000000e-01 : f32
    %491 = vector.broadcast %cst_343 : f32 to vector<12x512xf32>
    %492 = arith.mulf %491, %488 : vector<12x512xf32>
    %493 = arith.select %490, %488, %492 : vector<12x512xi1>, vector<12x512xf32>
    %c0_344 = arith.constant 0 : index
    %c0_345 = arith.constant 0 : index
    %494 = vector.load %arg19[%c0_344, %c0_345] : memref<18x12xbf16, #tpu.memory_space<vmem>>, vector<18x12xbf16>
    %495 = arith.truncf %493 : vector<12x512xf32> to vector<12x512xbf16>
    %cst_346 = arith.constant dense<0.000000e+00> : vector<18x512xf32>
    %496 = tpu.matmul %494, %495, %cst_346 {dimension_numbers = #tpu.dot_dimension_numbers<[1], [0], [0], [1], [0, 0, 1, 1], [], []>} : vector<18x12xbf16>, vector<12x512xbf16>, vector<18x512xf32> -> vector<18x512xf32>
    %c0_347 = arith.constant 0 : index
    %c0_348 = arith.constant 0 : index
    %497 = vector.load %arg20[%c0_347, %c0_348] : memref<18x1xf32, #tpu.memory_space<vmem>>, vector<18x1xf32>
    %498 = vector.broadcast %497 : vector<18x1xf32> to vector<18x512xf32>
    %499 = arith.addf %496, %498 : vector<18x512xf32>
    %c0_349 = arith.constant 0 : index
    %c0_350 = arith.constant 0 : index
    %500 = vector.load %arg25[%c0_349, %c0_350] : memref<18x1xf32, #tpu.memory_space<vmem>>, vector<18x1xf32>
    %cst_351 = arith.constant 0.000000e+00 : f32
    %501 = vector.broadcast %cst_351 : f32 to vector<18x512xf32>
    %502 = arith.subf %501, %499 : vector<18x512xf32>
    %503 = math.exp %502 : vector<18x512xf32>
    %cst_352 = arith.constant 1.000000e+00 : f32
    %504 = vector.broadcast %cst_352 : f32 to vector<18x512xf32>
    %505 = arith.addf %504, %503 : vector<18x512xf32>
    %506 = tpu.reciprocal %505 : vector<18x512xf32> -> vector<18x512xf32>
    %507 = vector.broadcast %500 : vector<18x1xf32> to vector<18x512xf32>
    %508 = arith.mulf %507, %506 : vector<18x512xf32>
    %c0_353 = arith.constant 0 : index
    %c0_354 = arith.constant 0 : index
    %509 = vector.load %arg27[%c0_353, %c0_354] : memref<18x1xf32, #tpu.memory_space<vmem>>, vector<18x1xf32>
    %c0_355 = arith.constant 0 : index
    %c0_356 = arith.constant 0 : index
    %510 = vector.load %arg26[%c0_355, %c0_356] : memref<18x1xf32, #tpu.memory_space<vmem>>, vector<18x1xf32>
    %511 = vector.broadcast %510 : vector<18x1xf32> to vector<18x512xf32>
    %512 = arith.mulf %499, %511 : vector<18x512xf32>
    %513 = math.exp %512 : vector<18x512xf32>
    %514 = vector.broadcast %509 : vector<18x1xf32> to vector<18x512xf32>
    %515 = arith.mulf %514, %513 : vector<18x512xf32>
    %516 = arith.addf %508, %515 : vector<18x512xf32>
    %c0_357 = arith.constant 0 : index
    %c0_358 = arith.constant 0 : index
    %517 = vector.load %arg28[%c0_357, %c0_358] : memref<18x512xf32, #tpu.memory_space<vmem>>, vector<18x512xf32>
    %518 = arith.addf %516, %517 : vector<18x512xf32>
    %c0_359 = arith.constant 0 : index
    %c0_360 = arith.constant 0 : index
    %519 = vector.load %arg30[%c0_359, %c0_360] : memref<18x512xf32, #tpu.memory_space<vmem>>, vector<18x512xf32>
    tpu.vector_store %arg30[%c0_359, %c0_360], %518 {strides = array<i32>} : memref<18x512xf32, #tpu.memory_space<vmem>>, vector<18x512xf32>,
    return
  }
  func.func @transform_0(%arg0: i32) -> (i32, i32, i32) {
    %c0_i32 = arith.constant 0 : i32
    %c0_i32_0 = arith.constant 0 : i32
    %c0_i32_1 = arith.constant 0 : i32
    %c0_i32_2 = arith.constant 0 : i32
    return %c0_i32, %c0_i32_0, %c0_i32_1 : i32, i32, i32
  }
  func.func @transform_1(%arg0: i32) -> (i32, i32, i32) {
    %c0_i32 = arith.constant 0 : i32
    %c0_i32_0 = arith.constant 0 : i32
    %c0_i32_1 = arith.constant 0 : i32
    %c0_i32_2 = arith.constant 0 : i32
    return %c0_i32, %c0_i32_0, %c0_i32_1 : i32, i32, i32
  }
  func.func @transform_2(%arg0: i32) -> (i32, i32, i32) {
    %c0_i32 = arith.constant 0 : i32
    %c0_i32_0 = arith.constant 0 : i32
    %c0_i32_1 = arith.constant 0 : i32
    %c0_i32_2 = arith.constant 0 : i32
    return %c0_i32, %c0_i32_0, %c0_i32_1 : i32, i32, i32
  }
  func.func @transform_3(%arg0: i32) -> (i32, i32, i32) {
    %c0_i32 = arith.constant 0 : i32
    %c0_i32_0 = arith.constant 0 : i32
    %c0_i32_1 = arith.constant 0 : i32
    %c0_i32_2 = arith.constant 0 : i32
    return %c0_i32, %c0_i32_0, %c0_i32_1 : i32, i32, i32
  }
  func.func @transform_4(%arg0: i32) -> (i32, i32, i32) {
    %c0_i32 = arith.constant 0 : i32
    %c0_i32_0 = arith.constant 0 : i32
    %c0_i32_1 = arith.constant 0 : i32
    %c0_i32_2 = arith.constant 0 : i32
    return %c0_i32, %c0_i32_0, %c0_i32_1 : i32, i32, i32
  }
  func.func @transform_5(%arg0: i32) -> (i32, i32) {
    %c0_i32 = arith.constant 0 : i32
    %c0_i32_0 = arith.constant 0 : i32
    %c0_i32_1 = arith.constant 0 : i32
    return %c0_i32, %c0_i32_0 : i32, i32
  }
  func.func @transform_6(%arg0: i32) -> (i32, i32) {
    %c0_i32 = arith.constant 0 : i32
    %c0_i32_0 = arith.constant 0 : i32
    %c0_i32_1 = arith.constant 0 : i32
    return %c0_i32, %c0_i32_0 : i32, i32
  }
  func.func @transform_7(%arg0: i32) -> (i32, i32, i32) {
    %c0_i32 = arith.constant 0 : i32
    %c0_i32_0 = arith.constant 0 : i32
    %c0_i32_1 = arith.constant 0 : i32
    %c0_i32_2 = arith.constant 0 : i32
    return %c0_i32, %c0_i32_0, %c0_i32_1 : i32, i32, i32
  }
  func.func @transform_8(%arg0: i32) -> (i32, i32) {
    %c0_i32 = arith.constant 0 : i32
    %c0_i32_0 = arith.constant 0 : i32
    %c0_i32_1 = arith.constant 0 : i32
    return %c0_i32, %c0_i32_0 : i32, i32
  }
  func.func @transform_9(%arg0: i32) -> (i32, i32) {
    %c0_i32 = arith.constant 0 : i32
    %c0_i32_0 = arith.constant 0 : i32
    %c0_i32_1 = arith.constant 0 : i32
    return %c0_i32, %c0_i32_0 : i32, i32
  }
  func.func @transform_10(%arg0: i32) -> (i32, i32) {
    %c0_i32 = arith.constant 0 : i32
    %c0_i32_0 = arith.constant 0 : i32
    %c0_i32_1 = arith.constant 0 : i32
    return %c0_i32, %c0_i32_0 : i32, i32
  }
  func.func @transform_11(%arg0: i32) -> (i32, i32) {
    %c0_i32 = arith.constant 0 : i32
    %c0_i32_0 = arith.constant 0 : i32
    %c0_i32_1 = arith.constant 0 : i32
    return %c0_i32, %c0_i32_0 : i32, i32
  }
  func.func @transform_12(%arg0: i32) -> (i32, i32) {
    %c0_i32 = arith.constant 0 : i32
    %c0_i32_0 = arith.constant 0 : i32
    %c0_i32_1 = arith.constant 0 : i32
    return %c0_i32, %c0_i32_0 : i32, i32
  }
  func.func @transform_13(%arg0: i32) -> (i32, i32) {
    %c0_i32 = arith.constant 0 : i32
    %c0_i32_0 = arith.constant 0 : i32
    %c0_i32_1 = arith.constant 0 : i32
    return %c0_i32, %c0_i32_0 : i32, i32
  }
  func.func @transform_14(%arg0: i32) -> (i32, i32) {
    %c0_i32 = arith.constant 0 : i32
    %c0_i32_0 = arith.constant 0 : i32
    %c0_i32_1 = arith.constant 0 : i32
    return %c0_i32, %c0_i32_0 : i32, i32
  }
  func.func @transform_15(%arg0: i32) -> (i32, i32, i32) {
    %c0_i32 = arith.constant 0 : i32
    %c0_i32_0 = arith.constant 0 : i32
    %c0_i32_1 = arith.constant 0 : i32
    %c0_i32_2 = arith.constant 0 : i32
    return %c0_i32, %c0_i32_0, %c0_i32_1 : i32, i32, i32
  }
  func.func @transform_16(%arg0: i32) -> (i32, i32, i32) {
    %c0_i32 = arith.constant 0 : i32
    %c0_i32_0 = arith.constant 0 : i32
    %c0_i32_1 = arith.constant 0 : i32
    %c0_i32_2 = arith.constant 0 : i32
    return %c0_i32, %c0_i32_0, %c0_i32_1 : i32, i32, i32
  }
  func.func @transform_17(%arg0: i32) -> (i32, i32) {
    %c0_i32 = arith.constant 0 : i32
    %c0_i32_0 = arith.constant 0 : i32
    %c0_i32_1 = arith.constant 0 : i32
    return %c0_i32, %c0_i32_0 : i32, i32
  }
  func.func @transform_18(%arg0: i32) -> (i32, i32) {
    %c0_i32 = arith.constant 0 : i32
    %c0_i32_0 = arith.constant 0 : i32
    %c0_i32_1 = arith.constant 0 : i32
    return %c0_i32, %c0_i32_0 : i32, i32
  }
  func.func @transform_19(%arg0: i32) -> (i32, i32) {
    %c0_i32 = arith.constant 0 : i32
    %c0_i32_0 = arith.constant 0 : i32
    %c0_i32_1 = arith.constant 0 : i32
    return %c0_i32, %c0_i32_0 : i32, i32
  }
  func.func @transform_20(%arg0: i32) -> (i32, i32) {
    %c0_i32 = arith.constant 0 : i32
    %c0_i32_0 = arith.constant 0 : i32
    %c0_i32_1 = arith.constant 0 : i32
    return %c0_i32, %c0_i32_0 : i32, i32
  }
  func.func @transform_21(%arg0: i32) -> (i32, i32) {
    %c0_i32 = arith.constant 0 : i32
    %c0_i32_0 = arith.constant 0 : i32
    %c0_i32_1 = arith.constant 0 : i32
    return %c0_i32, %c0_i32_0 : i32, i32
  }
  func.func @transform_22(%arg0: i32) -> (i32, i32) {
    %c0_i32 = arith.constant 0 : i32
    %c0_i32_0 = arith.constant 0 : i32
    %c0_i32_1 = arith.constant 0 : i32
    return %c0_i32, %c0_i32_0 : i32, i32
  }
  func.func @transform_23(%arg0: i32) -> (i32, i32) {
    %c0_i32 = arith.constant 0 : i32
    %c0_i32_0 = arith.constant 0 : i32
    %c0_i32_1 = arith.constant 0 : i32
    return %c0_i32, %c0_i32_0 : i32, i32
  }
  func.func @transform_24(%arg0: i32) -> (i32, i32) {
    %c0_i32 = arith.constant 0 : i32
    %c0_i32_0 = arith.constant 0 : i32
    %c0_i32_1 = arith.constant 0 : i32
    return %c0_i32, %c0_i32_0 : i32, i32
  }
  func.func @transform_25(%arg0: i32) -> (i32, i32) {
    %c0_i32 = arith.constant 0 : i32
    %c0_i32_0 = arith.constant 0 : i32
    %c0_i32_1 = arith.constant 0 : i32
    return %c0_i32, %c0_i32_0 : i32, i32
  }
  func.func @transform_26(%arg0: i32) -> (i32, i32) {
    %c0_i32 = arith.constant 0 : i32
    %c0_i32_0 = arith.constant 0 : i32
    %c0_i32_1 = arith.constant 0 : i32
    return %c0_i32, %c0_i32_0 : i32, i32
  }
  func.func @transform_27(%arg0: i32) -> (i32, i32) {
    %c0_i32 = arith.constant 0 : i32
    %c0_i32_0 = arith.constant 0 : i32
    %c0_i32_1 = arith.constant 0 : i32
    return %c0_i32, %c0_i32_0 : i32, i32
  }
  func.func @transform_28(%arg0: i32) -> (i32, i32) {
    %c0_i32 = arith.constant 0 : i32
    %c0_i32_0 = arith.constant 0 : i32
    %c0_i32_1 = arith.constant 0 : i32
    return %c0_i32, %c0_i32_0 : i32, i32
  }
  func.func @transform_29(%arg0: i32) -> (i32, i32) {
    %c0_i32 = arith.constant 0 : i32
    %c0_i32_0 = arith.constant 0 : i32
    %c0_i32_1 = arith.constant 0 : i32
    return %c0_i32, %c0_i32_0 : i32, i32
  }
}

</mosaic_0001>

<llo_original>
// kernel: darknet_forward.1
$region0: #{darknet_forward.1}
  #allocation0 [shape = 'u32[]', space=smem, size = 0x4, offset = 0x4, fixed_abs, tag = 'smem constant byte address 0x4 - core index']
  #allocation1 [shape = 'u32[72,128]{1,0:T(1,128)}', space=vmem, size = 0x9000, scoped, tag = 'internal scratch']
  %s0 = inlined_call_operand.smem [shape: u32[30], index: -1, kind: input, shape index: {}]
  %s1 = sld [smem:[%s0]]
  %s2 = scalar_lea.smem %s0, 1
  %s3 = sld [smem:[%s2]]
  %s4 = scalar_lea.smem %s0, 2
  %s5 = sld [smem:[%s4]]
  %s6 = scalar_lea.smem %s0, 3
  %s7 = sld [smem:[%s6]]
  %s8 = scalar_lea.smem %s0, 4
  %s9 = sld [smem:[%s8]]
  %s10 = scalar_lea.smem %s0, 5
  %s11 = sld [smem:[%s10]]
  %s12 = scalar_lea.smem %s0, 6
  %s13 = sld [smem:[%s12]]
  %s14 = scalar_lea.smem %s0, 7
  %s15 = sld [smem:[%s14]]
  %s16 = scalar_lea.smem %s0, 8
  %s17 = sld [smem:[%s16]]
  %s18 = scalar_lea.smem %s0, 9
  %s19 = sld [smem:[%s18]]
  %s20 = scalar_lea.smem %s0, 10
  %s21 = sld [smem:[%s20]]
  %s22 = scalar_lea.smem %s0, 11
  %s23 = sld [smem:[%s22]]
  %s24 = scalar_lea.smem %s0, 12
  %s25 = sld [smem:[%s24]]
  %s26 = scalar_lea.smem %s0, 13
  %s27 = sld [smem:[%s26]]
  %s28 = scalar_lea.smem %s0, 14
  %s29 = sld [smem:[%s28]]
  %s30 = scalar_lea.smem %s0, 15
  %s31 = sld [smem:[%s30]]
  %s32 = scalar_lea.smem %s0, 16
  %s33 = sld [smem:[%s32]]
  %s34 = scalar_lea.smem %s0, 17
  %s35 = sld [smem:[%s34]]
  %s36 = scalar_lea.smem %s0, 18
  %s37 = sld [smem:[%s36]]
  %s38 = scalar_lea.smem %s0, 19
  %s39 = sld [smem:[%s38]]
  %s40 = scalar_lea.smem %s0, 20
  %s41 = sld [smem:[%s40]]
  %s42 = scalar_lea.smem %s0, 21
  %s43 = sld [smem:[%s42]]
  %s44 = scalar_lea.smem %s0, 22
  %s45 = sld [smem:[%s44]]
  %s46 = scalar_lea.smem %s0, 23
  %s47 = sld [smem:[%s46]]
  %s48 = scalar_lea.smem %s0, 24
  %s49 = sld [smem:[%s48]]
  %s50 = scalar_lea.smem %s0, 25
  %s51 = sld [smem:[%s50]]
  %s52 = scalar_lea.smem %s0, 26
  %s53 = sld [smem:[%s52]]
  %s54 = scalar_lea.smem %s0, 27
  %s55 = sld [smem:[%s54]]
  %s56 = scalar_lea.smem %s0, 28
  %s57 = sld [smem:[%s56]]
  %s58 = scalar_lea.smem %s0, 29
  %s59 = sld [smem:[%s58]]
  %60 = xla_tuple %s57, %s59
  %s61 = sld [smem:[#allocation0]]
  $region130: #{darknet_forward.1} parent=0
    _
  %s63 = ssub.s32 1, %s61
  %s64 = scalar_select 0, %s63, %s61
  // Predicated region
  $region2: #{darknet_forward.1} parent=0 // pred_check
    _
  $region3: #{darknet_forward.1} parent=0 // pred_check_branch
    %66 = sbr.rel (0) target = $region5
  $region4: #{darknet_forward.1} parent=0 // pred_region
    _
  $region5: #{darknet_forward.1} parent=0 // pred_fallthru
    _
  // Predicated region
  $region6: #{darknet_forward.1} parent=0 // pred_check
    _
  $region7: #{darknet_forward.1} parent=0 // pred_check_branch
    %68 = sbr.rel (0) target = $region9
  $region8: #{darknet_forward.1} parent=0 // pred_region
    _
  $region9: #{darknet_forward.1} parent=0 // pred_fallthru
    _
  // Predicated region
  $region10: #{darknet_forward.1} parent=0 // pred_check
    _
  $region11: #{darknet_forward.1} parent=0 // pred_check_branch
    %70 = sbr.rel (0) target = $region13
  $region12: #{darknet_forward.1} parent=0 // pred_region
    _
  $region13: #{darknet_forward.1} parent=0 // pred_fallthru
    _
  // Predicated region
  $region14: #{darknet_forward.1} parent=0 // pred_check
    _
  $region15: #{darknet_forward.1} parent=0 // pred_check_branch
    %72 = sbr.rel (0) target = $region17
  $region16: #{darknet_forward.1} parent=0 // pred_region
    _
  $region17: #{darknet_forward.1} parent=0 // pred_fallthru
    _
  // Predicated region
  $region18: #{darknet_forward.1} parent=0 // pred_check
    _
  $region19: #{darknet_forward.1} parent=0 // pred_check_branch
    %74 = sbr.rel (0) target = $region21
  $region20: #{darknet_forward.1} parent=0 // pred_region
    _
  $region21: #{darknet_forward.1} parent=0 // pred_fallthru
    _
  // Predicated region
  $region22: #{darknet_forward.1} parent=0 // pred_check
    _
  $region23: #{darknet_forward.1} parent=0 // pred_check_branch
    %76 = sbr.rel (0) target = $region25
  $region24: #{darknet_forward.1} parent=0 // pred_region
    _
  $region25: #{darknet_forward.1} parent=0 // pred_fallthru
    _
  // Predicated region
  $region26: #{darknet_forward.1} parent=0 // pred_check
    _
  $region27: #{darknet_forward.1} parent=0 // pred_check_branch
    %78 = sbr.rel (0) target = $region29
  $region28: #{darknet_forward.1} parent=0 // pred_region
    _
  $region29: #{darknet_forward.1} parent=0 // pred_fallthru
    _
  // Predicated region
  $region30: #{darknet_forward.1} parent=0 // pred_check
    _
  $region31: #{darknet_forward.1} parent=0 // pred_check_branch
    %80 = sbr.rel (0) target = $region33
  $region32: #{darknet_forward.1} parent=0 // pred_region
    _
  $region33: #{darknet_forward.1} parent=0 // pred_fallthru
    _
  // Predicated region
  $region34: #{darknet_forward.1} parent=0 // pred_check
    _
  $region35: #{darknet_forward.1} parent=0 // pred_check_branch
    %82 = sbr.rel (0) target = $region37
  $region36: #{darknet_forward.1} parent=0 // pred_region
    _
  $region37: #{darknet_forward.1} parent=0 // pred_fallthru
    _
  // Predicated region
  $region38: #{darknet_forward.1} parent=0 // pred_check
    _
  $region39: #{darknet_forward.1} parent=0 // pred_check_branch
    %84 = sbr.rel (0) target = $region41
  $region40: #{darknet_forward.1} parent=0 // pred_region
    _
  $region41: #{darknet_forward.1} parent=0 // pred_fallthru
    _
  // Predicated region
  $region42: #{darknet_forward.1} parent=0 // pred_check
    _
  $region43: #{darknet_forward.1} parent=0 // pred_check_branch
    %86 = sbr.rel (0) target = $region45
  $region44: #{darknet_forward.1} parent=0 // pred_region
    _
  $region45: #{darknet_forward.1} parent=0 // pred_fallthru
    _
  // Predicated region
  $region46: #{darknet_forward.1} parent=0 // pred_check
    _
  $region47: #{darknet_forward.1} parent=0 // pred_check_branch
    %88 = sbr.rel (0) target = $region49
  $region48: #{darknet_forward.1} parent=0 // pred_region
    _
  $region49: #{darknet_forward.1} parent=0 // pred_fallthru
    _
  // Predicated region
  $region50: #{darknet_forward.1} parent=0 // pred_check
    _
  $region51: #{darknet_forward.1} parent=0 // pred_check_branch
    %90 = sbr.rel (0) target = $region53
  $region52: #{darknet_forward.1} parent=0 // pred_region
    _
  $region53: #{darknet_forward.1} parent=0 // pred_fallthru
    _
  // Predicated region
  $region54: #{darknet_forward.1} parent=0 // pred_check
    _
  $region55: #{darknet_forward.1} parent=0 // pred_check_branch
    %92 = sbr.rel (0) target = $region57
  $region56: #{darknet_forward.1} parent=0 // pred_region
    _
  $region57: #{darknet_forward.1} parent=0 // pred_fallthru
    _
  // Predicated region
  $region58: #{darknet_forward.1} parent=0 // pred_check
    _
  $region59: #{darknet_forward.1} parent=0 // pred_check_branch
    %94 = sbr.rel (0) target = $region61
  $region60: #{darknet_forward.1} parent=0 // pred_region
    _
  $region61: #{darknet_forward.1} parent=0 // pred_fallthru
    _
  // Predicated region
  $region62: #{darknet_forward.1} parent=0 // pred_check
    _
  $region63: #{darknet_forward.1} parent=0 // pred_check_branch
    %96 = sbr.rel (0) target = $region65
  $region64: #{darknet_forward.1} parent=0 // pred_region
    _
  $region65: #{darknet_forward.1} parent=0 // pred_fallthru
    _
  // Predicated region
  $region66: #{darknet_forward.1} parent=0 // pred_check
    _
  $region67: #{darknet_forward.1} parent=0 // pred_check_branch
    %98 = sbr.rel (0) target = $region69
  $region68: #{darknet_forward.1} parent=0 // pred_region
    _
  $region69: #{darknet_forward.1} parent=0 // pred_fallthru
    _
  // Predicated region
  $region70: #{darknet_forward.1} parent=0 // pred_check
    _
  $region71: #{darknet_forward.1} parent=0 // pred_check_branch
    %100 = sbr.rel (0) target = $region73
  $region72: #{darknet_forward.1} parent=0 // pred_region
    _
  $region73: #{darknet_forward.1} parent=0 // pred_fallthru
    _
  // Predicated region
  $region74: #{darknet_forward.1} parent=0 // pred_check
    _
  $region75: #{darknet_forward.1} parent=0 // pred_check_branch
    %102 = sbr.rel (0) target = $region77
  $region76: #{darknet_forward.1} parent=0 // pred_region
    _
  $region77: #{darknet_forward.1} parent=0 // pred_fallthru
    _
  // Predicated region
  $region78: #{darknet_forward.1} parent=0 // pred_check
    _
  $region79: #{darknet_forward.1} parent=0 // pred_check_branch
    %104 = sbr.rel (0) target = $region81
  $region80: #{darknet_forward.1} parent=0 // pred_region
    _
  $region81: #{darknet_forward.1} parent=0 // pred_fallthru
    _
  // Predicated region
  $region82: #{darknet_forward.1} parent=0 // pred_check
    _
  $region83: #{darknet_forward.1} parent=0 // pred_check_branch
    %106 = sbr.rel (0) target = $region85
  $region84: #{darknet_forward.1} parent=0 // pred_region
    _
  $region85: #{darknet_forward.1} parent=0 // pred_fallthru
    _
  // Predicated region
  $region86: #{darknet_forward.1} parent=0 // pred_check
    _
  $region87: #{darknet_forward.1} parent=0 // pred_check_branch
    %108 = sbr.rel (0) target = $region89
  $region88: #{darknet_forward.1} parent=0 // pred_region
    _
  $region89: #{darknet_forward.1} parent=0 // pred_fallthru
    _
  // Predicated region
  $region90: #{darknet_forward.1} parent=0 // pred_check
    _
  $region91: #{darknet_forward.1} parent=0 // pred_check_branch
    %110 = sbr.rel (0) target = $region93
  $region92: #{darknet_forward.1} parent=0 // pred_region
    _
  $region93: #{darknet_forward.1} parent=0 // pred_fallthru
    _
  // Predicated region
  $region94: #{darknet_forward.1} parent=0 // pred_check
    _
  $region95: #{darknet_forward.1} parent=0 // pred_check_branch
    %112 = sbr.rel (0) target = $region97
  $region96: #{darknet_forward.1} parent=0 // pred_region
    _
  $region97: #{darknet_forward.1} parent=0 // pred_fallthru
    _
  // Predicated region
  $region98: #{darknet_forward.1} parent=0 // pred_check
    _
  $region99: #{darknet_forward.1} parent=0 // pred_check_branch
    %114 = sbr.rel (0) target = $region101
  $region100: #{darknet_forward.1} parent=0 // pred_region
    _
  $region101: #{darknet_forward.1} parent=0 // pred_fallthru
    _
  // Predicated region
  $region102: #{darknet_forward.1} parent=0 // pred_check
    _
  $region103: #{darknet_forward.1} parent=0 // pred_check_branch
    %116 = sbr.rel (0) target = $region105
  $region104: #{darknet_forward.1} parent=0 // pred_region
    _
  $region105: #{darknet_forward.1} parent=0 // pred_fallthru
    _
  // Predicated region
  $region106: #{darknet_forward.1} parent=0 // pred_check
    _
  $region107: #{darknet_forward.1} parent=0 // pred_check_branch
    %118 = sbr.rel (0) target = $region109
  $region108: #{darknet_forward.1} parent=0 // pred_region
    _
  $region109: #{darknet_forward.1} parent=0 // pred_fallthru
    _
  // Predicated region
  $region110: #{darknet_forward.1} parent=0 // pred_check
    _
  $region111: #{darknet_forward.1} parent=0 // pred_check_branch
    %120 = sbr.rel (0) target = $region113
  $region112: #{darknet_forward.1} parent=0 // pred_region
    _
  $region113: #{darknet_forward.1} parent=0 // pred_fallthru
    _
  %v122 = vld [vmem:[%s11] sm:$0xf]
  %v123 = vld [vmem:[%s13] sm:$0xff]
  %v124 = vld [vmem:[%s1] sm:$0xf]
  %v125 = vld [vmem:[%s1 + $0x4] sm:$0xf]
  %v126 = vld [vmem:[%s1 + $0x8] sm:$0xf]
  %v127 = vld [vmem:[%s1 + $0xc] sm:$0xf]
  %v128 = vld [vmem:[%s1 + $0x10] sm:$0x3]
  %130 = vset.pattern.permute.xlu0 0
  %131 = vperm.xlu0 %130, %v123
  %v132 = vpop.permute.xlu0 %131
  %v139 = vunpack.c.l.b16 %v124
  %v140 = vunpack.c.l.b16 %v125
  %v141 = vunpack.c.l.b16 %v126
  %v142 = vunpack.c.l.b16 %v127
  %v143 = vunpack.c.l.b16 %v128
  %v144 = vpack.c.b16 %v140, %v139
  %v145 = vpack.c.b16 %v142, %v141
  %v146 = vpack.c.b16 %v143, %v143
  %vm149 = vcmask 293888
  %v151 = vsel %vm149, %v122, 0
  %vm153 = vcmask 1041408
  %v155 = vsel %vm153, %v146, 0
  %157 = vmatpush.bf16.msra.mxu0 0
  %158 = vmatpush.bf16.msra.mxu0 0
  %159 = vmatpush.bf16.msra.mxu0 0
  %160 = vmatpush.bf16.msra.mxu0 0
  %161 = vmatpush.bf16.msra.mxu0 0
  %162 = vmatpush.bf16.msra.mxu0 %v155
  %163 = vmatpush.bf16.msra.mxu0 %v145
  %164 = vmatpush.bf16.msra.mxu0 %v144
  %165 = vmatmul.bf16.gmra.mxu0 %v151
  %v166 = vpop.f32.mrf.mxu0
  %v167 = vadd.f32 %v132, %v166
  %v168 = vpop.f32.mrf.mxu0
  %169 = vdwg.mxu0
  %vm170 = vcmp.gt.f32.partialorder %v167, 0.0
  %v171 = vmul.f32 %v167, 0.1
  %v172 = vsel %vm170, %v167, %v171
  %v173 = vld [vmem:[%s3] sm:$0x1]
  %v175 = vperm.slane %v173, 0
  %v177 = vmul.f32 %v172, %v175
  %v178 = vld [vmem:[%s15] sm:$0xf]
  %v179 = vld [vmem:[%s15 + $0x4] sm:$0xf]
  %v180 = vpack.c.bf16 %v177, %v177
  %s181 = scalar_lea.vmem %s1, 20
  %v182 = vld [vmem:[%s181] sm:$0xf]
  %v183 = vld [vmem:[%s181 + $0x4] sm:$0xf]
  %v184 = vld [vmem:[%s181 + $0x8] sm:$0xf]
  %v185 = vld [vmem:[%s181 + $0xc] sm:$0xf]
  %v186 = vld [vmem:[%s181 + $0x10] sm:$0x3]
  %v192 = vunpack.c.l.b16 %v182
  %v193 = vunpack.c.l.b16 %v183
  %v194 = vunpack.c.l.b16 %v184
  %v195 = vunpack.c.l.b16 %v185
  %v196 = vunpack.c.l.b16 %v186
  %v197 = vpack.c.b16 %v193, %v192
  %v198 = vpack.c.b16 %v195, %v194
  %v199 = vpack.c.b16 %v196, %v196
  %v203 = vsel %vm153, %v199, 0
  %205 = vmatpush.bf16.msra.mxu0 0
  %206 = vmatpush.bf16.msra.mxu0 0
  %207 = vmatpush.bf16.msra.mxu0 0
  %208 = vmatpush.bf16.msra.mxu0 0
  %209 = vmatpush.bf16.msra.mxu0 0
  %210 = vmatpush.bf16.msra.mxu0 %v203
  %211 = vmatpush.bf16.msra.mxu0 %v198
  %212 = vmatpush.bf16.msra.mxu0 %v197
  %213 = vmatmul.bf16.gmra.mxu0 %v151
  %v214 = vpop.f32.mrf.mxu0
  %v215 = vadd.f32 %v132, %v214
  %v216 = vpop.f32.mrf.mxu0
  %217 = vdwg.mxu0
  %vm218 = vcmp.gt.f32.partialorder %v215, 0.0
  %v219 = vmul.f32 %v215, 0.1
  %v220 = vsel %vm218, %v215, %v219
  %s221 = scalar_lea.vmem %s3, 1
  %v222 = vld [vmem:[%s221] sm:$0x1]
  %v224 = vperm.slane %v222, 0
  %v226 = vmul.f32 %v220, %v224
  %s227 = scalar_lea.vmem %s15, 8
  %v228 = vld [vmem:[%s227] sm:$0xf]
  %v229 = vld [vmem:[%s227 + $0x4] sm:$0xf]
  %v230 = vpack.c.bf16 %v226, %v226
  %v233 = vunpack.c.l.b16 %v228
  %v234 = vunpack.c.l.b16 %v229
  %v235 = vpack.c.b16 %v234, %v233
  %vm236 = vcmask 64512
  %v238 = vsel %vm236, %v235, 0
  %vm240 = vcmask 1043456
  %v242 = vsel %vm240, %v230, 0
  %244 = vmatpush.bf16.msra.mxu0 0
  %245 = vmatpush.bf16.msra.mxu0 0
  %246 = vmatpush.bf16.msra.mxu0 0
  %247 = vmatpush.bf16.msra.mxu0 0
  %248 = vmatpush.bf16.msra.mxu0 0
  %249 = vmatpush.bf16.msra.mxu0 0
  %250 = vmatpush.bf16.msra.mxu0 0
  %251 = vmatpush.bf16.msra.mxu0 %v242
  %252 = vmatmul.bf16.gmra.mxu0 %v238
  %v253 = vpop.f32.mrf.mxu0
  %v254 = vadd.f32 0.0, %v253
  %v255 = vpop.f32.mrf.mxu0
  %v256 = vadd.f32 0.0, %v255
  %257 = vdwg.mxu0
  %v260 = vunpack.c.l.b16 %v178
  %v261 = vunpack.c.l.b16 %v179
  %v262 = vpack.c.b16 %v261, %v260
  %v264 = vsel %vm236, %v262, 0
  %v267 = vsel %vm240, %v180, 0
  %269 = vmatpush.bf16.msra.mxu0 0
  %270 = vmatpush.bf16.msra.mxu0 0
  %271 = vmatpush.bf16.msra.mxu0 0
  %272 = vmatpush.bf16.msra.mxu0 0
  %273 = vmatpush.bf16.msra.mxu0 0
  %274 = vmatpush.bf16.msra.mxu0 0
  %275 = vmatpush.bf16.msra.mxu0 0
  %276 = vmatpush.bf16.msra.mxu0 %v267
  %277 = vmatmul.bf16.gmra.mxu0 %v264
  %v278 = vpop.f32.mrf.mxu0
  %v279 = vadd.f32 %v254, %v278
  %v280 = vpop.f32.mrf.mxu0
  %v281 = vadd.f32 %v256, %v280
  %282 = vdwg.mxu0
  %s283 = scalar_lea.vmem %s1, 40
  %v284 = vld [vmem:[%s283] sm:$0xf]
  %v285 = vld [vmem:[%s283 + $0x4] sm:$0xf]
  %v286 = vld [vmem:[%s283 + $0x8] sm:$0xf]
  %v287 = vld [vmem:[%s283 + $0xc] sm:$0xf]
  %v288 = vld [vmem:[%s283 + $0x10] sm:$0x3]
  %v294 = vunpack.c.l.b16 %v284
  %v295 = vunpack.c.l.b16 %v285
  %v296 = vunpack.c.l.b16 %v286
  %v297 = vunpack.c.l.b16 %v287
  %v298 = vunpack.c.l.b16 %v288
  %v299 = vpack.c.b16 %v295, %v294
  %v300 = vpack.c.b16 %v297, %v296
  %v301 = vpack.c.b16 %v298, %v298
  %v305 = vsel %vm153, %v301, 0
  %307 = vmatpush.bf16.msra.mxu0 0
  %308 = vmatpush.bf16.msra.mxu0 0
  %309 = vmatpush.bf16.msra.mxu0 0
  %310 = vmatpush.bf16.msra.mxu0 0
  %311 = vmatpush.bf16.msra.mxu0 0
  %312 = vmatpush.bf16.msra.mxu0 %v305
  %313 = vmatpush.bf16.msra.mxu0 %v300
  %314 = vmatpush.bf16.msra.mxu0 %v299
  %315 = vmatmul.bf16.gmra.mxu0 %v151
  %v316 = vpop.f32.mrf.mxu0
  %v317 = vadd.f32 %v132, %v316
  %v318 = vpop.f32.mrf.mxu0
  %319 = vdwg.mxu0
  %vm320 = vcmp.gt.f32.partialorder %v317, 0.0
  %v321 = vmul.f32 %v317, 0.1
  %v322 = vsel %vm320, %v317, %v321
  %s323 = scalar_lea.vmem %s3, 2
  %v324 = vld [vmem:[%s323] sm:$0x1]
  %v326 = vperm.slane %v324, 0
  %v328 = vmul.f32 %v322, %v326
  %s329 = scalar_lea.vmem %s15, 16
  %v330 = vld [vmem:[%s329] sm:$0xf]
  %v331 = vld [vmem:[%s329 + $0x4] sm:$0xf]
  %v332 = vpack.c.bf16 %v328, %v328
  %v335 = vunpack.c.l.b16 %v330
  %v336 = vunpack.c.l.b16 %v331
  %v337 = vpack.c.b16 %v336, %v335
  %v339 = vsel %vm236, %v337, 0
  %v342 = vsel %vm240, %v332, 0
  %344 = vmatpush.bf16.msra.mxu0 0
  %345 = vmatpush.bf16.msra.mxu0 0
  %346 = vmatpush.bf16.msra.mxu0 0
  %347 = vmatpush.bf16.msra.mxu0 0
  %348 = vmatpush.bf16.msra.mxu0 0
  %349 = vmatpush.bf16.msra.mxu0 0
  %350 = vmatpush.bf16.msra.mxu0 0
  %351 = vmatpush.bf16.msra.mxu0 %v342
  %352 = vmatmul.bf16.gmra.mxu0 %v339
  %v353 = vpop.f32.mrf.mxu0
  %v354 = vadd.f32 0.0, %v353
  %v355 = vpop.f32.mrf.mxu0
  %v356 = vadd.f32 0.0, %v355
  %357 = vdwg.mxu0
  %v358 = vadd.f32 %v279, %v354
  %v359 = vadd.f32 %v281, %v356
  %s360 = scalar_lea.vmem %s1, 60
  %v361 = vld [vmem:[%s360] sm:$0xf]
  %v362 = vld [vmem:[%s360 + $0x4] sm:$0xf]
  %v363 = vld [vmem:[%s360 + $0x8] sm:$0xf]
  %v364 = vld [vmem:[%s360 + $0xc] sm:$0xf]
  %v365 = vld [vmem:[%s360 + $0x10] sm:$0x3]
  %v371 = vunpack.c.l.b16 %v361
  %v372 = vunpack.c.l.b16 %v362
  %v373 = vunpack.c.l.b16 %v363
  %v374 = vunpack.c.l.b16 %v364
  %v375 = vunpack.c.l.b16 %v365
  %v376 = vpack.c.b16 %v372, %v371
  %v377 = vpack.c.b16 %v374, %v373
  %v378 = vpack.c.b16 %v375, %v375
  %v382 = vsel %vm153, %v378, 0
  %384 = vmatpush.bf16.msra.mxu0 0
  %385 = vmatpush.bf16.msra.mxu0 0
  %386 = vmatpush.bf16.msra.mxu0 0
  %387 = vmatpush.bf16.msra.mxu0 0
  %388 = vmatpush.bf16.msra.mxu0 0
  %389 = vmatpush.bf16.msra.mxu0 %v382
  %390 = vmatpush.bf16.msra.mxu0 %v377
  %391 = vmatpush.bf16.msra.mxu0 %v376
  %392 = vmatmul.bf16.gmra.mxu0 %v151
  %v393 = vpop.f32.mrf.mxu0
  %v394 = vadd.f32 %v132, %v393
  %v395 = vpop.f32.mrf.mxu0
  %396 = vdwg.mxu0
  %vm397 = vcmp.gt.f32.partialorder %v394, 0.0
  %v398 = vmul.f32 %v394, 0.1
  %v399 = vsel %vm397, %v394, %v398
  %s400 = scalar_lea.vmem %s3, 3
  %v401 = vld [vmem:[%s400] sm:$0x1]
  %v403 = vperm.slane %v401, 0
  %v405 = vmul.f32 %v399, %v403
  %s406 = scalar_lea.vmem %s15, 24
  %v407 = vld [vmem:[%s406] sm:$0xf]
  %v408 = vld [vmem:[%s406 + $0x4] sm:$0xf]
  %v409 = vpack.c.bf16 %v405, %v405
  %v412 = vunpack.c.l.b16 %v407
  %v413 = vunpack.c.l.b16 %v408
  %v414 = vpack.c.b16 %v413, %v412
  %v416 = vsel %vm236, %v414, 0
  %v419 = vsel %vm240, %v409, 0
  %421 = vmatpush.bf16.msra.mxu0 0
  %422 = vmatpush.bf16.msra.mxu0 0
  %423 = vmatpush.bf16.msra.mxu0 0
  %424 = vmatpush.bf16.msra.mxu0 0
  %425 = vmatpush.bf16.msra.mxu0 0
  %426 = vmatpush.bf16.msra.mxu0 0
  %427 = vmatpush.bf16.msra.mxu0 0
  %428 = vmatpush.bf16.msra.mxu0 %v419
  %429 = vmatmul.bf16.gmra.mxu0 %v416
  %v430 = vpop.f32.mrf.mxu0
  %v431 = vadd.f32 0.0, %v430
  %v432 = vpop.f32.mrf.mxu0
  %v433 = vadd.f32 0.0, %v432
  %434 = vdwg.mxu0
  %v435 = vadd.f32 %v358, %v431
  %v436 = vadd.f32 %v359, %v433
  %s437 = scalar_lea.vmem %s1, 80
  %v438 = vld [vmem:[%s437] sm:$0xf]
  %v439 = vld [vmem:[%s437 + $0x4] sm:$0xf]
  %v440 = vld [vmem:[%s437 + $0x8] sm:$0xf]
  %v441 = vld [vmem:[%s437 + $0xc] sm:$0xf]
  %v442 = vld [vmem:[%s437 + $0x10] sm:$0x3]
  %v448 = vunpack.c.l.b16 %v438
  %v449 = vunpack.c.l.b16 %v439
  %v450 = vunpack.c.l.b16 %v440
  %v451 = vunpack.c.l.b16 %v441
  %v452 = vunpack.c.l.b16 %v442
  %v453 = vpack.c.b16 %v449, %v448
  %v454 = vpack.c.b16 %v451, %v450
  %v455 = vpack.c.b16 %v452, %v452
  %v459 = vsel %vm153, %v455, 0
  %461 = vmatpush.bf16.msra.mxu0 0
  %462 = vmatpush.bf16.msra.mxu0 0
  %463 = vmatpush.bf16.msra.mxu0 0
  %464 = vmatpush.bf16.msra.mxu0 0
  %465 = vmatpush.bf16.msra.mxu0 0
  %466 = vmatpush.bf16.msra.mxu0 %v459
  %467 = vmatpush.bf16.msra.mxu0 %v454
  %468 = vmatpush.bf16.msra.mxu0 %v453
  %469 = vmatmul.bf16.gmra.mxu0 %v151
  %v470 = vpop.f32.mrf.mxu0
  %v471 = vadd.f32 %v132, %v470
  %v472 = vpop.f32.mrf.mxu0
  %473 = vdwg.mxu0
  %vm474 = vcmp.gt.f32.partialorder %v471, 0.0
  %v475 = vmul.f32 %v471, 0.1
  %v476 = vsel %vm474, %v471, %v475
  %s477 = scalar_lea.vmem %s3, 4
  %v478 = vld [vmem:[%s477] sm:$0x1]
  %v480 = vperm.slane %v478, 0
  %v482 = vmul.f32 %v476, %v480
  %s483 = scalar_lea.vmem %s15, 32
  %v484 = vld [vmem:[%s483] sm:$0xf]
  %v485 = vld [vmem:[%s483 + $0x4] sm:$0xf]
  %v486 = vpack.c.bf16 %v482, %v482
  %v489 = vunpack.c.l.b16 %v484
  %v490 = vunpack.c.l.b16 %v485
  %v491 = vpack.c.b16 %v490, %v489
  %v493 = vsel %vm236, %v491, 0
  %v496 = vsel %vm240, %v486, 0
  %498 = vmatpush.bf16.msra.mxu0 0
  %499 = vmatpush.bf16.msra.mxu0 0
  %500 = vmatpush.bf16.msra.mxu0 0
  %501 = vmatpush.bf16.msra.mxu0 0
  %502 = vmatpush.bf16.msra.mxu0 0
  %503 = vmatpush.bf16.msra.mxu0 0
  %504 = vmatpush.bf16.msra.mxu0 0
  %505 = vmatpush.bf16.msra.mxu0 %v496
  %506 = vmatmul.bf16.gmra.mxu0 %v493
  %v507 = vpop.f32.mrf.mxu0
  %v508 = vadd.f32 0.0, %v507
  %v509 = vpop.f32.mrf.mxu0
  %v510 = vadd.f32 0.0, %v509
  %511 = vdwg.mxu0
  %v512 = vadd.f32 %v435, %v508
  %v513 = vadd.f32 %v436, %v510
  %s514 = scalar_lea.vmem %s1, 100
  %v515 = vld [vmem:[%s514] sm:$0xf]
  %v516 = vld [vmem:[%s514 + $0x4] sm:$0xf]
  %v517 = vld [vmem:[%s514 + $0x8] sm:$0xf]
  %v518 = vld [vmem:[%s514 + $0xc] sm:$0xf]
  %v519 = vld [vmem:[%s514 + $0x10] sm:$0x3]
  %v525 = vunpack.c.l.b16 %v515
  %v526 = vunpack.c.l.b16 %v516
  %v527 = vunpack.c.l.b16 %v517
  %v528 = vunpack.c.l.b16 %v518
  %v529 = vunpack.c.l.b16 %v519
  %v530 = vpack.c.b16 %v526, %v525
  %v531 = vpack.c.b16 %v528, %v527
  %v532 = vpack.c.b16 %v529, %v529
  %v536 = vsel %vm153, %v532, 0
  %538 = vmatpush.bf16.msra.mxu0 0
  %539 = vmatpush.bf16.msra.mxu0 0
  %540 = vmatpush.bf16.msra.mxu0 0
  %541 = vmatpush.bf16.msra.mxu0 0
  %542 = vmatpush.bf16.msra.mxu0 0
  %543 = vmatpush.bf16.msra.mxu0 %v536
  %544 = vmatpush.bf16.msra.mxu0 %v531
  %545 = vmatpush.bf16.msra.mxu0 %v530
  %546 = vmatmul.bf16.gmra.mxu0 %v151
  %v547 = vpop.f32.mrf.mxu0
  %v548 = vadd.f32 %v132, %v547
  %v549 = vpop.f32.mrf.mxu0
  %550 = vdwg.mxu0
  %vm551 = vcmp.gt.f32.partialorder %v548, 0.0
  %v552 = vmul.f32 %v548, 0.1
  %v553 = vsel %vm551, %v548, %v552
  %s554 = scalar_lea.vmem %s3, 5
  %v555 = vld [vmem:[%s554] sm:$0x1]
  %v557 = vperm.slane %v555, 0
  %v559 = vmul.f32 %v553, %v557
  %s560 = scalar_lea.vmem %s15, 40
  %v561 = vld [vmem:[%s560] sm:$0xf]
  %v562 = vld [vmem:[%s560 + $0x4] sm:$0xf]
  %v563 = vpack.c.bf16 %v559, %v559
  %v566 = vunpack.c.l.b16 %v561
  %v567 = vunpack.c.l.b16 %v562
  %v568 = vpack.c.b16 %v567, %v566
  %v570 = vsel %vm236, %v568, 0
  %v573 = vsel %vm240, %v563, 0
  %575 = vmatpush.bf16.msra.mxu0 0
  %576 = vmatpush.bf16.msra.mxu0 0
  %577 = vmatpush.bf16.msra.mxu0 0
  %578 = vmatpush.bf16.msra.mxu0 0
  %579 = vmatpush.bf16.msra.mxu0 0
  %580 = vmatpush.bf16.msra.mxu0 0
  %581 = vmatpush.bf16.msra.mxu0 0
  %582 = vmatpush.bf16.msra.mxu0 %v573
  %583 = vmatmul.bf16.gmra.mxu0 %v570
  %v584 = vpop.f32.mrf.mxu0
  %v585 = vadd.f32 0.0, %v584
  %v586 = vpop.f32.mrf.mxu0
  %v587 = vadd.f32 0.0, %v586
  %588 = vdwg.mxu0
  %v589 = vadd.f32 %v512, %v585
  %v590 = vadd.f32 %v513, %v587
  %s591 = scalar_lea.vmem %s1, 120
  %v592 = vld [vmem:[%s591] sm:$0xf]
  %v593 = vld [vmem:[%s591 + $0x4] sm:$0xf]
  %v594 = vld [vmem:[%s591 + $0x8] sm:$0xf]
  %v595 = vld [vmem:[%s591 + $0xc] sm:$0xf]
  %v596 = vld [vmem:[%s591 + $0x10] sm:$0x3]
  %v602 = vunpack.c.l.b16 %v592
  %v603 = vunpack.c.l.b16 %v593
  %v604 = vunpack.c.l.b16 %v594
  %v605 = vunpack.c.l.b16 %v595
  %v606 = vunpack.c.l.b16 %v596
  %v607 = vpack.c.b16 %v603, %v602
  %v608 = vpack.c.b16 %v605, %v604
  %v609 = vpack.c.b16 %v606, %v606
  %v613 = vsel %vm153, %v609, 0
  %615 = vmatpush.bf16.msra.mxu0 0
  %616 = vmatpush.bf16.msra.mxu0 0
  %617 = vmatpush.bf16.msra.mxu0 0
  %618 = vmatpush.bf16.msra.mxu0 0
  %619 = vmatpush.bf16.msra.mxu0 0
  %620 = vmatpush.bf16.msra.mxu0 %v613
  %621 = vmatpush.bf16.msra.mxu0 %v608
  %622 = vmatpush.bf16.msra.mxu0 %v607
  %623 = vmatmul.bf16.gmra.mxu0 %v151
  %v624 = vpop.f32.mrf.mxu0
  %v625 = vadd.f32 %v132, %v624
  %v626 = vpop.f32.mrf.mxu0
  %627 = vdwg.mxu0
  %vm628 = vcmp.gt.f32.partialorder %v625, 0.0
  %v629 = vmul.f32 %v625, 0.1
  %v630 = vsel %vm628, %v625, %v629
  %s631 = scalar_lea.vmem %s3, 6
  %v632 = vld [vmem:[%s631] sm:$0x1]
  %v634 = vperm.slane %v632, 0
  %v636 = vmul.f32 %v630, %v634
  %s637 = scalar_lea.vmem %s15, 48
  %v638 = vld [vmem:[%s637] sm:$0xf]
  %v639 = vld [vmem:[%s637 + $0x4] sm:$0xf]
  %v640 = vpack.c.bf16 %v636, %v636
  %v643 = vunpack.c.l.b16 %v638
  %v644 = vunpack.c.l.b16 %v639
  %v645 = vpack.c.b16 %v644, %v643
  %v647 = vsel %vm236, %v645, 0
  %v650 = vsel %vm240, %v640, 0
  %652 = vmatpush.bf16.msra.mxu0 0
  %653 = vmatpush.bf16.msra.mxu0 0
  %654 = vmatpush.bf16.msra.mxu0 0
  %655 = vmatpush.bf16.msra.mxu0 0
  %656 = vmatpush.bf16.msra.mxu0 0
  %657 = vmatpush.bf16.msra.mxu0 0
  %658 = vmatpush.bf16.msra.mxu0 0
  %659 = vmatpush.bf16.msra.mxu0 %v650
  %660 = vmatmul.bf16.gmra.mxu0 %v647
  %v661 = vpop.f32.mrf.mxu0
  %v662 = vadd.f32 0.0, %v661
  %v663 = vpop.f32.mrf.mxu0
  %v664 = vadd.f32 0.0, %v663
  %665 = vdwg.mxu0
  %v666 = vadd.f32 %v589, %v662
  %v667 = vadd.f32 %v590, %v664
  %s668 = scalar_lea.vmem %s1, 140
  %v669 = vld [vmem:[%s668] sm:$0xf]
  %v670 = vld [vmem:[%s668 + $0x4] sm:$0xf]
  %v671 = vld [vmem:[%s668 + $0x8] sm:$0xf]
  %v672 = vld [vmem:[%s668 + $0xc] sm:$0xf]
  %v673 = vld [vmem:[%s668 + $0x10] sm:$0x3]
  %v679 = vunpack.c.l.b16 %v669
  %v680 = vunpack.c.l.b16 %v670
  %v681 = vunpack.c.l.b16 %v671
  %v682 = vunpack.c.l.b16 %v672
  %v683 = vunpack.c.l.b16 %v673
  %v684 = vpack.c.b16 %v680, %v679
  %v685 = vpack.c.b16 %v682, %v681
  %v686 = vpack.c.b16 %v683, %v683
  %v690 = vsel %vm153, %v686, 0
  %692 = vmatpush.bf16.msra.mxu0 0
  %693 = vmatpush.bf16.msra.mxu0 0
  %694 = vmatpush.bf16.msra.mxu0 0
  %695 = vmatpush.bf16.msra.mxu0 0
  %696 = vmatpush.bf16.msra.mxu0 0
  %697 = vmatpush.bf16.msra.mxu0 %v690
  %698 = vmatpush.bf16.msra.mxu0 %v685
  %699 = vmatpush.bf16.msra.mxu0 %v684
  %700 = vmatmul.bf16.gmra.mxu0 %v151
  %v701 = vpop.f32.mrf.mxu0
  %v702 = vadd.f32 %v132, %v701
  %v703 = vpop.f32.mrf.mxu0
  %704 = vdwg.mxu0
  %vm705 = vcmp.gt.f32.partialorder %v702, 0.0
  %v706 = vmul.f32 %v702, 0.1
  %v707 = vsel %vm705, %v702, %v706
  %s708 = scalar_lea.vmem %s3, 7
  %v709 = vld [vmem:[%s708] sm:$0x1]
  %v711 = vperm.slane %v709, 0
  %v713 = vmul.f32 %v707, %v711
  %s714 = scalar_lea.vmem %s15, 56
  %v715 = vld [vmem:[%s714] sm:$0xf]
  %v716 = vld [vmem:[%s714 + $0x4] sm:$0xf]
  %v717 = vpack.c.bf16 %v713, %v713
  %v720 = vunpack.c.l.b16 %v715
  %v721 = vunpack.c.l.b16 %v716
  %v722 = vpack.c.b16 %v721, %v720
  %v724 = vsel %vm236, %v722, 0
  %v727 = vsel %vm240, %v717, 0
  %729 = vmatpush.bf16.msra.mxu0 0
  %730 = vmatpush.bf16.msra.mxu0 0
  %731 = vmatpush.bf16.msra.mxu0 0
  %732 = vmatpush.bf16.msra.mxu0 0
  %733 = vmatpush.bf16.msra.mxu0 0
  %734 = vmatpush.bf16.msra.mxu0 0
  %735 = vmatpush.bf16.msra.mxu0 0
  %736 = vmatpush.bf16.msra.mxu0 %v727
  %737 = vmatmul.bf16.gmra.mxu0 %v724
  %v738 = vpop.f32.mrf.mxu0
  %v739 = vadd.f32 0.0, %v738
  %v740 = vpop.f32.mrf.mxu0
  %v741 = vadd.f32 0.0, %v740
  %742 = vdwg.mxu0
  %v743 = vadd.f32 %v666, %v739
  %v744 = vadd.f32 %v667, %v741
  %s745 = scalar_lea.vmem %s1, 160
  %v746 = vld [vmem:[%s745] sm:$0xf]
  %v747 = vld [vmem:[%s745 + $0x4] sm:$0xf]
  %v748 = vld [vmem:[%s745 + $0x8] sm:$0xf]
  %v749 = vld [vmem:[%s745 + $0xc] sm:$0xf]
  %v750 = vld [vmem:[%s745 + $0x10] sm:$0x3]
  %v756 = vunpack.c.l.b16 %v746
  %v757 = vunpack.c.l.b16 %v747
  %v758 = vunpack.c.l.b16 %v748
  %v759 = vunpack.c.l.b16 %v749
  %v760 = vunpack.c.l.b16 %v750
  %v761 = vpack.c.b16 %v757, %v756
  %v762 = vpack.c.b16 %v759, %v758
  %v763 = vpack.c.b16 %v760, %v760
  %v767 = vsel %vm153, %v763, 0
  %769 = vmatpush.bf16.msra.mxu0 0
  %770 = vmatpush.bf16.msra.mxu0 0
  %771 = vmatpush.bf16.msra.mxu0 0
  %772 = vmatpush.bf16.msra.mxu0 0
  %773 = vmatpush.bf16.msra.mxu0 0
  %774 = vmatpush.bf16.msra.mxu0 %v767
  %775 = vmatpush.bf16.msra.mxu0 %v762
  %776 = vmatpush.bf16.msra.mxu0 %v761
  %777 = vmatmul.bf16.gmra.mxu0 %v151
  %v778 = vpop.f32.mrf.mxu0
  %v779 = vadd.f32 %v132, %v778
  %v780 = vpop.f32.mrf.mxu0
  %781 = vdwg.mxu0
  %vm782 = vcmp.gt.f32.partialorder %v779, 0.0
  %v783 = vmul.f32 %v779, 0.1
  %v784 = vsel %vm782, %v779, %v783
  %s785 = scalar_lea.vmem %s3, 8
  %v786 = vld [vmem:[%s785] sm:$0x1]
  %v788 = vperm.slane %v786, 0
  %v790 = vmul.f32 %v784, %v788
  %s791 = scalar_lea.vmem %s15, 64
  %v792 = vld [vmem:[%s791] sm:$0xf]
  %v793 = vld [vmem:[%s791 + $0x4] sm:$0xf]
  %v794 = vpack.c.bf16 %v790, %v790
  %v797 = vunpack.c.l.b16 %v792
  %v798 = vunpack.c.l.b16 %v793
  %v799 = vpack.c.b16 %v798, %v797
  %v801 = vsel %vm236, %v799, 0
  %v804 = vsel %vm240, %v794, 0
  %806 = vmatpush.bf16.msra.mxu0 0
  %807 = vmatpush.bf16.msra.mxu0 0
  %808 = vmatpush.bf16.msra.mxu0 0
  %809 = vmatpush.bf16.msra.mxu0 0
  %810 = vmatpush.bf16.msra.mxu0 0
  %811 = vmatpush.bf16.msra.mxu0 0
  %812 = vmatpush.bf16.msra.mxu0 0
  %813 = vmatpush.bf16.msra.mxu0 %v804
  %814 = vmatmul.bf16.gmra.mxu0 %v801
  %v815 = vpop.f32.mrf.mxu0
  %v816 = vadd.f32 0.0, %v815
  %v817 = vpop.f32.mrf.mxu0
  %v818 = vadd.f32 0.0, %v817
  %819 = vdwg.mxu0
  %v820 = vadd.f32 %v743, %v816
  %v821 = vadd.f32 %v744, %v818
  %v822 = vld [vmem:[%s17] sm:$0xff]
  %v823 = vld [vmem:[%s17 + $0x8] sm:$0xff]
  %825 = vset.pattern.permute.xlu0 0
  %826 = vperm.xlu0 %825, %v822
  %v827 = vpop.permute.xlu0 %826
  %830 = vset.pattern.permute.xlu0 0
  %831 = vperm.xlu0 %830, %v823
  %v832 = vpop.permute.xlu0 %831
  %v834 = vadd.f32 %v820, %v827
  %v835 = vadd.f32 %v821, %v832
  %v836 = vmin.f32 %v834, 20.0
  %v837 = vmin.f32 %v835, 20.0
  %v838 = vmul.f32 %v836, 1.442695
  %v839 = vpow.pop %v838
  %v840 = vmul.f32 %v837, 1.442695
  %v841 = vpow.pop %v840
  %v842 = vadd.f32 %v839, 1.0
  %v843 = vadd.f32 %v841, 1.0
  %v844 = vmul.f32 %v842, %v842
  %v845 = vmul.f32 %v843, %v843
  %v846 = vsub.f32 %v844, 1.0
  %v847 = vsub.f32 %v845, 1.0
  %v848 = vmul.f32 %v834, %v846
  %v849 = vmul.f32 %v835, %v847
  %v850 = vadd.f32 %v844, 1.0
  %v851 = vadd.f32 %v845, 1.0
  %v852 = vrcp.pop %v850
  %v853 = vmul.f32 %v850, %v852
  %v854 = vsub.f32 1.0, %v853
  %v855 = vmul.f32 %v852, %v854
  %v856 = vadd.f32 %v852, %v855
  %vm857 = vweird.f32 %v850
  %vm858 = vweird.f32 %v852
  %vm859 = vmor %vm857, %vm858
  %v860 = vsel %vm859, %v852, %v856
  %v861 = vand.u32 2147483647, %v850
  %vm862 = vcmp.eq.f32.partialorder %v861, 8.507059e+37
  %v863 = vand.u32 %v850, 2147483648
  %v864 = vor.u32 1.1754944e-38, %v863
  %v865 = vsel %vm862, %v864, %v860
  %v866 = vrcp.pop %v851
  %v867 = vmul.f32 %v851, %v866
  %v868 = vsub.f32 1.0, %v867
  %v869 = vmul.f32 %v866, %v868
  %v870 = vadd.f32 %v866, %v869
  %vm871 = vweird.f32 %v851
  %vm872 = vweird.f32 %v866
  %vm873 = vmor %vm871, %vm872
  %v874 = vsel %vm873, %v866, %v870
  %v875 = vand.u32 2147483647, %v851
  %vm876 = vcmp.eq.f32.partialorder %v875, 8.507059e+37
  %v877 = vand.u32 %v851, 2147483648
  %v878 = vor.u32 1.1754944e-38, %v877
  %v879 = vsel %vm876, %v878, %v874
  %v880 = vmul.f32 %v848, %v865
  %v881 = vmul.f32 %v849, %v879
  %v882 = vld [vmem:[%s19] sm:$0xf]
  %v883 = vld [vmem:[%s19 + $0x4] sm:$0xf]
  %v884 = vpack.c.bf16 %v881, %v880
  %v885 = vld [vmem:[%s21] sm:$0xff]
  %v886 = vld [vmem:[%s21 + $0x8] sm:$0xff]
  %888 = vset.pattern.permute.xlu0 0
  %889 = vperm.xlu0 %888, %v885
  %v890 = vpop.permute.xlu0 %889
  %893 = vset.pattern.permute.xlu0 0
  %894 = vperm.xlu0 %893, %v886
  %v895 = vpop.permute.xlu0 %894
  %v899 = vunpack.c.l.b16 %v882
  %v900 = vunpack.c.l.b16 %v883
  %v901 = vpack.c.b16 %v900, %v899
  %vm902 = vcmask 130048
  %v904 = vsel %vm902, %v901, 0
  %906 = vmatpush.bf16.msra.mxu0 0
  %907 = vmatpush.bf16.msra.mxu0 0
  %908 = vmatpush.bf16.msra.mxu0 0
  %909 = vmatpush.bf16.msra.mxu0 0
  %910 = vmatpush.bf16.msra.mxu0 0
  %911 = vmatpush.bf16.msra.mxu0 0
  %912 = vmatpush.bf16.msra.mxu0 0
  %913 = vmatpush.bf16.msra.mxu0 %v884
  %914 = vmatmul.bf16.gmra.mxu0 %v904
  %v915 = vpop.f32.mrf.mxu0
  %v916 = vadd.f32 %v890, %v915
  %v917 = vpop.f32.mrf.mxu0
  %v918 = vadd.f32 %v895, %v917
  %919 = vdwg.mxu0
  %vm920 = vcmp.gt.f32.partialorder %v916, 0.0
  %vm921 = vcmp.gt.f32.partialorder %v918, 0.0
  %v922 = vmul.f32 %v916, 0.1
  %v923 = vmul.f32 %v918, 0.1
  %v924 = vsel %vm920, %v916, %v922
  %v925 = vsel %vm921, %v918, %v923
  %v926 = vadd.f32 %v880, %v924
  %v927 = vadd.f32 %v881, %v925
  %v928 = vld [vmem:[%s23] sm:$0xf]
  %v929 = vld [vmem:[%s23 + $0x4] sm:$0xf]
  %v930 = vld [vmem:[%s23 + $0x8] sm:$0x1]
  %v931 = vpack.c.bf16 %v927, %v926
  %v932 = vld [vmem:[%s25] sm:$0xff]
  %v933 = vld [vmem:[%s25 + $0x8] sm:$0xff]
  %v934 = vld [vmem:[%s25 + $0x10] sm:$0x3]
  %936 = vset.pattern.permute.xlu0 0
  %937 = vperm.xlu0 %936, %v932
  %v938 = vpop.permute.xlu0 %937
  %941 = vset.pattern.permute.xlu0 0
  %942 = vperm.xlu0 %941, %v933
  %v943 = vpop.permute.xlu0 %942
  %946 = vset.pattern.permute.xlu0 0
  %947 = vperm.xlu0 %946, %v934
  %v948 = vpop.permute.xlu0 %947
  %v953 = vunpack.c.l.b16 %v928
  %v954 = vunpack.c.l.b16 %v929
  %v955 = vunpack.c.l.b16 %v930
  %v956 = vpack.c.b16 %v954, %v953
  %v957 = vpack.c.b16 %v955, %v955
  %v959 = vsel %vm902, %v956, 0
  %v962 = vsel %vm902, %v957, 0
  %964 = vmatpush.bf16.msra.mxu0 0
  %965 = vmatpush.bf16.msra.mxu0 0
  %966 = vmatpush.bf16.msra.mxu0 0
  %967 = vmatpush.bf16.msra.mxu0 0
  %968 = vmatpush.bf16.msra.mxu0 0
  %969 = vmatpush.bf16.msra.mxu0 0
  %970 = vmatpush.bf16.msra.mxu0 0
  %971 = vmatpush.bf16.msra.mxu0 %v931
  %972 = vmatmul.bf16.gmra.mxu0 %v959
  %v973 = vpop.f32.mrf.mxu0
  %v974 = vadd.f32 %v938, %v973
  %v975 = vpop.f32.mrf.mxu0
  %v976 = vadd.f32 %v943, %v975
  %977 = vmatmul.bf16.gmra.mxu0 %v962
  %v978 = vpop.f32.mrf.mxu0
  %v979 = vadd.f32 %v948, %v978
  %v980 = vpop.f32.mrf.mxu0
  %981 = vdwg.mxu0
  %v982 = vld [vmem:[%s41] sm:$0xff]
  %v983 = vld [vmem:[%s41 + $0x8] sm:$0xff]
  %v984 = vld [vmem:[%s41 + $0x10] sm:$0x3]
  %v985 = vsub.f32 0.0, %v974
  %v986 = vsub.f32 0.0, %v976
  %v987 = vsub.f32 0.0, %v979
  %v988 = vmul.f32 %v985, 1.442695
  %v989 = vpow.pop %v988
  %v990 = vmul.f32 %v986, 1.442695
  %v991 = vpow.pop %v990
  %v992 = vmul.f32 %v987, 1.442695
  %v993 = vpow.pop %v992
  %v994 = vadd.f32 %v989, 1.0
  %v995 = vadd.f32 %v991, 1.0
  %v996 = vadd.f32 %v993, 1.0
  %v997 = vrcp.pop %v994
  %v998 = vmul.f32 %v994, %v997
  %v999 = vsub.f32 1.0, %v998
  %v1000 = vmul.f32 %v997, %v999
  %v1001 = vadd.f32 %v997, %v1000
  %vm1002 = vweird.f32 %v994
  %vm1003 = vweird.f32 %v997
  %vm1004 = vmor %vm1002, %vm1003
  %v1005 = vsel %vm1004, %v997, %v1001
  %v1006 = vand.u32 2147483647, %v994
  %vm1007 = vcmp.eq.f32.partialorder %v1006, 8.507059e+37
  %v1008 = vand.u32 %v994, 2147483648
  %v1009 = vor.u32 1.1754944e-38, %v1008
  %v1010 = vsel %vm1007, %v1009, %v1005
  %v1011 = vrcp.pop %v995
  %v1012 = vmul.f32 %v995, %v1011
  %v1013 = vsub.f32 1.0, %v1012
  %v1014 = vmul.f32 %v1011, %v1013
  %v1015 = vadd.f32 %v1011, %v1014
  %vm1016 = vweird.f32 %v995
  %vm1017 = vweird.f32 %v1011
  %vm1018 = vmor %vm1016, %vm1017
  %v1019 = vsel %vm1018, %v1011, %v1015
  %v1020 = vand.u32 2147483647, %v995
  %vm1021 = vcmp.eq.f32.partialorder %v1020, 8.507059e+37
  %v1022 = vand.u32 %v995, 2147483648
  %v1023 = vor.u32 1.1754944e-38, %v1022
  %v1024 = vsel %vm1021, %v1023, %v1019
  %v1025 = vrcp.pop %v996
  %v1026 = vmul.f32 %v996, %v1025
  %v1027 = vsub.f32 1.0, %v1026
  %v1028 = vmul.f32 %v1025, %v1027
  %v1029 = vadd.f32 %v1025, %v1028
  %vm1030 = vweird.f32 %v996
  %vm1031 = vweird.f32 %v1025
  %vm1032 = vmor %vm1030, %vm1031
  %v1033 = vsel %vm1032, %v1025, %v1029
  %v1034 = vand.u32 2147483647, %v996
  %vm1035 = vcmp.eq.f32.partialorder %v1034, 8.507059e+37
  %v1036 = vand.u32 %v996, 2147483648
  %v1037 = vor.u32 1.1754944e-38, %v1036
  %v1038 = vsel %vm1035, %v1037, %v1033
  %1040 = vset.pattern.permute.xlu0 0
  %1041 = vperm.xlu0 %1040, %v982
  %v1042 = vpop.permute.xlu0 %1041
  %1045 = vset.pattern.permute.xlu0 0
  %1046 = vperm.xlu0 %1045, %v983
  %v1047 = vpop.permute.xlu0 %1046
  %1050 = vset.pattern.permute.xlu0 0
  %1051 = vperm.xlu0 %1050, %v984
  %v1052 = vpop.permute.xlu0 %1051
  %v1054 = vmul.f32 %v1042, %v1010
  %v1055 = vmul.f32 %v1047, %v1024
  %v1056 = vmul.f32 %v1052, %v1038
  %v1057 = vld [vmem:[%s45] sm:$0xff]
  %v1058 = vld [vmem:[%s45 + $0x8] sm:$0xff]
  %v1059 = vld [vmem:[%s45 + $0x10] sm:$0x3]
  %v1060 = vld [vmem:[%s43] sm:$0xff]
  %v1061 = vld [vmem:[%s43 + $0x8] sm:$0xff]
  %v1062 = vld [vmem:[%s43 + $0x10] sm:$0x3]
  %1064 = vset.pattern.permute.xlu0 0
  %1065 = vperm.xlu0 %1064, %v1060
  %v1066 = vpop.permute.xlu0 %1065
  %1069 = vset.pattern.permute.xlu0 0
  %1070 = vperm.xlu0 %1069, %v1061
  %v1071 = vpop.permute.xlu0 %1070
  %1074 = vset.pattern.permute.xlu0 0
  %1075 = vperm.xlu0 %1074, %v1062
  %v1076 = vpop.permute.xlu0 %1075
  %v1078 = vmul.f32 %v974, %v1066
  %v1079 = vmul.f32 %v976, %v1071
  %v1080 = vmul.f32 %v979, %v1076
  %v1081 = vmul.f32 %v1078, 1.442695
  %v1082 = vpow.pop %v1081
  %v1083 = vmul.f32 %v1079, 1.442695
  %v1084 = vpow.pop %v1083
  %v1085 = vmul.f32 %v1080, 1.442695
  %v1086 = vpow.pop %v1085
  %1088 = vset.pattern.permute.xlu0 0
  %1089 = vperm.xlu0 %1088, %v1057
  %v1090 = vpop.permute.xlu0 %1089
  %1093 = vset.pattern.permute.xlu0 0
  %1094 = vperm.xlu0 %1093, %v1058
  %v1095 = vpop.permute.xlu0 %1094
  %1098 = vset.pattern.permute.xlu0 0
  %1099 = vperm.xlu0 %1098, %v1059
  %v1100 = vpop.permute.xlu0 %1099
  %v1102 = vmul.f32 %v1090, %v1082
  %v1103 = vmul.f32 %v1095, %v1084
  %v1104 = vmul.f32 %v1100, %v1086
  %v1105 = vadd.f32 %v1054, %v1102
  %v1106 = vadd.f32 %v1055, %v1103
  %v1107 = vadd.f32 %v1056, %v1104
  %v1108 = vld [vmem:[%s47] sm:$0xff]
  %v1109 = vld [vmem:[%s47 + $0x8] sm:$0xff]
  %v1110 = vld [vmem:[%s47 + $0x10] sm:$0x3]
  %v1111 = vadd.f32 %v1105, %v1108
  %v1112 = vadd.f32 %v1106, %v1109
  %v1113 = vadd.f32 %v1107, %v1110
  %1114 = vst [vmem:[%s57] sm:$0xff] %v1111
  %1115 = vst [vmem:[%s57 + $0x8] sm:$0xff] %v1112
  %1116 = vst [vmem:[%s57 + $0x10] sm:$0x3] %v1113
  %v1117 = vld [vmem:[%s27] sm:$0xf]
  %v1118 = vld [vmem:[%s29] sm:$0xff]
  %1120 = vset.pattern.permute.xlu0 0
  %1121 = vperm.xlu0 %1120, %v1118
  %v1122 = vpop.permute.xlu0 %1121
  %v1125 = vsel %vm902, %v1117, 0
  %1127 = vmatpush.bf16.msra.mxu0 0
  %1128 = vmatpush.bf16.msra.mxu0 0
  %1129 = vmatpush.bf16.msra.mxu0 0
  %1130 = vmatpush.bf16.msra.mxu0 0
  %1131 = vmatpush.bf16.msra.mxu0 0
  %1132 = vmatpush.bf16.msra.mxu0 0
  %1133 = vmatpush.bf16.msra.mxu0 0
  %1134 = vmatpush.bf16.msra.mxu0 %v931
  %1135 = vmatmul.bf16.gmra.mxu0 %v1125
  %v1136 = vpop.f32.mrf.mxu0
  %v1137 = vadd.f32 %v1122, %v1136
  %v1138 = vpop.f32.mrf.mxu0
  %1139 = vdwg.mxu0
  %vm1140 = vcmp.gt.f32.partialorder %v1137, 0.0
  %v1141 = vmul.f32 %v1137, 0.1
  %v1142 = vsel %vm1140, %v1137, %v1141
  %v1143 = vpack.c.bf16 %v1142, %v1142
  %v1144 = vld [vmem:[%s9] sm:$0xff]
  %v1145 = vld [vmem:[%s9 + $0x8] sm:$0xff]
  %v1146 = vld [vmem:[%s9 + $0x10] sm:$0xff]
  %v1147 = vld [vmem:[%s9 + $0x18] sm:$0xff]
  %v1148 = vld [vmem:[%s9 + $0x20] sm:$0xff]
  %v1149 = vld [vmem:[%s9 + $0x28] sm:$0xff]
  %v1150 = vld [vmem:[%s9 + $0x30] sm:$0xff]
  %v1151 = vld [vmem:[%s9 + $0x38] sm:$0xff]
  %v1152 = vld [vmem:[%s9 + $0x40] sm:$0xff]
  %v1153 = vld [vmem:[%s9 + $0x48] sm:$0xff]
  %v1154 = vld [vmem:[%s9 + $0x50] sm:$0xff]
  %v1155 = vld [vmem:[%s9 + $0x58] sm:$0xff]
  %v1156 = vld [vmem:[%s9 + $0x60] sm:$0xff]
  %v1157 = vld [vmem:[%s9 + $0x68] sm:$0xff]
  %v1158 = vld [vmem:[%s9 + $0x70] sm:$0xff]
  %v1159 = vld [vmem:[%s9 + $0x78] sm:$0xff]
  %v1160 = vld [vmem:[%s9 + $0x80] sm:$0xff]
  %v1161 = vld [vmem:[%s9 + $0x88] sm:$0xff]
  %v1162 = vld [vmem:[%s9 + $0x90] sm:$0xff]
  %v1163 = vld [vmem:[%s9 + $0x98] sm:$0xff]
  %v1164 = vld [vmem:[%s9 + $0xa0] sm:$0xff]
  %v1165 = vld [vmem:[%s9 + $0xa8] sm:$0xff]
  %v1166 = vld [vmem:[%s9 + $0xb0] sm:$0xff]
  %v1167 = vld [vmem:[%s9 + $0xb8] sm:$0xff]
  %v1168 = vld [vmem:[%s9 + $0xc0] sm:$0xff]
  %v1169 = vld [vmem:[%s9 + $0xc8] sm:$0xff]
  %v1170 = vld [vmem:[%s9 + $0xd0] sm:$0xff]
  %v1171 = vld [vmem:[%s9 + $0xd8] sm:$0xff]
  %v1172 = vld [vmem:[%s9 + $0xe0] sm:$0xff]
  %v1173 = vld [vmem:[%s9 + $0xe8] sm:$0xff]
  %v1174 = vld [vmem:[%s9 + $0xf0] sm:$0xff]
  %v1175 = vld [vmem:[%s9 + $0xf8] sm:$0xff]
  %v1208 = vunpack.c.l.b16 %v1144
  %v1209 = vunpack.c.h.b16 %v1144
  %v1210 = vunpack.c.l.b16 %v1145
  %v1211 = vunpack.c.h.b16 %v1145
  %v1212 = vunpack.c.l.b16 %v1146
  %v1213 = vunpack.c.h.b16 %v1146
  %v1214 = vunpack.c.l.b16 %v1147
  %v1215 = vunpack.c.h.b16 %v1147
  %v1216 = vunpack.c.l.b16 %v1148
  %v1217 = vunpack.c.h.b16 %v1148
  %v1218 = vunpack.c.l.b16 %v1149
  %v1219 = vunpack.c.h.b16 %v1149
  %v1220 = vunpack.c.l.b16 %v1150
  %v1221 = vunpack.c.h.b16 %v1150
  %v1222 = vunpack.c.l.b16 %v1151
  %v1223 = vunpack.c.h.b16 %v1151
  %v1224 = vunpack.c.l.b16 %v1152
  %v1225 = vunpack.c.h.b16 %v1152
  %v1226 = vunpack.c.l.b16 %v1153
  %v1227 = vunpack.c.h.b16 %v1153
  %v1228 = vunpack.c.l.b16 %v1154
  %v1229 = vunpack.c.h.b16 %v1154
  %v1230 = vunpack.c.l.b16 %v1155
  %v1231 = vunpack.c.h.b16 %v1155
  %v1232 = vunpack.c.l.b16 %v1156
  %v1233 = vunpack.c.h.b16 %v1156
  %v1234 = vunpack.c.l.b16 %v1157
  %v1235 = vunpack.c.h.b16 %v1157
  %v1236 = vunpack.c.l.b16 %v1158
  %v1237 = vunpack.c.h.b16 %v1158
  %v1238 = vunpack.c.l.b16 %v1159
  %v1239 = vunpack.c.h.b16 %v1159
  %v1240 = vunpack.c.l.b16 %v1160
  %v1241 = vunpack.c.h.b16 %v1160
  %v1242 = vunpack.c.l.b16 %v1161
  %v1243 = vunpack.c.h.b16 %v1161
  %v1244 = vunpack.c.l.b16 %v1162
  %v1245 = vunpack.c.h.b16 %v1162
  %v1246 = vunpack.c.l.b16 %v1163
  %v1247 = vunpack.c.h.b16 %v1163
  %v1248 = vunpack.c.l.b16 %v1164
  %v1249 = vunpack.c.h.b16 %v1164
  %v1250 = vunpack.c.l.b16 %v1165
  %v1251 = vunpack.c.h.b16 %v1165
  %v1252 = vunpack.c.l.b16 %v1166
  %v1253 = vunpack.c.h.b16 %v1166
  %v1254 = vunpack.c.l.b16 %v1167
  %v1255 = vunpack.c.h.b16 %v1167
  %v1256 = vunpack.c.l.b16 %v1168
  %v1257 = vunpack.c.h.b16 %v1168
  %v1258 = vunpack.c.l.b16 %v1169
  %v1259 = vunpack.c.h.b16 %v1169
  %v1260 = vunpack.c.l.b16 %v1170
  %v1261 = vunpack.c.h.b16 %v1170
  %v1262 = vunpack.c.l.b16 %v1171
  %v1263 = vunpack.c.h.b16 %v1171
  %v1264 = vunpack.c.l.b16 %v1172
  %v1265 = vunpack.c.h.b16 %v1172
  %v1266 = vunpack.c.l.b16 %v1173
  %v1267 = vunpack.c.h.b16 %v1173
  %v1268 = vunpack.c.l.b16 %v1174
  %v1269 = vunpack.c.h.b16 %v1174
  %v1270 = vunpack.c.l.b16 %v1175
  %v1271 = vunpack.c.h.b16 %v1175
  %v1272 = vpack.c.b16 %v1212, %v1208
  %v1273 = vpack.c.b16 %v1213, %v1209
  %v1274 = vpack.c.b16 %v1214, %v1210
  %v1275 = vpack.c.b16 %v1215, %v1211
  %v1276 = vpack.c.b16 %v1220, %v1216
  %v1277 = vpack.c.b16 %v1221, %v1217
  %v1278 = vpack.c.b16 %v1222, %v1218
  %v1279 = vpack.c.b16 %v1223, %v1219
  %v1280 = vpack.c.b16 %v1228, %v1224
  %v1281 = vpack.c.b16 %v1229, %v1225
  %v1282 = vpack.c.b16 %v1230, %v1226
  %v1283 = vpack.c.b16 %v1231, %v1227
  %v1284 = vpack.c.b16 %v1236, %v1232
  %v1285 = vpack.c.b16 %v1237, %v1233
  %v1286 = vpack.c.b16 %v1238, %v1234
  %v1287 = vpack.c.b16 %v1239, %v1235
  %v1288 = vpack.c.b16 %v1244, %v1240
  %v1289 = vpack.c.b16 %v1245, %v1241
  %v1290 = vpack.c.b16 %v1246, %v1242
  %v1291 = vpack.c.b16 %v1247, %v1243
  %v1292 = vpack.c.b16 %v1252, %v1248
  %v1293 = vpack.c.b16 %v1253, %v1249
  %v1294 = vpack.c.b16 %v1254, %v1250
  %v1295 = vpack.c.b16 %v1255, %v1251
  %v1296 = vpack.c.b16 %v1260, %v1256
  %v1297 = vpack.c.b16 %v1261, %v1257
  %v1298 = vpack.c.b16 %v1262, %v1258
  %v1299 = vpack.c.b16 %v1263, %v1259
  %v1300 = vpack.c.b16 %v1268, %v1264
  %v1301 = vpack.c.b16 %v1269, %v1265
  %v1302 = vpack.c.b16 %v1270, %v1266
  %v1303 = vpack.c.b16 %v1271, %v1267
  %1336 = vmatpush.bf16.msra.mxu0 %v1300
  %1337 = vmatpush.bf16.msra.mxu0 %v1296
  %1338 = vmatpush.bf16.msra.mxu0 %v1292
  %1339 = vmatpush.bf16.msra.mxu0 %v1288
  %1340 = vmatpush.bf16.msra.mxu0 %v1284
  %1341 = vmatpush.bf16.msra.mxu0 %v1280
  %1342 = vmatpush.bf16.msra.mxu0 %v1276
  %1343 = vmatpush.bf16.msra.mxu0 %v1272
  %1344 = vmatmul.bf16.gmra.mxu0 %v1143
  %v1345 = vpop.f32.mrf.mxu0
  %v1346 = vadd.f32 0.0, %v1345
  %v1347 = vpop.f32.mrf.mxu0
  %1348 = vdwg.mxu0
  %1349 = vmatpush.bf16.msra.mxu0 %v1301
  %1350 = vmatpush.bf16.msra.mxu0 %v1297
  %1351 = vmatpush.bf16.msra.mxu0 %v1293
  %1352 = vmatpush.bf16.msra.mxu0 %v1289
  %1353 = vmatpush.bf16.msra.mxu0 %v1285
  %1354 = vmatpush.bf16.msra.mxu0 %v1281
  %1355 = vmatpush.bf16.msra.mxu0 %v1277
  %1356 = vmatpush.bf16.msra.mxu0 %v1273
  %1357 = vmatmul.bf16.gmra.mxu0 %v1143
  %v1358 = vpop.f32.mrf.mxu0
  %v1359 = vadd.f32 0.0, %v1358
  %v1360 = vpop.f32.mrf.mxu0
  %1361 = vdwg.mxu0
  %1362 = vmatpush.bf16.msra.mxu0 %v1302
  %1363 = vmatpush.bf16.msra.mxu0 %v1298
  %1364 = vmatpush.bf16.msra.mxu0 %v1294
  %1365 = vmatpush.bf16.msra.mxu0 %v1290
  %1366 = vmatpush.bf16.msra.mxu0 %v1286
  %1367 = vmatpush.bf16.msra.mxu0 %v1282
  %1368 = vmatpush.bf16.msra.mxu0 %v1278
  %1369 = vmatpush.bf16.msra.mxu0 %v1274
  %1370 = vmatmul.bf16.gmra.mxu0 %v1143
  %v1371 = vpop.f32.mrf.mxu0
  %v1372 = vadd.f32 0.0, %v1371
  %v1373 = vpop.f32.mrf.mxu0
  %1374 = vdwg.mxu0
  %1375 = vmatpush.bf16.msra.mxu0 %v1303
  %1376 = vmatpush.bf16.msra.mxu0 %v1299
  %1377 = vmatpush.bf16.msra.mxu0 %v1295
  %1378 = vmatpush.bf16.msra.mxu0 %v1291
  %1379 = vmatpush.bf16.msra.mxu0 %v1287
  %1380 = vmatpush.bf16.msra.mxu0 %v1283
  %1381 = vmatpush.bf16.msra.mxu0 %v1279
  %1382 = vmatpush.bf16.msra.mxu0 %v1275
  %1383 = vmatmul.bf16.gmra.mxu0 %v1143
  %v1384 = vpop.f32.mrf.mxu0
  %v1385 = vadd.f32 0.0, %v1384
  %v1386 = vpop.f32.mrf.mxu0
  %1387 = vdwg.mxu0
  %v1388 = vld [vmem:[%s5] sm:$0xff]
  %v1389 = vld [vmem:[%s5 + $0x8] sm:$0xff]
  %v1390 = vld [vmem:[%s5 + $0x10] sm:$0xff]
  %v1391 = vld [vmem:[%s5 + $0x18] sm:$0xff]
  %v1392 = vld [vmem:[%s5 + $0x20] sm:$0xff]
  %v1393 = vld [vmem:[%s5 + $0x28] sm:$0xff]
  %v1394 = vld [vmem:[%s5 + $0x30] sm:$0xff]
  %v1395 = vld [vmem:[%s5 + $0x38] sm:$0xff]
  %v1396 = vld [vmem:[%s5 + $0x40] sm:$0x33]
  %v1397 = vld [vmem:[%s5 + $0x48] sm:$0x33]
  %v1408 = vunpack.c.l.b16 %v1388
  %v1409 = vunpack.c.h.b16 %v1388
  %v1410 = vunpack.c.l.b16 %v1389
  %v1411 = vunpack.c.h.b16 %v1389
  %v1412 = vunpack.c.l.b16 %v1390
  %v1413 = vunpack.c.h.b16 %v1390
  %v1414 = vunpack.c.l.b16 %v1391
  %v1415 = vunpack.c.h.b16 %v1391
  %v1416 = vunpack.c.l.b16 %v1392
  %v1417 = vunpack.c.h.b16 %v1392
  %v1418 = vunpack.c.l.b16 %v1393
  %v1419 = vunpack.c.h.b16 %v1393
  %v1420 = vunpack.c.l.b16 %v1394
  %v1421 = vunpack.c.h.b16 %v1394
  %v1422 = vunpack.c.l.b16 %v1395
  %v1423 = vunpack.c.h.b16 %v1395
  %v1424 = vunpack.c.l.b16 %v1396
  %v1425 = vunpack.c.h.b16 %v1396
  %v1426 = vunpack.c.l.b16 %v1397
  %v1427 = vunpack.c.h.b16 %v1397
  %v1428 = vpack.c.b16 %v1412, %v1408
  %v1429 = vpack.c.b16 %v1413, %v1409
  %v1430 = vpack.c.b16 %v1414, %v1410
  %v1431 = vpack.c.b16 %v1415, %v1411
  %v1432 = vpack.c.b16 %v1420, %v1416
  %v1433 = vpack.c.b16 %v1421, %v1417
  %v1434 = vpack.c.b16 %v1422, %v1418
  %v1435 = vpack.c.b16 %v1423, %v1419
  %v1436 = vpack.c.b16 %v1424, %v1424
  %v1437 = vpack.c.b16 %v1425, %v1425
  %v1438 = vpack.c.b16 %v1426, %v1426
  %v1439 = vpack.c.b16 %v1427, %v1427
  %v1449 = vsel %vm153, %v1436, 0
  %v1452 = vsel %vm153, %v1437, 0
  %v1455 = vsel %vm153, %v1438, 0
  %v1458 = vsel %vm153, %v1439, 0
  %1460 = vmatpush.bf16.msra.mxu0 0
  %1461 = vmatpush.bf16.msra.mxu0 0
  %1462 = vmatpush.bf16.msra.mxu0 0
  %1463 = vmatpush.bf16.msra.mxu0 0
  %1464 = vmatpush.bf16.msra.mxu0 0
  %1465 = vmatpush.bf16.msra.mxu0 %v1449
  %1466 = vmatpush.bf16.msra.mxu0 %v1432
  %1467 = vmatpush.bf16.msra.mxu0 %v1428
  %1468 = vmatmul.bf16.gmra.mxu0 %v151
  %v1469 = vpop.f32.mrf.mxu0
  %v1470 = vadd.f32 %v132, %v1469
  %v1471 = vpop.f32.mrf.mxu0
  %1472 = vdwg.mxu0
  %1473 = vmatpush.bf16.msra.mxu0 0
  %1474 = vmatpush.bf16.msra.mxu0 0
  %1475 = vmatpush.bf16.msra.mxu0 0
  %1476 = vmatpush.bf16.msra.mxu0 0
  %1477 = vmatpush.bf16.msra.mxu0 0
  %1478 = vmatpush.bf16.msra.mxu0 %v1452
  %1479 = vmatpush.bf16.msra.mxu0 %v1433
  %1480 = vmatpush.bf16.msra.mxu0 %v1429
  %1481 = vmatmul.bf16.gmra.mxu0 %v151
  %v1482 = vpop.f32.mrf.mxu0
  %v1483 = vadd.f32 %v132, %v1482
  %v1484 = vpop.f32.mrf.mxu0
  %1485 = vdwg.mxu0
  %1486 = vmatpush.bf16.msra.mxu0 0
  %1487 = vmatpush.bf16.msra.mxu0 0
  %1488 = vmatpush.bf16.msra.mxu0 0
  %1489 = vmatpush.bf16.msra.mxu0 0
  %1490 = vmatpush.bf16.msra.mxu0 0
  %1491 = vmatpush.bf16.msra.mxu0 %v1455
  %1492 = vmatpush.bf16.msra.mxu0 %v1434
  %1493 = vmatpush.bf16.msra.mxu0 %v1430
  %1494 = vmatmul.bf16.gmra.mxu0 %v151
  %v1495 = vpop.f32.mrf.mxu0
  %v1496 = vadd.f32 %v132, %v1495
  %v1497 = vpop.f32.mrf.mxu0
  %1498 = vdwg.mxu0
  %1499 = vmatpush.bf16.msra.mxu0 0
  %1500 = vmatpush.bf16.msra.mxu0 0
  %1501 = vmatpush.bf16.msra.mxu0 0
  %1502 = vmatpush.bf16.msra.mxu0 0
  %1503 = vmatpush.bf16.msra.mxu0 0
  %1504 = vmatpush.bf16.msra.mxu0 %v1458
  %1505 = vmatpush.bf16.msra.mxu0 %v1435
  %1506 = vmatpush.bf16.msra.mxu0 %v1431
  %1507 = vmatmul.bf16.gmra.mxu0 %v151
  %v1508 = vpop.f32.mrf.mxu0
  %v1509 = vadd.f32 %v132, %v1508
  %v1510 = vpop.f32.mrf.mxu0
  %1511 = vdwg.mxu0
  %vm1512 = vcmp.gt.f32.partialorder %v1470, 0.0
  %vm1513 = vcmp.gt.f32.partialorder %v1483, 0.0
  %vm1514 = vcmp.gt.f32.partialorder %v1496, 0.0
  %vm1515 = vcmp.gt.f32.partialorder %v1509, 0.0
  %v1516 = vmul.f32 %v1470, 0.1
  %v1517 = vmul.f32 %v1483, 0.1
  %v1518 = vmul.f32 %v1496, 0.1
  %v1519 = vmul.f32 %v1509, 0.1
  %v1520 = vsel %vm1512, %v1470, %v1516
  %v1521 = vsel %vm1513, %v1483, %v1517
  %v1522 = vsel %vm1514, %v1496, %v1518
  %v1523 = vsel %vm1515, %v1509, %v1519
  %v1524 = vld [vmem:[%s7] sm:$0xf]
  %v1526 = vperm.slane %v1524, 0
  %v1527 = vperm.slane %v1524, 1
  %v1528 = vperm.slane %v1524, 2
  %v1529 = vperm.slane %v1524, 3
  %v1534 = vmul.f32 %v1520, %v1526
  %v1535 = vmul.f32 %v1521, %v1527
  %v1536 = vmul.f32 %v1522, %v1528
  %v1537 = vmul.f32 %v1523, %v1529
  %v1538 = vld [vmem:[%s31] sm:$0xf]
  %v1539 = vld [vmem:[%s31 + $0x4] sm:$0x3]
  %v1540 = vpack.c.bf16 %v1346, %v1346
  %v1541 = vpack.c.bf16 %v1359, %v1359
  %v1542 = vpack.c.bf16 %v1372, %v1372
  %v1543 = vpack.c.bf16 %v1385, %v1385
  %v1544 = vld [vmem:[%s33] sm:$0xf]
  %v1545 = vld [vmem:[%s33 + $0x4] sm:$0x3]
  %v1546 = vpack.c.bf16 %v1534, %v1534
  %v1547 = vpack.c.bf16 %v1535, %v1535
  %v1548 = vpack.c.bf16 %v1536, %v1536
  %v1549 = vpack.c.bf16 %v1537, %v1537
  %v1552 = vunpack.c.l.b16 %v1544
  %v1553 = vunpack.c.l.b16 %v1545
  %v1554 = vpack.c.b16 %v1553, %v1552
  %v1556 = vsel %vm236, %v1554, 0
  %v1559 = vsel %vm240, %v1546, 0
  %v1562 = vsel %vm240, %v1547, 0
  %v1565 = vsel %vm240, %v1548, 0
  %v1568 = vsel %vm240, %v1549, 0
  %1570 = vmatpush.bf16.msra.mxu0 0
  %1571 = vmatpush.bf16.msra.mxu0 0
  %1572 = vmatpush.bf16.msra.mxu0 0
  %1573 = vmatpush.bf16.msra.mxu0 0
  %1574 = vmatpush.bf16.msra.mxu0 0
  %1575 = vmatpush.bf16.msra.mxu0 0
  %1576 = vmatpush.bf16.msra.mxu0 0
  %1577 = vmatpush.bf16.msra.mxu0 %v1559
  %1578 = vmatmul.bf16.gmra.mxu0 %v1556
  %v1579 = vpop.f32.mrf.mxu0
  %v1580 = vadd.f32 0.0, %v1579
  %v1581 = vpop.f32.mrf.mxu0
  %v1582 = vadd.f32 0.0, %v1581
  %1583 = vdwg.mxu0
  %1584 = vmatpush.bf16.msra.mxu0 0
  %1585 = vmatpush.bf16.msra.mxu0 0
  %1586 = vmatpush.bf16.msra.mxu0 0
  %1587 = vmatpush.bf16.msra.mxu0 0
  %1588 = vmatpush.bf16.msra.mxu0 0
  %1589 = vmatpush.bf16.msra.mxu0 0
  %1590 = vmatpush.bf16.msra.mxu0 0
  %1591 = vmatpush.bf16.msra.mxu0 %v1562
  %1592 = vmatmul.bf16.gmra.mxu0 %v1556
  %v1593 = vpop.f32.mrf.mxu0
  %v1594 = vadd.f32 0.0, %v1593
  %v1595 = vpop.f32.mrf.mxu0
  %v1596 = vadd.f32 0.0, %v1595
  %1597 = vdwg.mxu0
  %1598 = vmatpush.bf16.msra.mxu0 0
  %1599 = vmatpush.bf16.msra.mxu0 0
  %1600 = vmatpush.bf16.msra.mxu0 0
  %1601 = vmatpush.bf16.msra.mxu0 0
  %1602 = vmatpush.bf16.msra.mxu0 0
  %1603 = vmatpush.bf16.msra.mxu0 0
  %1604 = vmatpush.bf16.msra.mxu0 0
  %1605 = vmatpush.bf16.msra.mxu0 %v1565
  %1606 = vmatmul.bf16.gmra.mxu0 %v1556
  %v1607 = vpop.f32.mrf.mxu0
  %v1608 = vadd.f32 0.0, %v1607
  %v1609 = vpop.f32.mrf.mxu0
  %v1610 = vadd.f32 0.0, %v1609
  %1611 = vdwg.mxu0
  %1612 = vmatpush.bf16.msra.mxu0 0
  %1613 = vmatpush.bf16.msra.mxu0 0
  %1614 = vmatpush.bf16.msra.mxu0 0
  %1615 = vmatpush.bf16.msra.mxu0 0
  %1616 = vmatpush.bf16.msra.mxu0 0
  %1617 = vmatpush.bf16.msra.mxu0 0
  %1618 = vmatpush.bf16.msra.mxu0 0
  %1619 = vmatpush.bf16.msra.mxu0 %v1568
  %1620 = vmatmul.bf16.gmra.mxu0 %v1556
  %v1621 = vpop.f32.mrf.mxu0
  %v1622 = vadd.f32 0.0, %v1621
  %v1623 = vpop.f32.mrf.mxu0
  %v1624 = vadd.f32 0.0, %v1623
  %1625 = vdwg.mxu0
  %v1628 = vunpack.c.l.b16 %v1538
  %v1629 = vunpack.c.l.b16 %v1539
  %v1630 = vpack.c.b16 %v1629, %v1628
  %v1632 = vsel %vm236, %v1630, 0
  %v1635 = vsel %vm240, %v1540, 0
  %v1638 = vsel %vm240, %v1541, 0
  %v1641 = vsel %vm240, %v1542, 0
  %v1644 = vsel %vm240, %v1543, 0
  %1646 = vmatpush.bf16.msra.mxu0 0
  %1647 = vmatpush.bf16.msra.mxu0 0
  %1648 = vmatpush.bf16.msra.mxu0 0
  %1649 = vmatpush.bf16.msra.mxu0 0
  %1650 = vmatpush.bf16.msra.mxu0 0
  %1651 = vmatpush.bf16.msra.mxu0 0
  %1652 = vmatpush.bf16.msra.mxu0 0
  %1653 = vmatpush.bf16.msra.mxu0 %v1635
  %1654 = vmatmul.bf16.gmra.mxu0 %v1632
  %v1655 = vpop.f32.mrf.mxu0
  %v1656 = vadd.f32 %v1580, %v1655
  %v1657 = vpop.f32.mrf.mxu0
  %v1658 = vadd.f32 %v1582, %v1657
  %1659 = vdwg.mxu0
  %1660 = vmatpush.bf16.msra.mxu0 0
  %1661 = vmatpush.bf16.msra.mxu0 0
  %1662 = vmatpush.bf16.msra.mxu0 0
  %1663 = vmatpush.bf16.msra.mxu0 0
  %1664 = vmatpush.bf16.msra.mxu0 0
  %1665 = vmatpush.bf16.msra.mxu0 0
  %1666 = vmatpush.bf16.msra.mxu0 0
  %1667 = vmatpush.bf16.msra.mxu0 %v1638
  %1668 = vmatmul.bf16.gmra.mxu0 %v1632
  %v1669 = vpop.f32.mrf.mxu0
  %v1670 = vadd.f32 %v1594, %v1669
  %v1671 = vpop.f32.mrf.mxu0
  %v1672 = vadd.f32 %v1596, %v1671
  %1673 = vdwg.mxu0
  %1674 = vmatpush.bf16.msra.mxu0 0
  %1675 = vmatpush.bf16.msra.mxu0 0
  %1676 = vmatpush.bf16.msra.mxu0 0
  %1677 = vmatpush.bf16.msra.mxu0 0
  %1678 = vmatpush.bf16.msra.mxu0 0
  %1679 = vmatpush.bf16.msra.mxu0 0
  %1680 = vmatpush.bf16.msra.mxu0 0
  %1681 = vmatpush.bf16.msra.mxu0 %v1641
  %1682 = vmatmul.bf16.gmra.mxu0 %v1632
  %v1683 = vpop.f32.mrf.mxu0
  %v1684 = vadd.f32 %v1608, %v1683
  %v1685 = vpop.f32.mrf.mxu0
  %v1686 = vadd.f32 %v1610, %v1685
  %1687 = vdwg.mxu0
  %1688 = vmatpush.bf16.msra.mxu0 0
  %1689 = vmatpush.bf16.msra.mxu0 0
  %1690 = vmatpush.bf16.msra.mxu0 0
  %1691 = vmatpush.bf16.msra.mxu0 0
  %1692 = vmatpush.bf16.msra.mxu0 0
  %1693 = vmatpush.bf16.msra.mxu0 0
  %1694 = vmatpush.bf16.msra.mxu0 0
  %1695 = vmatpush.bf16.msra.mxu0 %v1644
  %1696 = vmatmul.bf16.gmra.mxu0 %v1632
  %v1697 = vpop.f32.mrf.mxu0
  %v1698 = vadd.f32 %v1622, %v1697
  %v1699 = vpop.f32.mrf.mxu0
  %v1700 = vadd.f32 %v1624, %v1699
  %1701 = vdwg.mxu0
  %s1702 = scalar_lea.vmem %s9, 256
  %v1703 = vld [vmem:[%s1702] sm:$0xff]
  %v1704 = vld [vmem:[%s1702 + $0x8] sm:$0xff]
  %v1705 = vld [vmem:[%s1702 + $0x10] sm:$0xff]
  %v1706 = vld [vmem:[%s1702 + $0x18] sm:$0xff]
  %v1707 = vld [vmem:[%s1702 + $0x20] sm:$0xff]
  %v1708 = vld [vmem:[%s1702 + $0x28] sm:$0xff]
  %v1709 = vld [vmem:[%s1702 + $0x30] sm:$0xff]
  %v1710 = vld [vmem:[%s1702 + $0x38] sm:$0xff]
  %v1711 = vld [vmem:[%s1702 + $0x40] sm:$0xff]
  %v1712 = vld [vmem:[%s1702 + $0x48] sm:$0xff]
  %v1713 = vld [vmem:[%s1702 + $0x50] sm:$0xff]
  %v1714 = vld [vmem:[%s1702 + $0x58] sm:$0xff]
  %v1715 = vld [vmem:[%s1702 + $0x60] sm:$0xff]
  %v1716 = vld [vmem:[%s1702 + $0x68] sm:$0xff]
  %v1717 = vld [vmem:[%s1702 + $0x70] sm:$0xff]
  %v1718 = vld [vmem:[%s1702 + $0x78] sm:$0xff]
  %v1719 = vld [vmem:[%s1702 + $0x80] sm:$0xff]
  %v1720 = vld [vmem:[%s1702 + $0x88] sm:$0xff]
  %v1721 = vld [vmem:[%s1702 + $0x90] sm:$0xff]
  %v1722 = vld [vmem:[%s1702 + $0x98] sm:$0xff]
  %v1723 = vld [vmem:[%s1702 + $0xa0] sm:$0xff]
  %v1724 = vld [vmem:[%s1702 + $0xa8] sm:$0xff]
  %v1725 = vld [vmem:[%s1702 + $0xb0] sm:$0xff]
  %v1726 = vld [vmem:[%s1702 + $0xb8] sm:$0xff]
  %v1727 = vld [vmem:[%s1702 + $0xc0] sm:$0xff]
  %v1728 = vld [vmem:[%s1702 + $0xc8] sm:$0xff]
  %v1729 = vld [vmem:[%s1702 + $0xd0] sm:$0xff]
  %v1730 = vld [vmem:[%s1702 + $0xd8] sm:$0xff]
  %v1731 = vld [vmem:[%s1702 + $0xe0] sm:$0xff]
  %v1732 = vld [vmem:[%s1702 + $0xe8] sm:$0xff]
  %v1733 = vld [vmem:[%s1702 + $0xf0] sm:$0xff]
  %v1734 = vld [vmem:[%s1702 + $0xf8] sm:$0xff]
  %v1767 = vunpack.c.l.b16 %v1703
  %v1768 = vunpack.c.h.b16 %v1703
  %v1769 = vunpack.c.l.b16 %v1704
  %v1770 = vunpack.c.h.b16 %v1704
  %v1771 = vunpack.c.l.b16 %v1705
  %v1772 = vunpack.c.h.b16 %v1705
  %v1773 = vunpack.c.l.b16 %v1706
  %v1774 = vunpack.c.h.b16 %v1706
  %v1775 = vunpack.c.l.b16 %v1707
  %v1776 = vunpack.c.h.b16 %v1707
  %v1777 = vunpack.c.l.b16 %v1708
  %v1778 = vunpack.c.h.b16 %v1708
  %v1779 = vunpack.c.l.b16 %v1709
  %v1780 = vunpack.c.h.b16 %v1709
  %v1781 = vunpack.c.l.b16 %v1710
  %v1782 = vunpack.c.h.b16 %v1710
  %v1783 = vunpack.c.l.b16 %v1711
  %v1784 = vunpack.c.h.b16 %v1711
  %v1785 = vunpack.c.l.b16 %v1712
  %v1786 = vunpack.c.h.b16 %v1712
  %v1787 = vunpack.c.l.b16 %v1713
  %v1788 = vunpack.c.h.b16 %v1713
  %v1789 = vunpack.c.l.b16 %v1714
  %v1790 = vunpack.c.h.b16 %v1714
  %v1791 = vunpack.c.l.b16 %v1715
  %v1792 = vunpack.c.h.b16 %v1715
  %v1793 = vunpack.c.l.b16 %v1716
  %v1794 = vunpack.c.h.b16 %v1716
  %v1795 = vunpack.c.l.b16 %v1717
  %v1796 = vunpack.c.h.b16 %v1717
  %v1797 = vunpack.c.l.b16 %v1718
  %v1798 = vunpack.c.h.b16 %v1718
  %v1799 = vunpack.c.l.b16 %v1719
  %v1800 = vunpack.c.h.b16 %v1719
  %v1801 = vunpack.c.l.b16 %v1720
  %v1802 = vunpack.c.h.b16 %v1720
  %v1803 = vunpack.c.l.b16 %v1721
  %v1804 = vunpack.c.h.b16 %v1721
  %v1805 = vunpack.c.l.b16 %v1722
  %v1806 = vunpack.c.h.b16 %v1722
  %v1807 = vunpack.c.l.b16 %v1723
  %v1808 = vunpack.c.h.b16 %v1723
  %v1809 = vunpack.c.l.b16 %v1724
  %v1810 = vunpack.c.h.b16 %v1724
  %v1811 = vunpack.c.l.b16 %v1725
  %v1812 = vunpack.c.h.b16 %v1725
  %v1813 = vunpack.c.l.b16 %v1726
  %v1814 = vunpack.c.h.b16 %v1726
  %v1815 = vunpack.c.l.b16 %v1727
  %v1816 = vunpack.c.h.b16 %v1727
  %v1817 = vunpack.c.l.b16 %v1728
  %v1818 = vunpack.c.h.b16 %v1728
  %v1819 = vunpack.c.l.b16 %v1729
  %v1820 = vunpack.c.h.b16 %v1729
  %v1821 = vunpack.c.l.b16 %v1730
  %v1822 = vunpack.c.h.b16 %v1730
  %v1823 = vunpack.c.l.b16 %v1731
  %v1824 = vunpack.c.h.b16 %v1731
  %v1825 = vunpack.c.l.b16 %v1732
  %v1826 = vunpack.c.h.b16 %v1732
  %v1827 = vunpack.c.l.b16 %v1733
  %v1828 = vunpack.c.h.b16 %v1733
  %v1829 = vunpack.c.l.b16 %v1734
  %v1830 = vunpack.c.h.b16 %v1734
  %v1831 = vpack.c.b16 %v1771, %v1767
  %v1832 = vpack.c.b16 %v1772, %v1768
  %v1833 = vpack.c.b16 %v1773, %v1769
  %v1834 = vpack.c.b16 %v1774, %v1770
  %v1835 = vpack.c.b16 %v1779, %v1775
  %v1836 = vpack.c.b16 %v1780, %v1776
  %v1837 = vpack.c.b16 %v1781, %v1777
  %v1838 = vpack.c.b16 %v1782, %v1778
  %v1839 = vpack.c.b16 %v1787, %v1783
  %v1840 = vpack.c.b16 %v1788, %v1784
  %v1841 = vpack.c.b16 %v1789, %v1785
  %v1842 = vpack.c.b16 %v1790, %v1786
  %v1843 = vpack.c.b16 %v1795, %v1791
  %v1844 = vpack.c.b16 %v1796, %v1792
  %v1845 = vpack.c.b16 %v1797, %v1793
  %v1846 = vpack.c.b16 %v1798, %v1794
  %v1847 = vpack.c.b16 %v1803, %v1799
  %v1848 = vpack.c.b16 %v1804, %v1800
  %v1849 = vpack.c.b16 %v1805, %v1801
  %v1850 = vpack.c.b16 %v1806, %v1802
  %v1851 = vpack.c.b16 %v1811, %v1807
  %v1852 = vpack.c.b16 %v1812, %v1808
  %v1853 = vpack.c.b16 %v1813, %v1809
  %v1854 = vpack.c.b16 %v1814, %v1810
  %v1855 = vpack.c.b16 %v1819, %v1815
  %v1856 = vpack.c.b16 %v1820, %v1816
  %v1857 = vpack.c.b16 %v1821, %v1817
  %v1858 = vpack.c.b16 %v1822, %v1818
  %v1859 = vpack.c.b16 %v1827, %v1823
  %v1860 = vpack.c.b16 %v1828, %v1824
  %v1861 = vpack.c.b16 %v1829, %v1825
  %v1862 = vpack.c.b16 %v1830, %v1826
  %1895 = vmatpush.bf16.msra.mxu0 %v1859
  %1896 = vmatpush.bf16.msra.mxu0 %v1855
  %1897 = vmatpush.bf16.msra.mxu0 %v1851
  %1898 = vmatpush.bf16.msra.mxu0 %v1847
  %1899 = vmatpush.bf16.msra.mxu0 %v1843
  %1900 = vmatpush.bf16.msra.mxu0 %v1839
  %1901 = vmatpush.bf16.msra.mxu0 %v1835
  %1902 = vmatpush.bf16.msra.mxu0 %v1831
  %1903 = vmatmul.bf16.gmra.mxu0 %v1143
  %v1904 = vpop.f32.mrf.mxu0
  %v1905 = vadd.f32 0.0, %v1904
  %v1906 = vpop.f32.mrf.mxu0
  %1907 = vdwg.mxu0
  %1908 = vmatpush.bf16.msra.mxu0 %v1860
  %1909 = vmatpush.bf16.msra.mxu0 %v1856
  %1910 = vmatpush.bf16.msra.mxu0 %v1852
  %1911 = vmatpush.bf16.msra.mxu0 %v1848
  %1912 = vmatpush.bf16.msra.mxu0 %v1844
  %1913 = vmatpush.bf16.msra.mxu0 %v1840
  %1914 = vmatpush.bf16.msra.mxu0 %v1836
  %1915 = vmatpush.bf16.msra.mxu0 %v1832
  %1916 = vmatmul.bf16.gmra.mxu0 %v1143
  %v1917 = vpop.f32.mrf.mxu0
  %v1918 = vadd.f32 0.0, %v1917
  %v1919 = vpop.f32.mrf.mxu0
  %1920 = vdwg.mxu0
  %1921 = vmatpush.bf16.msra.mxu0 %v1861
  %1922 = vmatpush.bf16.msra.mxu0 %v1857
  %1923 = vmatpush.bf16.msra.mxu0 %v1853
  %1924 = vmatpush.bf16.msra.mxu0 %v1849
  %1925 = vmatpush.bf16.msra.mxu0 %v1845
  %1926 = vmatpush.bf16.msra.mxu0 %v1841
  %1927 = vmatpush.bf16.msra.mxu0 %v1837
  %1928 = vmatpush.bf16.msra.mxu0 %v1833
  %1929 = vmatmul.bf16.gmra.mxu0 %v1143
  %v1930 = vpop.f32.mrf.mxu0
  %v1931 = vadd.f32 0.0, %v1930
  %v1932 = vpop.f32.mrf.mxu0
  %1933 = vdwg.mxu0
  %1934 = vmatpush.bf16.msra.mxu0 %v1862
  %1935 = vmatpush.bf16.msra.mxu0 %v1858
  %1936 = vmatpush.bf16.msra.mxu0 %v1854
  %1937 = vmatpush.bf16.msra.mxu0 %v1850
  %1938 = vmatpush.bf16.msra.mxu0 %v1846
  %1939 = vmatpush.bf16.msra.mxu0 %v1842
  %1940 = vmatpush.bf16.msra.mxu0 %v1838
  %1941 = vmatpush.bf16.msra.mxu0 %v1834
  %1942 = vmatmul.bf16.gmra.mxu0 %v1143
  %v1943 = vpop.f32.mrf.mxu0
  %v1944 = vadd.f32 0.0, %v1943
  %v1945 = vpop.f32.mrf.mxu0
  %1946 = vdwg.mxu0
  %s1947 = scalar_lea.vmem %s5, 80
  %v1948 = vld [vmem:[%s1947] sm:$0xff]
  %v1949 = vld [vmem:[%s1947 + $0x8] sm:$0xff]
  %v1950 = vld [vmem:[%s1947 + $0x10] sm:$0xff]
  %v1951 = vld [vmem:[%s1947 + $0x18] sm:$0xff]
  %v1952 = vld [vmem:[%s1947 + $0x20] sm:$0xff]
  %v1953 = vld [vmem:[%s1947 + $0x28] sm:$0xff]
  %v1954 = vld [vmem:[%s1947 + $0x30] sm:$0xff]
  %v1955 = vld [vmem:[%s1947 + $0x38] sm:$0xff]
  %v1956 = vld [vmem:[%s1947 + $0x40] sm:$0x33]
  %v1957 = vld [vmem:[%s1947 + $0x48] sm:$0x33]
  %v1968 = vunpack.c.l.b16 %v1948
  %v1969 = vunpack.c.h.b16 %v1948
  %v1970 = vunpack.c.l.b16 %v1949
  %v1971 = vunpack.c.h.b16 %v1949
  %v1972 = vunpack.c.l.b16 %v1950
  %v1973 = vunpack.c.h.b16 %v1950
  %v1974 = vunpack.c.l.b16 %v1951
  %v1975 = vunpack.c.h.b16 %v1951
  %v1976 = vunpack.c.l.b16 %v1952
  %v1977 = vunpack.c.h.b16 %v1952
  %v1978 = vunpack.c.l.b16 %v1953
  %v1979 = vunpack.c.h.b16 %v1953
  %v1980 = vunpack.c.l.b16 %v1954
  %v1981 = vunpack.c.h.b16 %v1954
  %v1982 = vunpack.c.l.b16 %v1955
  %v1983 = vunpack.c.h.b16 %v1955
  %v1984 = vunpack.c.l.b16 %v1956
  %v1985 = vunpack.c.h.b16 %v1956
  %v1986 = vunpack.c.l.b16 %v1957
  %v1987 = vunpack.c.h.b16 %v1957
  %v1988 = vpack.c.b16 %v1972, %v1968
  %v1989 = vpack.c.b16 %v1973, %v1969
  %v1990 = vpack.c.b16 %v1974, %v1970
  %v1991 = vpack.c.b16 %v1975, %v1971
  %v1992 = vpack.c.b16 %v1980, %v1976
  %v1993 = vpack.c.b16 %v1981, %v1977
  %v1994 = vpack.c.b16 %v1982, %v1978
  %v1995 = vpack.c.b16 %v1983, %v1979
  %v1996 = vpack.c.b16 %v1984, %v1984
  %v1997 = vpack.c.b16 %v1985, %v1985
  %v1998 = vpack.c.b16 %v1986, %v1986
  %v1999 = vpack.c.b16 %v1987, %v1987
  %v2009 = vsel %vm153, %v1996, 0
  %v2012 = vsel %vm153, %v1997, 0
  %v2015 = vsel %vm153, %v1998, 0
  %v2018 = vsel %vm153, %v1999, 0
  %2020 = vmatpush.bf16.msra.mxu0 0
  %2021 = vmatpush.bf16.msra.mxu0 0
  %2022 = vmatpush.bf16.msra.mxu0 0
  %2023 = vmatpush.bf16.msra.mxu0 0
  %2024 = vmatpush.bf16.msra.mxu0 0
  %2025 = vmatpush.bf16.msra.mxu0 %v2009
  %2026 = vmatpush.bf16.msra.mxu0 %v1992
  %2027 = vmatpush.bf16.msra.mxu0 %v1988
  %2028 = vmatmul.bf16.gmra.mxu0 %v151
  %v2029 = vpop.f32.mrf.mxu0
  %v2030 = vadd.f32 %v132, %v2029
  %v2031 = vpop.f32.mrf.mxu0
  %2032 = vdwg.mxu0
  %2033 = vmatpush.bf16.msra.mxu0 0
  %2034 = vmatpush.bf16.msra.mxu0 0
  %2035 = vmatpush.bf16.msra.mxu0 0
  %2036 = vmatpush.bf16.msra.mxu0 0
  %2037 = vmatpush.bf16.msra.mxu0 0
  %2038 = vmatpush.bf16.msra.mxu0 %v2012
  %2039 = vmatpush.bf16.msra.mxu0 %v1993
  %2040 = vmatpush.bf16.msra.mxu0 %v1989
  %2041 = vmatmul.bf16.gmra.mxu0 %v151
  %v2042 = vpop.f32.mrf.mxu0
  %v2043 = vadd.f32 %v132, %v2042
  %v2044 = vpop.f32.mrf.mxu0
  %2045 = vdwg.mxu0
  %2046 = vmatpush.bf16.msra.mxu0 0
  %2047 = vmatpush.bf16.msra.mxu0 0
  %2048 = vmatpush.bf16.msra.mxu0 0
  %2049 = vmatpush.bf16.msra.mxu0 0
  %2050 = vmatpush.bf16.msra.mxu0 0
  %2051 = vmatpush.bf16.msra.mxu0 %v2015
  %2052 = vmatpush.bf16.msra.mxu0 %v1994
  %2053 = vmatpush.bf16.msra.mxu0 %v1990
  %2054 = vmatmul.bf16.gmra.mxu0 %v151
  %v2055 = vpop.f32.mrf.mxu0
  %v2056 = vadd.f32 %v132, %v2055
  %v2057 = vpop.f32.mrf.mxu0
  %2058 = vdwg.mxu0
  %2059 = vmatpush.bf16.msra.mxu0 0
  %2060 = vmatpush.bf16.msra.mxu0 0
  %2061 = vmatpush.bf16.msra.mxu0 0
  %2062 = vmatpush.bf16.msra.mxu0 0
  %2063 = vmatpush.bf16.msra.mxu0 0
  %2064 = vmatpush.bf16.msra.mxu0 %v2018
  %2065 = vmatpush.bf16.msra.mxu0 %v1995
  %2066 = vmatpush.bf16.msra.mxu0 %v1991
  %2067 = vmatmul.bf16.gmra.mxu0 %v151
  %v2068 = vpop.f32.mrf.mxu0
  %v2069 = vadd.f32 %v132, %v2068
  %v2070 = vpop.f32.mrf.mxu0
  %2071 = vdwg.mxu0
  %vm2072 = vcmp.gt.f32.partialorder %v2030, 0.0
  %vm2073 = vcmp.gt.f32.partialorder %v2043, 0.0
  %vm2074 = vcmp.gt.f32.partialorder %v2056, 0.0
  %vm2075 = vcmp.gt.f32.partialorder %v2069, 0.0
  %v2076 = vmul.f32 %v2030, 0.1
  %v2077 = vmul.f32 %v2043, 0.1
  %v2078 = vmul.f32 %v2056, 0.1
  %v2079 = vmul.f32 %v2069, 0.1
  %v2080 = vsel %vm2072, %v2030, %v2076
  %v2081 = vsel %vm2073, %v2043, %v2077
  %v2082 = vsel %vm2074, %v2056, %v2078
  %v2083 = vsel %vm2075, %v2069, %v2079
  %s2084 = scalar_lea.vmem %s7, 4
  %v2085 = vld [vmem:[%s2084] sm:$0xf]
  %v2087 = vperm.slane %v2085, 0
  %v2088 = vperm.slane %v2085, 1
  %v2089 = vperm.slane %v2085, 2
  %v2090 = vperm.slane %v2085, 3
  %v2095 = vmul.f32 %v2080, %v2087
  %v2096 = vmul.f32 %v2081, %v2088
  %v2097 = vmul.f32 %v2082, %v2089
  %v2098 = vmul.f32 %v2083, %v2090
  %s2099 = scalar_lea.vmem %s31, 8
  %v2100 = vld [vmem:[%s2099] sm:$0xf]
  %v2101 = vld [vmem:[%s2099 + $0x4] sm:$0x3]
  %v2102 = vpack.c.bf16 %v1905, %v1905
  %v2103 = vpack.c.bf16 %v1918, %v1918
  %v2104 = vpack.c.bf16 %v1931, %v1931
  %v2105 = vpack.c.bf16 %v1944, %v1944
  %v2108 = vunpack.c.l.b16 %v2100
  %v2109 = vunpack.c.l.b16 %v2101
  %v2110 = vpack.c.b16 %v2109, %v2108
  %v2112 = vsel %vm236, %v2110, 0
  %v2115 = vsel %vm240, %v2102, 0
  %v2118 = vsel %vm240, %v2103, 0
  %v2121 = vsel %vm240, %v2104, 0
  %v2124 = vsel %vm240, %v2105, 0
  %2126 = vmatpush.bf16.msra.mxu0 0
  %2127 = vmatpush.bf16.msra.mxu0 0
  %2128 = vmatpush.bf16.msra.mxu0 0
  %2129 = vmatpush.bf16.msra.mxu0 0
  %2130 = vmatpush.bf16.msra.mxu0 0
  %2131 = vmatpush.bf16.msra.mxu0 0
  %2132 = vmatpush.bf16.msra.mxu0 0
  %2133 = vmatpush.bf16.msra.mxu0 %v2115
  %2134 = vmatmul.bf16.gmra.mxu0 %v2112
  %v2135 = vpop.f32.mrf.mxu0
  %v2136 = vadd.f32 0.0, %v2135
  %v2137 = vpop.f32.mrf.mxu0
  %v2138 = vadd.f32 0.0, %v2137
  %2139 = vdwg.mxu0
  %2140 = vmatpush.bf16.msra.mxu0 0
  %2141 = vmatpush.bf16.msra.mxu0 0
  %2142 = vmatpush.bf16.msra.mxu0 0
  %2143 = vmatpush.bf16.msra.mxu0 0
  %2144 = vmatpush.bf16.msra.mxu0 0
  %2145 = vmatpush.bf16.msra.mxu0 0
  %2146 = vmatpush.bf16.msra.mxu0 0
  %2147 = vmatpush.bf16.msra.mxu0 %v2118
  %2148 = vmatmul.bf16.gmra.mxu0 %v2112
  %v2149 = vpop.f32.mrf.mxu0
  %v2150 = vadd.f32 0.0, %v2149
  %v2151 = vpop.f32.mrf.mxu0
  %v2152 = vadd.f32 0.0, %v2151
  %2153 = vdwg.mxu0
  %2154 = vmatpush.bf16.msra.mxu0 0
  %2155 = vmatpush.bf16.msra.mxu0 0
  %2156 = vmatpush.bf16.msra.mxu0 0
  %2157 = vmatpush.bf16.msra.mxu0 0
  %2158 = vmatpush.bf16.msra.mxu0 0
  %2159 = vmatpush.bf16.msra.mxu0 0
  %2160 = vmatpush.bf16.msra.mxu0 0
  %2161 = vmatpush.bf16.msra.mxu0 %v2121
  %2162 = vmatmul.bf16.gmra.mxu0 %v2112
  %v2163 = vpop.f32.mrf.mxu0
  %v2164 = vadd.f32 0.0, %v2163
  %v2165 = vpop.f32.mrf.mxu0
  %v2166 = vadd.f32 0.0, %v2165
  %2167 = vdwg.mxu0
  %2168 = vmatpush.bf16.msra.mxu0 0
  %2169 = vmatpush.bf16.msra.mxu0 0
  %2170 = vmatpush.bf16.msra.mxu0 0
  %2171 = vmatpush.bf16.msra.mxu0 0
  %2172 = vmatpush.bf16.msra.mxu0 0
  %2173 = vmatpush.bf16.msra.mxu0 0
  %2174 = vmatpush.bf16.msra.mxu0 0
  %2175 = vmatpush.bf16.msra.mxu0 %v2124
  %2176 = vmatmul.bf16.gmra.mxu0 %v2112
  %v2177 = vpop.f32.mrf.mxu0
  %v2178 = vadd.f32 0.0, %v2177
  %v2179 = vpop.f32.mrf.mxu0
  %v2180 = vadd.f32 0.0, %v2179
  %2181 = vdwg.mxu0
  %v2182 = vadd.f32 %v1656, %v2136
  %v2183 = vadd.f32 %v1670, %v2150
  %v2184 = vadd.f32 %v1684, %v2164
  %v2185 = vadd.f32 %v1698, %v2178
  %v2186 = vadd.f32 %v1658, %v2138
  %v2187 = vadd.f32 %v1672, %v2152
  %v2188 = vadd.f32 %v1686, %v2166
  %v2189 = vadd.f32 %v1700, %v2180
  %s2190 = scalar_lea.vmem %s33, 8
  %v2191 = vld [vmem:[%s2190] sm:$0xf]
  %v2192 = vld [vmem:[%s2190 + $0x4] sm:$0x3]
  %v2193 = vpack.c.bf16 %v2095, %v2095
  %v2194 = vpack.c.bf16 %v2096, %v2096
  %v2195 = vpack.c.bf16 %v2097, %v2097
  %v2196 = vpack.c.bf16 %v2098, %v2098
  %v2199 = vunpack.c.l.b16 %v2191
  %v2200 = vunpack.c.l.b16 %v2192
  %v2201 = vpack.c.b16 %v2200, %v2199
  %v2203 = vsel %vm236, %v2201, 0
  %v2206 = vsel %vm240, %v2193, 0
  %v2209 = vsel %vm240, %v2194, 0
  %v2212 = vsel %vm240, %v2195, 0
  %v2215 = vsel %vm240, %v2196, 0
  %2217 = vmatpush.bf16.msra.mxu0 0
  %2218 = vmatpush.bf16.msra.mxu0 0
  %2219 = vmatpush.bf16.msra.mxu0 0
  %2220 = vmatpush.bf16.msra.mxu0 0
  %2221 = vmatpush.bf16.msra.mxu0 0
  %2222 = vmatpush.bf16.msra.mxu0 0
  %2223 = vmatpush.bf16.msra.mxu0 0
  %2224 = vmatpush.bf16.msra.mxu0 %v2206
  %2225 = vmatmul.bf16.gmra.mxu0 %v2203
  %v2226 = vpop.f32.mrf.mxu0
  %v2227 = vadd.f32 0.0, %v2226
  %v2228 = vpop.f32.mrf.mxu0
  %v2229 = vadd.f32 0.0, %v2228
  %2230 = vdwg.mxu0
  %2231 = vmatpush.bf16.msra.mxu0 0
  %2232 = vmatpush.bf16.msra.mxu0 0
  %2233 = vmatpush.bf16.msra.mxu0 0
  %2234 = vmatpush.bf16.msra.mxu0 0
  %2235 = vmatpush.bf16.msra.mxu0 0
  %2236 = vmatpush.bf16.msra.mxu0 0
  %2237 = vmatpush.bf16.msra.mxu0 0
  %2238 = vmatpush.bf16.msra.mxu0 %v2209
  %2239 = vmatmul.bf16.gmra.mxu0 %v2203
  %v2240 = vpop.f32.mrf.mxu0
  %v2241 = vadd.f32 0.0, %v2240
  %v2242 = vpop.f32.mrf.mxu0
  %v2243 = vadd.f32 0.0, %v2242
  %2244 = vdwg.mxu0
  %2245 = vmatpush.bf16.msra.mxu0 0
  %2246 = vmatpush.bf16.msra.mxu0 0
  %2247 = vmatpush.bf16.msra.mxu0 0
  %2248 = vmatpush.bf16.msra.mxu0 0
  %2249 = vmatpush.bf16.msra.mxu0 0
  %2250 = vmatpush.bf16.msra.mxu0 0
  %2251 = vmatpush.bf16.msra.mxu0 0
  %2252 = vmatpush.bf16.msra.mxu0 %v2212
  %2253 = vmatmul.bf16.gmra.mxu0 %v2203
  %v2254 = vpop.f32.mrf.mxu0
  %v2255 = vadd.f32 0.0, %v2254
  %v2256 = vpop.f32.mrf.mxu0
  %v2257 = vadd.f32 0.0, %v2256
  %2258 = vdwg.mxu0
  %2259 = vmatpush.bf16.msra.mxu0 0
  %2260 = vmatpush.bf16.msra.mxu0 0
  %2261 = vmatpush.bf16.msra.mxu0 0
  %2262 = vmatpush.bf16.msra.mxu0 0
  %2263 = vmatpush.bf16.msra.mxu0 0
  %2264 = vmatpush.bf16.msra.mxu0 0
  %2265 = vmatpush.bf16.msra.mxu0 0
  %2266 = vmatpush.bf16.msra.mxu0 %v2215
  %2267 = vmatmul.bf16.gmra.mxu0 %v2203
  %v2268 = vpop.f32.mrf.mxu0
  %v2269 = vadd.f32 0.0, %v2268
  %v2270 = vpop.f32.mrf.mxu0
  %v2271 = vadd.f32 0.0, %v2270
  %2272 = vdwg.mxu0
  %v2273 = vadd.f32 %v2182, %v2227
  %v2274 = vadd.f32 %v2183, %v2241
  %v2275 = vadd.f32 %v2184, %v2255
  %v2276 = vadd.f32 %v2185, %v2269
  %v2277 = vadd.f32 %v2186, %v2229
  %v2278 = vadd.f32 %v2187, %v2243
  %v2279 = vadd.f32 %v2188, %v2257
  %v2280 = vadd.f32 %v2189, %v2271
  %s2281 = scalar_lea.vmem %s9, 512
  %v2282 = vld [vmem:[%s2281] sm:$0xff]
  %v2283 = vld [vmem:[%s2281 + $0x8] sm:$0xff]
  %v2284 = vld [vmem:[%s2281 + $0x10] sm:$0xff]
  %v2285 = vld [vmem:[%s2281 + $0x18] sm:$0xff]
  %v2286 = vld [vmem:[%s2281 + $0x20] sm:$0xff]
  %v2287 = vld [vmem:[%s2281 + $0x28] sm:$0xff]
  %v2288 = vld [vmem:[%s2281 + $0x30] sm:$0xff]
  %v2289 = vld [vmem:[%s2281 + $0x38] sm:$0xff]
  %v2290 = vld [vmem:[%s2281 + $0x40] sm:$0xff]
  %v2291 = vld [vmem:[%s2281 + $0x48] sm:$0xff]
  %v2292 = vld [vmem:[%s2281 + $0x50] sm:$0xff]
  %v2293 = vld [vmem:[%s2281 + $0x58] sm:$0xff]
  %v2294 = vld [vmem:[%s2281 + $0x60] sm:$0xff]
  %v2295 = vld [vmem:[%s2281 + $0x68] sm:$0xff]
  %v2296 = vld [vmem:[%s2281 + $0x70] sm:$0xff]
  %v2297 = vld [vmem:[%s2281 + $0x78] sm:$0xff]
  %v2298 = vld [vmem:[%s2281 + $0x80] sm:$0xff]
  %v2299 = vld [vmem:[%s2281 + $0x88] sm:$0xff]
  %v2300 = vld [vmem:[%s2281 + $0x90] sm:$0xff]
  %v2301 = vld [vmem:[%s2281 + $0x98] sm:$0xff]
  %v2302 = vld [vmem:[%s2281 + $0xa0] sm:$0xff]
  %v2303 = vld [vmem:[%s2281 + $0xa8] sm:$0xff]
  %v2304 = vld [vmem:[%s2281 + $0xb0] sm:$0xff]
  %v2305 = vld [vmem:[%s2281 + $0xb8] sm:$0xff]
  %v2306 = vld [vmem:[%s2281 + $0xc0] sm:$0xff]
  %v2307 = vld [vmem:[%s2281 + $0xc8] sm:$0xff]
  %v2308 = vld [vmem:[%s2281 + $0xd0] sm:$0xff]
  %v2309 = vld [vmem:[%s2281 + $0xd8] sm:$0xff]
  %v2310 = vld [vmem:[%s2281 + $0xe0] sm:$0xff]
  %v2311 = vld [vmem:[%s2281 + $0xe8] sm:$0xff]
  %v2312 = vld [vmem:[%s2281 + $0xf0] sm:$0xff]
  %v2313 = vld [vmem:[%s2281 + $0xf8] sm:$0xff]
  %v2346 = vunpack.c.l.b16 %v2282
  %v2347 = vunpack.c.h.b16 %v2282
  %v2348 = vunpack.c.l.b16 %v2283
  %v2349 = vunpack.c.h.b16 %v2283
  %v2350 = vunpack.c.l.b16 %v2284
  %v2351 = vunpack.c.h.b16 %v2284
  %v2352 = vunpack.c.l.b16 %v2285
  %v2353 = vunpack.c.h.b16 %v2285
  %v2354 = vunpack.c.l.b16 %v2286
  %v2355 = vunpack.c.h.b16 %v2286
  %v2356 = vunpack.c.l.b16 %v2287
  %v2357 = vunpack.c.h.b16 %v2287
  %v2358 = vunpack.c.l.b16 %v2288
  %v2359 = vunpack.c.h.b16 %v2288
  %v2360 = vunpack.c.l.b16 %v2289
  %v2361 = vunpack.c.h.b16 %v2289
  %v2362 = vunpack.c.l.b16 %v2290
  %v2363 = vunpack.c.h.b16 %v2290
  %v2364 = vunpack.c.l.b16 %v2291
  %v2365 = vunpack.c.h.b16 %v2291
  %v2366 = vunpack.c.l.b16 %v2292
  %v2367 = vunpack.c.h.b16 %v2292
  %v2368 = vunpack.c.l.b16 %v2293
  %v2369 = vunpack.c.h.b16 %v2293
  %v2370 = vunpack.c.l.b16 %v2294
  %v2371 = vunpack.c.h.b16 %v2294
  %v2372 = vunpack.c.l.b16 %v2295
  %v2373 = vunpack.c.h.b16 %v2295
  %v2374 = vunpack.c.l.b16 %v2296
  %v2375 = vunpack.c.h.b16 %v2296
  %v2376 = vunpack.c.l.b16 %v2297
  %v2377 = vunpack.c.h.b16 %v2297
  %v2378 = vunpack.c.l.b16 %v2298
  %v2379 = vunpack.c.h.b16 %v2298
  %v2380 = vunpack.c.l.b16 %v2299
  %v2381 = vunpack.c.h.b16 %v2299
  %v2382 = vunpack.c.l.b16 %v2300
  %v2383 = vunpack.c.h.b16 %v2300
  %v2384 = vunpack.c.l.b16 %v2301
  %v2385 = vunpack.c.h.b16 %v2301
  %v2386 = vunpack.c.l.b16 %v2302
  %v2387 = vunpack.c.h.b16 %v2302
  %v2388 = vunpack.c.l.b16 %v2303
  %v2389 = vunpack.c.h.b16 %v2303
  %v2390 = vunpack.c.l.b16 %v2304
  %v2391 = vunpack.c.h.b16 %v2304
  %v2392 = vunpack.c.l.b16 %v2305
  %v2393 = vunpack.c.h.b16 %v2305
  %v2394 = vunpack.c.l.b16 %v2306
  %v2395 = vunpack.c.h.b16 %v2306
  %v2396 = vunpack.c.l.b16 %v2307
  %v2397 = vunpack.c.h.b16 %v2307
  %v2398 = vunpack.c.l.b16 %v2308
  %v2399 = vunpack.c.h.b16 %v2308
  %v2400 = vunpack.c.l.b16 %v2309
  %v2401 = vunpack.c.h.b16 %v2309
  %v2402 = vunpack.c.l.b16 %v2310
  %v2403 = vunpack.c.h.b16 %v2310
  %v2404 = vunpack.c.l.b16 %v2311
  %v2405 = vunpack.c.h.b16 %v2311
  %v2406 = vunpack.c.l.b16 %v2312
  %v2407 = vunpack.c.h.b16 %v2312
  %v2408 = vunpack.c.l.b16 %v2313
  %v2409 = vunpack.c.h.b16 %v2313
  %v2410 = vpack.c.b16 %v2350, %v2346
  %v2411 = vpack.c.b16 %v2351, %v2347
  %v2412 = vpack.c.b16 %v2352, %v2348
  %v2413 = vpack.c.b16 %v2353, %v2349
  %v2414 = vpack.c.b16 %v2358, %v2354
  %v2415 = vpack.c.b16 %v2359, %v2355
  %v2416 = vpack.c.b16 %v2360, %v2356
  %v2417 = vpack.c.b16 %v2361, %v2357
  %v2418 = vpack.c.b16 %v2366, %v2362
  %v2419 = vpack.c.b16 %v2367, %v2363
  %v2420 = vpack.c.b16 %v2368, %v2364
  %v2421 = vpack.c.b16 %v2369, %v2365
  %v2422 = vpack.c.b16 %v2374, %v2370
  %v2423 = vpack.c.b16 %v2375, %v2371
  %v2424 = vpack.c.b16 %v2376, %v2372
  %v2425 = vpack.c.b16 %v2377, %v2373
  %v2426 = vpack.c.b16 %v2382, %v2378
  %v2427 = vpack.c.b16 %v2383, %v2379
  %v2428 = vpack.c.b16 %v2384, %v2380
  %v2429 = vpack.c.b16 %v2385, %v2381
  %v2430 = vpack.c.b16 %v2390, %v2386
  %v2431 = vpack.c.b16 %v2391, %v2387
  %v2432 = vpack.c.b16 %v2392, %v2388
  %v2433 = vpack.c.b16 %v2393, %v2389
  %v2434 = vpack.c.b16 %v2398, %v2394
  %v2435 = vpack.c.b16 %v2399, %v2395
  %v2436 = vpack.c.b16 %v2400, %v2396
  %v2437 = vpack.c.b16 %v2401, %v2397
  %v2438 = vpack.c.b16 %v2406, %v2402
  %v2439 = vpack.c.b16 %v2407, %v2403
  %v2440 = vpack.c.b16 %v2408, %v2404
  %v2441 = vpack.c.b16 %v2409, %v2405
  %2474 = vmatpush.bf16.msra.mxu0 %v2438
  %2475 = vmatpush.bf16.msra.mxu0 %v2434
  %2476 = vmatpush.bf16.msra.mxu0 %v2430
  %2477 = vmatpush.bf16.msra.mxu0 %v2426
  %2478 = vmatpush.bf16.msra.mxu0 %v2422
  %2479 = vmatpush.bf16.msra.mxu0 %v2418
  %2480 = vmatpush.bf16.msra.mxu0 %v2414
  %2481 = vmatpush.bf16.msra.mxu0 %v2410
  %2482 = vmatmul.bf16.gmra.mxu0 %v1143
  %v2483 = vpop.f32.mrf.mxu0
  %v2484 = vadd.f32 0.0, %v2483
  %v2485 = vpop.f32.mrf.mxu0
  %2486 = vdwg.mxu0
  %2487 = vmatpush.bf16.msra.mxu0 %v2439
  %2488 = vmatpush.bf16.msra.mxu0 %v2435
  %2489 = vmatpush.bf16.msra.mxu0 %v2431
  %2490 = vmatpush.bf16.msra.mxu0 %v2427
  %2491 = vmatpush.bf16.msra.mxu0 %v2423
  %2492 = vmatpush.bf16.msra.mxu0 %v2419
  %2493 = vmatpush.bf16.msra.mxu0 %v2415
  %2494 = vmatpush.bf16.msra.mxu0 %v2411
  %2495 = vmatmul.bf16.gmra.mxu0 %v1143
  %v2496 = vpop.f32.mrf.mxu0
  %v2497 = vadd.f32 0.0, %v2496
  %v2498 = vpop.f32.mrf.mxu0
  %2499 = vdwg.mxu0
  %2500 = vmatpush.bf16.msra.mxu0 %v2440
  %2501 = vmatpush.bf16.msra.mxu0 %v2436
  %2502 = vmatpush.bf16.msra.mxu0 %v2432
  %2503 = vmatpush.bf16.msra.mxu0 %v2428
  %2504 = vmatpush.bf16.msra.mxu0 %v2424
  %2505 = vmatpush.bf16.msra.mxu0 %v2420
  %2506 = vmatpush.bf16.msra.mxu0 %v2416
  %2507 = vmatpush.bf16.msra.mxu0 %v2412
  %2508 = vmatmul.bf16.gmra.mxu0 %v1143
  %v2509 = vpop.f32.mrf.mxu0
  %v2510 = vadd.f32 0.0, %v2509
  %v2511 = vpop.f32.mrf.mxu0
  %2512 = vdwg.mxu0
  %2513 = vmatpush.bf16.msra.mxu0 %v2441
  %2514 = vmatpush.bf16.msra.mxu0 %v2437
  %2515 = vmatpush.bf16.msra.mxu0 %v2433
  %2516 = vmatpush.bf16.msra.mxu0 %v2429
  %2517 = vmatpush.bf16.msra.mxu0 %v2425
  %2518 = vmatpush.bf16.msra.mxu0 %v2421
  %2519 = vmatpush.bf16.msra.mxu0 %v2417
  %2520 = vmatpush.bf16.msra.mxu0 %v2413
  %2521 = vmatmul.bf16.gmra.mxu0 %v1143
  %v2522 = vpop.f32.mrf.mxu0
  %v2523 = vadd.f32 0.0, %v2522
  %v2524 = vpop.f32.mrf.mxu0
  %2525 = vdwg.mxu0
  %s2526 = scalar_lea.vmem %s5, 160
  %v2527 = vld [vmem:[%s2526] sm:$0xff]
  %v2528 = vld [vmem:[%s2526 + $0x8] sm:$0xff]
  %v2529 = vld [vmem:[%s2526 + $0x10] sm:$0xff]
  %v2530 = vld [vmem:[%s2526 + $0x18] sm:$0xff]
  %v2531 = vld [vmem:[%s2526 + $0x20] sm:$0xff]
  %v2532 = vld [vmem:[%s2526 + $0x28] sm:$0xff]
  %v2533 = vld [vmem:[%s2526 + $0x30] sm:$0xff]
  %v2534 = vld [vmem:[%s2526 + $0x38] sm:$0xff]
  %v2535 = vld [vmem:[%s2526 + $0x40] sm:$0x33]
  %v2536 = vld [vmem:[%s2526 + $0x48] sm:$0x33]
  %v2547 = vunpack.c.l.b16 %v2527
  %v2548 = vunpack.c.h.b16 %v2527
  %v2549 = vunpack.c.l.b16 %v2528
  %v2550 = vunpack.c.h.b16 %v2528
  %v2551 = vunpack.c.l.b16 %v2529
  %v2552 = vunpack.c.h.b16 %v2529
  %v2553 = vunpack.c.l.b16 %v2530
  %v2554 = vunpack.c.h.b16 %v2530
  %v2555 = vunpack.c.l.b16 %v2531
  %v2556 = vunpack.c.h.b16 %v2531
  %v2557 = vunpack.c.l.b16 %v2532
  %v2558 = vunpack.c.h.b16 %v2532
  %v2559 = vunpack.c.l.b16 %v2533
  %v2560 = vunpack.c.h.b16 %v2533
  %v2561 = vunpack.c.l.b16 %v2534
  %v2562 = vunpack.c.h.b16 %v2534
  %v2563 = vunpack.c.l.b16 %v2535
  %v2564 = vunpack.c.h.b16 %v2535
  %v2565 = vunpack.c.l.b16 %v2536
  %v2566 = vunpack.c.h.b16 %v2536
  %v2567 = vpack.c.b16 %v2551, %v2547
  %v2568 = vpack.c.b16 %v2552, %v2548
  %v2569 = vpack.c.b16 %v2553, %v2549
  %v2570 = vpack.c.b16 %v2554, %v2550
  %v2571 = vpack.c.b16 %v2559, %v2555
  %v2572 = vpack.c.b16 %v2560, %v2556
  %v2573 = vpack.c.b16 %v2561, %v2557
  %v2574 = vpack.c.b16 %v2562, %v2558
  %v2575 = vpack.c.b16 %v2563, %v2563
  %v2576 = vpack.c.b16 %v2564, %v2564
  %v2577 = vpack.c.b16 %v2565, %v2565
  %v2578 = vpack.c.b16 %v2566, %v2566
  %v2588 = vsel %vm153, %v2575, 0
  %v2591 = vsel %vm153, %v2576, 0
  %v2594 = vsel %vm153, %v2577, 0
  %v2597 = vsel %vm153, %v2578, 0
  %2599 = vmatpush.bf16.msra.mxu0 0
  %2600 = vmatpush.bf16.msra.mxu0 0
  %2601 = vmatpush.bf16.msra.mxu0 0
  %2602 = vmatpush.bf16.msra.mxu0 0
  %2603 = vmatpush.bf16.msra.mxu0 0
  %2604 = vmatpush.bf16.msra.mxu0 %v2588
  %2605 = vmatpush.bf16.msra.mxu0 %v2571
  %2606 = vmatpush.bf16.msra.mxu0 %v2567
  %2607 = vmatmul.bf16.gmra.mxu0 %v151
  %v2608 = vpop.f32.mrf.mxu0
  %v2609 = vadd.f32 %v132, %v2608
  %v2610 = vpop.f32.mrf.mxu0
  %2611 = vdwg.mxu0
  %2612 = vmatpush.bf16.msra.mxu0 0
  %2613 = vmatpush.bf16.msra.mxu0 0
  %2614 = vmatpush.bf16.msra.mxu0 0
  %2615 = vmatpush.bf16.msra.mxu0 0
  %2616 = vmatpush.bf16.msra.mxu0 0
  %2617 = vmatpush.bf16.msra.mxu0 %v2591
  %2618 = vmatpush.bf16.msra.mxu0 %v2572
  %2619 = vmatpush.bf16.msra.mxu0 %v2568
  %2620 = vmatmul.bf16.gmra.mxu0 %v151
  %v2621 = vpop.f32.mrf.mxu0
  %v2622 = vadd.f32 %v132, %v2621
  %v2623 = vpop.f32.mrf.mxu0
  %2624 = vdwg.mxu0
  %2625 = vmatpush.bf16.msra.mxu0 0
  %2626 = vmatpush.bf16.msra.mxu0 0
  %2627 = vmatpush.bf16.msra.mxu0 0
  %2628 = vmatpush.bf16.msra.mxu0 0
  %2629 = vmatpush.bf16.msra.mxu0 0
  %2630 = vmatpush.bf16.msra.mxu0 %v2594
  %2631 = vmatpush.bf16.msra.mxu0 %v2573
  %2632 = vmatpush.bf16.msra.mxu0 %v2569
  %2633 = vmatmul.bf16.gmra.mxu0 %v151
  %v2634 = vpop.f32.mrf.mxu0
  %v2635 = vadd.f32 %v132, %v2634
  %v2636 = vpop.f32.mrf.mxu0
  %2637 = vdwg.mxu0
  %2638 = vmatpush.bf16.msra.mxu0 0
  %2639 = vmatpush.bf16.msra.mxu0 0
  %2640 = vmatpush.bf16.msra.mxu0 0
  %2641 = vmatpush.bf16.msra.mxu0 0
  %2642 = vmatpush.bf16.msra.mxu0 0
  %2643 = vmatpush.bf16.msra.mxu0 %v2597
  %2644 = vmatpush.bf16.msra.mxu0 %v2574
  %2645 = vmatpush.bf16.msra.mxu0 %v2570
  %2646 = vmatmul.bf16.gmra.mxu0 %v151
  %v2647 = vpop.f32.mrf.mxu0
  %v2648 = vadd.f32 %v132, %v2647
  %v2649 = vpop.f32.mrf.mxu0
  %2650 = vdwg.mxu0
  %vm2651 = vcmp.gt.f32.partialorder %v2609, 0.0
  %vm2652 = vcmp.gt.f32.partialorder %v2622, 0.0
  %vm2653 = vcmp.gt.f32.partialorder %v2635, 0.0
  %vm2654 = vcmp.gt.f32.partialorder %v2648, 0.0
  %v2655 = vmul.f32 %v2609, 0.1
  %v2656 = vmul.f32 %v2622, 0.1
  %v2657 = vmul.f32 %v2635, 0.1
  %v2658 = vmul.f32 %v2648, 0.1
  %v2659 = vsel %vm2651, %v2609, %v2655
  %v2660 = vsel %vm2652, %v2622, %v2656
  %v2661 = vsel %vm2653, %v2635, %v2657
  %v2662 = vsel %vm2654, %v2648, %v2658
  %s2663 = scalar_lea.vmem %s7, 8
  %v2664 = vld [vmem:[%s2663] sm:$0xf]
  %v2666 = vperm.slane %v2664, 0
  %v2667 = vperm.slane %v2664, 1
  %v2668 = vperm.slane %v2664, 2
  %v2669 = vperm.slane %v2664, 3
  %v2674 = vmul.f32 %v2659, %v2666
  %v2675 = vmul.f32 %v2660, %v2667
  %v2676 = vmul.f32 %v2661, %v2668
  %v2677 = vmul.f32 %v2662, %v2669
  %s2678 = scalar_lea.vmem %s31, 16
  %v2679 = vld [vmem:[%s2678] sm:$0xf]
  %v2680 = vld [vmem:[%s2678 + $0x4] sm:$0x3]
  %v2681 = vpack.c.bf16 %v2484, %v2484
  %v2682 = vpack.c.bf16 %v2497, %v2497
  %v2683 = vpack.c.bf16 %v2510, %v2510
  %v2684 = vpack.c.bf16 %v2523, %v2523
  %v2687 = vunpack.c.l.b16 %v2679
  %v2688 = vunpack.c.l.b16 %v2680
  %v2689 = vpack.c.b16 %v2688, %v2687
  %v2691 = vsel %vm236, %v2689, 0
  %v2694 = vsel %vm240, %v2681, 0
  %v2697 = vsel %vm240, %v2682, 0
  %v2700 = vsel %vm240, %v2683, 0
  %v2703 = vsel %vm240, %v2684, 0
  %2705 = vmatpush.bf16.msra.mxu0 0
  %2706 = vmatpush.bf16.msra.mxu0 0
  %2707 = vmatpush.bf16.msra.mxu0 0
  %2708 = vmatpush.bf16.msra.mxu0 0
  %2709 = vmatpush.bf16.msra.mxu0 0
  %2710 = vmatpush.bf16.msra.mxu0 0
  %2711 = vmatpush.bf16.msra.mxu0 0
  %2712 = vmatpush.bf16.msra.mxu0 %v2694
  %2713 = vmatmul.bf16.gmra.mxu0 %v2691
  %v2714 = vpop.f32.mrf.mxu0
  %v2715 = vadd.f32 0.0, %v2714
  %v2716 = vpop.f32.mrf.mxu0
  %v2717 = vadd.f32 0.0, %v2716
  %2718 = vdwg.mxu0
  %2719 = vmatpush.bf16.msra.mxu0 0
  %2720 = vmatpush.bf16.msra.mxu0 0
  %2721 = vmatpush.bf16.msra.mxu0 0
  %2722 = vmatpush.bf16.msra.mxu0 0
  %2723 = vmatpush.bf16.msra.mxu0 0
  %2724 = vmatpush.bf16.msra.mxu0 0
  %2725 = vmatpush.bf16.msra.mxu0 0
  %2726 = vmatpush.bf16.msra.mxu0 %v2697
  %2727 = vmatmul.bf16.gmra.mxu0 %v2691
  %v2728 = vpop.f32.mrf.mxu0
  %v2729 = vadd.f32 0.0, %v2728
  %v2730 = vpop.f32.mrf.mxu0
  %v2731 = vadd.f32 0.0, %v2730
  %2732 = vdwg.mxu0
  %2733 = vmatpush.bf16.msra.mxu0 0
  %2734 = vmatpush.bf16.msra.mxu0 0
  %2735 = vmatpush.bf16.msra.mxu0 0
  %2736 = vmatpush.bf16.msra.mxu0 0
  %2737 = vmatpush.bf16.msra.mxu0 0
  %2738 = vmatpush.bf16.msra.mxu0 0
  %2739 = vmatpush.bf16.msra.mxu0 0
  %2740 = vmatpush.bf16.msra.mxu0 %v2700
  %2741 = vmatmul.bf16.gmra.mxu0 %v2691
  %v2742 = vpop.f32.mrf.mxu0
  %v2743 = vadd.f32 0.0, %v2742
  %v2744 = vpop.f32.mrf.mxu0
  %v2745 = vadd.f32 0.0, %v2744
  %2746 = vdwg.mxu0
  %2747 = vmatpush.bf16.msra.mxu0 0
  %2748 = vmatpush.bf16.msra.mxu0 0
  %2749 = vmatpush.bf16.msra.mxu0 0
  %2750 = vmatpush.bf16.msra.mxu0 0
  %2751 = vmatpush.bf16.msra.mxu0 0
  %2752 = vmatpush.bf16.msra.mxu0 0
  %2753 = vmatpush.bf16.msra.mxu0 0
  %2754 = vmatpush.bf16.msra.mxu0 %v2703
  %2755 = vmatmul.bf16.gmra.mxu0 %v2691
  %v2756 = vpop.f32.mrf.mxu0
  %v2757 = vadd.f32 0.0, %v2756
  %v2758 = vpop.f32.mrf.mxu0
  %v2759 = vadd.f32 0.0, %v2758
  %2760 = vdwg.mxu0
  %v2761 = vadd.f32 %v2273, %v2715
  %v2762 = vadd.f32 %v2274, %v2729
  %v2763 = vadd.f32 %v2275, %v2743
  %v2764 = vadd.f32 %v2276, %v2757
  %v2765 = vadd.f32 %v2277, %v2717
  %v2766 = vadd.f32 %v2278, %v2731
  %v2767 = vadd.f32 %v2279, %v2745
  %v2768 = vadd.f32 %v2280, %v2759
  %s2769 = scalar_lea.vmem %s33, 16
  %v2770 = vld [vmem:[%s2769] sm:$0xf]
  %v2771 = vld [vmem:[%s2769 + $0x4] sm:$0x3]
  %v2772 = vpack.c.bf16 %v2674, %v2674
  %v2773 = vpack.c.bf16 %v2675, %v2675
  %v2774 = vpack.c.bf16 %v2676, %v2676
  %v2775 = vpack.c.bf16 %v2677, %v2677
  %v2778 = vunpack.c.l.b16 %v2770
  %v2779 = vunpack.c.l.b16 %v2771
  %v2780 = vpack.c.b16 %v2779, %v2778
  %v2782 = vsel %vm236, %v2780, 0
  %v2785 = vsel %vm240, %v2772, 0
  %v2788 = vsel %vm240, %v2773, 0
  %v2791 = vsel %vm240, %v2774, 0
  %v2794 = vsel %vm240, %v2775, 0
  %2796 = vmatpush.bf16.msra.mxu0 0
  %2797 = vmatpush.bf16.msra.mxu0 0
  %2798 = vmatpush.bf16.msra.mxu0 0
  %2799 = vmatpush.bf16.msra.mxu0 0
  %2800 = vmatpush.bf16.msra.mxu0 0
  %2801 = vmatpush.bf16.msra.mxu0 0
  %2802 = vmatpush.bf16.msra.mxu0 0
  %2803 = vmatpush.bf16.msra.mxu0 %v2785
  %2804 = vmatmul.bf16.gmra.mxu0 %v2782
  %v2805 = vpop.f32.mrf.mxu0
  %v2806 = vadd.f32 0.0, %v2805
  %v2807 = vpop.f32.mrf.mxu0
  %v2808 = vadd.f32 0.0, %v2807
  %2809 = vdwg.mxu0
  %2810 = vmatpush.bf16.msra.mxu0 0
  %2811 = vmatpush.bf16.msra.mxu0 0
  %2812 = vmatpush.bf16.msra.mxu0 0
  %2813 = vmatpush.bf16.msra.mxu0 0
  %2814 = vmatpush.bf16.msra.mxu0 0
  %2815 = vmatpush.bf16.msra.mxu0 0
  %2816 = vmatpush.bf16.msra.mxu0 0
  %2817 = vmatpush.bf16.msra.mxu0 %v2788
  %2818 = vmatmul.bf16.gmra.mxu0 %v2782
  %v2819 = vpop.f32.mrf.mxu0
  %v2820 = vadd.f32 0.0, %v2819
  %v2821 = vpop.f32.mrf.mxu0
  %v2822 = vadd.f32 0.0, %v2821
  %2823 = vdwg.mxu0
  %2824 = vmatpush.bf16.msra.mxu0 0
  %2825 = vmatpush.bf16.msra.mxu0 0
  %2826 = vmatpush.bf16.msra.mxu0 0
  %2827 = vmatpush.bf16.msra.mxu0 0
  %2828 = vmatpush.bf16.msra.mxu0 0
  %2829 = vmatpush.bf16.msra.mxu0 0
  %2830 = vmatpush.bf16.msra.mxu0 0
  %2831 = vmatpush.bf16.msra.mxu0 %v2791
  %2832 = vmatmul.bf16.gmra.mxu0 %v2782
  %v2833 = vpop.f32.mrf.mxu0
  %v2834 = vadd.f32 0.0, %v2833
  %v2835 = vpop.f32.mrf.mxu0
  %v2836 = vadd.f32 0.0, %v2835
  %2837 = vdwg.mxu0
  %2838 = vmatpush.bf16.msra.mxu0 0
  %2839 = vmatpush.bf16.msra.mxu0 0
  %2840 = vmatpush.bf16.msra.mxu0 0
  %2841 = vmatpush.bf16.msra.mxu0 0
  %2842 = vmatpush.bf16.msra.mxu0 0
  %2843 = vmatpush.bf16.msra.mxu0 0
  %2844 = vmatpush.bf16.msra.mxu0 0
  %2845 = vmatpush.bf16.msra.mxu0 %v2794
  %2846 = vmatmul.bf16.gmra.mxu0 %v2782
  %v2847 = vpop.f32.mrf.mxu0
  %v2848 = vadd.f32 0.0, %v2847
  %v2849 = vpop.f32.mrf.mxu0
  %v2850 = vadd.f32 0.0, %v2849
  %2851 = vdwg.mxu0
  %v2852 = vadd.f32 %v2761, %v2806
  %v2853 = vadd.f32 %v2762, %v2820
  %v2854 = vadd.f32 %v2763, %v2834
  %v2855 = vadd.f32 %v2764, %v2848
  %v2856 = vadd.f32 %v2765, %v2808
  %v2857 = vadd.f32 %v2766, %v2822
  %v2858 = vadd.f32 %v2767, %v2836
  %v2859 = vadd.f32 %v2768, %v2850
  %s2860 = scalar_lea.vmem %s9, 768
  %v2861 = vld [vmem:[%s2860] sm:$0xff]
  %v2862 = vld [vmem:[%s2860 + $0x8] sm:$0xff]
  %v2863 = vld [vmem:[%s2860 + $0x10] sm:$0xff]
  %v2864 = vld [vmem:[%s2860 + $0x18] sm:$0xff]
  %v2865 = vld [vmem:[%s2860 + $0x20] sm:$0xff]
  %v2866 = vld [vmem:[%s2860 + $0x28] sm:$0xff]
  %v2867 = vld [vmem:[%s2860 + $0x30] sm:$0xff]
  %v2868 = vld [vmem:[%s2860 + $0x38] sm:$0xff]
  %v2869 = vld [vmem:[%s2860 + $0x40] sm:$0xff]
  %v2870 = vld [vmem:[%s2860 + $0x48] sm:$0xff]
  %v2871 = vld [vmem:[%s2860 + $0x50] sm:$0xff]
  %v2872 = vld [vmem:[%s2860 + $0x58] sm:$0xff]
  %v2873 = vld [vmem:[%s2860 + $0x60] sm:$0xff]
  %v2874 = vld [vmem:[%s2860 + $0x68] sm:$0xff]
  %v2875 = vld [vmem:[%s2860 + $0x70] sm:$0xff]
  %v2876 = vld [vmem:[%s2860 + $0x78] sm:$0xff]
  %v2877 = vld [vmem:[%s2860 + $0x80] sm:$0xff]
  %v2878 = vld [vmem:[%s2860 + $0x88] sm:$0xff]
  %v2879 = vld [vmem:[%s2860 + $0x90] sm:$0xff]
  %v2880 = vld [vmem:[%s2860 + $0x98] sm:$0xff]
  %v2881 = vld [vmem:[%s2860 + $0xa0] sm:$0xff]
  %v2882 = vld [vmem:[%s2860 + $0xa8] sm:$0xff]
  %v2883 = vld [vmem:[%s2860 + $0xb0] sm:$0xff]
  %v2884 = vld [vmem:[%s2860 + $0xb8] sm:$0xff]
  %v2885 = vld [vmem:[%s2860 + $0xc0] sm:$0xff]
  %v2886 = vld [vmem:[%s2860 + $0xc8] sm:$0xff]
  %v2887 = vld [vmem:[%s2860 + $0xd0] sm:$0xff]
  %v2888 = vld [vmem:[%s2860 + $0xd8] sm:$0xff]
  %v2889 = vld [vmem:[%s2860 + $0xe0] sm:$0xff]
  %v2890 = vld [vmem:[%s2860 + $0xe8] sm:$0xff]
  %v2891 = vld [vmem:[%s2860 + $0xf0] sm:$0xff]
  %v2892 = vld [vmem:[%s2860 + $0xf8] sm:$0xff]
  %v2925 = vunpack.c.l.b16 %v2861
  %v2926 = vunpack.c.h.b16 %v2861
  %v2927 = vunpack.c.l.b16 %v2862
  %v2928 = vunpack.c.h.b16 %v2862
  %v2929 = vunpack.c.l.b16 %v2863
  %v2930 = vunpack.c.h.b16 %v2863
  %v2931 = vunpack.c.l.b16 %v2864
  %v2932 = vunpack.c.h.b16 %v2864
  %v2933 = vunpack.c.l.b16 %v2865
  %v2934 = vunpack.c.h.b16 %v2865
  %v2935 = vunpack.c.l.b16 %v2866
  %v2936 = vunpack.c.h.b16 %v2866
  %v2937 = vunpack.c.l.b16 %v2867
  %v2938 = vunpack.c.h.b16 %v2867
  %v2939 = vunpack.c.l.b16 %v2868
  %v2940 = vunpack.c.h.b16 %v2868
  %v2941 = vunpack.c.l.b16 %v2869
  %v2942 = vunpack.c.h.b16 %v2869
  %v2943 = vunpack.c.l.b16 %v2870
  %v2944 = vunpack.c.h.b16 %v2870
  %v2945 = vunpack.c.l.b16 %v2871
  %v2946 = vunpack.c.h.b16 %v2871
  %v2947 = vunpack.c.l.b16 %v2872
  %v2948 = vunpack.c.h.b16 %v2872
  %v2949 = vunpack.c.l.b16 %v2873
  %v2950 = vunpack.c.h.b16 %v2873
  %v2951 = vunpack.c.l.b16 %v2874
  %v2952 = vunpack.c.h.b16 %v2874
  %v2953 = vunpack.c.l.b16 %v2875
  %v2954 = vunpack.c.h.b16 %v2875
  %v2955 = vunpack.c.l.b16 %v2876
  %v2956 = vunpack.c.h.b16 %v2876
  %v2957 = vunpack.c.l.b16 %v2877
  %v2958 = vunpack.c.h.b16 %v2877
  %v2959 = vunpack.c.l.b16 %v2878
  %v2960 = vunpack.c.h.b16 %v2878
  %v2961 = vunpack.c.l.b16 %v2879
  %v2962 = vunpack.c.h.b16 %v2879
  %v2963 = vunpack.c.l.b16 %v2880
  %v2964 = vunpack.c.h.b16 %v2880
  %v2965 = vunpack.c.l.b16 %v2881
  %v2966 = vunpack.c.h.b16 %v2881
  %v2967 = vunpack.c.l.b16 %v2882
  %v2968 = vunpack.c.h.b16 %v2882
  %v2969 = vunpack.c.l.b16 %v2883
  %v2970 = vunpack.c.h.b16 %v2883
  %v2971 = vunpack.c.l.b16 %v2884
  %v2972 = vunpack.c.h.b16 %v2884
  %v2973 = vunpack.c.l.b16 %v2885
  %v2974 = vunpack.c.h.b16 %v2885
  %v2975 = vunpack.c.l.b16 %v2886
  %v2976 = vunpack.c.h.b16 %v2886
  %v2977 = vunpack.c.l.b16 %v2887
  %v2978 = vunpack.c.h.b16 %v2887
  %v2979 = vunpack.c.l.b16 %v2888
  %v2980 = vunpack.c.h.b16 %v2888
  %v2981 = vunpack.c.l.b16 %v2889
  %v2982 = vunpack.c.h.b16 %v2889
  %v2983 = vunpack.c.l.b16 %v2890
  %v2984 = vunpack.c.h.b16 %v2890
  %v2985 = vunpack.c.l.b16 %v2891
  %v2986 = vunpack.c.h.b16 %v2891
  %v2987 = vunpack.c.l.b16 %v2892
  %v2988 = vunpack.c.h.b16 %v2892
  %v2989 = vpack.c.b16 %v2929, %v2925
  %v2990 = vpack.c.b16 %v2930, %v2926
  %v2991 = vpack.c.b16 %v2931, %v2927
  %v2992 = vpack.c.b16 %v2932, %v2928
  %v2993 = vpack.c.b16 %v2937, %v2933
  %v2994 = vpack.c.b16 %v2938, %v2934
  %v2995 = vpack.c.b16 %v2939, %v2935
  %v2996 = vpack.c.b16 %v2940, %v2936
  %v2997 = vpack.c.b16 %v2945, %v2941
  %v2998 = vpack.c.b16 %v2946, %v2942
  %v2999 = vpack.c.b16 %v2947, %v2943
  %v3000 = vpack.c.b16 %v2948, %v2944
  %v3001 = vpack.c.b16 %v2953, %v2949
  %v3002 = vpack.c.b16 %v2954, %v2950
  %v3003 = vpack.c.b16 %v2955, %v2951
  %v3004 = vpack.c.b16 %v2956, %v2952
  %v3005 = vpack.c.b16 %v2961, %v2957
  %v3006 = vpack.c.b16 %v2962, %v2958
  %v3007 = vpack.c.b16 %v2963, %v2959
  %v3008 = vpack.c.b16 %v2964, %v2960
  %v3009 = vpack.c.b16 %v2969, %v2965
  %v3010 = vpack.c.b16 %v2970, %v2966
  %v3011 = vpack.c.b16 %v2971, %v2967
  %v3012 = vpack.c.b16 %v2972, %v2968
  %v3013 = vpack.c.b16 %v2977, %v2973
  %v3014 = vpack.c.b16 %v2978, %v2974
  %v3015 = vpack.c.b16 %v2979, %v2975
  %v3016 = vpack.c.b16 %v2980, %v2976
  %v3017 = vpack.c.b16 %v2985, %v2981
  %v3018 = vpack.c.b16 %v2986, %v2982
  %v3019 = vpack.c.b16 %v2987, %v2983
  %v3020 = vpack.c.b16 %v2988, %v2984
  %3053 = vmatpush.bf16.msra.mxu0 %v3017
  %3054 = vmatpush.bf16.msra.mxu0 %v3013
  %3055 = vmatpush.bf16.msra.mxu0 %v3009
  %3056 = vmatpush.bf16.msra.mxu0 %v3005
  %3057 = vmatpush.bf16.msra.mxu0 %v3001
  %3058 = vmatpush.bf16.msra.mxu0 %v2997
  %3059 = vmatpush.bf16.msra.mxu0 %v2993
  %3060 = vmatpush.bf16.msra.mxu0 %v2989
  %3061 = vmatmul.bf16.gmra.mxu0 %v1143
  %v3062 = vpop.f32.mrf.mxu0
  %v3063 = vadd.f32 0.0, %v3062
  %v3064 = vpop.f32.mrf.mxu0
  %3065 = vdwg.mxu0
  %3066 = vmatpush.bf16.msra.mxu0 %v3018
  %3067 = vmatpush.bf16.msra.mxu0 %v3014
  %3068 = vmatpush.bf16.msra.mxu0 %v3010
  %3069 = vmatpush.bf16.msra.mxu0 %v3006
  %3070 = vmatpush.bf16.msra.mxu0 %v3002
  %3071 = vmatpush.bf16.msra.mxu0 %v2998
  %3072 = vmatpush.bf16.msra.mxu0 %v2994
  %3073 = vmatpush.bf16.msra.mxu0 %v2990
  %3074 = vmatmul.bf16.gmra.mxu0 %v1143
  %v3075 = vpop.f32.mrf.mxu0
  %v3076 = vadd.f32 0.0, %v3075
  %v3077 = vpop.f32.mrf.mxu0
  %3078 = vdwg.mxu0
  %3079 = vmatpush.bf16.msra.mxu0 %v3019
  %3080 = vmatpush.bf16.msra.mxu0 %v3015
  %3081 = vmatpush.bf16.msra.mxu0 %v3011
  %3082 = vmatpush.bf16.msra.mxu0 %v3007
  %3083 = vmatpush.bf16.msra.mxu0 %v3003
  %3084 = vmatpush.bf16.msra.mxu0 %v2999
  %3085 = vmatpush.bf16.msra.mxu0 %v2995
  %3086 = vmatpush.bf16.msra.mxu0 %v2991
  %3087 = vmatmul.bf16.gmra.mxu0 %v1143
  %v3088 = vpop.f32.mrf.mxu0
  %v3089 = vadd.f32 0.0, %v3088
  %v3090 = vpop.f32.mrf.mxu0
  %3091 = vdwg.mxu0
  %3092 = vmatpush.bf16.msra.mxu0 %v3020
  %3093 = vmatpush.bf16.msra.mxu0 %v3016
  %3094 = vmatpush.bf16.msra.mxu0 %v3012
  %3095 = vmatpush.bf16.msra.mxu0 %v3008
  %3096 = vmatpush.bf16.msra.mxu0 %v3004
  %3097 = vmatpush.bf16.msra.mxu0 %v3000
  %3098 = vmatpush.bf16.msra.mxu0 %v2996
  %3099 = vmatpush.bf16.msra.mxu0 %v2992
  %3100 = vmatmul.bf16.gmra.mxu0 %v1143
  %v3101 = vpop.f32.mrf.mxu0
  %v3102 = vadd.f32 0.0, %v3101
  %v3103 = vpop.f32.mrf.mxu0
  %3104 = vdwg.mxu0
  %s3105 = scalar_lea.vmem %s5, 240
  %v3106 = vld [vmem:[%s3105] sm:$0xff]
  %v3107 = vld [vmem:[%s3105 + $0x8] sm:$0xff]
  %v3108 = vld [vmem:[%s3105 + $0x10] sm:$0xff]
  %v3109 = vld [vmem:[%s3105 + $0x18] sm:$0xff]
  %v3110 = vld [vmem:[%s3105 + $0x20] sm:$0xff]
  %v3111 = vld [vmem:[%s3105 + $0x28] sm:$0xff]
  %v3112 = vld [vmem:[%s3105 + $0x30] sm:$0xff]
  %v3113 = vld [vmem:[%s3105 + $0x38] sm:$0xff]
  %v3114 = vld [vmem:[%s3105 + $0x40] sm:$0x33]
  %v3115 = vld [vmem:[%s3105 + $0x48] sm:$0x33]
  %v3126 = vunpack.c.l.b16 %v3106
  %v3127 = vunpack.c.h.b16 %v3106
  %v3128 = vunpack.c.l.b16 %v3107
  %v3129 = vunpack.c.h.b16 %v3107
  %v3130 = vunpack.c.l.b16 %v3108
  %v3131 = vunpack.c.h.b16 %v3108
  %v3132 = vunpack.c.l.b16 %v3109
  %v3133 = vunpack.c.h.b16 %v3109
  %v3134 = vunpack.c.l.b16 %v3110
  %v3135 = vunpack.c.h.b16 %v3110
  %v3136 = vunpack.c.l.b16 %v3111
  %v3137 = vunpack.c.h.b16 %v3111
  %v3138 = vunpack.c.l.b16 %v3112
  %v3139 = vunpack.c.h.b16 %v3112
  %v3140 = vunpack.c.l.b16 %v3113
  %v3141 = vunpack.c.h.b16 %v3113
  %v3142 = vunpack.c.l.b16 %v3114
  %v3143 = vunpack.c.h.b16 %v3114
  %v3144 = vunpack.c.l.b16 %v3115
  %v3145 = vunpack.c.h.b16 %v3115
  %v3146 = vpack.c.b16 %v3130, %v3126
  %v3147 = vpack.c.b16 %v3131, %v3127
  %v3148 = vpack.c.b16 %v3132, %v3128
  %v3149 = vpack.c.b16 %v3133, %v3129
  %v3150 = vpack.c.b16 %v3138, %v3134
  %v3151 = vpack.c.b16 %v3139, %v3135
  %v3152 = vpack.c.b16 %v3140, %v3136
  %v3153 = vpack.c.b16 %v3141, %v3137
  %v3154 = vpack.c.b16 %v3142, %v3142
  %v3155 = vpack.c.b16 %v3143, %v3143
  %v3156 = vpack.c.b16 %v3144, %v3144
  %v3157 = vpack.c.b16 %v3145, %v3145
  %v3167 = vsel %vm153, %v3154, 0
  %v3170 = vsel %vm153, %v3155, 0
  %v3173 = vsel %vm153, %v3156, 0
  %v3176 = vsel %vm153, %v3157, 0
  %3178 = vmatpush.bf16.msra.mxu0 0
  %3179 = vmatpush.bf16.msra.mxu0 0
  %3180 = vmatpush.bf16.msra.mxu0 0
  %3181 = vmatpush.bf16.msra.mxu0 0
  %3182 = vmatpush.bf16.msra.mxu0 0
  %3183 = vmatpush.bf16.msra.mxu0 %v3167
  %3184 = vmatpush.bf16.msra.mxu0 %v3150
  %3185 = vmatpush.bf16.msra.mxu0 %v3146
  %3186 = vmatmul.bf16.gmra.mxu0 %v151
  %v3187 = vpop.f32.mrf.mxu0
  %v3188 = vadd.f32 %v132, %v3187
  %v3189 = vpop.f32.mrf.mxu0
  %3190 = vdwg.mxu0
  %3191 = vmatpush.bf16.msra.mxu0 0
  %3192 = vmatpush.bf16.msra.mxu0 0
  %3193 = vmatpush.bf16.msra.mxu0 0
  %3194 = vmatpush.bf16.msra.mxu0 0
  %3195 = vmatpush.bf16.msra.mxu0 0
  %3196 = vmatpush.bf16.msra.mxu0 %v3170
  %3197 = vmatpush.bf16.msra.mxu0 %v3151
  %3198 = vmatpush.bf16.msra.mxu0 %v3147
  %3199 = vmatmul.bf16.gmra.mxu0 %v151
  %v3200 = vpop.f32.mrf.mxu0
  %v3201 = vadd.f32 %v132, %v3200
  %v3202 = vpop.f32.mrf.mxu0
  %3203 = vdwg.mxu0
  %3204 = vmatpush.bf16.msra.mxu0 0
  %3205 = vmatpush.bf16.msra.mxu0 0
  %3206 = vmatpush.bf16.msra.mxu0 0
  %3207 = vmatpush.bf16.msra.mxu0 0
  %3208 = vmatpush.bf16.msra.mxu0 0
  %3209 = vmatpush.bf16.msra.mxu0 %v3173
  %3210 = vmatpush.bf16.msra.mxu0 %v3152
  %3211 = vmatpush.bf16.msra.mxu0 %v3148
  %3212 = vmatmul.bf16.gmra.mxu0 %v151
  %v3213 = vpop.f32.mrf.mxu0
  %v3214 = vadd.f32 %v132, %v3213
  %v3215 = vpop.f32.mrf.mxu0
  %3216 = vdwg.mxu0
  %3217 = vmatpush.bf16.msra.mxu0 0
  %3218 = vmatpush.bf16.msra.mxu0 0
  %3219 = vmatpush.bf16.msra.mxu0 0
  %3220 = vmatpush.bf16.msra.mxu0 0
  %3221 = vmatpush.bf16.msra.mxu0 0
  %3222 = vmatpush.bf16.msra.mxu0 %v3176
  %3223 = vmatpush.bf16.msra.mxu0 %v3153
  %3224 = vmatpush.bf16.msra.mxu0 %v3149
  %3225 = vmatmul.bf16.gmra.mxu0 %v151
  %v3226 = vpop.f32.mrf.mxu0
  %v3227 = vadd.f32 %v132, %v3226
  %v3228 = vpop.f32.mrf.mxu0
  %3229 = vdwg.mxu0
  %vm3230 = vcmp.gt.f32.partialorder %v3188, 0.0
  %vm3231 = vcmp.gt.f32.partialorder %v3201, 0.0
  %vm3232 = vcmp.gt.f32.partialorder %v3214, 0.0
  %vm3233 = vcmp.gt.f32.partialorder %v3227, 0.0
  %v3234 = vmul.f32 %v3188, 0.1
  %v3235 = vmul.f32 %v3201, 0.1
  %v3236 = vmul.f32 %v3214, 0.1
  %v3237 = vmul.f32 %v3227, 0.1
  %v3238 = vsel %vm3230, %v3188, %v3234
  %v3239 = vsel %vm3231, %v3201, %v3235
  %v3240 = vsel %vm3232, %v3214, %v3236
  %v3241 = vsel %vm3233, %v3227, %v3237
  %s3242 = scalar_lea.vmem %s7, 12
  %v3243 = vld [vmem:[%s3242] sm:$0xf]
  %v3245 = vperm.slane %v3243, 0
  %v3246 = vperm.slane %v3243, 1
  %v3247 = vperm.slane %v3243, 2
  %v3248 = vperm.slane %v3243, 3
  %v3253 = vmul.f32 %v3238, %v3245
  %v3254 = vmul.f32 %v3239, %v3246
  %v3255 = vmul.f32 %v3240, %v3247
  %v3256 = vmul.f32 %v3241, %v3248
  %s3257 = scalar_lea.vmem %s31, 24
  %v3258 = vld [vmem:[%s3257] sm:$0xf]
  %v3259 = vld [vmem:[%s3257 + $0x4] sm:$0x3]
  %v3260 = vpack.c.bf16 %v3063, %v3063
  %v3261 = vpack.c.bf16 %v3076, %v3076
  %v3262 = vpack.c.bf16 %v3089, %v3089
  %v3263 = vpack.c.bf16 %v3102, %v3102
  %v3266 = vunpack.c.l.b16 %v3258
  %v3267 = vunpack.c.l.b16 %v3259
  %v3268 = vpack.c.b16 %v3267, %v3266
  %v3270 = vsel %vm236, %v3268, 0
  %v3273 = vsel %vm240, %v3260, 0
  %v3276 = vsel %vm240, %v3261, 0
  %v3279 = vsel %vm240, %v3262, 0
  %v3282 = vsel %vm240, %v3263, 0
  %3284 = vmatpush.bf16.msra.mxu0 0
  %3285 = vmatpush.bf16.msra.mxu0 0
  %3286 = vmatpush.bf16.msra.mxu0 0
  %3287 = vmatpush.bf16.msra.mxu0 0
  %3288 = vmatpush.bf16.msra.mxu0 0
  %3289 = vmatpush.bf16.msra.mxu0 0
  %3290 = vmatpush.bf16.msra.mxu0 0
  %3291 = vmatpush.bf16.msra.mxu0 %v3273
  %3292 = vmatmul.bf16.gmra.mxu0 %v3270
  %v3293 = vpop.f32.mrf.mxu0
  %v3294 = vadd.f32 0.0, %v3293
  %v3295 = vpop.f32.mrf.mxu0
  %v3296 = vadd.f32 0.0, %v3295
  %3297 = vdwg.mxu0
  %3298 = vmatpush.bf16.msra.mxu0 0
  %3299 = vmatpush.bf16.msra.mxu0 0
  %3300 = vmatpush.bf16.msra.mxu0 0
  %3301 = vmatpush.bf16.msra.mxu0 0
  %3302 = vmatpush.bf16.msra.mxu0 0
  %3303 = vmatpush.bf16.msra.mxu0 0
  %3304 = vmatpush.bf16.msra.mxu0 0
  %3305 = vmatpush.bf16.msra.mxu0 %v3276
  %3306 = vmatmul.bf16.gmra.mxu0 %v3270
  %v3307 = vpop.f32.mrf.mxu0
  %v3308 = vadd.f32 0.0, %v3307
  %v3309 = vpop.f32.mrf.mxu0
  %v3310 = vadd.f32 0.0, %v3309
  %3311 = vdwg.mxu0
  %3312 = vmatpush.bf16.msra.mxu0 0
  %3313 = vmatpush.bf16.msra.mxu0 0
  %3314 = vmatpush.bf16.msra.mxu0 0
  %3315 = vmatpush.bf16.msra.mxu0 0
  %3316 = vmatpush.bf16.msra.mxu0 0
  %3317 = vmatpush.bf16.msra.mxu0 0
  %3318 = vmatpush.bf16.msra.mxu0 0
  %3319 = vmatpush.bf16.msra.mxu0 %v3279
  %3320 = vmatmul.bf16.gmra.mxu0 %v3270
  %v3321 = vpop.f32.mrf.mxu0
  %v3322 = vadd.f32 0.0, %v3321
  %v3323 = vpop.f32.mrf.mxu0
  %v3324 = vadd.f32 0.0, %v3323
  %3325 = vdwg.mxu0
  %3326 = vmatpush.bf16.msra.mxu0 0
  %3327 = vmatpush.bf16.msra.mxu0 0
  %3328 = vmatpush.bf16.msra.mxu0 0
  %3329 = vmatpush.bf16.msra.mxu0 0
  %3330 = vmatpush.bf16.msra.mxu0 0
  %3331 = vmatpush.bf16.msra.mxu0 0
  %3332 = vmatpush.bf16.msra.mxu0 0
  %3333 = vmatpush.bf16.msra.mxu0 %v3282
  %3334 = vmatmul.bf16.gmra.mxu0 %v3270
  %v3335 = vpop.f32.mrf.mxu0
  %v3336 = vadd.f32 0.0, %v3335
  %v3337 = vpop.f32.mrf.mxu0
  %v3338 = vadd.f32 0.0, %v3337
  %3339 = vdwg.mxu0
  %v3340 = vadd.f32 %v2852, %v3294
  %v3341 = vadd.f32 %v2853, %v3308
  %v3342 = vadd.f32 %v2854, %v3322
  %v3343 = vadd.f32 %v2855, %v3336
  %v3344 = vadd.f32 %v2856, %v3296
  %v3345 = vadd.f32 %v2857, %v3310
  %v3346 = vadd.f32 %v2858, %v3324
  %v3347 = vadd.f32 %v2859, %v3338
  %s3348 = scalar_lea.vmem %s33, 24
  %v3349 = vld [vmem:[%s3348] sm:$0xf]
  %v3350 = vld [vmem:[%s3348 + $0x4] sm:$0x3]
  %v3351 = vpack.c.bf16 %v3253, %v3253
  %v3352 = vpack.c.bf16 %v3254, %v3254
  %v3353 = vpack.c.bf16 %v3255, %v3255
  %v3354 = vpack.c.bf16 %v3256, %v3256
  %v3357 = vunpack.c.l.b16 %v3349
  %v3358 = vunpack.c.l.b16 %v3350
  %v3359 = vpack.c.b16 %v3358, %v3357
  %v3361 = vsel %vm236, %v3359, 0
  %v3364 = vsel %vm240, %v3351, 0
  %v3367 = vsel %vm240, %v3352, 0
  %v3370 = vsel %vm240, %v3353, 0
  %v3373 = vsel %vm240, %v3354, 0
  %3375 = vmatpush.bf16.msra.mxu0 0
  %3376 = vmatpush.bf16.msra.mxu0 0
  %3377 = vmatpush.bf16.msra.mxu0 0
  %3378 = vmatpush.bf16.msra.mxu0 0
  %3379 = vmatpush.bf16.msra.mxu0 0
  %3380 = vmatpush.bf16.msra.mxu0 0
  %3381 = vmatpush.bf16.msra.mxu0 0
  %3382 = vmatpush.bf16.msra.mxu0 %v3364
  %3383 = vmatmul.bf16.gmra.mxu0 %v3361
  %v3384 = vpop.f32.mrf.mxu0
  %v3385 = vadd.f32 0.0, %v3384
  %v3386 = vpop.f32.mrf.mxu0
  %v3387 = vadd.f32 0.0, %v3386
  %3388 = vdwg.mxu0
  %3389 = vmatpush.bf16.msra.mxu0 0
  %3390 = vmatpush.bf16.msra.mxu0 0
  %3391 = vmatpush.bf16.msra.mxu0 0
  %3392 = vmatpush.bf16.msra.mxu0 0
  %3393 = vmatpush.bf16.msra.mxu0 0
  %3394 = vmatpush.bf16.msra.mxu0 0
  %3395 = vmatpush.bf16.msra.mxu0 0
  %3396 = vmatpush.bf16.msra.mxu0 %v3367
  %3397 = vmatmul.bf16.gmra.mxu0 %v3361
  %v3398 = vpop.f32.mrf.mxu0
  %v3399 = vadd.f32 0.0, %v3398
  %v3400 = vpop.f32.mrf.mxu0
  %v3401 = vadd.f32 0.0, %v3400
  %3402 = vdwg.mxu0
  %3403 = vmatpush.bf16.msra.mxu0 0
  %3404 = vmatpush.bf16.msra.mxu0 0
  %3405 = vmatpush.bf16.msra.mxu0 0
  %3406 = vmatpush.bf16.msra.mxu0 0
  %3407 = vmatpush.bf16.msra.mxu0 0
  %3408 = vmatpush.bf16.msra.mxu0 0
  %3409 = vmatpush.bf16.msra.mxu0 0
  %3410 = vmatpush.bf16.msra.mxu0 %v3370
  %3411 = vmatmul.bf16.gmra.mxu0 %v3361
  %v3412 = vpop.f32.mrf.mxu0
  %v3413 = vadd.f32 0.0, %v3412
  %v3414 = vpop.f32.mrf.mxu0
  %v3415 = vadd.f32 0.0, %v3414
  %3416 = vdwg.mxu0
  %3417 = vmatpush.bf16.msra.mxu0 0
  %3418 = vmatpush.bf16.msra.mxu0 0
  %3419 = vmatpush.bf16.msra.mxu0 0
  %3420 = vmatpush.bf16.msra.mxu0 0
  %3421 = vmatpush.bf16.msra.mxu0 0
  %3422 = vmatpush.bf16.msra.mxu0 0
  %3423 = vmatpush.bf16.msra.mxu0 0
  %3424 = vmatpush.bf16.msra.mxu0 %v3373
  %3425 = vmatmul.bf16.gmra.mxu0 %v3361
  %v3426 = vpop.f32.mrf.mxu0
  %v3427 = vadd.f32 0.0, %v3426
  %v3428 = vpop.f32.mrf.mxu0
  %v3429 = vadd.f32 0.0, %v3428
  %3430 = vdwg.mxu0
  %v3431 = vadd.f32 %v3340, %v3385
  %v3432 = vadd.f32 %v3341, %v3399
  %v3433 = vadd.f32 %v3342, %v3413
  %v3434 = vadd.f32 %v3343, %v3427
  %v3435 = vadd.f32 %v3344, %v3387
  %v3436 = vadd.f32 %v3345, %v3401
  %v3437 = vadd.f32 %v3346, %v3415
  %v3438 = vadd.f32 %v3347, %v3429
  %s3439 = scalar_lea.vmem %s9, 1024
  %v3440 = vld [vmem:[%s3439] sm:$0xff]
  %v3441 = vld [vmem:[%s3439 + $0x8] sm:$0xff]
  %v3442 = vld [vmem:[%s3439 + $0x10] sm:$0xff]
  %v3443 = vld [vmem:[%s3439 + $0x18] sm:$0xff]
  %v3444 = vld [vmem:[%s3439 + $0x20] sm:$0xff]
  %v3445 = vld [vmem:[%s3439 + $0x28] sm:$0xff]
  %v3446 = vld [vmem:[%s3439 + $0x30] sm:$0xff]
  %v3447 = vld [vmem:[%s3439 + $0x38] sm:$0xff]
  %v3448 = vld [vmem:[%s3439 + $0x40] sm:$0xff]
  %v3449 = vld [vmem:[%s3439 + $0x48] sm:$0xff]
  %v3450 = vld [vmem:[%s3439 + $0x50] sm:$0xff]
  %v3451 = vld [vmem:[%s3439 + $0x58] sm:$0xff]
  %v3452 = vld [vmem:[%s3439 + $0x60] sm:$0xff]
  %v3453 = vld [vmem:[%s3439 + $0x68] sm:$0xff]
  %v3454 = vld [vmem:[%s3439 + $0x70] sm:$0xff]
  %v3455 = vld [vmem:[%s3439 + $0x78] sm:$0xff]
  %v3456 = vld [vmem:[%s3439 + $0x80] sm:$0xff]
  %v3457 = vld [vmem:[%s3439 + $0x88] sm:$0xff]
  %v3458 = vld [vmem:[%s3439 + $0x90] sm:$0xff]
  %v3459 = vld [vmem:[%s3439 + $0x98] sm:$0xff]
  %v3460 = vld [vmem:[%s3439 + $0xa0] sm:$0xff]
  %v3461 = vld [vmem:[%s3439 + $0xa8] sm:$0xff]
  %v3462 = vld [vmem:[%s3439 + $0xb0] sm:$0xff]
  %v3463 = vld [vmem:[%s3439 + $0xb8] sm:$0xff]
  %v3464 = vld [vmem:[%s3439 + $0xc0] sm:$0xff]
  %v3465 = vld [vmem:[%s3439 + $0xc8] sm:$0xff]
  %v3466 = vld [vmem:[%s3439 + $0xd0] sm:$0xff]
  %v3467 = vld [vmem:[%s3439 + $0xd8] sm:$0xff]
  %v3468 = vld [vmem:[%s3439 + $0xe0] sm:$0xff]
  %v3469 = vld [vmem:[%s3439 + $0xe8] sm:$0xff]
  %v3470 = vld [vmem:[%s3439 + $0xf0] sm:$0xff]
  %v3471 = vld [vmem:[%s3439 + $0xf8] sm:$0xff]
  %v3504 = vunpack.c.l.b16 %v3440
  %v3505 = vunpack.c.h.b16 %v3440
  %v3506 = vunpack.c.l.b16 %v3441
  %v3507 = vunpack.c.h.b16 %v3441
  %v3508 = vunpack.c.l.b16 %v3442
  %v3509 = vunpack.c.h.b16 %v3442
  %v3510 = vunpack.c.l.b16 %v3443
  %v3511 = vunpack.c.h.b16 %v3443
  %v3512 = vunpack.c.l.b16 %v3444
  %v3513 = vunpack.c.h.b16 %v3444
  %v3514 = vunpack.c.l.b16 %v3445
  %v3515 = vunpack.c.h.b16 %v3445
  %v3516 = vunpack.c.l.b16 %v3446
  %v3517 = vunpack.c.h.b16 %v3446
  %v3518 = vunpack.c.l.b16 %v3447
  %v3519 = vunpack.c.h.b16 %v3447
  %v3520 = vunpack.c.l.b16 %v3448
  %v3521 = vunpack.c.h.b16 %v3448
  %v3522 = vunpack.c.l.b16 %v3449
  %v3523 = vunpack.c.h.b16 %v3449
  %v3524 = vunpack.c.l.b16 %v3450
  %v3525 = vunpack.c.h.b16 %v3450
  %v3526 = vunpack.c.l.b16 %v3451
  %v3527 = vunpack.c.h.b16 %v3451
  %v3528 = vunpack.c.l.b16 %v3452
  %v3529 = vunpack.c.h.b16 %v3452
  %v3530 = vunpack.c.l.b16 %v3453
  %v3531 = vunpack.c.h.b16 %v3453
  %v3532 = vunpack.c.l.b16 %v3454
  %v3533 = vunpack.c.h.b16 %v3454
  %v3534 = vunpack.c.l.b16 %v3455
  %v3535 = vunpack.c.h.b16 %v3455
  %v3536 = vunpack.c.l.b16 %v3456
  %v3537 = vunpack.c.h.b16 %v3456
  %v3538 = vunpack.c.l.b16 %v3457
  %v3539 = vunpack.c.h.b16 %v3457
  %v3540 = vunpack.c.l.b16 %v3458
  %v3541 = vunpack.c.h.b16 %v3458
  %v3542 = vunpack.c.l.b16 %v3459
  %v3543 = vunpack.c.h.b16 %v3459
  %v3544 = vunpack.c.l.b16 %v3460
  %v3545 = vunpack.c.h.b16 %v3460
  %v3546 = vunpack.c.l.b16 %v3461
  %v3547 = vunpack.c.h.b16 %v3461
  %v3548 = vunpack.c.l.b16 %v3462
  %v3549 = vunpack.c.h.b16 %v3462
  %v3550 = vunpack.c.l.b16 %v3463
  %v3551 = vunpack.c.h.b16 %v3463
  %v3552 = vunpack.c.l.b16 %v3464
  %v3553 = vunpack.c.h.b16 %v3464
  %v3554 = vunpack.c.l.b16 %v3465
  %v3555 = vunpack.c.h.b16 %v3465
  %v3556 = vunpack.c.l.b16 %v3466
  %v3557 = vunpack.c.h.b16 %v3466
  %v3558 = vunpack.c.l.b16 %v3467
  %v3559 = vunpack.c.h.b16 %v3467
  %v3560 = vunpack.c.l.b16 %v3468
  %v3561 = vunpack.c.h.b16 %v3468
  %v3562 = vunpack.c.l.b16 %v3469
  %v3563 = vunpack.c.h.b16 %v3469
  %v3564 = vunpack.c.l.b16 %v3470
  %v3565 = vunpack.c.h.b16 %v3470
  %v3566 = vunpack.c.l.b16 %v3471
  %v3567 = vunpack.c.h.b16 %v3471
  %v3568 = vpack.c.b16 %v3508, %v3504
  %v3569 = vpack.c.b16 %v3509, %v3505
  %v3570 = vpack.c.b16 %v3510, %v3506
  %v3571 = vpack.c.b16 %v3511, %v3507
  %v3572 = vpack.c.b16 %v3516, %v3512
  %v3573 = vpack.c.b16 %v3517, %v3513
  %v3574 = vpack.c.b16 %v3518, %v3514
  %v3575 = vpack.c.b16 %v3519, %v3515
  %v3576 = vpack.c.b16 %v3524, %v3520
  %v3577 = vpack.c.b16 %v3525, %v3521
  %v3578 = vpack.c.b16 %v3526, %v3522
  %v3579 = vpack.c.b16 %v3527, %v3523
  %v3580 = vpack.c.b16 %v3532, %v3528
  %v3581 = vpack.c.b16 %v3533, %v3529
  %v3582 = vpack.c.b16 %v3534, %v3530
  %v3583 = vpack.c.b16 %v3535, %v3531
  %v3584 = vpack.c.b16 %v3540, %v3536
  %v3585 = vpack.c.b16 %v3541, %v3537
  %v3586 = vpack.c.b16 %v3542, %v3538
  %v3587 = vpack.c.b16 %v3543, %v3539
  %v3588 = vpack.c.b16 %v3548, %v3544
  %v3589 = vpack.c.b16 %v3549, %v3545
  %v3590 = vpack.c.b16 %v3550, %v3546
  %v3591 = vpack.c.b16 %v3551, %v3547
  %v3592 = vpack.c.b16 %v3556, %v3552
  %v3593 = vpack.c.b16 %v3557, %v3553
  %v3594 = vpack.c.b16 %v3558, %v3554
  %v3595 = vpack.c.b16 %v3559, %v3555
  %v3596 = vpack.c.b16 %v3564, %v3560
  %v3597 = vpack.c.b16 %v3565, %v3561
  %v3598 = vpack.c.b16 %v3566, %v3562
  %v3599 = vpack.c.b16 %v3567, %v3563
  %3632 = vmatpush.bf16.msra.mxu0 %v3596
  %3633 = vmatpush.bf16.msra.mxu0 %v3592
  %3634 = vmatpush.bf16.msra.mxu0 %v3588
  %3635 = vmatpush.bf16.msra.mxu0 %v3584
  %3636 = vmatpush.bf16.msra.mxu0 %v3580
  %3637 = vmatpush.bf16.msra.mxu0 %v3576
  %3638 = vmatpush.bf16.msra.mxu0 %v3572
  %3639 = vmatpush.bf16.msra.mxu0 %v3568
  %3640 = vmatmul.bf16.gmra.mxu0 %v1143
  %v3641 = vpop.f32.mrf.mxu0
  %v3642 = vadd.f32 0.0, %v3641
  %v3643 = vpop.f32.mrf.mxu0
  %3644 = vdwg.mxu0
  %3645 = vmatpush.bf16.msra.mxu0 %v3597
  %3646 = vmatpush.bf16.msra.mxu0 %v3593
  %3647 = vmatpush.bf16.msra.mxu0 %v3589
  %3648 = vmatpush.bf16.msra.mxu0 %v3585
  %3649 = vmatpush.bf16.msra.mxu0 %v3581
  %3650 = vmatpush.bf16.msra.mxu0 %v3577
  %3651 = vmatpush.bf16.msra.mxu0 %v3573
  %3652 = vmatpush.bf16.msra.mxu0 %v3569
  %3653 = vmatmul.bf16.gmra.mxu0 %v1143
  %v3654 = vpop.f32.mrf.mxu0
  %v3655 = vadd.f32 0.0, %v3654
  %v3656 = vpop.f32.mrf.mxu0
  %3657 = vdwg.mxu0
  %3658 = vmatpush.bf16.msra.mxu0 %v3598
  %3659 = vmatpush.bf16.msra.mxu0 %v3594
  %3660 = vmatpush.bf16.msra.mxu0 %v3590
  %3661 = vmatpush.bf16.msra.mxu0 %v3586
  %3662 = vmatpush.bf16.msra.mxu0 %v3582
  %3663 = vmatpush.bf16.msra.mxu0 %v3578
  %3664 = vmatpush.bf16.msra.mxu0 %v3574
  %3665 = vmatpush.bf16.msra.mxu0 %v3570
  %3666 = vmatmul.bf16.gmra.mxu0 %v1143
  %v3667 = vpop.f32.mrf.mxu0
  %v3668 = vadd.f32 0.0, %v3667
  %v3669 = vpop.f32.mrf.mxu0
  %3670 = vdwg.mxu0
  %3671 = vmatpush.bf16.msra.mxu0 %v3599
  %3672 = vmatpush.bf16.msra.mxu0 %v3595
  %3673 = vmatpush.bf16.msra.mxu0 %v3591
  %3674 = vmatpush.bf16.msra.mxu0 %v3587
  %3675 = vmatpush.bf16.msra.mxu0 %v3583
  %3676 = vmatpush.bf16.msra.mxu0 %v3579
  %3677 = vmatpush.bf16.msra.mxu0 %v3575
  %3678 = vmatpush.bf16.msra.mxu0 %v3571
  %3679 = vmatmul.bf16.gmra.mxu0 %v1143
  %v3680 = vpop.f32.mrf.mxu0
  %v3681 = vadd.f32 0.0, %v3680
  %v3682 = vpop.f32.mrf.mxu0
  %3683 = vdwg.mxu0
  %s3684 = scalar_lea.vmem %s5, 320
  %v3685 = vld [vmem:[%s3684] sm:$0xff]
  %v3686 = vld [vmem:[%s3684 + $0x8] sm:$0xff]
  %v3687 = vld [vmem:[%s3684 + $0x10] sm:$0xff]
  %v3688 = vld [vmem:[%s3684 + $0x18] sm:$0xff]
  %v3689 = vld [vmem:[%s3684 + $0x20] sm:$0xff]
  %v3690 = vld [vmem:[%s3684 + $0x28] sm:$0xff]
  %v3691 = vld [vmem:[%s3684 + $0x30] sm:$0xff]
  %v3692 = vld [vmem:[%s3684 + $0x38] sm:$0xff]
  %v3693 = vld [vmem:[%s3684 + $0x40] sm:$0x33]
  %v3694 = vld [vmem:[%s3684 + $0x48] sm:$0x33]
  %v3705 = vunpack.c.l.b16 %v3685
  %v3706 = vunpack.c.h.b16 %v3685
  %v3707 = vunpack.c.l.b16 %v3686
  %v3708 = vunpack.c.h.b16 %v3686
  %v3709 = vunpack.c.l.b16 %v3687
  %v3710 = vunpack.c.h.b16 %v3687
  %v3711 = vunpack.c.l.b16 %v3688
  %v3712 = vunpack.c.h.b16 %v3688
  %v3713 = vunpack.c.l.b16 %v3689
  %v3714 = vunpack.c.h.b16 %v3689
  %v3715 = vunpack.c.l.b16 %v3690
  %v3716 = vunpack.c.h.b16 %v3690
  %v3717 = vunpack.c.l.b16 %v3691
  %v3718 = vunpack.c.h.b16 %v3691
  %v3719 = vunpack.c.l.b16 %v3692
  %v3720 = vunpack.c.h.b16 %v3692
  %v3721 = vunpack.c.l.b16 %v3693
  %v3722 = vunpack.c.h.b16 %v3693
  %v3723 = vunpack.c.l.b16 %v3694
  %v3724 = vunpack.c.h.b16 %v3694
  %v3725 = vpack.c.b16 %v3709, %v3705
  %v3726 = vpack.c.b16 %v3710, %v3706
  %v3727 = vpack.c.b16 %v3711, %v3707
  %v3728 = vpack.c.b16 %v3712, %v3708
  %v3729 = vpack.c.b16 %v3717, %v3713
  %v3730 = vpack.c.b16 %v3718, %v3714
  %v3731 = vpack.c.b16 %v3719, %v3715
  %v3732 = vpack.c.b16 %v3720, %v3716
  %v3733 = vpack.c.b16 %v3721, %v3721
  %v3734 = vpack.c.b16 %v3722, %v3722
  %v3735 = vpack.c.b16 %v3723, %v3723
  %v3736 = vpack.c.b16 %v3724, %v3724
  %v3746 = vsel %vm153, %v3733, 0
  %v3749 = vsel %vm153, %v3734, 0
  %v3752 = vsel %vm153, %v3735, 0
  %v3755 = vsel %vm153, %v3736, 0
  %3757 = vmatpush.bf16.msra.mxu0 0
  %3758 = vmatpush.bf16.msra.mxu0 0
  %3759 = vmatpush.bf16.msra.mxu0 0
  %3760 = vmatpush.bf16.msra.mxu0 0
  %3761 = vmatpush.bf16.msra.mxu0 0
  %3762 = vmatpush.bf16.msra.mxu0 %v3746
  %3763 = vmatpush.bf16.msra.mxu0 %v3729
  %3764 = vmatpush.bf16.msra.mxu0 %v3725
  %3765 = vmatmul.bf16.gmra.mxu0 %v151
  %v3766 = vpop.f32.mrf.mxu0
  %v3767 = vadd.f32 %v132, %v3766
  %v3768 = vpop.f32.mrf.mxu0
  %3769 = vdwg.mxu0
  %3770 = vmatpush.bf16.msra.mxu0 0
  %3771 = vmatpush.bf16.msra.mxu0 0
  %3772 = vmatpush.bf16.msra.mxu0 0
  %3773 = vmatpush.bf16.msra.mxu0 0
  %3774 = vmatpush.bf16.msra.mxu0 0
  %3775 = vmatpush.bf16.msra.mxu0 %v3749
  %3776 = vmatpush.bf16.msra.mxu0 %v3730
  %3777 = vmatpush.bf16.msra.mxu0 %v3726
  %3778 = vmatmul.bf16.gmra.mxu0 %v151
  %v3779 = vpop.f32.mrf.mxu0
  %v3780 = vadd.f32 %v132, %v3779
  %v3781 = vpop.f32.mrf.mxu0
  %3782 = vdwg.mxu0
  %3783 = vmatpush.bf16.msra.mxu0 0
  %3784 = vmatpush.bf16.msra.mxu0 0
  %3785 = vmatpush.bf16.msra.mxu0 0
  %3786 = vmatpush.bf16.msra.mxu0 0
  %3787 = vmatpush.bf16.msra.mxu0 0
  %3788 = vmatpush.bf16.msra.mxu0 %v3752
  %3789 = vmatpush.bf16.msra.mxu0 %v3731
  %3790 = vmatpush.bf16.msra.mxu0 %v3727
  %3791 = vmatmul.bf16.gmra.mxu0 %v151
  %v3792 = vpop.f32.mrf.mxu0
  %v3793 = vadd.f32 %v132, %v3792
  %v3794 = vpop.f32.mrf.mxu0
  %3795 = vdwg.mxu0
  %3796 = vmatpush.bf16.msra.mxu0 0
  %3797 = vmatpush.bf16.msra.mxu0 0
  %3798 = vmatpush.bf16.msra.mxu0 0
  %3799 = vmatpush.bf16.msra.mxu0 0
  %3800 = vmatpush.bf16.msra.mxu0 0
  %3801 = vmatpush.bf16.msra.mxu0 %v3755
  %3802 = vmatpush.bf16.msra.mxu0 %v3732
  %3803 = vmatpush.bf16.msra.mxu0 %v3728
  %3804 = vmatmul.bf16.gmra.mxu0 %v151
  %v3805 = vpop.f32.mrf.mxu0
  %v3806 = vadd.f32 %v132, %v3805
  %v3807 = vpop.f32.mrf.mxu0
  %3808 = vdwg.mxu0
  %vm3809 = vcmp.gt.f32.partialorder %v3767, 0.0
  %vm3810 = vcmp.gt.f32.partialorder %v3780, 0.0
  %vm3811 = vcmp.gt.f32.partialorder %v3793, 0.0
  %vm3812 = vcmp.gt.f32.partialorder %v3806, 0.0
  %v3813 = vmul.f32 %v3767, 0.1
  %v3814 = vmul.f32 %v3780, 0.1
  %v3815 = vmul.f32 %v3793, 0.1
  %v3816 = vmul.f32 %v3806, 0.1
  %v3817 = vsel %vm3809, %v3767, %v3813
  %v3818 = vsel %vm3810, %v3780, %v3814
  %v3819 = vsel %vm3811, %v3793, %v3815
  %v3820 = vsel %vm3812, %v3806, %v3816
  %s3821 = scalar_lea.vmem %s7, 16
  %v3822 = vld [vmem:[%s3821] sm:$0xf]
  %v3824 = vperm.slane %v3822, 0
  %v3825 = vperm.slane %v3822, 1
  %v3826 = vperm.slane %v3822, 2
  %v3827 = vperm.slane %v3822, 3
  %v3832 = vmul.f32 %v3817, %v3824
  %v3833 = vmul.f32 %v3818, %v3825
  %v3834 = vmul.f32 %v3819, %v3826
  %v3835 = vmul.f32 %v3820, %v3827
  %s3836 = scalar_lea.vmem %s31, 32
  %v3837 = vld [vmem:[%s3836] sm:$0xf]
  %v3838 = vld [vmem:[%s3836 + $0x4] sm:$0x3]
  %v3839 = vpack.c.bf16 %v3642, %v3642
  %v3840 = vpack.c.bf16 %v3655, %v3655
  %v3841 = vpack.c.bf16 %v3668, %v3668
  %v3842 = vpack.c.bf16 %v3681, %v3681
  %v3845 = vunpack.c.l.b16 %v3837
  %v3846 = vunpack.c.l.b16 %v3838
  %v3847 = vpack.c.b16 %v3846, %v3845
  %v3849 = vsel %vm236, %v3847, 0
  %v3852 = vsel %vm240, %v3839, 0
  %v3855 = vsel %vm240, %v3840, 0
  %v3858 = vsel %vm240, %v3841, 0
  %v3861 = vsel %vm240, %v3842, 0
  %3863 = vmatpush.bf16.msra.mxu0 0
  %3864 = vmatpush.bf16.msra.mxu0 0
  %3865 = vmatpush.bf16.msra.mxu0 0
  %3866 = vmatpush.bf16.msra.mxu0 0
  %3867 = vmatpush.bf16.msra.mxu0 0
  %3868 = vmatpush.bf16.msra.mxu0 0
  %3869 = vmatpush.bf16.msra.mxu0 0
  %3870 = vmatpush.bf16.msra.mxu0 %v3852
  %3871 = vmatmul.bf16.gmra.mxu0 %v3849
  %v3872 = vpop.f32.mrf.mxu0
  %v3873 = vadd.f32 0.0, %v3872
  %v3874 = vpop.f32.mrf.mxu0
  %v3875 = vadd.f32 0.0, %v3874
  %3876 = vdwg.mxu0
  %3877 = vmatpush.bf16.msra.mxu0 0
  %3878 = vmatpush.bf16.msra.mxu0 0
  %3879 = vmatpush.bf16.msra.mxu0 0
  %3880 = vmatpush.bf16.msra.mxu0 0
  %3881 = vmatpush.bf16.msra.mxu0 0
  %3882 = vmatpush.bf16.msra.mxu0 0
  %3883 = vmatpush.bf16.msra.mxu0 0
  %3884 = vmatpush.bf16.msra.mxu0 %v3855
  %3885 = vmatmul.bf16.gmra.mxu0 %v3849
  %v3886 = vpop.f32.mrf.mxu0
  %v3887 = vadd.f32 0.0, %v3886
  %v3888 = vpop.f32.mrf.mxu0
  %v3889 = vadd.f32 0.0, %v3888
  %3890 = vdwg.mxu0
  %3891 = vmatpush.bf16.msra.mxu0 0
  %3892 = vmatpush.bf16.msra.mxu0 0
  %3893 = vmatpush.bf16.msra.mxu0 0
  %3894 = vmatpush.bf16.msra.mxu0 0
  %3895 = vmatpush.bf16.msra.mxu0 0
  %3896 = vmatpush.bf16.msra.mxu0 0
  %3897 = vmatpush.bf16.msra.mxu0 0
  %3898 = vmatpush.bf16.msra.mxu0 %v3858
  %3899 = vmatmul.bf16.gmra.mxu0 %v3849
  %v3900 = vpop.f32.mrf.mxu0
  %v3901 = vadd.f32 0.0, %v3900
  %v3902 = vpop.f32.mrf.mxu0
  %v3903 = vadd.f32 0.0, %v3902
  %3904 = vdwg.mxu0
  %3905 = vmatpush.bf16.msra.mxu0 0
  %3906 = vmatpush.bf16.msra.mxu0 0
  %3907 = vmatpush.bf16.msra.mxu0 0
  %3908 = vmatpush.bf16.msra.mxu0 0
  %3909 = vmatpush.bf16.msra.mxu0 0
  %3910 = vmatpush.bf16.msra.mxu0 0
  %3911 = vmatpush.bf16.msra.mxu0 0
  %3912 = vmatpush.bf16.msra.mxu0 %v3861
  %3913 = vmatmul.bf16.gmra.mxu0 %v3849
  %v3914 = vpop.f32.mrf.mxu0
  %v3915 = vadd.f32 0.0, %v3914
  %v3916 = vpop.f32.mrf.mxu0
  %v3917 = vadd.f32 0.0, %v3916
  %3918 = vdwg.mxu0
  %v3919 = vadd.f32 %v3431, %v3873
  %v3920 = vadd.f32 %v3432, %v3887
  %v3921 = vadd.f32 %v3433, %v3901
  %v3922 = vadd.f32 %v3434, %v3915
  %v3923 = vadd.f32 %v3435, %v3875
  %v3924 = vadd.f32 %v3436, %v3889
  %v3925 = vadd.f32 %v3437, %v3903
  %v3926 = vadd.f32 %v3438, %v3917
  %s3927 = scalar_lea.vmem %s33, 32
  %v3928 = vld [vmem:[%s3927] sm:$0xf]
  %v3929 = vld [vmem:[%s3927 + $0x4] sm:$0x3]
  %v3930 = vpack.c.bf16 %v3832, %v3832
  %v3931 = vpack.c.bf16 %v3833, %v3833
  %v3932 = vpack.c.bf16 %v3834, %v3834
  %v3933 = vpack.c.bf16 %v3835, %v3835
  %v3936 = vunpack.c.l.b16 %v3928
  %v3937 = vunpack.c.l.b16 %v3929
  %v3938 = vpack.c.b16 %v3937, %v3936
  %v3940 = vsel %vm236, %v3938, 0
  %v3943 = vsel %vm240, %v3930, 0
  %v3946 = vsel %vm240, %v3931, 0
  %v3949 = vsel %vm240, %v3932, 0
  %v3952 = vsel %vm240, %v3933, 0
  %3954 = vmatpush.bf16.msra.mxu0 0
  %3955 = vmatpush.bf16.msra.mxu0 0
  %3956 = vmatpush.bf16.msra.mxu0 0
  %3957 = vmatpush.bf16.msra.mxu0 0
  %3958 = vmatpush.bf16.msra.mxu0 0
  %3959 = vmatpush.bf16.msra.mxu0 0
  %3960 = vmatpush.bf16.msra.mxu0 0
  %3961 = vmatpush.bf16.msra.mxu0 %v3943
  %3962 = vmatmul.bf16.gmra.mxu0 %v3940
  %v3963 = vpop.f32.mrf.mxu0
  %v3964 = vadd.f32 0.0, %v3963
  %v3965 = vpop.f32.mrf.mxu0
  %v3966 = vadd.f32 0.0, %v3965
  %3967 = vdwg.mxu0
  %3968 = vmatpush.bf16.msra.mxu0 0
  %3969 = vmatpush.bf16.msra.mxu0 0
  %3970 = vmatpush.bf16.msra.mxu0 0
  %3971 = vmatpush.bf16.msra.mxu0 0
  %3972 = vmatpush.bf16.msra.mxu0 0
  %3973 = vmatpush.bf16.msra.mxu0 0
  %3974 = vmatpush.bf16.msra.mxu0 0
  %3975 = vmatpush.bf16.msra.mxu0 %v3946
  %3976 = vmatmul.bf16.gmra.mxu0 %v3940
  %v3977 = vpop.f32.mrf.mxu0
  %v3978 = vadd.f32 0.0, %v3977
  %v3979 = vpop.f32.mrf.mxu0
  %v3980 = vadd.f32 0.0, %v3979
  %3981 = vdwg.mxu0
  %3982 = vmatpush.bf16.msra.mxu0 0
  %3983 = vmatpush.bf16.msra.mxu0 0
  %3984 = vmatpush.bf16.msra.mxu0 0
  %3985 = vmatpush.bf16.msra.mxu0 0
  %3986 = vmatpush.bf16.msra.mxu0 0
  %3987 = vmatpush.bf16.msra.mxu0 0
  %3988 = vmatpush.bf16.msra.mxu0 0
  %3989 = vmatpush.bf16.msra.mxu0 %v3949
  %3990 = vmatmul.bf16.gmra.mxu0 %v3940
  %v3991 = vpop.f32.mrf.mxu0
  %v3992 = vadd.f32 0.0, %v3991
  %v3993 = vpop.f32.mrf.mxu0
  %v3994 = vadd.f32 0.0, %v3993
  %3995 = vdwg.mxu0
  %3996 = vmatpush.bf16.msra.mxu0 0
  %3997 = vmatpush.bf16.msra.mxu0 0
  %3998 = vmatpush.bf16.msra.mxu0 0
  %3999 = vmatpush.bf16.msra.mxu0 0
  %4000 = vmatpush.bf16.msra.mxu0 0
  %4001 = vmatpush.bf16.msra.mxu0 0
  %4002 = vmatpush.bf16.msra.mxu0 0
  %4003 = vmatpush.bf16.msra.mxu0 %v3952
  %4004 = vmatmul.bf16.gmra.mxu0 %v3940
  %v4005 = vpop.f32.mrf.mxu0
  %v4006 = vadd.f32 0.0, %v4005
  %v4007 = vpop.f32.mrf.mxu0
  %v4008 = vadd.f32 0.0, %v4007
  %4009 = vdwg.mxu0
  %v4010 = vadd.f32 %v3919, %v3964
  %v4011 = vadd.f32 %v3920, %v3978
  %v4012 = vadd.f32 %v3921, %v3992
  %v4013 = vadd.f32 %v3922, %v4006
  %v4014 = vadd.f32 %v3923, %v3966
  %v4015 = vadd.f32 %v3924, %v3980
  %v4016 = vadd.f32 %v3925, %v3994
  %v4017 = vadd.f32 %v3926, %v4008
  %s4018 = scalar_lea.vmem %s9, 1280
  %v4019 = vld [vmem:[%s4018] sm:$0xff]
  %v4020 = vld [vmem:[%s4018 + $0x8] sm:$0xff]
  %v4021 = vld [vmem:[%s4018 + $0x10] sm:$0xff]
  %v4022 = vld [vmem:[%s4018 + $0x18] sm:$0xff]
  %v4023 = vld [vmem:[%s4018 + $0x20] sm:$0xff]
  %v4024 = vld [vmem:[%s4018 + $0x28] sm:$0xff]
  %v4025 = vld [vmem:[%s4018 + $0x30] sm:$0xff]
  %v4026 = vld [vmem:[%s4018 + $0x38] sm:$0xff]
  %v4027 = vld [vmem:[%s4018 + $0x40] sm:$0xff]
  %v4028 = vld [vmem:[%s4018 + $0x48] sm:$0xff]
  %v4029 = vld [vmem:[%s4018 + $0x50] sm:$0xff]
  %v4030 = vld [vmem:[%s4018 + $0x58] sm:$0xff]
  %v4031 = vld [vmem:[%s4018 + $0x60] sm:$0xff]
  %v4032 = vld [vmem:[%s4018 + $0x68] sm:$0xff]
  %v4033 = vld [vmem:[%s4018 + $0x70] sm:$0xff]
  %v4034 = vld [vmem:[%s4018 + $0x78] sm:$0xff]
  %v4035 = vld [vmem:[%s4018 + $0x80] sm:$0xff]
  %v4036 = vld [vmem:[%s4018 + $0x88] sm:$0xff]
  %v4037 = vld [vmem:[%s4018 + $0x90] sm:$0xff]
  %v4038 = vld [vmem:[%s4018 + $0x98] sm:$0xff]
  %v4039 = vld [vmem:[%s4018 + $0xa0] sm:$0xff]
  %v4040 = vld [vmem:[%s4018 + $0xa8] sm:$0xff]
  %v4041 = vld [vmem:[%s4018 + $0xb0] sm:$0xff]
  %v4042 = vld [vmem:[%s4018 + $0xb8] sm:$0xff]
  %v4043 = vld [vmem:[%s4018 + $0xc0] sm:$0xff]
  %v4044 = vld [vmem:[%s4018 + $0xc8] sm:$0xff]
  %v4045 = vld [vmem:[%s4018 + $0xd0] sm:$0xff]
  %v4046 = vld [vmem:[%s4018 + $0xd8] sm:$0xff]
  %v4047 = vld [vmem:[%s4018 + $0xe0] sm:$0xff]
  %v4048 = vld [vmem:[%s4018 + $0xe8] sm:$0xff]
  %v4049 = vld [vmem:[%s4018 + $0xf0] sm:$0xff]
  %v4050 = vld [vmem:[%s4018 + $0xf8] sm:$0xff]
  %v4083 = vunpack.c.l.b16 %v4019
  %v4084 = vunpack.c.h.b16 %v4019
  %v4085 = vunpack.c.l.b16 %v4020
  %v4086 = vunpack.c.h.b16 %v4020
  %v4087 = vunpack.c.l.b16 %v4021
  %v4088 = vunpack.c.h.b16 %v4021
  %v4089 = vunpack.c.l.b16 %v4022
  %v4090 = vunpack.c.h.b16 %v4022
  %v4091 = vunpack.c.l.b16 %v4023
  %v4092 = vunpack.c.h.b16 %v4023
  %v4093 = vunpack.c.l.b16 %v4024
  %v4094 = vunpack.c.h.b16 %v4024
  %v4095 = vunpack.c.l.b16 %v4025
  %v4096 = vunpack.c.h.b16 %v4025
  %v4097 = vunpack.c.l.b16 %v4026
  %v4098 = vunpack.c.h.b16 %v4026
  %v4099 = vunpack.c.l.b16 %v4027
  %v4100 = vunpack.c.h.b16 %v4027
  %v4101 = vunpack.c.l.b16 %v4028
  %v4102 = vunpack.c.h.b16 %v4028
  %v4103 = vunpack.c.l.b16 %v4029
  %v4104 = vunpack.c.h.b16 %v4029
  %v4105 = vunpack.c.l.b16 %v4030
  %v4106 = vunpack.c.h.b16 %v4030
  %v4107 = vunpack.c.l.b16 %v4031
  %v4108 = vunpack.c.h.b16 %v4031
  %v4109 = vunpack.c.l.b16 %v4032
  %v4110 = vunpack.c.h.b16 %v4032
  %v4111 = vunpack.c.l.b16 %v4033
  %v4112 = vunpack.c.h.b16 %v4033
  %v4113 = vunpack.c.l.b16 %v4034
  %v4114 = vunpack.c.h.b16 %v4034
  %v4115 = vunpack.c.l.b16 %v4035
  %v4116 = vunpack.c.h.b16 %v4035
  %v4117 = vunpack.c.l.b16 %v4036
  %v4118 = vunpack.c.h.b16 %v4036
  %v4119 = vunpack.c.l.b16 %v4037
  %v4120 = vunpack.c.h.b16 %v4037
  %v4121 = vunpack.c.l.b16 %v4038
  %v4122 = vunpack.c.h.b16 %v4038
  %v4123 = vunpack.c.l.b16 %v4039
  %v4124 = vunpack.c.h.b16 %v4039
  %v4125 = vunpack.c.l.b16 %v4040
  %v4126 = vunpack.c.h.b16 %v4040
  %v4127 = vunpack.c.l.b16 %v4041
  %v4128 = vunpack.c.h.b16 %v4041
  %v4129 = vunpack.c.l.b16 %v4042
  %v4130 = vunpack.c.h.b16 %v4042
  %v4131 = vunpack.c.l.b16 %v4043
  %v4132 = vunpack.c.h.b16 %v4043
  %v4133 = vunpack.c.l.b16 %v4044
  %v4134 = vunpack.c.h.b16 %v4044
  %v4135 = vunpack.c.l.b16 %v4045
  %v4136 = vunpack.c.h.b16 %v4045
  %v4137 = vunpack.c.l.b16 %v4046
  %v4138 = vunpack.c.h.b16 %v4046
  %v4139 = vunpack.c.l.b16 %v4047
  %v4140 = vunpack.c.h.b16 %v4047
  %v4141 = vunpack.c.l.b16 %v4048
  %v4142 = vunpack.c.h.b16 %v4048
  %v4143 = vunpack.c.l.b16 %v4049
  %v4144 = vunpack.c.h.b16 %v4049
  %v4145 = vunpack.c.l.b16 %v4050
  %v4146 = vunpack.c.h.b16 %v4050
  %v4147 = vpack.c.b16 %v4087, %v4083
  %v4148 = vpack.c.b16 %v4088, %v4084
  %v4149 = vpack.c.b16 %v4089, %v4085
  %v4150 = vpack.c.b16 %v4090, %v4086
  %v4151 = vpack.c.b16 %v4095, %v4091
  %v4152 = vpack.c.b16 %v4096, %v4092
  %v4153 = vpack.c.b16 %v4097, %v4093
  %v4154 = vpack.c.b16 %v4098, %v4094
  %v4155 = vpack.c.b16 %v4103, %v4099
  %v4156 = vpack.c.b16 %v4104, %v4100
  %v4157 = vpack.c.b16 %v4105, %v4101
  %v4158 = vpack.c.b16 %v4106, %v4102
  %v4159 = vpack.c.b16 %v4111, %v4107
  %v4160 = vpack.c.b16 %v4112, %v4108
  %v4161 = vpack.c.b16 %v4113, %v4109
  %v4162 = vpack.c.b16 %v4114, %v4110
  %v4163 = vpack.c.b16 %v4119, %v4115
  %v4164 = vpack.c.b16 %v4120, %v4116
  %v4165 = vpack.c.b16 %v4121, %v4117
  %v4166 = vpack.c.b16 %v4122, %v4118
  %v4167 = vpack.c.b16 %v4127, %v4123
  %v4168 = vpack.c.b16 %v4128, %v4124
  %v4169 = vpack.c.b16 %v4129, %v4125
  %v4170 = vpack.c.b16 %v4130, %v4126
  %v4171 = vpack.c.b16 %v4135, %v4131
  %v4172 = vpack.c.b16 %v4136, %v4132
  %v4173 = vpack.c.b16 %v4137, %v4133
  %v4174 = vpack.c.b16 %v4138, %v4134
  %v4175 = vpack.c.b16 %v4143, %v4139
  %v4176 = vpack.c.b16 %v4144, %v4140
  %v4177 = vpack.c.b16 %v4145, %v4141
  %v4178 = vpack.c.b16 %v4146, %v4142
  %4211 = vmatpush.bf16.msra.mxu0 %v4175
  %4212 = vmatpush.bf16.msra.mxu0 %v4171
  %4213 = vmatpush.bf16.msra.mxu0 %v4167
  %4214 = vmatpush.bf16.msra.mxu0 %v4163
  %4215 = vmatpush.bf16.msra.mxu0 %v4159
  %4216 = vmatpush.bf16.msra.mxu0 %v4155
  %4217 = vmatpush.bf16.msra.mxu0 %v4151
  %4218 = vmatpush.bf16.msra.mxu0 %v4147
  %4219 = vmatmul.bf16.gmra.mxu0 %v1143
  %v4220 = vpop.f32.mrf.mxu0
  %v4221 = vadd.f32 0.0, %v4220
  %v4222 = vpop.f32.mrf.mxu0
  %4223 = vdwg.mxu0
  %4224 = vmatpush.bf16.msra.mxu0 %v4176
  %4225 = vmatpush.bf16.msra.mxu0 %v4172
  %4226 = vmatpush.bf16.msra.mxu0 %v4168
  %4227 = vmatpush.bf16.msra.mxu0 %v4164
  %4228 = vmatpush.bf16.msra.mxu0 %v4160
  %4229 = vmatpush.bf16.msra.mxu0 %v4156
  %4230 = vmatpush.bf16.msra.mxu0 %v4152
  %4231 = vmatpush.bf16.msra.mxu0 %v4148
  %4232 = vmatmul.bf16.gmra.mxu0 %v1143
  %v4233 = vpop.f32.mrf.mxu0
  %v4234 = vadd.f32 0.0, %v4233
  %v4235 = vpop.f32.mrf.mxu0
  %4236 = vdwg.mxu0
  %4237 = vmatpush.bf16.msra.mxu0 %v4177
  %4238 = vmatpush.bf16.msra.mxu0 %v4173
  %4239 = vmatpush.bf16.msra.mxu0 %v4169
  %4240 = vmatpush.bf16.msra.mxu0 %v4165
  %4241 = vmatpush.bf16.msra.mxu0 %v4161
  %4242 = vmatpush.bf16.msra.mxu0 %v4157
  %4243 = vmatpush.bf16.msra.mxu0 %v4153
  %4244 = vmatpush.bf16.msra.mxu0 %v4149
  %4245 = vmatmul.bf16.gmra.mxu0 %v1143
  %v4246 = vpop.f32.mrf.mxu0
  %v4247 = vadd.f32 0.0, %v4246
  %v4248 = vpop.f32.mrf.mxu0
  %4249 = vdwg.mxu0
  %4250 = vmatpush.bf16.msra.mxu0 %v4178
  %4251 = vmatpush.bf16.msra.mxu0 %v4174
  %4252 = vmatpush.bf16.msra.mxu0 %v4170
  %4253 = vmatpush.bf16.msra.mxu0 %v4166
  %4254 = vmatpush.bf16.msra.mxu0 %v4162
  %4255 = vmatpush.bf16.msra.mxu0 %v4158
  %4256 = vmatpush.bf16.msra.mxu0 %v4154
  %4257 = vmatpush.bf16.msra.mxu0 %v4150
  %4258 = vmatmul.bf16.gmra.mxu0 %v1143
  %v4259 = vpop.f32.mrf.mxu0
  %v4260 = vadd.f32 0.0, %v4259
  %v4261 = vpop.f32.mrf.mxu0
  %4262 = vdwg.mxu0
  %s4263 = scalar_lea.vmem %s5, 400
  %v4264 = vld [vmem:[%s4263] sm:$0xff]
  %v4265 = vld [vmem:[%s4263 + $0x8] sm:$0xff]
  %v4266 = vld [vmem:[%s4263 + $0x10] sm:$0xff]
  %v4267 = vld [vmem:[%s4263 + $0x18] sm:$0xff]
  %v4268 = vld [vmem:[%s4263 + $0x20] sm:$0xff]
  %v4269 = vld [vmem:[%s4263 + $0x28] sm:$0xff]
  %v4270 = vld [vmem:[%s4263 + $0x30] sm:$0xff]
  %v4271 = vld [vmem:[%s4263 + $0x38] sm:$0xff]
  %v4272 = vld [vmem:[%s4263 + $0x40] sm:$0x33]
  %v4273 = vld [vmem:[%s4263 + $0x48] sm:$0x33]
  %v4284 = vunpack.c.l.b16 %v4264
  %v4285 = vunpack.c.h.b16 %v4264
  %v4286 = vunpack.c.l.b16 %v4265
  %v4287 = vunpack.c.h.b16 %v4265
  %v4288 = vunpack.c.l.b16 %v4266
  %v4289 = vunpack.c.h.b16 %v4266
  %v4290 = vunpack.c.l.b16 %v4267
  %v4291 = vunpack.c.h.b16 %v4267
  %v4292 = vunpack.c.l.b16 %v4268
  %v4293 = vunpack.c.h.b16 %v4268
  %v4294 = vunpack.c.l.b16 %v4269
  %v4295 = vunpack.c.h.b16 %v4269
  %v4296 = vunpack.c.l.b16 %v4270
  %v4297 = vunpack.c.h.b16 %v4270
  %v4298 = vunpack.c.l.b16 %v4271
  %v4299 = vunpack.c.h.b16 %v4271
  %v4300 = vunpack.c.l.b16 %v4272
  %v4301 = vunpack.c.h.b16 %v4272
  %v4302 = vunpack.c.l.b16 %v4273
  %v4303 = vunpack.c.h.b16 %v4273
  %v4304 = vpack.c.b16 %v4288, %v4284
  %v4305 = vpack.c.b16 %v4289, %v4285
  %v4306 = vpack.c.b16 %v4290, %v4286
  %v4307 = vpack.c.b16 %v4291, %v4287
  %v4308 = vpack.c.b16 %v4296, %v4292
  %v4309 = vpack.c.b16 %v4297, %v4293
  %v4310 = vpack.c.b16 %v4298, %v4294
  %v4311 = vpack.c.b16 %v4299, %v4295
  %v4312 = vpack.c.b16 %v4300, %v4300
  %v4313 = vpack.c.b16 %v4301, %v4301
  %v4314 = vpack.c.b16 %v4302, %v4302
  %v4315 = vpack.c.b16 %v4303, %v4303
  %v4325 = vsel %vm153, %v4312, 0
  %v4328 = vsel %vm153, %v4313, 0
  %v4331 = vsel %vm153, %v4314, 0
  %v4334 = vsel %vm153, %v4315, 0
  %4336 = vmatpush.bf16.msra.mxu0 0
  %4337 = vmatpush.bf16.msra.mxu0 0
  %4338 = vmatpush.bf16.msra.mxu0 0
  %4339 = vmatpush.bf16.msra.mxu0 0
  %4340 = vmatpush.bf16.msra.mxu0 0
  %4341 = vmatpush.bf16.msra.mxu0 %v4325
  %4342 = vmatpush.bf16.msra.mxu0 %v4308
  %4343 = vmatpush.bf16.msra.mxu0 %v4304
  %4344 = vmatmul.bf16.gmra.mxu0 %v151
  %v4345 = vpop.f32.mrf.mxu0
  %v4346 = vadd.f32 %v132, %v4345
  %v4347 = vpop.f32.mrf.mxu0
  %4348 = vdwg.mxu0
  %4349 = vmatpush.bf16.msra.mxu0 0
  %4350 = vmatpush.bf16.msra.mxu0 0
  %4351 = vmatpush.bf16.msra.mxu0 0
  %4352 = vmatpush.bf16.msra.mxu0 0
  %4353 = vmatpush.bf16.msra.mxu0 0
  %4354 = vmatpush.bf16.msra.mxu0 %v4328
  %4355 = vmatpush.bf16.msra.mxu0 %v4309
  %4356 = vmatpush.bf16.msra.mxu0 %v4305
  %4357 = vmatmul.bf16.gmra.mxu0 %v151
  %v4358 = vpop.f32.mrf.mxu0
  %v4359 = vadd.f32 %v132, %v4358
  %v4360 = vpop.f32.mrf.mxu0
  %4361 = vdwg.mxu0
  %4362 = vmatpush.bf16.msra.mxu0 0
  %4363 = vmatpush.bf16.msra.mxu0 0
  %4364 = vmatpush.bf16.msra.mxu0 0
  %4365 = vmatpush.bf16.msra.mxu0 0
  %4366 = vmatpush.bf16.msra.mxu0 0
  %4367 = vmatpush.bf16.msra.mxu0 %v4331
  %4368 = vmatpush.bf16.msra.mxu0 %v4310
  %4369 = vmatpush.bf16.msra.mxu0 %v4306
  %4370 = vmatmul.bf16.gmra.mxu0 %v151
  %v4371 = vpop.f32.mrf.mxu0
  %v4372 = vadd.f32 %v132, %v4371
  %v4373 = vpop.f32.mrf.mxu0
  %4374 = vdwg.mxu0
  %4375 = vmatpush.bf16.msra.mxu0 0
  %4376 = vmatpush.bf16.msra.mxu0 0
  %4377 = vmatpush.bf16.msra.mxu0 0
  %4378 = vmatpush.bf16.msra.mxu0 0
  %4379 = vmatpush.bf16.msra.mxu0 0
  %4380 = vmatpush.bf16.msra.mxu0 %v4334
  %4381 = vmatpush.bf16.msra.mxu0 %v4311
  %4382 = vmatpush.bf16.msra.mxu0 %v4307
  %4383 = vmatmul.bf16.gmra.mxu0 %v151
  %v4384 = vpop.f32.mrf.mxu0
  %v4385 = vadd.f32 %v132, %v4384
  %v4386 = vpop.f32.mrf.mxu0
  %4387 = vdwg.mxu0
  %vm4388 = vcmp.gt.f32.partialorder %v4346, 0.0
  %vm4389 = vcmp.gt.f32.partialorder %v4359, 0.0
  %vm4390 = vcmp.gt.f32.partialorder %v4372, 0.0
  %vm4391 = vcmp.gt.f32.partialorder %v4385, 0.0
  %v4392 = vmul.f32 %v4346, 0.1
  %v4393 = vmul.f32 %v4359, 0.1
  %v4394 = vmul.f32 %v4372, 0.1
  %v4395 = vmul.f32 %v4385, 0.1
  %v4396 = vsel %vm4388, %v4346, %v4392
  %v4397 = vsel %vm4389, %v4359, %v4393
  %v4398 = vsel %vm4390, %v4372, %v4394
  %v4399 = vsel %vm4391, %v4385, %v4395
  %s4400 = scalar_lea.vmem %s7, 20
  %v4401 = vld [vmem:[%s4400] sm:$0xf]
  %v4403 = vperm.slane %v4401, 0
  %v4404 = vperm.slane %v4401, 1
  %v4405 = vperm.slane %v4401, 2
  %v4406 = vperm.slane %v4401, 3
  %v4411 = vmul.f32 %v4396, %v4403
  %v4412 = vmul.f32 %v4397, %v4404
  %v4413 = vmul.f32 %v4398, %v4405
  %v4414 = vmul.f32 %v4399, %v4406
  %s4415 = scalar_lea.vmem %s31, 40
  %v4416 = vld [vmem:[%s4415] sm:$0xf]
  %v4417 = vld [vmem:[%s4415 + $0x4] sm:$0x3]
  %v4418 = vpack.c.bf16 %v4221, %v4221
  %v4419 = vpack.c.bf16 %v4234, %v4234
  %v4420 = vpack.c.bf16 %v4247, %v4247
  %v4421 = vpack.c.bf16 %v4260, %v4260
  %v4424 = vunpack.c.l.b16 %v4416
  %v4425 = vunpack.c.l.b16 %v4417
  %v4426 = vpack.c.b16 %v4425, %v4424
  %v4428 = vsel %vm236, %v4426, 0
  %v4431 = vsel %vm240, %v4418, 0
  %v4434 = vsel %vm240, %v4419, 0
  %v4437 = vsel %vm240, %v4420, 0
  %v4440 = vsel %vm240, %v4421, 0
  %4442 = vmatpush.bf16.msra.mxu0 0
  %4443 = vmatpush.bf16.msra.mxu0 0
  %4444 = vmatpush.bf16.msra.mxu0 0
  %4445 = vmatpush.bf16.msra.mxu0 0
  %4446 = vmatpush.bf16.msra.mxu0 0
  %4447 = vmatpush.bf16.msra.mxu0 0
  %4448 = vmatpush.bf16.msra.mxu0 0
  %4449 = vmatpush.bf16.msra.mxu0 %v4431
  %4450 = vmatmul.bf16.gmra.mxu0 %v4428
  %v4451 = vpop.f32.mrf.mxu0
  %v4452 = vadd.f32 0.0, %v4451
  %v4453 = vpop.f32.mrf.mxu0
  %v4454 = vadd.f32 0.0, %v4453
  %4455 = vdwg.mxu0
  %4456 = vmatpush.bf16.msra.mxu0 0
  %4457 = vmatpush.bf16.msra.mxu0 0
  %4458 = vmatpush.bf16.msra.mxu0 0
  %4459 = vmatpush.bf16.msra.mxu0 0
  %4460 = vmatpush.bf16.msra.mxu0 0
  %4461 = vmatpush.bf16.msra.mxu0 0
  %4462 = vmatpush.bf16.msra.mxu0 0
  %4463 = vmatpush.bf16.msra.mxu0 %v4434
  %4464 = vmatmul.bf16.gmra.mxu0 %v4428
  %v4465 = vpop.f32.mrf.mxu0
  %v4466 = vadd.f32 0.0, %v4465
  %v4467 = vpop.f32.mrf.mxu0
  %v4468 = vadd.f32 0.0, %v4467
  %4469 = vdwg.mxu0
  %4470 = vmatpush.bf16.msra.mxu0 0
  %4471 = vmatpush.bf16.msra.mxu0 0
  %4472 = vmatpush.bf16.msra.mxu0 0
  %4473 = vmatpush.bf16.msra.mxu0 0
  %4474 = vmatpush.bf16.msra.mxu0 0
  %4475 = vmatpush.bf16.msra.mxu0 0
  %4476 = vmatpush.bf16.msra.mxu0 0
  %4477 = vmatpush.bf16.msra.mxu0 %v4437
  %4478 = vmatmul.bf16.gmra.mxu0 %v4428
  %v4479 = vpop.f32.mrf.mxu0
  %v4480 = vadd.f32 0.0, %v4479
  %v4481 = vpop.f32.mrf.mxu0
  %v4482 = vadd.f32 0.0, %v4481
  %4483 = vdwg.mxu0
  %4484 = vmatpush.bf16.msra.mxu0 0
  %4485 = vmatpush.bf16.msra.mxu0 0
  %4486 = vmatpush.bf16.msra.mxu0 0
  %4487 = vmatpush.bf16.msra.mxu0 0
  %4488 = vmatpush.bf16.msra.mxu0 0
  %4489 = vmatpush.bf16.msra.mxu0 0
  %4490 = vmatpush.bf16.msra.mxu0 0
  %4491 = vmatpush.bf16.msra.mxu0 %v4440
  %4492 = vmatmul.bf16.gmra.mxu0 %v4428
  %v4493 = vpop.f32.mrf.mxu0
  %v4494 = vadd.f32 0.0, %v4493
  %v4495 = vpop.f32.mrf.mxu0
  %v4496 = vadd.f32 0.0, %v4495
  %4497 = vdwg.mxu0
  %v4498 = vadd.f32 %v4010, %v4452
  %v4499 = vadd.f32 %v4011, %v4466
  %v4500 = vadd.f32 %v4012, %v4480
  %v4501 = vadd.f32 %v4013, %v4494
  %v4502 = vadd.f32 %v4014, %v4454
  %v4503 = vadd.f32 %v4015, %v4468
  %v4504 = vadd.f32 %v4016, %v4482
  %v4505 = vadd.f32 %v4017, %v4496
  %s4506 = scalar_lea.vmem %s33, 40
  %v4507 = vld [vmem:[%s4506] sm:$0xf]
  %v4508 = vld [vmem:[%s4506 + $0x4] sm:$0x3]
  %v4509 = vpack.c.bf16 %v4411, %v4411
  %v4510 = vpack.c.bf16 %v4412, %v4412
  %v4511 = vpack.c.bf16 %v4413, %v4413
  %v4512 = vpack.c.bf16 %v4414, %v4414
  %v4515 = vunpack.c.l.b16 %v4507
  %v4516 = vunpack.c.l.b16 %v4508
  %v4517 = vpack.c.b16 %v4516, %v4515
  %v4519 = vsel %vm236, %v4517, 0
  %v4522 = vsel %vm240, %v4509, 0
  %v4525 = vsel %vm240, %v4510, 0
  %v4528 = vsel %vm240, %v4511, 0
  %v4531 = vsel %vm240, %v4512, 0
  %4533 = vmatpush.bf16.msra.mxu0 0
  %4534 = vmatpush.bf16.msra.mxu0 0
  %4535 = vmatpush.bf16.msra.mxu0 0
  %4536 = vmatpush.bf16.msra.mxu0 0
  %4537 = vmatpush.bf16.msra.mxu0 0
  %4538 = vmatpush.bf16.msra.mxu0 0
  %4539 = vmatpush.bf16.msra.mxu0 0
  %4540 = vmatpush.bf16.msra.mxu0 %v4522
  %4541 = vmatmul.bf16.gmra.mxu0 %v4519
  %v4542 = vpop.f32.mrf.mxu0
  %v4543 = vadd.f32 0.0, %v4542
  %v4544 = vpop.f32.mrf.mxu0
  %v4545 = vadd.f32 0.0, %v4544
  %4546 = vdwg.mxu0
  %4547 = vmatpush.bf16.msra.mxu0 0
  %4548 = vmatpush.bf16.msra.mxu0 0
  %4549 = vmatpush.bf16.msra.mxu0 0
  %4550 = vmatpush.bf16.msra.mxu0 0
  %4551 = vmatpush.bf16.msra.mxu0 0
  %4552 = vmatpush.bf16.msra.mxu0 0
  %4553 = vmatpush.bf16.msra.mxu0 0
  %4554 = vmatpush.bf16.msra.mxu0 %v4525
  %4555 = vmatmul.bf16.gmra.mxu0 %v4519
  %v4556 = vpop.f32.mrf.mxu0
  %v4557 = vadd.f32 0.0, %v4556
  %v4558 = vpop.f32.mrf.mxu0
  %v4559 = vadd.f32 0.0, %v4558
  %4560 = vdwg.mxu0
  %4561 = vmatpush.bf16.msra.mxu0 0
  %4562 = vmatpush.bf16.msra.mxu0 0
  %4563 = vmatpush.bf16.msra.mxu0 0
  %4564 = vmatpush.bf16.msra.mxu0 0
  %4565 = vmatpush.bf16.msra.mxu0 0
  %4566 = vmatpush.bf16.msra.mxu0 0
  %4567 = vmatpush.bf16.msra.mxu0 0
  %4568 = vmatpush.bf16.msra.mxu0 %v4528
  %4569 = vmatmul.bf16.gmra.mxu0 %v4519
  %v4570 = vpop.f32.mrf.mxu0
  %v4571 = vadd.f32 0.0, %v4570
  %v4572 = vpop.f32.mrf.mxu0
  %v4573 = vadd.f32 0.0, %v4572
  %4574 = vdwg.mxu0
  %4575 = vmatpush.bf16.msra.mxu0 0
  %4576 = vmatpush.bf16.msra.mxu0 0
  %4577 = vmatpush.bf16.msra.mxu0 0
  %4578 = vmatpush.bf16.msra.mxu0 0
  %4579 = vmatpush.bf16.msra.mxu0 0
  %4580 = vmatpush.bf16.msra.mxu0 0
  %4581 = vmatpush.bf16.msra.mxu0 0
  %4582 = vmatpush.bf16.msra.mxu0 %v4531
  %4583 = vmatmul.bf16.gmra.mxu0 %v4519
  %v4584 = vpop.f32.mrf.mxu0
  %v4585 = vadd.f32 0.0, %v4584
  %v4586 = vpop.f32.mrf.mxu0
  %v4587 = vadd.f32 0.0, %v4586
  %4588 = vdwg.mxu0
  %v4589 = vadd.f32 %v4498, %v4543
  %v4590 = vadd.f32 %v4499, %v4557
  %v4591 = vadd.f32 %v4500, %v4571
  %v4592 = vadd.f32 %v4501, %v4585
  %v4593 = vadd.f32 %v4502, %v4545
  %v4594 = vadd.f32 %v4503, %v4559
  %v4595 = vadd.f32 %v4504, %v4573
  %v4596 = vadd.f32 %v4505, %v4587
  %s4597 = scalar_lea.vmem %s9, 1536
  %v4598 = vld [vmem:[%s4597] sm:$0xff]
  %v4599 = vld [vmem:[%s4597 + $0x8] sm:$0xff]
  %v4600 = vld [vmem:[%s4597 + $0x10] sm:$0xff]
  %v4601 = vld [vmem:[%s4597 + $0x18] sm:$0xff]
  %v4602 = vld [vmem:[%s4597 + $0x20] sm:$0xff]
  %v4603 = vld [vmem:[%s4597 + $0x28] sm:$0xff]
  %v4604 = vld [vmem:[%s4597 + $0x30] sm:$0xff]
  %v4605 = vld [vmem:[%s4597 + $0x38] sm:$0xff]
  %v4606 = vld [vmem:[%s4597 + $0x40] sm:$0xff]
  %v4607 = vld [vmem:[%s4597 + $0x48] sm:$0xff]
  %v4608 = vld [vmem:[%s4597 + $0x50] sm:$0xff]
  %v4609 = vld [vmem:[%s4597 + $0x58] sm:$0xff]
  %v4610 = vld [vmem:[%s4597 + $0x60] sm:$0xff]
  %v4611 = vld [vmem:[%s4597 + $0x68] sm:$0xff]
  %v4612 = vld [vmem:[%s4597 + $0x70] sm:$0xff]
  %v4613 = vld [vmem:[%s4597 + $0x78] sm:$0xff]
  %v4614 = vld [vmem:[%s4597 + $0x80] sm:$0xff]
  %v4615 = vld [vmem:[%s4597 + $0x88] sm:$0xff]
  %v4616 = vld [vmem:[%s4597 + $0x90] sm:$0xff]
  %v4617 = vld [vmem:[%s4597 + $0x98] sm:$0xff]
  %v4618 = vld [vmem:[%s4597 + $0xa0] sm:$0xff]
  %v4619 = vld [vmem:[%s4597 + $0xa8] sm:$0xff]
  %v4620 = vld [vmem:[%s4597 + $0xb0] sm:$0xff]
  %v4621 = vld [vmem:[%s4597 + $0xb8] sm:$0xff]
  %v4622 = vld [vmem:[%s4597 + $0xc0] sm:$0xff]
  %v4623 = vld [vmem:[%s4597 + $0xc8] sm:$0xff]
  %v4624 = vld [vmem:[%s4597 + $0xd0] sm:$0xff]
  %v4625 = vld [vmem:[%s4597 + $0xd8] sm:$0xff]
  %v4626 = vld [vmem:[%s4597 + $0xe0] sm:$0xff]
  %v4627 = vld [vmem:[%s4597 + $0xe8] sm:$0xff]
  %v4628 = vld [vmem:[%s4597 + $0xf0] sm:$0xff]
  %v4629 = vld [vmem:[%s4597 + $0xf8] sm:$0xff]
  %v4662 = vunpack.c.l.b16 %v4598
  %v4663 = vunpack.c.h.b16 %v4598
  %v4664 = vunpack.c.l.b16 %v4599
  %v4665 = vunpack.c.h.b16 %v4599
  %v4666 = vunpack.c.l.b16 %v4600
  %v4667 = vunpack.c.h.b16 %v4600
  %v4668 = vunpack.c.l.b16 %v4601
  %v4669 = vunpack.c.h.b16 %v4601
  %v4670 = vunpack.c.l.b16 %v4602
  %v4671 = vunpack.c.h.b16 %v4602
  %v4672 = vunpack.c.l.b16 %v4603
  %v4673 = vunpack.c.h.b16 %v4603
  %v4674 = vunpack.c.l.b16 %v4604
  %v4675 = vunpack.c.h.b16 %v4604
  %v4676 = vunpack.c.l.b16 %v4605
  %v4677 = vunpack.c.h.b16 %v4605
  %v4678 = vunpack.c.l.b16 %v4606
  %v4679 = vunpack.c.h.b16 %v4606
  %v4680 = vunpack.c.l.b16 %v4607
  %v4681 = vunpack.c.h.b16 %v4607
  %v4682 = vunpack.c.l.b16 %v4608
  %v4683 = vunpack.c.h.b16 %v4608
  %v4684 = vunpack.c.l.b16 %v4609
  %v4685 = vunpack.c.h.b16 %v4609
  %v4686 = vunpack.c.l.b16 %v4610
  %v4687 = vunpack.c.h.b16 %v4610
  %v4688 = vunpack.c.l.b16 %v4611
  %v4689 = vunpack.c.h.b16 %v4611
  %v4690 = vunpack.c.l.b16 %v4612
  %v4691 = vunpack.c.h.b16 %v4612
  %v4692 = vunpack.c.l.b16 %v4613
  %v4693 = vunpack.c.h.b16 %v4613
  %v4694 = vunpack.c.l.b16 %v4614
  %v4695 = vunpack.c.h.b16 %v4614
  %v4696 = vunpack.c.l.b16 %v4615
  %v4697 = vunpack.c.h.b16 %v4615
  %v4698 = vunpack.c.l.b16 %v4616
  %v4699 = vunpack.c.h.b16 %v4616
  %v4700 = vunpack.c.l.b16 %v4617
  %v4701 = vunpack.c.h.b16 %v4617
  %v4702 = vunpack.c.l.b16 %v4618
  %v4703 = vunpack.c.h.b16 %v4618
  %v4704 = vunpack.c.l.b16 %v4619
  %v4705 = vunpack.c.h.b16 %v4619
  %v4706 = vunpack.c.l.b16 %v4620
  %v4707 = vunpack.c.h.b16 %v4620
  %v4708 = vunpack.c.l.b16 %v4621
  %v4709 = vunpack.c.h.b16 %v4621
  %v4710 = vunpack.c.l.b16 %v4622
  %v4711 = vunpack.c.h.b16 %v4622
  %v4712 = vunpack.c.l.b16 %v4623
  %v4713 = vunpack.c.h.b16 %v4623
  %v4714 = vunpack.c.l.b16 %v4624
  %v4715 = vunpack.c.h.b16 %v4624
  %v4716 = vunpack.c.l.b16 %v4625
  %v4717 = vunpack.c.h.b16 %v4625
  %v4718 = vunpack.c.l.b16 %v4626
  %v4719 = vunpack.c.h.b16 %v4626
  %v4720 = vunpack.c.l.b16 %v4627
  %v4721 = vunpack.c.h.b16 %v4627
  %v4722 = vunpack.c.l.b16 %v4628
  %v4723 = vunpack.c.h.b16 %v4628
  %v4724 = vunpack.c.l.b16 %v4629
  %v4725 = vunpack.c.h.b16 %v4629
  %v4726 = vpack.c.b16 %v4666, %v4662
  %v4727 = vpack.c.b16 %v4667, %v4663
  %v4728 = vpack.c.b16 %v4668, %v4664
  %v4729 = vpack.c.b16 %v4669, %v4665
  %v4730 = vpack.c.b16 %v4674, %v4670
  %v4731 = vpack.c.b16 %v4675, %v4671
  %v4732 = vpack.c.b16 %v4676, %v4672
  %v4733 = vpack.c.b16 %v4677, %v4673
  %v4734 = vpack.c.b16 %v4682, %v4678
  %v4735 = vpack.c.b16 %v4683, %v4679
  %v4736 = vpack.c.b16 %v4684, %v4680
  %v4737 = vpack.c.b16 %v4685, %v4681
  %v4738 = vpack.c.b16 %v4690, %v4686
  %v4739 = vpack.c.b16 %v4691, %v4687
  %v4740 = vpack.c.b16 %v4692, %v4688
  %v4741 = vpack.c.b16 %v4693, %v4689
  %v4742 = vpack.c.b16 %v4698, %v4694
  %v4743 = vpack.c.b16 %v4699, %v4695
  %v4744 = vpack.c.b16 %v4700, %v4696
  %v4745 = vpack.c.b16 %v4701, %v4697
  %v4746 = vpack.c.b16 %v4706, %v4702
  %v4747 = vpack.c.b16 %v4707, %v4703
  %v4748 = vpack.c.b16 %v4708, %v4704
  %v4749 = vpack.c.b16 %v4709, %v4705
  %v4750 = vpack.c.b16 %v4714, %v4710
  %v4751 = vpack.c.b16 %v4715, %v4711
  %v4752 = vpack.c.b16 %v4716, %v4712
  %v4753 = vpack.c.b16 %v4717, %v4713
  %v4754 = vpack.c.b16 %v4722, %v4718
  %v4755 = vpack.c.b16 %v4723, %v4719
  %v4756 = vpack.c.b16 %v4724, %v4720
  %v4757 = vpack.c.b16 %v4725, %v4721
  %4790 = vmatpush.bf16.msra.mxu0 %v4754
  %4791 = vmatpush.bf16.msra.mxu0 %v4750
  %4792 = vmatpush.bf16.msra.mxu0 %v4746
  %4793 = vmatpush.bf16.msra.mxu0 %v4742
  %4794 = vmatpush.bf16.msra.mxu0 %v4738
  %4795 = vmatpush.bf16.msra.mxu0 %v4734
  %4796 = vmatpush.bf16.msra.mxu0 %v4730
  %4797 = vmatpush.bf16.msra.mxu0 %v4726
  %4798 = vmatmul.bf16.gmra.mxu0 %v1143
  %v4799 = vpop.f32.mrf.mxu0
  %v4800 = vadd.f32 0.0, %v4799
  %v4801 = vpop.f32.mrf.mxu0
  %4802 = vdwg.mxu0
  %4803 = vmatpush.bf16.msra.mxu0 %v4755
  %4804 = vmatpush.bf16.msra.mxu0 %v4751
  %4805 = vmatpush.bf16.msra.mxu0 %v4747
  %4806 = vmatpush.bf16.msra.mxu0 %v4743
  %4807 = vmatpush.bf16.msra.mxu0 %v4739
  %4808 = vmatpush.bf16.msra.mxu0 %v4735
  %4809 = vmatpush.bf16.msra.mxu0 %v4731
  %4810 = vmatpush.bf16.msra.mxu0 %v4727
  %4811 = vmatmul.bf16.gmra.mxu0 %v1143
  %v4812 = vpop.f32.mrf.mxu0
  %v4813 = vadd.f32 0.0, %v4812
  %v4814 = vpop.f32.mrf.mxu0
  %4815 = vdwg.mxu0
  %4816 = vmatpush.bf16.msra.mxu0 %v4756
  %4817 = vmatpush.bf16.msra.mxu0 %v4752
  %4818 = vmatpush.bf16.msra.mxu0 %v4748
  %4819 = vmatpush.bf16.msra.mxu0 %v4744
  %4820 = vmatpush.bf16.msra.mxu0 %v4740
  %4821 = vmatpush.bf16.msra.mxu0 %v4736
  %4822 = vmatpush.bf16.msra.mxu0 %v4732
  %4823 = vmatpush.bf16.msra.mxu0 %v4728
  %4824 = vmatmul.bf16.gmra.mxu0 %v1143
  %v4825 = vpop.f32.mrf.mxu0
  %v4826 = vadd.f32 0.0, %v4825
  %v4827 = vpop.f32.mrf.mxu0
  %4828 = vdwg.mxu0
  %4829 = vmatpush.bf16.msra.mxu0 %v4757
  %4830 = vmatpush.bf16.msra.mxu0 %v4753
  %4831 = vmatpush.bf16.msra.mxu0 %v4749
  %4832 = vmatpush.bf16.msra.mxu0 %v4745
  %4833 = vmatpush.bf16.msra.mxu0 %v4741
  %4834 = vmatpush.bf16.msra.mxu0 %v4737
  %4835 = vmatpush.bf16.msra.mxu0 %v4733
  %4836 = vmatpush.bf16.msra.mxu0 %v4729
  %4837 = vmatmul.bf16.gmra.mxu0 %v1143
  %v4838 = vpop.f32.mrf.mxu0
  %v4839 = vadd.f32 0.0, %v4838
  %v4840 = vpop.f32.mrf.mxu0
  %4841 = vdwg.mxu0
  %s4842 = scalar_lea.vmem %s5, 480
  %v4843 = vld [vmem:[%s4842] sm:$0xff]
  %v4844 = vld [vmem:[%s4842 + $0x8] sm:$0xff]
  %v4845 = vld [vmem:[%s4842 + $0x10] sm:$0xff]
  %v4846 = vld [vmem:[%s4842 + $0x18] sm:$0xff]
  %v4847 = vld [vmem:[%s4842 + $0x20] sm:$0xff]
  %v4848 = vld [vmem:[%s4842 + $0x28] sm:$0xff]
  %v4849 = vld [vmem:[%s4842 + $0x30] sm:$0xff]
  %v4850 = vld [vmem:[%s4842 + $0x38] sm:$0xff]
  %v4851 = vld [vmem:[%s4842 + $0x40] sm:$0x33]
  %v4852 = vld [vmem:[%s4842 + $0x48] sm:$0x33]
  %v4863 = vunpack.c.l.b16 %v4843
  %v4864 = vunpack.c.h.b16 %v4843
  %v4865 = vunpack.c.l.b16 %v4844
  %v4866 = vunpack.c.h.b16 %v4844
  %v4867 = vunpack.c.l.b16 %v4845
  %v4868 = vunpack.c.h.b16 %v4845
  %v4869 = vunpack.c.l.b16 %v4846
  %v4870 = vunpack.c.h.b16 %v4846
  %v4871 = vunpack.c.l.b16 %v4847
  %v4872 = vunpack.c.h.b16 %v4847
  %v4873 = vunpack.c.l.b16 %v4848
  %v4874 = vunpack.c.h.b16 %v4848
  %v4875 = vunpack.c.l.b16 %v4849
  %v4876 = vunpack.c.h.b16 %v4849
  %v4877 = vunpack.c.l.b16 %v4850
  %v4878 = vunpack.c.h.b16 %v4850
  %v4879 = vunpack.c.l.b16 %v4851
  %v4880 = vunpack.c.h.b16 %v4851
  %v4881 = vunpack.c.l.b16 %v4852
  %v4882 = vunpack.c.h.b16 %v4852
  %v4883 = vpack.c.b16 %v4867, %v4863
  %v4884 = vpack.c.b16 %v4868, %v4864
  %v4885 = vpack.c.b16 %v4869, %v4865
  %v4886 = vpack.c.b16 %v4870, %v4866
  %v4887 = vpack.c.b16 %v4875, %v4871
  %v4888 = vpack.c.b16 %v4876, %v4872
  %v4889 = vpack.c.b16 %v4877, %v4873
  %v4890 = vpack.c.b16 %v4878, %v4874
  %v4891 = vpack.c.b16 %v4879, %v4879
  %v4892 = vpack.c.b16 %v4880, %v4880
  %v4893 = vpack.c.b16 %v4881, %v4881
  %v4894 = vpack.c.b16 %v4882, %v4882
  %v4904 = vsel %vm153, %v4891, 0
  %v4907 = vsel %vm153, %v4892, 0
  %v4910 = vsel %vm153, %v4893, 0
  %v4913 = vsel %vm153, %v4894, 0
  %4915 = vmatpush.bf16.msra.mxu0 0
  %4916 = vmatpush.bf16.msra.mxu0 0
  %4917 = vmatpush.bf16.msra.mxu0 0
  %4918 = vmatpush.bf16.msra.mxu0 0
  %4919 = vmatpush.bf16.msra.mxu0 0
  %4920 = vmatpush.bf16.msra.mxu0 %v4904
  %4921 = vmatpush.bf16.msra.mxu0 %v4887
  %4922 = vmatpush.bf16.msra.mxu0 %v4883
  %4923 = vmatmul.bf16.gmra.mxu0 %v151
  %v4924 = vpop.f32.mrf.mxu0
  %v4925 = vadd.f32 %v132, %v4924
  %v4926 = vpop.f32.mrf.mxu0
  %4927 = vdwg.mxu0
  %4928 = vmatpush.bf16.msra.mxu0 0
  %4929 = vmatpush.bf16.msra.mxu0 0
  %4930 = vmatpush.bf16.msra.mxu0 0
  %4931 = vmatpush.bf16.msra.mxu0 0
  %4932 = vmatpush.bf16.msra.mxu0 0
  %4933 = vmatpush.bf16.msra.mxu0 %v4907
  %4934 = vmatpush.bf16.msra.mxu0 %v4888
  %4935 = vmatpush.bf16.msra.mxu0 %v4884
  %4936 = vmatmul.bf16.gmra.mxu0 %v151
  %v4937 = vpop.f32.mrf.mxu0
  %v4938 = vadd.f32 %v132, %v4937
  %v4939 = vpop.f32.mrf.mxu0
  %4940 = vdwg.mxu0
  %4941 = vmatpush.bf16.msra.mxu0 0
  %4942 = vmatpush.bf16.msra.mxu0 0
  %4943 = vmatpush.bf16.msra.mxu0 0
  %4944 = vmatpush.bf16.msra.mxu0 0
  %4945 = vmatpush.bf16.msra.mxu0 0
  %4946 = vmatpush.bf16.msra.mxu0 %v4910
  %4947 = vmatpush.bf16.msra.mxu0 %v4889
  %4948 = vmatpush.bf16.msra.mxu0 %v4885
  %4949 = vmatmul.bf16.gmra.mxu0 %v151
  %v4950 = vpop.f32.mrf.mxu0
  %v4951 = vadd.f32 %v132, %v4950
  %v4952 = vpop.f32.mrf.mxu0
  %4953 = vdwg.mxu0
  %4954 = vmatpush.bf16.msra.mxu0 0
  %4955 = vmatpush.bf16.msra.mxu0 0
  %4956 = vmatpush.bf16.msra.mxu0 0
  %4957 = vmatpush.bf16.msra.mxu0 0
  %4958 = vmatpush.bf16.msra.mxu0 0
  %4959 = vmatpush.bf16.msra.mxu0 %v4913
  %4960 = vmatpush.bf16.msra.mxu0 %v4890
  %4961 = vmatpush.bf16.msra.mxu0 %v4886
  %4962 = vmatmul.bf16.gmra.mxu0 %v151
  %v4963 = vpop.f32.mrf.mxu0
  %v4964 = vadd.f32 %v132, %v4963
  %v4965 = vpop.f32.mrf.mxu0
  %4966 = vdwg.mxu0
  %vm4967 = vcmp.gt.f32.partialorder %v4925, 0.0
  %vm4968 = vcmp.gt.f32.partialorder %v4938, 0.0
  %vm4969 = vcmp.gt.f32.partialorder %v4951, 0.0
  %vm4970 = vcmp.gt.f32.partialorder %v4964, 0.0
  %v4971 = vmul.f32 %v4925, 0.1
  %v4972 = vmul.f32 %v4938, 0.1
  %v4973 = vmul.f32 %v4951, 0.1
  %v4974 = vmul.f32 %v4964, 0.1
  %v4975 = vsel %vm4967, %v4925, %v4971
  %v4976 = vsel %vm4968, %v4938, %v4972
  %v4977 = vsel %vm4969, %v4951, %v4973
  %v4978 = vsel %vm4970, %v4964, %v4974
  %s4979 = scalar_lea.vmem %s7, 24
  %v4980 = vld [vmem:[%s4979] sm:$0xf]
  %v4982 = vperm.slane %v4980, 0
  %v4983 = vperm.slane %v4980, 1
  %v4984 = vperm.slane %v4980, 2
  %v4985 = vperm.slane %v4980, 3
  %v4990 = vmul.f32 %v4975, %v4982
  %v4991 = vmul.f32 %v4976, %v4983
  %v4992 = vmul.f32 %v4977, %v4984
  %v4993 = vmul.f32 %v4978, %v4985
  %s4994 = scalar_lea.vmem %s31, 48
  %v4995 = vld [vmem:[%s4994] sm:$0xf]
  %v4996 = vld [vmem:[%s4994 + $0x4] sm:$0x3]
  %v4997 = vpack.c.bf16 %v4800, %v4800
  %v4998 = vpack.c.bf16 %v4813, %v4813
  %v4999 = vpack.c.bf16 %v4826, %v4826
  %v5000 = vpack.c.bf16 %v4839, %v4839
  %v5003 = vunpack.c.l.b16 %v4995
  %v5004 = vunpack.c.l.b16 %v4996
  %v5005 = vpack.c.b16 %v5004, %v5003
  %v5007 = vsel %vm236, %v5005, 0
  %v5010 = vsel %vm240, %v4997, 0
  %v5013 = vsel %vm240, %v4998, 0
  %v5016 = vsel %vm240, %v4999, 0
  %v5019 = vsel %vm240, %v5000, 0
  %5021 = vmatpush.bf16.msra.mxu0 0
  %5022 = vmatpush.bf16.msra.mxu0 0
  %5023 = vmatpush.bf16.msra.mxu0 0
  %5024 = vmatpush.bf16.msra.mxu0 0
  %5025 = vmatpush.bf16.msra.mxu0 0
  %5026 = vmatpush.bf16.msra.mxu0 0
  %5027 = vmatpush.bf16.msra.mxu0 0
  %5028 = vmatpush.bf16.msra.mxu0 %v5010
  %5029 = vmatmul.bf16.gmra.mxu0 %v5007
  %v5030 = vpop.f32.mrf.mxu0
  %v5031 = vadd.f32 0.0, %v5030
  %v5032 = vpop.f32.mrf.mxu0
  %v5033 = vadd.f32 0.0, %v5032
  %5034 = vdwg.mxu0
  %5035 = vmatpush.bf16.msra.mxu0 0
  %5036 = vmatpush.bf16.msra.mxu0 0
  %5037 = vmatpush.bf16.msra.mxu0 0
  %5038 = vmatpush.bf16.msra.mxu0 0
  %5039 = vmatpush.bf16.msra.mxu0 0
  %5040 = vmatpush.bf16.msra.mxu0 0
  %5041 = vmatpush.bf16.msra.mxu0 0
  %5042 = vmatpush.bf16.msra.mxu0 %v5013
  %5043 = vmatmul.bf16.gmra.mxu0 %v5007
  %v5044 = vpop.f32.mrf.mxu0
  %v5045 = vadd.f32 0.0, %v5044
  %v5046 = vpop.f32.mrf.mxu0
  %v5047 = vadd.f32 0.0, %v5046
  %5048 = vdwg.mxu0
  %5049 = vmatpush.bf16.msra.mxu0 0
  %5050 = vmatpush.bf16.msra.mxu0 0
  %5051 = vmatpush.bf16.msra.mxu0 0
  %5052 = vmatpush.bf16.msra.mxu0 0
  %5053 = vmatpush.bf16.msra.mxu0 0
  %5054 = vmatpush.bf16.msra.mxu0 0
  %5055 = vmatpush.bf16.msra.mxu0 0
  %5056 = vmatpush.bf16.msra.mxu0 %v5016
  %5057 = vmatmul.bf16.gmra.mxu0 %v5007
  %v5058 = vpop.f32.mrf.mxu0
  %v5059 = vadd.f32 0.0, %v5058
  %v5060 = vpop.f32.mrf.mxu0
  %v5061 = vadd.f32 0.0, %v5060
  %5062 = vdwg.mxu0
  %5063 = vmatpush.bf16.msra.mxu0 0
  %5064 = vmatpush.bf16.msra.mxu0 0
  %5065 = vmatpush.bf16.msra.mxu0 0
  %5066 = vmatpush.bf16.msra.mxu0 0
  %5067 = vmatpush.bf16.msra.mxu0 0
  %5068 = vmatpush.bf16.msra.mxu0 0
  %5069 = vmatpush.bf16.msra.mxu0 0
  %5070 = vmatpush.bf16.msra.mxu0 %v5019
  %5071 = vmatmul.bf16.gmra.mxu0 %v5007
  %v5072 = vpop.f32.mrf.mxu0
  %v5073 = vadd.f32 0.0, %v5072
  %v5074 = vpop.f32.mrf.mxu0
  %v5075 = vadd.f32 0.0, %v5074
  %5076 = vdwg.mxu0
  %v5077 = vadd.f32 %v4589, %v5031
  %v5078 = vadd.f32 %v4590, %v5045
  %v5079 = vadd.f32 %v4591, %v5059
  %v5080 = vadd.f32 %v4592, %v5073
  %v5081 = vadd.f32 %v4593, %v5033
  %v5082 = vadd.f32 %v4594, %v5047
  %v5083 = vadd.f32 %v4595, %v5061
  %v5084 = vadd.f32 %v4596, %v5075
  %s5085 = scalar_lea.vmem %s33, 48
  %v5086 = vld [vmem:[%s5085] sm:$0xf]
  %v5087 = vld [vmem:[%s5085 + $0x4] sm:$0x3]
  %v5088 = vpack.c.bf16 %v4990, %v4990
  %v5089 = vpack.c.bf16 %v4991, %v4991
  %v5090 = vpack.c.bf16 %v4992, %v4992
  %v5091 = vpack.c.bf16 %v4993, %v4993
  %v5094 = vunpack.c.l.b16 %v5086
  %v5095 = vunpack.c.l.b16 %v5087
  %v5096 = vpack.c.b16 %v5095, %v5094
  %v5098 = vsel %vm236, %v5096, 0
  %v5101 = vsel %vm240, %v5088, 0
  %v5104 = vsel %vm240, %v5089, 0
  %v5107 = vsel %vm240, %v5090, 0
  %v5110 = vsel %vm240, %v5091, 0
  %5112 = vmatpush.bf16.msra.mxu0 0
  %5113 = vmatpush.bf16.msra.mxu0 0
  %5114 = vmatpush.bf16.msra.mxu0 0
  %5115 = vmatpush.bf16.msra.mxu0 0
  %5116 = vmatpush.bf16.msra.mxu0 0
  %5117 = vmatpush.bf16.msra.mxu0 0
  %5118 = vmatpush.bf16.msra.mxu0 0
  %5119 = vmatpush.bf16.msra.mxu0 %v5101
  %5120 = vmatmul.bf16.gmra.mxu0 %v5098
  %v5121 = vpop.f32.mrf.mxu0
  %v5122 = vadd.f32 0.0, %v5121
  %v5123 = vpop.f32.mrf.mxu0
  %v5124 = vadd.f32 0.0, %v5123
  %5125 = vdwg.mxu0
  %5126 = vmatpush.bf16.msra.mxu0 0
  %5127 = vmatpush.bf16.msra.mxu0 0
  %5128 = vmatpush.bf16.msra.mxu0 0
  %5129 = vmatpush.bf16.msra.mxu0 0
  %5130 = vmatpush.bf16.msra.mxu0 0
  %5131 = vmatpush.bf16.msra.mxu0 0
  %5132 = vmatpush.bf16.msra.mxu0 0
  %5133 = vmatpush.bf16.msra.mxu0 %v5104
  %5134 = vmatmul.bf16.gmra.mxu0 %v5098
  %v5135 = vpop.f32.mrf.mxu0
  %v5136 = vadd.f32 0.0, %v5135
  %v5137 = vpop.f32.mrf.mxu0
  %v5138 = vadd.f32 0.0, %v5137
  %5139 = vdwg.mxu0
  %5140 = vmatpush.bf16.msra.mxu0 0
  %5141 = vmatpush.bf16.msra.mxu0 0
  %5142 = vmatpush.bf16.msra.mxu0 0
  %5143 = vmatpush.bf16.msra.mxu0 0
  %5144 = vmatpush.bf16.msra.mxu0 0
  %5145 = vmatpush.bf16.msra.mxu0 0
  %5146 = vmatpush.bf16.msra.mxu0 0
  %5147 = vmatpush.bf16.msra.mxu0 %v5107
  %5148 = vmatmul.bf16.gmra.mxu0 %v5098
  %v5149 = vpop.f32.mrf.mxu0
  %v5150 = vadd.f32 0.0, %v5149
  %v5151 = vpop.f32.mrf.mxu0
  %v5152 = vadd.f32 0.0, %v5151
  %5153 = vdwg.mxu0
  %5154 = vmatpush.bf16.msra.mxu0 0
  %5155 = vmatpush.bf16.msra.mxu0 0
  %5156 = vmatpush.bf16.msra.mxu0 0
  %5157 = vmatpush.bf16.msra.mxu0 0
  %5158 = vmatpush.bf16.msra.mxu0 0
  %5159 = vmatpush.bf16.msra.mxu0 0
  %5160 = vmatpush.bf16.msra.mxu0 0
  %5161 = vmatpush.bf16.msra.mxu0 %v5110
  %5162 = vmatmul.bf16.gmra.mxu0 %v5098
  %v5163 = vpop.f32.mrf.mxu0
  %v5164 = vadd.f32 0.0, %v5163
  %v5165 = vpop.f32.mrf.mxu0
  %v5166 = vadd.f32 0.0, %v5165
  %5167 = vdwg.mxu0
  %v5168 = vadd.f32 %v5077, %v5122
  %v5169 = vadd.f32 %v5078, %v5136
  %v5170 = vadd.f32 %v5079, %v5150
  %v5171 = vadd.f32 %v5080, %v5164
  %v5172 = vadd.f32 %v5081, %v5124
  %v5173 = vadd.f32 %v5082, %v5138
  %v5174 = vadd.f32 %v5083, %v5152
  %v5175 = vadd.f32 %v5084, %v5166
  %s5176 = scalar_lea.vmem %s9, 1792
  %v5177 = vld [vmem:[%s5176] sm:$0xff]
  %v5178 = vld [vmem:[%s5176 + $0x8] sm:$0xff]
  %v5179 = vld [vmem:[%s5176 + $0x10] sm:$0xff]
  %v5180 = vld [vmem:[%s5176 + $0x18] sm:$0xff]
  %v5181 = vld [vmem:[%s5176 + $0x20] sm:$0xff]
  %v5182 = vld [vmem:[%s5176 + $0x28] sm:$0xff]
  %v5183 = vld [vmem:[%s5176 + $0x30] sm:$0xff]
  %v5184 = vld [vmem:[%s5176 + $0x38] sm:$0xff]
  %v5185 = vld [vmem:[%s5176 + $0x40] sm:$0xff]
  %v5186 = vld [vmem:[%s5176 + $0x48] sm:$0xff]
  %v5187 = vld [vmem:[%s5176 + $0x50] sm:$0xff]
  %v5188 = vld [vmem:[%s5176 + $0x58] sm:$0xff]
  %v5189 = vld [vmem:[%s5176 + $0x60] sm:$0xff]
  %v5190 = vld [vmem:[%s5176 + $0x68] sm:$0xff]
  %v5191 = vld [vmem:[%s5176 + $0x70] sm:$0xff]
  %v5192 = vld [vmem:[%s5176 + $0x78] sm:$0xff]
  %v5193 = vld [vmem:[%s5176 + $0x80] sm:$0xff]
  %v5194 = vld [vmem:[%s5176 + $0x88] sm:$0xff]
  %v5195 = vld [vmem:[%s5176 + $0x90] sm:$0xff]
  %v5196 = vld [vmem:[%s5176 + $0x98] sm:$0xff]
  %v5197 = vld [vmem:[%s5176 + $0xa0] sm:$0xff]
  %v5198 = vld [vmem:[%s5176 + $0xa8] sm:$0xff]
  %v5199 = vld [vmem:[%s5176 + $0xb0] sm:$0xff]
  %v5200 = vld [vmem:[%s5176 + $0xb8] sm:$0xff]
  %v5201 = vld [vmem:[%s5176 + $0xc0] sm:$0xff]
  %v5202 = vld [vmem:[%s5176 + $0xc8] sm:$0xff]
  %v5203 = vld [vmem:[%s5176 + $0xd0] sm:$0xff]
  %v5204 = vld [vmem:[%s5176 + $0xd8] sm:$0xff]
  %v5205 = vld [vmem:[%s5176 + $0xe0] sm:$0xff]
  %v5206 = vld [vmem:[%s5176 + $0xe8] sm:$0xff]
  %v5207 = vld [vmem:[%s5176 + $0xf0] sm:$0xff]
  %v5208 = vld [vmem:[%s5176 + $0xf8] sm:$0xff]
  %v5241 = vunpack.c.l.b16 %v5177
  %v5242 = vunpack.c.h.b16 %v5177
  %v5243 = vunpack.c.l.b16 %v5178
  %v5244 = vunpack.c.h.b16 %v5178
  %v5245 = vunpack.c.l.b16 %v5179
  %v5246 = vunpack.c.h.b16 %v5179
  %v5247 = vunpack.c.l.b16 %v5180
  %v5248 = vunpack.c.h.b16 %v5180
  %v5249 = vunpack.c.l.b16 %v5181
  %v5250 = vunpack.c.h.b16 %v5181
  %v5251 = vunpack.c.l.b16 %v5182
  %v5252 = vunpack.c.h.b16 %v5182
  %v5253 = vunpack.c.l.b16 %v5183
  %v5254 = vunpack.c.h.b16 %v5183
  %v5255 = vunpack.c.l.b16 %v5184
  %v5256 = vunpack.c.h.b16 %v5184
  %v5257 = vunpack.c.l.b16 %v5185
  %v5258 = vunpack.c.h.b16 %v5185
  %v5259 = vunpack.c.l.b16 %v5186
  %v5260 = vunpack.c.h.b16 %v5186
  %v5261 = vunpack.c.l.b16 %v5187
  %v5262 = vunpack.c.h.b16 %v5187
  %v5263 = vunpack.c.l.b16 %v5188
  %v5264 = vunpack.c.h.b16 %v5188
  %v5265 = vunpack.c.l.b16 %v5189
  %v5266 = vunpack.c.h.b16 %v5189
  %v5267 = vunpack.c.l.b16 %v5190
  %v5268 = vunpack.c.h.b16 %v5190
  %v5269 = vunpack.c.l.b16 %v5191
  %v5270 = vunpack.c.h.b16 %v5191
  %v5271 = vunpack.c.l.b16 %v5192
  %v5272 = vunpack.c.h.b16 %v5192
  %v5273 = vunpack.c.l.b16 %v5193
  %v5274 = vunpack.c.h.b16 %v5193
  %v5275 = vunpack.c.l.b16 %v5194
  %v5276 = vunpack.c.h.b16 %v5194
  %v5277 = vunpack.c.l.b16 %v5195
  %v5278 = vunpack.c.h.b16 %v5195
  %v5279 = vunpack.c.l.b16 %v5196
  %v5280 = vunpack.c.h.b16 %v5196
  %v5281 = vunpack.c.l.b16 %v5197
  %v5282 = vunpack.c.h.b16 %v5197
  %v5283 = vunpack.c.l.b16 %v5198
  %v5284 = vunpack.c.h.b16 %v5198
  %v5285 = vunpack.c.l.b16 %v5199
  %v5286 = vunpack.c.h.b16 %v5199
  %v5287 = vunpack.c.l.b16 %v5200
  %v5288 = vunpack.c.h.b16 %v5200
  %v5289 = vunpack.c.l.b16 %v5201
  %v5290 = vunpack.c.h.b16 %v5201
  %v5291 = vunpack.c.l.b16 %v5202
  %v5292 = vunpack.c.h.b16 %v5202
  %v5293 = vunpack.c.l.b16 %v5203
  %v5294 = vunpack.c.h.b16 %v5203
  %v5295 = vunpack.c.l.b16 %v5204
  %v5296 = vunpack.c.h.b16 %v5204
  %v5297 = vunpack.c.l.b16 %v5205
  %v5298 = vunpack.c.h.b16 %v5205
  %v5299 = vunpack.c.l.b16 %v5206
  %v5300 = vunpack.c.h.b16 %v5206
  %v5301 = vunpack.c.l.b16 %v5207
  %v5302 = vunpack.c.h.b16 %v5207
  %v5303 = vunpack.c.l.b16 %v5208
  %v5304 = vunpack.c.h.b16 %v5208
  %v5305 = vpack.c.b16 %v5245, %v5241
  %v5306 = vpack.c.b16 %v5246, %v5242
  %v5307 = vpack.c.b16 %v5247, %v5243
  %v5308 = vpack.c.b16 %v5248, %v5244
  %v5309 = vpack.c.b16 %v5253, %v5249
  %v5310 = vpack.c.b16 %v5254, %v5250
  %v5311 = vpack.c.b16 %v5255, %v5251
  %v5312 = vpack.c.b16 %v5256, %v5252
  %v5313 = vpack.c.b16 %v5261, %v5257
  %v5314 = vpack.c.b16 %v5262, %v5258
  %v5315 = vpack.c.b16 %v5263, %v5259
  %v5316 = vpack.c.b16 %v5264, %v5260
  %v5317 = vpack.c.b16 %v5269, %v5265
  %v5318 = vpack.c.b16 %v5270, %v5266
  %v5319 = vpack.c.b16 %v5271, %v5267
  %v5320 = vpack.c.b16 %v5272, %v5268
  %v5321 = vpack.c.b16 %v5277, %v5273
  %v5322 = vpack.c.b16 %v5278, %v5274
  %v5323 = vpack.c.b16 %v5279, %v5275
  %v5324 = vpack.c.b16 %v5280, %v5276
  %v5325 = vpack.c.b16 %v5285, %v5281
  %v5326 = vpack.c.b16 %v5286, %v5282
  %v5327 = vpack.c.b16 %v5287, %v5283
  %v5328 = vpack.c.b16 %v5288, %v5284
  %v5329 = vpack.c.b16 %v5293, %v5289
  %v5330 = vpack.c.b16 %v5294, %v5290
  %v5331 = vpack.c.b16 %v5295, %v5291
  %v5332 = vpack.c.b16 %v5296, %v5292
  %v5333 = vpack.c.b16 %v5301, %v5297
  %v5334 = vpack.c.b16 %v5302, %v5298
  %v5335 = vpack.c.b16 %v5303, %v5299
  %v5336 = vpack.c.b16 %v5304, %v5300
  %5369 = vmatpush.bf16.msra.mxu0 %v5333
  %5370 = vmatpush.bf16.msra.mxu0 %v5329
  %5371 = vmatpush.bf16.msra.mxu0 %v5325
  %5372 = vmatpush.bf16.msra.mxu0 %v5321
  %5373 = vmatpush.bf16.msra.mxu0 %v5317
  %5374 = vmatpush.bf16.msra.mxu0 %v5313
  %5375 = vmatpush.bf16.msra.mxu0 %v5309
  %5376 = vmatpush.bf16.msra.mxu0 %v5305
  %5377 = vmatmul.bf16.gmra.mxu0 %v1143
  %v5378 = vpop.f32.mrf.mxu0
  %v5379 = vadd.f32 0.0, %v5378
  %v5380 = vpop.f32.mrf.mxu0
  %5381 = vdwg.mxu0
  %5382 = vmatpush.bf16.msra.mxu0 %v5334
  %5383 = vmatpush.bf16.msra.mxu0 %v5330
  %5384 = vmatpush.bf16.msra.mxu0 %v5326
  %5385 = vmatpush.bf16.msra.mxu0 %v5322
  %5386 = vmatpush.bf16.msra.mxu0 %v5318
  %5387 = vmatpush.bf16.msra.mxu0 %v5314
  %5388 = vmatpush.bf16.msra.mxu0 %v5310
  %5389 = vmatpush.bf16.msra.mxu0 %v5306
  %5390 = vmatmul.bf16.gmra.mxu0 %v1143
  %v5391 = vpop.f32.mrf.mxu0
  %v5392 = vadd.f32 0.0, %v5391
  %v5393 = vpop.f32.mrf.mxu0
  %5394 = vdwg.mxu0
  %5395 = vmatpush.bf16.msra.mxu0 %v5335
  %5396 = vmatpush.bf16.msra.mxu0 %v5331
  %5397 = vmatpush.bf16.msra.mxu0 %v5327
  %5398 = vmatpush.bf16.msra.mxu0 %v5323
  %5399 = vmatpush.bf16.msra.mxu0 %v5319
  %5400 = vmatpush.bf16.msra.mxu0 %v5315
  %5401 = vmatpush.bf16.msra.mxu0 %v5311
  %5402 = vmatpush.bf16.msra.mxu0 %v5307
  %5403 = vmatmul.bf16.gmra.mxu0 %v1143
  %v5404 = vpop.f32.mrf.mxu0
  %v5405 = vadd.f32 0.0, %v5404
  %v5406 = vpop.f32.mrf.mxu0
  %5407 = vdwg.mxu0
  %5408 = vmatpush.bf16.msra.mxu0 %v5336
  %5409 = vmatpush.bf16.msra.mxu0 %v5332
  %5410 = vmatpush.bf16.msra.mxu0 %v5328
  %5411 = vmatpush.bf16.msra.mxu0 %v5324
  %5412 = vmatpush.bf16.msra.mxu0 %v5320
  %5413 = vmatpush.bf16.msra.mxu0 %v5316
  %5414 = vmatpush.bf16.msra.mxu0 %v5312
  %5415 = vmatpush.bf16.msra.mxu0 %v5308
  %5416 = vmatmul.bf16.gmra.mxu0 %v1143
  %v5417 = vpop.f32.mrf.mxu0
  %v5418 = vadd.f32 0.0, %v5417
  %v5419 = vpop.f32.mrf.mxu0
  %5420 = vdwg.mxu0
  %s5421 = scalar_lea.vmem %s5, 560
  %v5422 = vld [vmem:[%s5421] sm:$0xff]
  %v5423 = vld [vmem:[%s5421 + $0x8] sm:$0xff]
  %v5424 = vld [vmem:[%s5421 + $0x10] sm:$0xff]
  %v5425 = vld [vmem:[%s5421 + $0x18] sm:$0xff]
  %v5426 = vld [vmem:[%s5421 + $0x20] sm:$0xff]
  %v5427 = vld [vmem:[%s5421 + $0x28] sm:$0xff]
  %v5428 = vld [vmem:[%s5421 + $0x30] sm:$0xff]
  %v5429 = vld [vmem:[%s5421 + $0x38] sm:$0xff]
  %v5430 = vld [vmem:[%s5421 + $0x40] sm:$0x33]
  %v5431 = vld [vmem:[%s5421 + $0x48] sm:$0x33]
  %v5442 = vunpack.c.l.b16 %v5422
  %v5443 = vunpack.c.h.b16 %v5422
  %v5444 = vunpack.c.l.b16 %v5423
  %v5445 = vunpack.c.h.b16 %v5423
  %v5446 = vunpack.c.l.b16 %v5424
  %v5447 = vunpack.c.h.b16 %v5424
  %v5448 = vunpack.c.l.b16 %v5425
  %v5449 = vunpack.c.h.b16 %v5425
  %v5450 = vunpack.c.l.b16 %v5426
  %v5451 = vunpack.c.h.b16 %v5426
  %v5452 = vunpack.c.l.b16 %v5427
  %v5453 = vunpack.c.h.b16 %v5427
  %v5454 = vunpack.c.l.b16 %v5428
  %v5455 = vunpack.c.h.b16 %v5428
  %v5456 = vunpack.c.l.b16 %v5429
  %v5457 = vunpack.c.h.b16 %v5429
  %v5458 = vunpack.c.l.b16 %v5430
  %v5459 = vunpack.c.h.b16 %v5430
  %v5460 = vunpack.c.l.b16 %v5431
  %v5461 = vunpack.c.h.b16 %v5431
  %v5462 = vpack.c.b16 %v5446, %v5442
  %v5463 = vpack.c.b16 %v5447, %v5443
  %v5464 = vpack.c.b16 %v5448, %v5444
  %v5465 = vpack.c.b16 %v5449, %v5445
  %v5466 = vpack.c.b16 %v5454, %v5450
  %v5467 = vpack.c.b16 %v5455, %v5451
  %v5468 = vpack.c.b16 %v5456, %v5452
  %v5469 = vpack.c.b16 %v5457, %v5453
  %v5470 = vpack.c.b16 %v5458, %v5458
  %v5471 = vpack.c.b16 %v5459, %v5459
  %v5472 = vpack.c.b16 %v5460, %v5460
  %v5473 = vpack.c.b16 %v5461, %v5461
  %v5483 = vsel %vm153, %v5470, 0
  %v5486 = vsel %vm153, %v5471, 0
  %v5489 = vsel %vm153, %v5472, 0
  %v5492 = vsel %vm153, %v5473, 0
  %5494 = vmatpush.bf16.msra.mxu0 0
  %5495 = vmatpush.bf16.msra.mxu0 0
  %5496 = vmatpush.bf16.msra.mxu0 0
  %5497 = vmatpush.bf16.msra.mxu0 0
  %5498 = vmatpush.bf16.msra.mxu0 0
  %5499 = vmatpush.bf16.msra.mxu0 %v5483
  %5500 = vmatpush.bf16.msra.mxu0 %v5466
  %5501 = vmatpush.bf16.msra.mxu0 %v5462
  %5502 = vmatmul.bf16.gmra.mxu0 %v151
  %v5503 = vpop.f32.mrf.mxu0
  %v5504 = vadd.f32 %v132, %v5503
  %v5505 = vpop.f32.mrf.mxu0
  %5506 = vdwg.mxu0
  %5507 = vmatpush.bf16.msra.mxu0 0
  %5508 = vmatpush.bf16.msra.mxu0 0
  %5509 = vmatpush.bf16.msra.mxu0 0
  %5510 = vmatpush.bf16.msra.mxu0 0
  %5511 = vmatpush.bf16.msra.mxu0 0
  %5512 = vmatpush.bf16.msra.mxu0 %v5486
  %5513 = vmatpush.bf16.msra.mxu0 %v5467
  %5514 = vmatpush.bf16.msra.mxu0 %v5463
  %5515 = vmatmul.bf16.gmra.mxu0 %v151
  %v5516 = vpop.f32.mrf.mxu0
  %v5517 = vadd.f32 %v132, %v5516
  %v5518 = vpop.f32.mrf.mxu0
  %5519 = vdwg.mxu0
  %5520 = vmatpush.bf16.msra.mxu0 0
  %5521 = vmatpush.bf16.msra.mxu0 0
  %5522 = vmatpush.bf16.msra.mxu0 0
  %5523 = vmatpush.bf16.msra.mxu0 0
  %5524 = vmatpush.bf16.msra.mxu0 0
  %5525 = vmatpush.bf16.msra.mxu0 %v5489
  %5526 = vmatpush.bf16.msra.mxu0 %v5468
  %5527 = vmatpush.bf16.msra.mxu0 %v5464
  %5528 = vmatmul.bf16.gmra.mxu0 %v151
  %v5529 = vpop.f32.mrf.mxu0
  %v5530 = vadd.f32 %v132, %v5529
  %v5531 = vpop.f32.mrf.mxu0
  %5532 = vdwg.mxu0
  %5533 = vmatpush.bf16.msra.mxu0 0
  %5534 = vmatpush.bf16.msra.mxu0 0
  %5535 = vmatpush.bf16.msra.mxu0 0
  %5536 = vmatpush.bf16.msra.mxu0 0
  %5537 = vmatpush.bf16.msra.mxu0 0
  %5538 = vmatpush.bf16.msra.mxu0 %v5492
  %5539 = vmatpush.bf16.msra.mxu0 %v5469
  %5540 = vmatpush.bf16.msra.mxu0 %v5465
  %5541 = vmatmul.bf16.gmra.mxu0 %v151
  %v5542 = vpop.f32.mrf.mxu0
  %v5543 = vadd.f32 %v132, %v5542
  %v5544 = vpop.f32.mrf.mxu0
  %5545 = vdwg.mxu0
  %vm5546 = vcmp.gt.f32.partialorder %v5504, 0.0
  %vm5547 = vcmp.gt.f32.partialorder %v5517, 0.0
  %vm5548 = vcmp.gt.f32.partialorder %v5530, 0.0
  %vm5549 = vcmp.gt.f32.partialorder %v5543, 0.0
  %v5550 = vmul.f32 %v5504, 0.1
  %v5551 = vmul.f32 %v5517, 0.1
  %v5552 = vmul.f32 %v5530, 0.1
  %v5553 = vmul.f32 %v5543, 0.1
  %v5554 = vsel %vm5546, %v5504, %v5550
  %v5555 = vsel %vm5547, %v5517, %v5551
  %v5556 = vsel %vm5548, %v5530, %v5552
  %v5557 = vsel %vm5549, %v5543, %v5553
  %s5558 = scalar_lea.vmem %s7, 28
  %v5559 = vld [vmem:[%s5558] sm:$0xf]
  %v5561 = vperm.slane %v5559, 0
  %v5562 = vperm.slane %v5559, 1
  %v5563 = vperm.slane %v5559, 2
  %v5564 = vperm.slane %v5559, 3
  %v5569 = vmul.f32 %v5554, %v5561
  %v5570 = vmul.f32 %v5555, %v5562
  %v5571 = vmul.f32 %v5556, %v5563
  %v5572 = vmul.f32 %v5557, %v5564
  %s5573 = scalar_lea.vmem %s31, 56
  %v5574 = vld [vmem:[%s5573] sm:$0xf]
  %v5575 = vld [vmem:[%s5573 + $0x4] sm:$0x3]
  %v5576 = vpack.c.bf16 %v5379, %v5379
  %v5577 = vpack.c.bf16 %v5392, %v5392
  %v5578 = vpack.c.bf16 %v5405, %v5405
  %v5579 = vpack.c.bf16 %v5418, %v5418
  %v5582 = vunpack.c.l.b16 %v5574
  %v5583 = vunpack.c.l.b16 %v5575
  %v5584 = vpack.c.b16 %v5583, %v5582
  %v5586 = vsel %vm236, %v5584, 0
  %v5589 = vsel %vm240, %v5576, 0
  %v5592 = vsel %vm240, %v5577, 0
  %v5595 = vsel %vm240, %v5578, 0
  %v5598 = vsel %vm240, %v5579, 0
  %5600 = vmatpush.bf16.msra.mxu0 0
  %5601 = vmatpush.bf16.msra.mxu0 0
  %5602 = vmatpush.bf16.msra.mxu0 0
  %5603 = vmatpush.bf16.msra.mxu0 0
  %5604 = vmatpush.bf16.msra.mxu0 0
  %5605 = vmatpush.bf16.msra.mxu0 0
  %5606 = vmatpush.bf16.msra.mxu0 0
  %5607 = vmatpush.bf16.msra.mxu0 %v5589
  %5608 = vmatmul.bf16.gmra.mxu0 %v5586
  %v5609 = vpop.f32.mrf.mxu0
  %v5610 = vadd.f32 0.0, %v5609
  %v5611 = vpop.f32.mrf.mxu0
  %v5612 = vadd.f32 0.0, %v5611
  %5613 = vdwg.mxu0
  %5614 = vmatpush.bf16.msra.mxu0 0
  %5615 = vmatpush.bf16.msra.mxu0 0
  %5616 = vmatpush.bf16.msra.mxu0 0
  %5617 = vmatpush.bf16.msra.mxu0 0
  %5618 = vmatpush.bf16.msra.mxu0 0
  %5619 = vmatpush.bf16.msra.mxu0 0
  %5620 = vmatpush.bf16.msra.mxu0 0
  %5621 = vmatpush.bf16.msra.mxu0 %v5592
  %5622 = vmatmul.bf16.gmra.mxu0 %v5586
  %v5623 = vpop.f32.mrf.mxu0
  %v5624 = vadd.f32 0.0, %v5623
  %v5625 = vpop.f32.mrf.mxu0
  %v5626 = vadd.f32 0.0, %v5625
  %5627 = vdwg.mxu0
  %5628 = vmatpush.bf16.msra.mxu0 0
  %5629 = vmatpush.bf16.msra.mxu0 0
  %5630 = vmatpush.bf16.msra.mxu0 0
  %5631 = vmatpush.bf16.msra.mxu0 0
  %5632 = vmatpush.bf16.msra.mxu0 0
  %5633 = vmatpush.bf16.msra.mxu0 0
  %5634 = vmatpush.bf16.msra.mxu0 0
  %5635 = vmatpush.bf16.msra.mxu0 %v5595
  %5636 = vmatmul.bf16.gmra.mxu0 %v5586
  %v5637 = vpop.f32.mrf.mxu0
  %v5638 = vadd.f32 0.0, %v5637
  %v5639 = vpop.f32.mrf.mxu0
  %v5640 = vadd.f32 0.0, %v5639
  %5641 = vdwg.mxu0
  %5642 = vmatpush.bf16.msra.mxu0 0
  %5643 = vmatpush.bf16.msra.mxu0 0
  %5644 = vmatpush.bf16.msra.mxu0 0
  %5645 = vmatpush.bf16.msra.mxu0 0
  %5646 = vmatpush.bf16.msra.mxu0 0
  %5647 = vmatpush.bf16.msra.mxu0 0
  %5648 = vmatpush.bf16.msra.mxu0 0
  %5649 = vmatpush.bf16.msra.mxu0 %v5598
  %5650 = vmatmul.bf16.gmra.mxu0 %v5586
  %v5651 = vpop.f32.mrf.mxu0
  %v5652 = vadd.f32 0.0, %v5651
  %v5653 = vpop.f32.mrf.mxu0
  %v5654 = vadd.f32 0.0, %v5653
  %5655 = vdwg.mxu0
  %v5656 = vadd.f32 %v5168, %v5610
  %v5657 = vadd.f32 %v5169, %v5624
  %v5658 = vadd.f32 %v5170, %v5638
  %v5659 = vadd.f32 %v5171, %v5652
  %v5660 = vadd.f32 %v5172, %v5612
  %v5661 = vadd.f32 %v5173, %v5626
  %v5662 = vadd.f32 %v5174, %v5640
  %v5663 = vadd.f32 %v5175, %v5654
  %s5664 = scalar_lea.vmem %s33, 56
  %v5665 = vld [vmem:[%s5664] sm:$0xf]
  %v5666 = vld [vmem:[%s5664 + $0x4] sm:$0x3]
  %v5667 = vpack.c.bf16 %v5569, %v5569
  %v5668 = vpack.c.bf16 %v5570, %v5570
  %v5669 = vpack.c.bf16 %v5571, %v5571
  %v5670 = vpack.c.bf16 %v5572, %v5572
  %v5673 = vunpack.c.l.b16 %v5665
  %v5674 = vunpack.c.l.b16 %v5666
  %v5675 = vpack.c.b16 %v5674, %v5673
  %v5677 = vsel %vm236, %v5675, 0
  %v5680 = vsel %vm240, %v5667, 0
  %v5683 = vsel %vm240, %v5668, 0
  %v5686 = vsel %vm240, %v5669, 0
  %v5689 = vsel %vm240, %v5670, 0
  %5691 = vmatpush.bf16.msra.mxu0 0
  %5692 = vmatpush.bf16.msra.mxu0 0
  %5693 = vmatpush.bf16.msra.mxu0 0
  %5694 = vmatpush.bf16.msra.mxu0 0
  %5695 = vmatpush.bf16.msra.mxu0 0
  %5696 = vmatpush.bf16.msra.mxu0 0
  %5697 = vmatpush.bf16.msra.mxu0 0
  %5698 = vmatpush.bf16.msra.mxu0 %v5680
  %5699 = vmatmul.bf16.gmra.mxu0 %v5677
  %v5700 = vpop.f32.mrf.mxu0
  %v5701 = vadd.f32 0.0, %v5700
  %v5702 = vpop.f32.mrf.mxu0
  %v5703 = vadd.f32 0.0, %v5702
  %5704 = vdwg.mxu0
  %5705 = vmatpush.bf16.msra.mxu0 0
  %5706 = vmatpush.bf16.msra.mxu0 0
  %5707 = vmatpush.bf16.msra.mxu0 0
  %5708 = vmatpush.bf16.msra.mxu0 0
  %5709 = vmatpush.bf16.msra.mxu0 0
  %5710 = vmatpush.bf16.msra.mxu0 0
  %5711 = vmatpush.bf16.msra.mxu0 0
  %5712 = vmatpush.bf16.msra.mxu0 %v5683
  %5713 = vmatmul.bf16.gmra.mxu0 %v5677
  %v5714 = vpop.f32.mrf.mxu0
  %v5715 = vadd.f32 0.0, %v5714
  %v5716 = vpop.f32.mrf.mxu0
  %v5717 = vadd.f32 0.0, %v5716
  %5718 = vdwg.mxu0
  %5719 = vmatpush.bf16.msra.mxu0 0
  %5720 = vmatpush.bf16.msra.mxu0 0
  %5721 = vmatpush.bf16.msra.mxu0 0
  %5722 = vmatpush.bf16.msra.mxu0 0
  %5723 = vmatpush.bf16.msra.mxu0 0
  %5724 = vmatpush.bf16.msra.mxu0 0
  %5725 = vmatpush.bf16.msra.mxu0 0
  %5726 = vmatpush.bf16.msra.mxu0 %v5686
  %5727 = vmatmul.bf16.gmra.mxu0 %v5677
  %v5728 = vpop.f32.mrf.mxu0
  %v5729 = vadd.f32 0.0, %v5728
  %v5730 = vpop.f32.mrf.mxu0
  %v5731 = vadd.f32 0.0, %v5730
  %5732 = vdwg.mxu0
  %5733 = vmatpush.bf16.msra.mxu0 0
  %5734 = vmatpush.bf16.msra.mxu0 0
  %5735 = vmatpush.bf16.msra.mxu0 0
  %5736 = vmatpush.bf16.msra.mxu0 0
  %5737 = vmatpush.bf16.msra.mxu0 0
  %5738 = vmatpush.bf16.msra.mxu0 0
  %5739 = vmatpush.bf16.msra.mxu0 0
  %5740 = vmatpush.bf16.msra.mxu0 %v5689
  %5741 = vmatmul.bf16.gmra.mxu0 %v5677
  %v5742 = vpop.f32.mrf.mxu0
  %v5743 = vadd.f32 0.0, %v5742
  %v5744 = vpop.f32.mrf.mxu0
  %v5745 = vadd.f32 0.0, %v5744
  %5746 = vdwg.mxu0
  %v5747 = vadd.f32 %v5656, %v5701
  %v5748 = vadd.f32 %v5657, %v5715
  %v5749 = vadd.f32 %v5658, %v5729
  %v5750 = vadd.f32 %v5659, %v5743
  %v5751 = vadd.f32 %v5660, %v5703
  %v5752 = vadd.f32 %v5661, %v5717
  %v5753 = vadd.f32 %v5662, %v5731
  %v5754 = vadd.f32 %v5663, %v5745
  %s5755 = scalar_lea.vmem %s9, 2048
  %v5756 = vld [vmem:[%s5755] sm:$0xff]
  %v5757 = vld [vmem:[%s5755 + $0x8] sm:$0xff]
  %v5758 = vld [vmem:[%s5755 + $0x10] sm:$0xff]
  %v5759 = vld [vmem:[%s5755 + $0x18] sm:$0xff]
  %v5760 = vld [vmem:[%s5755 + $0x20] sm:$0xff]
  %v5761 = vld [vmem:[%s5755 + $0x28] sm:$0xff]
  %v5762 = vld [vmem:[%s5755 + $0x30] sm:$0xff]
  %v5763 = vld [vmem:[%s5755 + $0x38] sm:$0xff]
  %v5764 = vld [vmem:[%s5755 + $0x40] sm:$0xff]
  %v5765 = vld [vmem:[%s5755 + $0x48] sm:$0xff]
  %v5766 = vld [vmem:[%s5755 + $0x50] sm:$0xff]
  %v5767 = vld [vmem:[%s5755 + $0x58] sm:$0xff]
  %v5768 = vld [vmem:[%s5755 + $0x60] sm:$0xff]
  %v5769 = vld [vmem:[%s5755 + $0x68] sm:$0xff]
  %v5770 = vld [vmem:[%s5755 + $0x70] sm:$0xff]
  %v5771 = vld [vmem:[%s5755 + $0x78] sm:$0xff]
  %v5772 = vld [vmem:[%s5755 + $0x80] sm:$0xff]
  %v5773 = vld [vmem:[%s5755 + $0x88] sm:$0xff]
  %v5774 = vld [vmem:[%s5755 + $0x90] sm:$0xff]
  %v5775 = vld [vmem:[%s5755 + $0x98] sm:$0xff]
  %v5776 = vld [vmem:[%s5755 + $0xa0] sm:$0xff]
  %v5777 = vld [vmem:[%s5755 + $0xa8] sm:$0xff]
  %v5778 = vld [vmem:[%s5755 + $0xb0] sm:$0xff]
  %v5779 = vld [vmem:[%s5755 + $0xb8] sm:$0xff]
  %v5780 = vld [vmem:[%s5755 + $0xc0] sm:$0xff]
  %v5781 = vld [vmem:[%s5755 + $0xc8] sm:$0xff]
  %v5782 = vld [vmem:[%s5755 + $0xd0] sm:$0xff]
  %v5783 = vld [vmem:[%s5755 + $0xd8] sm:$0xff]
  %v5784 = vld [vmem:[%s5755 + $0xe0] sm:$0xff]
  %v5785 = vld [vmem:[%s5755 + $0xe8] sm:$0xff]
  %v5786 = vld [vmem:[%s5755 + $0xf0] sm:$0xff]
  %v5787 = vld [vmem:[%s5755 + $0xf8] sm:$0xff]
  %v5820 = vunpack.c.l.b16 %v5756
  %v5821 = vunpack.c.h.b16 %v5756
  %v5822 = vunpack.c.l.b16 %v5757
  %v5823 = vunpack.c.h.b16 %v5757
  %v5824 = vunpack.c.l.b16 %v5758
  %v5825 = vunpack.c.h.b16 %v5758
  %v5826 = vunpack.c.l.b16 %v5759
  %v5827 = vunpack.c.h.b16 %v5759
  %v5828 = vunpack.c.l.b16 %v5760
  %v5829 = vunpack.c.h.b16 %v5760
  %v5830 = vunpack.c.l.b16 %v5761
  %v5831 = vunpack.c.h.b16 %v5761
  %v5832 = vunpack.c.l.b16 %v5762
  %v5833 = vunpack.c.h.b16 %v5762
  %v5834 = vunpack.c.l.b16 %v5763
  %v5835 = vunpack.c.h.b16 %v5763
  %v5836 = vunpack.c.l.b16 %v5764
  %v5837 = vunpack.c.h.b16 %v5764
  %v5838 = vunpack.c.l.b16 %v5765
  %v5839 = vunpack.c.h.b16 %v5765
  %v5840 = vunpack.c.l.b16 %v5766
  %v5841 = vunpack.c.h.b16 %v5766
  %v5842 = vunpack.c.l.b16 %v5767
  %v5843 = vunpack.c.h.b16 %v5767
  %v5844 = vunpack.c.l.b16 %v5768
  %v5845 = vunpack.c.h.b16 %v5768
  %v5846 = vunpack.c.l.b16 %v5769
  %v5847 = vunpack.c.h.b16 %v5769
  %v5848 = vunpack.c.l.b16 %v5770
  %v5849 = vunpack.c.h.b16 %v5770
  %v5850 = vunpack.c.l.b16 %v5771
  %v5851 = vunpack.c.h.b16 %v5771
  %v5852 = vunpack.c.l.b16 %v5772
  %v5853 = vunpack.c.h.b16 %v5772
  %v5854 = vunpack.c.l.b16 %v5773
  %v5855 = vunpack.c.h.b16 %v5773
  %v5856 = vunpack.c.l.b16 %v5774
  %v5857 = vunpack.c.h.b16 %v5774
  %v5858 = vunpack.c.l.b16 %v5775
  %v5859 = vunpack.c.h.b16 %v5775
  %v5860 = vunpack.c.l.b16 %v5776
  %v5861 = vunpack.c.h.b16 %v5776
  %v5862 = vunpack.c.l.b16 %v5777
  %v5863 = vunpack.c.h.b16 %v5777
  %v5864 = vunpack.c.l.b16 %v5778
  %v5865 = vunpack.c.h.b16 %v5778
  %v5866 = vunpack.c.l.b16 %v5779
  %v5867 = vunpack.c.h.b16 %v5779
  %v5868 = vunpack.c.l.b16 %v5780
  %v5869 = vunpack.c.h.b16 %v5780
  %v5870 = vunpack.c.l.b16 %v5781
  %v5871 = vunpack.c.h.b16 %v5781
  %v5872 = vunpack.c.l.b16 %v5782
  %v5873 = vunpack.c.h.b16 %v5782
  %v5874 = vunpack.c.l.b16 %v5783
  %v5875 = vunpack.c.h.b16 %v5783
  %v5876 = vunpack.c.l.b16 %v5784
  %v5877 = vunpack.c.h.b16 %v5784
  %v5878 = vunpack.c.l.b16 %v5785
  %v5879 = vunpack.c.h.b16 %v5785
  %v5880 = vunpack.c.l.b16 %v5786
  %v5881 = vunpack.c.h.b16 %v5786
  %v5882 = vunpack.c.l.b16 %v5787
  %v5883 = vunpack.c.h.b16 %v5787
  %v5884 = vpack.c.b16 %v5824, %v5820
  %v5885 = vpack.c.b16 %v5825, %v5821
  %v5886 = vpack.c.b16 %v5826, %v5822
  %v5887 = vpack.c.b16 %v5827, %v5823
  %v5888 = vpack.c.b16 %v5832, %v5828
  %v5889 = vpack.c.b16 %v5833, %v5829
  %v5890 = vpack.c.b16 %v5834, %v5830
  %v5891 = vpack.c.b16 %v5835, %v5831
  %v5892 = vpack.c.b16 %v5840, %v5836
  %v5893 = vpack.c.b16 %v5841, %v5837
  %v5894 = vpack.c.b16 %v5842, %v5838
  %v5895 = vpack.c.b16 %v5843, %v5839
  %v5896 = vpack.c.b16 %v5848, %v5844
  %v5897 = vpack.c.b16 %v5849, %v5845
  %v5898 = vpack.c.b16 %v5850, %v5846
  %v5899 = vpack.c.b16 %v5851, %v5847
  %v5900 = vpack.c.b16 %v5856, %v5852
  %v5901 = vpack.c.b16 %v5857, %v5853
  %v5902 = vpack.c.b16 %v5858, %v5854
  %v5903 = vpack.c.b16 %v5859, %v5855
  %v5904 = vpack.c.b16 %v5864, %v5860
  %v5905 = vpack.c.b16 %v5865, %v5861
  %v5906 = vpack.c.b16 %v5866, %v5862
  %v5907 = vpack.c.b16 %v5867, %v5863
  %v5908 = vpack.c.b16 %v5872, %v5868
  %v5909 = vpack.c.b16 %v5873, %v5869
  %v5910 = vpack.c.b16 %v5874, %v5870
  %v5911 = vpack.c.b16 %v5875, %v5871
  %v5912 = vpack.c.b16 %v5880, %v5876
  %v5913 = vpack.c.b16 %v5881, %v5877
  %v5914 = vpack.c.b16 %v5882, %v5878
  %v5915 = vpack.c.b16 %v5883, %v5879
  %5948 = vmatpush.bf16.msra.mxu0 %v5912
  %5949 = vmatpush.bf16.msra.mxu0 %v5908
  %5950 = vmatpush.bf16.msra.mxu0 %v5904
  %5951 = vmatpush.bf16.msra.mxu0 %v5900
  %5952 = vmatpush.bf16.msra.mxu0 %v5896
  %5953 = vmatpush.bf16.msra.mxu0 %v5892
  %5954 = vmatpush.bf16.msra.mxu0 %v5888
  %5955 = vmatpush.bf16.msra.mxu0 %v5884
  %5956 = vmatmul.bf16.gmra.mxu0 %v1143
  %v5957 = vpop.f32.mrf.mxu0
  %v5958 = vadd.f32 0.0, %v5957
  %v5959 = vpop.f32.mrf.mxu0
  %5960 = vdwg.mxu0
  %5961 = vmatpush.bf16.msra.mxu0 %v5913
  %5962 = vmatpush.bf16.msra.mxu0 %v5909
  %5963 = vmatpush.bf16.msra.mxu0 %v5905
  %5964 = vmatpush.bf16.msra.mxu0 %v5901
  %5965 = vmatpush.bf16.msra.mxu0 %v5897
  %5966 = vmatpush.bf16.msra.mxu0 %v5893
  %5967 = vmatpush.bf16.msra.mxu0 %v5889
  %5968 = vmatpush.bf16.msra.mxu0 %v5885
  %5969 = vmatmul.bf16.gmra.mxu0 %v1143
  %v5970 = vpop.f32.mrf.mxu0
  %v5971 = vadd.f32 0.0, %v5970
  %v5972 = vpop.f32.mrf.mxu0
  %5973 = vdwg.mxu0
  %5974 = vmatpush.bf16.msra.mxu0 %v5914
  %5975 = vmatpush.bf16.msra.mxu0 %v5910
  %5976 = vmatpush.bf16.msra.mxu0 %v5906
  %5977 = vmatpush.bf16.msra.mxu0 %v5902
  %5978 = vmatpush.bf16.msra.mxu0 %v5898
  %5979 = vmatpush.bf16.msra.mxu0 %v5894
  %5980 = vmatpush.bf16.msra.mxu0 %v5890
  %5981 = vmatpush.bf16.msra.mxu0 %v5886
  %5982 = vmatmul.bf16.gmra.mxu0 %v1143
  %v5983 = vpop.f32.mrf.mxu0
  %v5984 = vadd.f32 0.0, %v5983
  %v5985 = vpop.f32.mrf.mxu0
  %5986 = vdwg.mxu0
  %5987 = vmatpush.bf16.msra.mxu0 %v5915
  %5988 = vmatpush.bf16.msra.mxu0 %v5911
  %5989 = vmatpush.bf16.msra.mxu0 %v5907
  %5990 = vmatpush.bf16.msra.mxu0 %v5903
  %5991 = vmatpush.bf16.msra.mxu0 %v5899
  %5992 = vmatpush.bf16.msra.mxu0 %v5895
  %5993 = vmatpush.bf16.msra.mxu0 %v5891
  %5994 = vmatpush.bf16.msra.mxu0 %v5887
  %5995 = vmatmul.bf16.gmra.mxu0 %v1143
  %v5996 = vpop.f32.mrf.mxu0
  %v5997 = vadd.f32 0.0, %v5996
  %v5998 = vpop.f32.mrf.mxu0
  %5999 = vdwg.mxu0
  %s6000 = scalar_lea.vmem %s5, 640
  %v6001 = vld [vmem:[%s6000] sm:$0xff]
  %v6002 = vld [vmem:[%s6000 + $0x8] sm:$0xff]
  %v6003 = vld [vmem:[%s6000 + $0x10] sm:$0xff]
  %v6004 = vld [vmem:[%s6000 + $0x18] sm:$0xff]
  %v6005 = vld [vmem:[%s6000 + $0x20] sm:$0xff]
  %v6006 = vld [vmem:[%s6000 + $0x28] sm:$0xff]
  %v6007 = vld [vmem:[%s6000 + $0x30] sm:$0xff]
  %v6008 = vld [vmem:[%s6000 + $0x38] sm:$0xff]
  %v6009 = vld [vmem:[%s6000 + $0x40] sm:$0x33]
  %v6010 = vld [vmem:[%s6000 + $0x48] sm:$0x33]
  %v6021 = vunpack.c.l.b16 %v6001
  %v6022 = vunpack.c.h.b16 %v6001
  %v6023 = vunpack.c.l.b16 %v6002
  %v6024 = vunpack.c.h.b16 %v6002
  %v6025 = vunpack.c.l.b16 %v6003
  %v6026 = vunpack.c.h.b16 %v6003
  %v6027 = vunpack.c.l.b16 %v6004
  %v6028 = vunpack.c.h.b16 %v6004
  %v6029 = vunpack.c.l.b16 %v6005
  %v6030 = vunpack.c.h.b16 %v6005
  %v6031 = vunpack.c.l.b16 %v6006
  %v6032 = vunpack.c.h.b16 %v6006
  %v6033 = vunpack.c.l.b16 %v6007
  %v6034 = vunpack.c.h.b16 %v6007
  %v6035 = vunpack.c.l.b16 %v6008
  %v6036 = vunpack.c.h.b16 %v6008
  %v6037 = vunpack.c.l.b16 %v6009
  %v6038 = vunpack.c.h.b16 %v6009
  %v6039 = vunpack.c.l.b16 %v6010
  %v6040 = vunpack.c.h.b16 %v6010
  %v6041 = vpack.c.b16 %v6025, %v6021
  %v6042 = vpack.c.b16 %v6026, %v6022
  %v6043 = vpack.c.b16 %v6027, %v6023
  %v6044 = vpack.c.b16 %v6028, %v6024
  %v6045 = vpack.c.b16 %v6033, %v6029
  %v6046 = vpack.c.b16 %v6034, %v6030
  %v6047 = vpack.c.b16 %v6035, %v6031
  %v6048 = vpack.c.b16 %v6036, %v6032
  %v6049 = vpack.c.b16 %v6037, %v6037
  %v6050 = vpack.c.b16 %v6038, %v6038
  %v6051 = vpack.c.b16 %v6039, %v6039
  %v6052 = vpack.c.b16 %v6040, %v6040
  %v6062 = vsel %vm153, %v6049, 0
  %v6065 = vsel %vm153, %v6050, 0
  %v6068 = vsel %vm153, %v6051, 0
  %v6071 = vsel %vm153, %v6052, 0
  %6073 = vmatpush.bf16.msra.mxu0 0
  %6074 = vmatpush.bf16.msra.mxu0 0
  %6075 = vmatpush.bf16.msra.mxu0 0
  %6076 = vmatpush.bf16.msra.mxu0 0
  %6077 = vmatpush.bf16.msra.mxu0 0
  %6078 = vmatpush.bf16.msra.mxu0 %v6062
  %6079 = vmatpush.bf16.msra.mxu0 %v6045
  %6080 = vmatpush.bf16.msra.mxu0 %v6041
  %6081 = vmatmul.bf16.gmra.mxu0 %v151
  %v6082 = vpop.f32.mrf.mxu0
  %v6083 = vadd.f32 %v132, %v6082
  %v6084 = vpop.f32.mrf.mxu0
  %6085 = vdwg.mxu0
  %6086 = vmatpush.bf16.msra.mxu0 0
  %6087 = vmatpush.bf16.msra.mxu0 0
  %6088 = vmatpush.bf16.msra.mxu0 0
  %6089 = vmatpush.bf16.msra.mxu0 0
  %6090 = vmatpush.bf16.msra.mxu0 0
  %6091 = vmatpush.bf16.msra.mxu0 %v6065
  %6092 = vmatpush.bf16.msra.mxu0 %v6046
  %6093 = vmatpush.bf16.msra.mxu0 %v6042
  %6094 = vmatmul.bf16.gmra.mxu0 %v151
  %v6095 = vpop.f32.mrf.mxu0
  %v6096 = vadd.f32 %v132, %v6095
  %v6097 = vpop.f32.mrf.mxu0
  %6098 = vdwg.mxu0
  %6099 = vmatpush.bf16.msra.mxu0 0
  %6100 = vmatpush.bf16.msra.mxu0 0
  %6101 = vmatpush.bf16.msra.mxu0 0
  %6102 = vmatpush.bf16.msra.mxu0 0
  %6103 = vmatpush.bf16.msra.mxu0 0
  %6104 = vmatpush.bf16.msra.mxu0 %v6068
  %6105 = vmatpush.bf16.msra.mxu0 %v6047
  %6106 = vmatpush.bf16.msra.mxu0 %v6043
  %6107 = vmatmul.bf16.gmra.mxu0 %v151
  %v6108 = vpop.f32.mrf.mxu0
  %v6109 = vadd.f32 %v132, %v6108
  %v6110 = vpop.f32.mrf.mxu0
  %6111 = vdwg.mxu0
  %6112 = vmatpush.bf16.msra.mxu0 0
  %6113 = vmatpush.bf16.msra.mxu0 0
  %6114 = vmatpush.bf16.msra.mxu0 0
  %6115 = vmatpush.bf16.msra.mxu0 0
  %6116 = vmatpush.bf16.msra.mxu0 0
  %6117 = vmatpush.bf16.msra.mxu0 %v6071
  %6118 = vmatpush.bf16.msra.mxu0 %v6048
  %6119 = vmatpush.bf16.msra.mxu0 %v6044
  %6120 = vmatmul.bf16.gmra.mxu0 %v151
  %v6121 = vpop.f32.mrf.mxu0
  %v6122 = vadd.f32 %v132, %v6121
  %v6123 = vpop.f32.mrf.mxu0
  %6124 = vdwg.mxu0
  %vm6125 = vcmp.gt.f32.partialorder %v6083, 0.0
  %vm6126 = vcmp.gt.f32.partialorder %v6096, 0.0
  %vm6127 = vcmp.gt.f32.partialorder %v6109, 0.0
  %vm6128 = vcmp.gt.f32.partialorder %v6122, 0.0
  %v6129 = vmul.f32 %v6083, 0.1
  %v6130 = vmul.f32 %v6096, 0.1
  %v6131 = vmul.f32 %v6109, 0.1
  %v6132 = vmul.f32 %v6122, 0.1
  %v6133 = vsel %vm6125, %v6083, %v6129
  %v6134 = vsel %vm6126, %v6096, %v6130
  %v6135 = vsel %vm6127, %v6109, %v6131
  %v6136 = vsel %vm6128, %v6122, %v6132
  %s6137 = scalar_lea.vmem %s7, 32
  %v6138 = vld [vmem:[%s6137] sm:$0xf]
  %v6140 = vperm.slane %v6138, 0
  %v6141 = vperm.slane %v6138, 1
  %v6142 = vperm.slane %v6138, 2
  %v6143 = vperm.slane %v6138, 3
  %v6148 = vmul.f32 %v6133, %v6140
  %v6149 = vmul.f32 %v6134, %v6141
  %v6150 = vmul.f32 %v6135, %v6142
  %v6151 = vmul.f32 %v6136, %v6143
  %s6152 = scalar_lea.vmem %s31, 64
  %v6153 = vld [vmem:[%s6152] sm:$0xf]
  %v6154 = vld [vmem:[%s6152 + $0x4] sm:$0x3]
  %v6155 = vpack.c.bf16 %v5958, %v5958
  %v6156 = vpack.c.bf16 %v5971, %v5971
  %v6157 = vpack.c.bf16 %v5984, %v5984
  %v6158 = vpack.c.bf16 %v5997, %v5997
  %v6161 = vunpack.c.l.b16 %v6153
  %v6162 = vunpack.c.l.b16 %v6154
  %v6163 = vpack.c.b16 %v6162, %v6161
  %v6165 = vsel %vm236, %v6163, 0
  %v6168 = vsel %vm240, %v6155, 0
  %v6171 = vsel %vm240, %v6156, 0
  %v6174 = vsel %vm240, %v6157, 0
  %v6177 = vsel %vm240, %v6158, 0
  %6179 = vmatpush.bf16.msra.mxu0 0
  %6180 = vmatpush.bf16.msra.mxu0 0
  %6181 = vmatpush.bf16.msra.mxu0 0
  %6182 = vmatpush.bf16.msra.mxu0 0
  %6183 = vmatpush.bf16.msra.mxu0 0
  %6184 = vmatpush.bf16.msra.mxu0 0
  %6185 = vmatpush.bf16.msra.mxu0 0
  %6186 = vmatpush.bf16.msra.mxu0 %v6168
  %6187 = vmatmul.bf16.gmra.mxu0 %v6165
  %v6188 = vpop.f32.mrf.mxu0
  %v6189 = vadd.f32 0.0, %v6188
  %v6190 = vpop.f32.mrf.mxu0
  %v6191 = vadd.f32 0.0, %v6190
  %6192 = vdwg.mxu0
  %6193 = vmatpush.bf16.msra.mxu0 0
  %6194 = vmatpush.bf16.msra.mxu0 0
  %6195 = vmatpush.bf16.msra.mxu0 0
  %6196 = vmatpush.bf16.msra.mxu0 0
  %6197 = vmatpush.bf16.msra.mxu0 0
  %6198 = vmatpush.bf16.msra.mxu0 0
  %6199 = vmatpush.bf16.msra.mxu0 0
  %6200 = vmatpush.bf16.msra.mxu0 %v6171
  %6201 = vmatmul.bf16.gmra.mxu0 %v6165
  %v6202 = vpop.f32.mrf.mxu0
  %v6203 = vadd.f32 0.0, %v6202
  %v6204 = vpop.f32.mrf.mxu0
  %v6205 = vadd.f32 0.0, %v6204
  %6206 = vdwg.mxu0
  %6207 = vmatpush.bf16.msra.mxu0 0
  %6208 = vmatpush.bf16.msra.mxu0 0
  %6209 = vmatpush.bf16.msra.mxu0 0
  %6210 = vmatpush.bf16.msra.mxu0 0
  %6211 = vmatpush.bf16.msra.mxu0 0
  %6212 = vmatpush.bf16.msra.mxu0 0
  %6213 = vmatpush.bf16.msra.mxu0 0
  %6214 = vmatpush.bf16.msra.mxu0 %v6174
  %6215 = vmatmul.bf16.gmra.mxu0 %v6165
  %v6216 = vpop.f32.mrf.mxu0
  %v6217 = vadd.f32 0.0, %v6216
  %v6218 = vpop.f32.mrf.mxu0
  %v6219 = vadd.f32 0.0, %v6218
  %6220 = vdwg.mxu0
  %6221 = vmatpush.bf16.msra.mxu0 0
  %6222 = vmatpush.bf16.msra.mxu0 0
  %6223 = vmatpush.bf16.msra.mxu0 0
  %6224 = vmatpush.bf16.msra.mxu0 0
  %6225 = vmatpush.bf16.msra.mxu0 0
  %6226 = vmatpush.bf16.msra.mxu0 0
  %6227 = vmatpush.bf16.msra.mxu0 0
  %6228 = vmatpush.bf16.msra.mxu0 %v6177
  %6229 = vmatmul.bf16.gmra.mxu0 %v6165
  %v6230 = vpop.f32.mrf.mxu0
  %v6231 = vadd.f32 0.0, %v6230
  %v6232 = vpop.f32.mrf.mxu0
  %v6233 = vadd.f32 0.0, %v6232
  %6234 = vdwg.mxu0
  %v6235 = vadd.f32 %v5747, %v6189
  %v6236 = vadd.f32 %v5748, %v6203
  %v6237 = vadd.f32 %v5749, %v6217
  %v6238 = vadd.f32 %v5750, %v6231
  %v6239 = vadd.f32 %v5751, %v6191
  %v6240 = vadd.f32 %v5752, %v6205
  %v6241 = vadd.f32 %v5753, %v6219
  %v6242 = vadd.f32 %v5754, %v6233
  %s6243 = scalar_lea.vmem %s33, 64
  %v6244 = vld [vmem:[%s6243] sm:$0xf]
  %v6245 = vld [vmem:[%s6243 + $0x4] sm:$0x3]
  %v6246 = vpack.c.bf16 %v6148, %v6148
  %v6247 = vpack.c.bf16 %v6149, %v6149
  %v6248 = vpack.c.bf16 %v6150, %v6150
  %v6249 = vpack.c.bf16 %v6151, %v6151
  %v6252 = vunpack.c.l.b16 %v6244
  %v6253 = vunpack.c.l.b16 %v6245
  %v6254 = vpack.c.b16 %v6253, %v6252
  %v6256 = vsel %vm236, %v6254, 0
  %v6259 = vsel %vm240, %v6246, 0
  %v6262 = vsel %vm240, %v6247, 0
  %v6265 = vsel %vm240, %v6248, 0
  %v6268 = vsel %vm240, %v6249, 0
  %6270 = vmatpush.bf16.msra.mxu0 0
  %6271 = vmatpush.bf16.msra.mxu0 0
  %6272 = vmatpush.bf16.msra.mxu0 0
  %6273 = vmatpush.bf16.msra.mxu0 0
  %6274 = vmatpush.bf16.msra.mxu0 0
  %6275 = vmatpush.bf16.msra.mxu0 0
  %6276 = vmatpush.bf16.msra.mxu0 0
  %6277 = vmatpush.bf16.msra.mxu0 %v6259
  %6278 = vmatmul.bf16.gmra.mxu0 %v6256
  %v6279 = vpop.f32.mrf.mxu0
  %v6280 = vadd.f32 0.0, %v6279
  %v6281 = vpop.f32.mrf.mxu0
  %v6282 = vadd.f32 0.0, %v6281
  %6283 = vdwg.mxu0
  %6284 = vmatpush.bf16.msra.mxu0 0
  %6285 = vmatpush.bf16.msra.mxu0 0
  %6286 = vmatpush.bf16.msra.mxu0 0
  %6287 = vmatpush.bf16.msra.mxu0 0
  %6288 = vmatpush.bf16.msra.mxu0 0
  %6289 = vmatpush.bf16.msra.mxu0 0
  %6290 = vmatpush.bf16.msra.mxu0 0
  %6291 = vmatpush.bf16.msra.mxu0 %v6262
  %6292 = vmatmul.bf16.gmra.mxu0 %v6256
  %v6293 = vpop.f32.mrf.mxu0
  %v6294 = vadd.f32 0.0, %v6293
  %v6295 = vpop.f32.mrf.mxu0
  %v6296 = vadd.f32 0.0, %v6295
  %6297 = vdwg.mxu0
  %6298 = vmatpush.bf16.msra.mxu0 0
  %6299 = vmatpush.bf16.msra.mxu0 0
  %6300 = vmatpush.bf16.msra.mxu0 0
  %6301 = vmatpush.bf16.msra.mxu0 0
  %6302 = vmatpush.bf16.msra.mxu0 0
  %6303 = vmatpush.bf16.msra.mxu0 0
  %6304 = vmatpush.bf16.msra.mxu0 0
  %6305 = vmatpush.bf16.msra.mxu0 %v6265
  %6306 = vmatmul.bf16.gmra.mxu0 %v6256
  %v6307 = vpop.f32.mrf.mxu0
  %v6308 = vadd.f32 0.0, %v6307
  %v6309 = vpop.f32.mrf.mxu0
  %v6310 = vadd.f32 0.0, %v6309
  %6311 = vdwg.mxu0
  %6312 = vmatpush.bf16.msra.mxu0 0
  %6313 = vmatpush.bf16.msra.mxu0 0
  %6314 = vmatpush.bf16.msra.mxu0 0
  %6315 = vmatpush.bf16.msra.mxu0 0
  %6316 = vmatpush.bf16.msra.mxu0 0
  %6317 = vmatpush.bf16.msra.mxu0 0
  %6318 = vmatpush.bf16.msra.mxu0 0
  %6319 = vmatpush.bf16.msra.mxu0 %v6268
  %6320 = vmatmul.bf16.gmra.mxu0 %v6256
  %v6321 = vpop.f32.mrf.mxu0
  %v6322 = vadd.f32 0.0, %v6321
  %v6323 = vpop.f32.mrf.mxu0
  %v6324 = vadd.f32 0.0, %v6323
  %6325 = vdwg.mxu0
  %v6326 = vadd.f32 %v6235, %v6280
  %v6327 = vadd.f32 %v6236, %v6294
  %v6328 = vadd.f32 %v6237, %v6308
  %v6329 = vadd.f32 %v6238, %v6322
  %v6330 = vadd.f32 %v6239, %v6282
  %v6331 = vadd.f32 %v6240, %v6296
  %v6332 = vadd.f32 %v6241, %v6310
  %v6333 = vadd.f32 %v6242, %v6324
  %v6334 = vld [vmem:[%s35] sm:$0xff]
  %v6335 = vld [vmem:[%s35 + $0x8] sm:$0xf]
  %6337 = vset.pattern.permute.xlu0 0
  %6338 = vperm.xlu0 %6337, %v6334
  %v6339 = vpop.permute.xlu0 %6338
  %6342 = vset.pattern.permute.xlu0 0
  %6343 = vperm.xlu0 %6342, %v6335
  %v6344 = vpop.permute.xlu0 %6343
  %v6346 = vadd.f32 %v6326, %v6339
  %v6347 = vadd.f32 %v6327, %v6339
  %v6348 = vadd.f32 %v6328, %v6339
  %v6349 = vadd.f32 %v6329, %v6339
  %v6350 = vadd.f32 %v6330, %v6344
  %v6351 = vadd.f32 %v6331, %v6344
  %v6352 = vadd.f32 %v6332, %v6344
  %v6353 = vadd.f32 %v6333, %v6344
  %vm6354 = vcmp.gt.f32.partialorder %v6346, 0.0
  %vm6355 = vcmp.gt.f32.partialorder %v6347, 0.0
  %vm6356 = vcmp.gt.f32.partialorder %v6348, 0.0
  %vm6357 = vcmp.gt.f32.partialorder %v6349, 0.0
  %vm6358 = vcmp.gt.f32.partialorder %v6350, 0.0
  %vm6359 = vcmp.gt.f32.partialorder %v6351, 0.0
  %vm6360 = vcmp.gt.f32.partialorder %v6352, 0.0
  %vm6361 = vcmp.gt.f32.partialorder %v6353, 0.0
  %v6362 = vmul.f32 %v6346, 0.1
  %v6363 = vmul.f32 %v6347, 0.1
  %v6364 = vmul.f32 %v6348, 0.1
  %v6365 = vmul.f32 %v6349, 0.1
  %v6366 = vmul.f32 %v6350, 0.1
  %v6367 = vmul.f32 %v6351, 0.1
  %v6368 = vmul.f32 %v6352, 0.1
  %v6369 = vmul.f32 %v6353, 0.1
  %v6370 = vsel %vm6354, %v6346, %v6362
  %v6371 = vsel %vm6355, %v6347, %v6363
  %v6372 = vsel %vm6356, %v6348, %v6364
  %v6373 = vsel %vm6357, %v6349, %v6365
  %v6374 = vsel %vm6358, %v6350, %v6366
  %v6375 = vsel %vm6359, %v6351, %v6367
  %v6376 = vsel %vm6360, %v6352, %v6368
  %v6377 = vsel %vm6361, %v6353, %v6369
  %v6378 = vld [vmem:[%s37] sm:$0xf]
  %v6379 = vld [vmem:[%s37 + $0x4] sm:$0xf]
  %v6380 = vld [vmem:[%s37 + $0x8] sm:$0x1]
  %v6381 = vpack.c.bf16 %v6374, %v6370
  %v6382 = vpack.c.bf16 %v6375, %v6371
  %v6383 = vpack.c.bf16 %v6376, %v6372
  %v6384 = vpack.c.bf16 %v6377, %v6373
  %v6385 = vld [vmem:[%s39] sm:$0xff]
  %v6386 = vld [vmem:[%s39 + $0x8] sm:$0xff]
  %v6387 = vld [vmem:[%s39 + $0x10] sm:$0x3]
  %6389 = vset.pattern.permute.xlu0 0
  %6390 = vperm.xlu0 %6389, %v6385
  %v6391 = vpop.permute.xlu0 %6390
  %6394 = vset.pattern.permute.xlu0 0
  %6395 = vperm.xlu0 %6394, %v6386
  %v6396 = vpop.permute.xlu0 %6395
  %6399 = vset.pattern.permute.xlu0 0
  %6400 = vperm.xlu0 %6399, %v6387
  %v6401 = vpop.permute.xlu0 %6400
  %v6406 = vunpack.c.l.b16 %v6378
  %v6407 = vunpack.c.l.b16 %v6379
  %v6408 = vunpack.c.l.b16 %v6380
  %v6409 = vpack.c.b16 %v6407, %v6406
  %v6410 = vpack.c.b16 %v6408, %v6408
  %vm6411 = vcmask 97280
  %v6413 = vsel %vm6411, %v6409, 0
  %v6416 = vsel %vm6411, %v6410, 0
  %vm6418 = vcmask 1045504
  %v6420 = vsel %vm6418, %v6381, 0
  %v6423 = vsel %vm6418, %v6382, 0
  %v6426 = vsel %vm6418, %v6383, 0
  %v6429 = vsel %vm6418, %v6384, 0
  %6431 = vmatpush.bf16.msra.mxu0 0
  %6432 = vmatpush.bf16.msra.mxu0 0
  %6433 = vmatpush.bf16.msra.mxu0 0
  %6434 = vmatpush.bf16.msra.mxu0 0
  %6435 = vmatpush.bf16.msra.mxu0 0
  %6436 = vmatpush.bf16.msra.mxu0 0
  %6437 = vmatpush.bf16.msra.mxu0 0
  %6438 = vmatpush.bf16.msra.mxu0 %v6420
  %6439 = vmatmul.bf16.gmra.mxu0 %v6413
  %v6440 = vpop.f32.mrf.mxu0
  %v6441 = vadd.f32 %v6391, %v6440
  %v6442 = vpop.f32.mrf.mxu0
  %v6443 = vadd.f32 %v6396, %v6442
  %6444 = vmatmul.bf16.gmra.mxu0 %v6416
  %v6445 = vpop.f32.mrf.mxu0
  %v6446 = vadd.f32 %v6401, %v6445
  %v6447 = vpop.f32.mrf.mxu0
  %6448 = vdwg.mxu0
  %6449 = vmatpush.bf16.msra.mxu0 0
  %6450 = vmatpush.bf16.msra.mxu0 0
  %6451 = vmatpush.bf16.msra.mxu0 0
  %6452 = vmatpush.bf16.msra.mxu0 0
  %6453 = vmatpush.bf16.msra.mxu0 0
  %6454 = vmatpush.bf16.msra.mxu0 0
  %6455 = vmatpush.bf16.msra.mxu0 0
  %6456 = vmatpush.bf16.msra.mxu0 %v6423
  %6457 = vmatmul.bf16.gmra.mxu0 %v6413
  %v6458 = vpop.f32.mrf.mxu0
  %v6459 = vadd.f32 %v6391, %v6458
  %v6460 = vpop.f32.mrf.mxu0
  %v6461 = vadd.f32 %v6396, %v6460
  %6462 = vmatmul.bf16.gmra.mxu0 %v6416
  %v6463 = vpop.f32.mrf.mxu0
  %v6464 = vadd.f32 %v6401, %v6463
  %v6465 = vpop.f32.mrf.mxu0
  %6466 = vdwg.mxu0
  %6467 = vmatpush.bf16.msra.mxu0 0
  %6468 = vmatpush.bf16.msra.mxu0 0
  %6469 = vmatpush.bf16.msra.mxu0 0
  %6470 = vmatpush.bf16.msra.mxu0 0
  %6471 = vmatpush.bf16.msra.mxu0 0
  %6472 = vmatpush.bf16.msra.mxu0 0
  %6473 = vmatpush.bf16.msra.mxu0 0
  %6474 = vmatpush.bf16.msra.mxu0 %v6426
  %6475 = vmatmul.bf16.gmra.mxu0 %v6413
  %v6476 = vpop.f32.mrf.mxu0
  %v6477 = vadd.f32 %v6391, %v6476
  %v6478 = vpop.f32.mrf.mxu0
  %v6479 = vadd.f32 %v6396, %v6478
  %6480 = vmatmul.bf16.gmra.mxu0 %v6416
  %v6481 = vpop.f32.mrf.mxu0
  %v6482 = vadd.f32 %v6401, %v6481
  %v6483 = vpop.f32.mrf.mxu0
  %6484 = vdwg.mxu0
  %6485 = vmatpush.bf16.msra.mxu0 0
  %6486 = vmatpush.bf16.msra.mxu0 0
  %6487 = vmatpush.bf16.msra.mxu0 0
  %6488 = vmatpush.bf16.msra.mxu0 0
  %6489 = vmatpush.bf16.msra.mxu0 0
  %6490 = vmatpush.bf16.msra.mxu0 0
  %6491 = vmatpush.bf16.msra.mxu0 0
  %6492 = vmatpush.bf16.msra.mxu0 %v6429
  %6493 = vmatmul.bf16.gmra.mxu0 %v6413
  %v6494 = vpop.f32.mrf.mxu0
  %v6495 = vadd.f32 %v6391, %v6494
  %v6496 = vpop.f32.mrf.mxu0
  %v6497 = vadd.f32 %v6396, %v6496
  %6498 = vmatmul.bf16.gmra.mxu0 %v6416
  %v6499 = vpop.f32.mrf.mxu0
  %v6500 = vadd.f32 %v6401, %v6499
  %v6501 = vpop.f32.mrf.mxu0
  %6502 = vdwg.mxu0
  %v6503 = vld [vmem:[%s49] sm:$0xff]
  %v6504 = vld [vmem:[%s49 + $0x8] sm:$0xff]
  %v6505 = vld [vmem:[%s49 + $0x10] sm:$0x3]
  %v6506 = vsub.f32 0.0, %v6441
  %v6507 = vsub.f32 0.0, %v6459
  %v6508 = vsub.f32 0.0, %v6477
  %v6509 = vsub.f32 0.0, %v6495
  %v6510 = vsub.f32 0.0, %v6443
  %v6511 = vsub.f32 0.0, %v6461
  %v6512 = vsub.f32 0.0, %v6479
  %v6513 = vsub.f32 0.0, %v6497
  %v6514 = vsub.f32 0.0, %v6446
  %v6515 = vsub.f32 0.0, %v6464
  %v6516 = vsub.f32 0.0, %v6482
  %v6517 = vsub.f32 0.0, %v6500
  %v6518 = vmul.f32 %v6506, 1.442695
  %v6519 = vpow.pop %v6518
  %v6520 = vmul.f32 %v6507, 1.442695
  %v6521 = vpow.pop %v6520
  %v6522 = vmul.f32 %v6508, 1.442695
  %v6523 = vpow.pop %v6522
  %v6524 = vmul.f32 %v6509, 1.442695
  %v6525 = vpow.pop %v6524
  %v6526 = vmul.f32 %v6510, 1.442695
  %v6527 = vpow.pop %v6526
  %v6528 = vmul.f32 %v6511, 1.442695
  %v6529 = vpow.pop %v6528
  %v6530 = vmul.f32 %v6512, 1.442695
  %v6531 = vpow.pop %v6530
  %v6532 = vmul.f32 %v6513, 1.442695
  %v6533 = vpow.pop %v6532
  %v6534 = vmul.f32 %v6514, 1.442695
  %v6535 = vpow.pop %v6534
  %v6536 = vmul.f32 %v6515, 1.442695
  %v6537 = vpow.pop %v6536
  %v6538 = vmul.f32 %v6516, 1.442695
  %v6539 = vpow.pop %v6538
  %v6540 = vmul.f32 %v6517, 1.442695
  %v6541 = vpow.pop %v6540
  %v6542 = vadd.f32 %v6519, 1.0
  %v6543 = vadd.f32 %v6521, 1.0
  %v6544 = vadd.f32 %v6523, 1.0
  %v6545 = vadd.f32 %v6525, 1.0
  %v6546 = vadd.f32 %v6527, 1.0
  %v6547 = vadd.f32 %v6529, 1.0
  %v6548 = vadd.f32 %v6531, 1.0
  %v6549 = vadd.f32 %v6533, 1.0
  %v6550 = vadd.f32 %v6535, 1.0
  %v6551 = vadd.f32 %v6537, 1.0
  %v6552 = vadd.f32 %v6539, 1.0
  %v6553 = vadd.f32 %v6541, 1.0
  %v6554 = vrcp.pop %v6542
  %v6555 = vmul.f32 %v6542, %v6554
  %v6556 = vsub.f32 1.0, %v6555
  %v6557 = vmul.f32 %v6554, %v6556
  %v6558 = vadd.f32 %v6554, %v6557
  %vm6559 = vweird.f32 %v6542
  %vm6560 = vweird.f32 %v6554
  %vm6561 = vmor %vm6559, %vm6560
  %v6562 = vsel %vm6561, %v6554, %v6558
  %v6563 = vand.u32 2147483647, %v6542
  %vm6564 = vcmp.eq.f32.partialorder %v6563, 8.507059e+37
  %v6565 = vand.u32 %v6542, 2147483648
  %v6566 = vor.u32 1.1754944e-38, %v6565
  %v6567 = vsel %vm6564, %v6566, %v6562
  %v6568 = vrcp.pop %v6543
  %v6569 = vmul.f32 %v6543, %v6568
  %v6570 = vsub.f32 1.0, %v6569
  %v6571 = vmul.f32 %v6568, %v6570
  %v6572 = vadd.f32 %v6568, %v6571
  %vm6573 = vweird.f32 %v6543
  %vm6574 = vweird.f32 %v6568
  %vm6575 = vmor %vm6573, %vm6574
  %v6576 = vsel %vm6575, %v6568, %v6572
  %v6577 = vand.u32 2147483647, %v6543
  %vm6578 = vcmp.eq.f32.partialorder %v6577, 8.507059e+37
  %v6579 = vand.u32 %v6543, 2147483648
  %v6580 = vor.u32 1.1754944e-38, %v6579
  %v6581 = vsel %vm6578, %v6580, %v6576
  %v6582 = vrcp.pop %v6544
  %v6583 = vmul.f32 %v6544, %v6582
  %v6584 = vsub.f32 1.0, %v6583
  %v6585 = vmul.f32 %v6582, %v6584
  %v6586 = vadd.f32 %v6582, %v6585
  %vm6587 = vweird.f32 %v6544
  %vm6588 = vweird.f32 %v6582
  %vm6589 = vmor %vm6587, %vm6588
  %v6590 = vsel %vm6589, %v6582, %v6586
  %v6591 = vand.u32 2147483647, %v6544
  %vm6592 = vcmp.eq.f32.partialorder %v6591, 8.507059e+37
  %v6593 = vand.u32 %v6544, 2147483648
  %v6594 = vor.u32 1.1754944e-38, %v6593
  %v6595 = vsel %vm6592, %v6594, %v6590
  %v6596 = vrcp.pop %v6545
  %v6597 = vmul.f32 %v6545, %v6596
  %v6598 = vsub.f32 1.0, %v6597
  %v6599 = vmul.f32 %v6596, %v6598
  %v6600 = vadd.f32 %v6596, %v6599
  %vm6601 = vweird.f32 %v6545
  %vm6602 = vweird.f32 %v6596
  %vm6603 = vmor %vm6601, %vm6602
  %v6604 = vsel %vm6603, %v6596, %v6600
  %v6605 = vand.u32 2147483647, %v6545
  %vm6606 = vcmp.eq.f32.partialorder %v6605, 8.507059e+37
  %v6607 = vand.u32 %v6545, 2147483648
  %v6608 = vor.u32 1.1754944e-38, %v6607
  %v6609 = vsel %vm6606, %v6608, %v6604
  %v6610 = vrcp.pop %v6546
  %v6611 = vmul.f32 %v6546, %v6610
  %v6612 = vsub.f32 1.0, %v6611
  %v6613 = vmul.f32 %v6610, %v6612
  %v6614 = vadd.f32 %v6610, %v6613
  %vm6615 = vweird.f32 %v6546
  %vm6616 = vweird.f32 %v6610
  %vm6617 = vmor %vm6615, %vm6616
  %v6618 = vsel %vm6617, %v6610, %v6614
  %v6619 = vand.u32 2147483647, %v6546
  %vm6620 = vcmp.eq.f32.partialorder %v6619, 8.507059e+37
  %v6621 = vand.u32 %v6546, 2147483648
  %v6622 = vor.u32 1.1754944e-38, %v6621
  %v6623 = vsel %vm6620, %v6622, %v6618
  %v6624 = vrcp.pop %v6547
  %v6625 = vmul.f32 %v6547, %v6624
  %v6626 = vsub.f32 1.0, %v6625
  %v6627 = vmul.f32 %v6624, %v6626
  %v6628 = vadd.f32 %v6624, %v6627
  %vm6629 = vweird.f32 %v6547
  %vm6630 = vweird.f32 %v6624
  %vm6631 = vmor %vm6629, %vm6630
  %v6632 = vsel %vm6631, %v6624, %v6628
  %v6633 = vand.u32 2147483647, %v6547
  %vm6634 = vcmp.eq.f32.partialorder %v6633, 8.507059e+37
  %v6635 = vand.u32 %v6547, 2147483648
  %v6636 = vor.u32 1.1754944e-38, %v6635
  %v6637 = vsel %vm6634, %v6636, %v6632
  %v6638 = vrcp.pop %v6548
  %v6639 = vmul.f32 %v6548, %v6638
  %v6640 = vsub.f32 1.0, %v6639
  %v6641 = vmul.f32 %v6638, %v6640
  %v6642 = vadd.f32 %v6638, %v6641
  %vm6643 = vweird.f32 %v6548
  %vm6644 = vweird.f32 %v6638
  %vm6645 = vmor %vm6643, %vm6644
  %v6646 = vsel %vm6645, %v6638, %v6642
  %v6647 = vand.u32 2147483647, %v6548
  %vm6648 = vcmp.eq.f32.partialorder %v6647, 8.507059e+37
  %v6649 = vand.u32 %v6548, 2147483648
  %v6650 = vor.u32 1.1754944e-38, %v6649
  %v6651 = vsel %vm6648, %v6650, %v6646
  %v6652 = vrcp.pop %v6549
  %v6653 = vmul.f32 %v6549, %v6652
  %v6654 = vsub.f32 1.0, %v6653
  %v6655 = vmul.f32 %v6652, %v6654
  %v6656 = vadd.f32 %v6652, %v6655
  %vm6657 = vweird.f32 %v6549
  %vm6658 = vweird.f32 %v6652
  %vm6659 = vmor %vm6657, %vm6658
  %v6660 = vsel %vm6659, %v6652, %v6656
  %v6661 = vand.u32 2147483647, %v6549
  %vm6662 = vcmp.eq.f32.partialorder %v6661, 8.507059e+37
  %v6663 = vand.u32 %v6549, 2147483648
  %v6664 = vor.u32 1.1754944e-38, %v6663
  %v6665 = vsel %vm6662, %v6664, %v6660
  %v6666 = vrcp.pop %v6550
  %v6667 = vmul.f32 %v6550, %v6666
  %v6668 = vsub.f32 1.0, %v6667
  %v6669 = vmul.f32 %v6666, %v6668
  %v6670 = vadd.f32 %v6666, %v6669
  %vm6671 = vweird.f32 %v6550
  %vm6672 = vweird.f32 %v6666
  %vm6673 = vmor %vm6671, %vm6672
  %v6674 = vsel %vm6673, %v6666, %v6670
  %v6675 = vand.u32 2147483647, %v6550
  %vm6676 = vcmp.eq.f32.partialorder %v6675, 8.507059e+37
  %v6677 = vand.u32 %v6550, 2147483648
  %v6678 = vor.u32 1.1754944e-38, %v6677
  %v6679 = vsel %vm6676, %v6678, %v6674
  %v6680 = vrcp.pop %v6551
  %v6681 = vmul.f32 %v6551, %v6680
  %v6682 = vsub.f32 1.0, %v6681
  %v6683 = vmul.f32 %v6680, %v6682
  %v6684 = vadd.f32 %v6680, %v6683
  %vm6685 = vweird.f32 %v6551
  %vm6686 = vweird.f32 %v6680
  %vm6687 = vmor %vm6685, %vm6686
  %v6688 = vsel %vm6687, %v6680, %v6684
  %v6689 = vand.u32 2147483647, %v6551
  %vm6690 = vcmp.eq.f32.partialorder %v6689, 8.507059e+37
  %v6691 = vand.u32 %v6551, 2147483648
  %v6692 = vor.u32 1.1754944e-38, %v6691
  %v6693 = vsel %vm6690, %v6692, %v6688
  %v6694 = vrcp.pop %v6552
  %v6695 = vmul.f32 %v6552, %v6694
  %v6696 = vsub.f32 1.0, %v6695
  %v6697 = vmul.f32 %v6694, %v6696
  %v6698 = vadd.f32 %v6694, %v6697
  %vm6699 = vweird.f32 %v6552
  %vm6700 = vweird.f32 %v6694
  %vm6701 = vmor %vm6699, %vm6700
  %v6702 = vsel %vm6701, %v6694, %v6698
  %v6703 = vand.u32 2147483647, %v6552
  %vm6704 = vcmp.eq.f32.partialorder %v6703, 8.507059e+37
  %v6705 = vand.u32 %v6552, 2147483648
  %v6706 = vor.u32 1.1754944e-38, %v6705
  %v6707 = vsel %vm6704, %v6706, %v6702
  %v6708 = vrcp.pop %v6553
  %v6709 = vmul.f32 %v6553, %v6708
  %v6710 = vsub.f32 1.0, %v6709
  %v6711 = vmul.f32 %v6708, %v6710
  %v6712 = vadd.f32 %v6708, %v6711
  %vm6713 = vweird.f32 %v6553
  %vm6714 = vweird.f32 %v6708
  %vm6715 = vmor %vm6713, %vm6714
  %v6716 = vsel %vm6715, %v6708, %v6712
  %v6717 = vand.u32 2147483647, %v6553
  %vm6718 = vcmp.eq.f32.partialorder %v6717, 8.507059e+37
  %v6719 = vand.u32 %v6553, 2147483648
  %v6720 = vor.u32 1.1754944e-38, %v6719
  %v6721 = vsel %vm6718, %v6720, %v6716
  %6723 = vset.pattern.permute.xlu0 0
  %6724 = vperm.xlu0 %6723, %v6503
  %v6725 = vpop.permute.xlu0 %6724
  %6728 = vset.pattern.permute.xlu0 0
  %6729 = vperm.xlu0 %6728, %v6504
  %v6730 = vpop.permute.xlu0 %6729
  %6733 = vset.pattern.permute.xlu0 0
  %6734 = vperm.xlu0 %6733, %v6505
  %v6735 = vpop.permute.xlu0 %6734
  %v6737 = vmul.f32 %v6725, %v6567
  %v6738 = vmul.f32 %v6725, %v6581
  %v6739 = vmul.f32 %v6725, %v6595
  %v6740 = vmul.f32 %v6725, %v6609
  %v6741 = vmul.f32 %v6730, %v6623
  %v6742 = vmul.f32 %v6730, %v6637
  %v6743 = vmul.f32 %v6730, %v6651
  %v6744 = vmul.f32 %v6730, %v6665
  %v6745 = vmul.f32 %v6735, %v6679
  %v6746 = vmul.f32 %v6735, %v6693
  %v6747 = vmul.f32 %v6735, %v6707
  %v6748 = vmul.f32 %v6735, %v6721
  %v6749 = vld [vmem:[%s53] sm:$0xff]
  %v6750 = vld [vmem:[%s53 + $0x8] sm:$0xff]
  %v6751 = vld [vmem:[%s53 + $0x10] sm:$0x3]
  %v6752 = vld [vmem:[%s51] sm:$0xff]
  %v6753 = vld [vmem:[%s51 + $0x8] sm:$0xff]
  %v6754 = vld [vmem:[%s51 + $0x10] sm:$0x3]
  %6756 = vset.pattern.permute.xlu0 0
  %6757 = vperm.xlu0 %6756, %v6752
  %v6758 = vpop.permute.xlu0 %6757
  %6761 = vset.pattern.permute.xlu0 0
  %6762 = vperm.xlu0 %6761, %v6753
  %v6763 = vpop.permute.xlu0 %6762
  %6766 = vset.pattern.permute.xlu0 0
  %6767 = vperm.xlu0 %6766, %v6754
  %v6768 = vpop.permute.xlu0 %6767
  %v6770 = vmul.f32 %v6441, %v6758
  %v6771 = vmul.f32 %v6459, %v6758
  %v6772 = vmul.f32 %v6477, %v6758
  %v6773 = vmul.f32 %v6495, %v6758
  %v6774 = vmul.f32 %v6443, %v6763
  %v6775 = vmul.f32 %v6461, %v6763
  %v6776 = vmul.f32 %v6479, %v6763
  %v6777 = vmul.f32 %v6497, %v6763
  %v6778 = vmul.f32 %v6446, %v6768
  %v6779 = vmul.f32 %v6464, %v6768
  %v6780 = vmul.f32 %v6482, %v6768
  %v6781 = vmul.f32 %v6500, %v6768
  %v6782 = vmul.f32 %v6770, 1.442695
  %v6783 = vpow.pop %v6782
  %v6784 = vmul.f32 %v6771, 1.442695
  %v6785 = vpow.pop %v6784
  %v6786 = vmul.f32 %v6772, 1.442695
  %v6787 = vpow.pop %v6786
  %v6788 = vmul.f32 %v6773, 1.442695
  %v6789 = vpow.pop %v6788
  %v6790 = vmul.f32 %v6774, 1.442695
  %v6791 = vpow.pop %v6790
  %v6792 = vmul.f32 %v6775, 1.442695
  %v6793 = vpow.pop %v6792
  %v6794 = vmul.f32 %v6776, 1.442695
  %v6795 = vpow.pop %v6794
  %v6796 = vmul.f32 %v6777, 1.442695
  %v6797 = vpow.pop %v6796
  %v6798 = vmul.f32 %v6778, 1.442695
  %v6799 = vpow.pop %v6798
  %v6800 = vmul.f32 %v6779, 1.442695
  %v6801 = vpow.pop %v6800
  %v6802 = vmul.f32 %v6780, 1.442695
  %v6803 = vpow.pop %v6802
  %v6804 = vmul.f32 %v6781, 1.442695
  %v6805 = vpow.pop %v6804
  %6807 = vset.pattern.permute.xlu0 0
  %6808 = vperm.xlu0 %6807, %v6749
  %v6809 = vpop.permute.xlu0 %6808
  %6812 = vset.pattern.permute.xlu0 0
  %6813 = vperm.xlu0 %6812, %v6750
  %v6814 = vpop.permute.xlu0 %6813
  %6817 = vset.pattern.permute.xlu0 0
  %6818 = vperm.xlu0 %6817, %v6751
  %v6819 = vpop.permute.xlu0 %6818
  %v6821 = vmul.f32 %v6809, %v6783
  %v6822 = vmul.f32 %v6809, %v6785
  %v6823 = vmul.f32 %v6809, %v6787
  %v6824 = vmul.f32 %v6809, %v6789
  %v6825 = vmul.f32 %v6814, %v6791
  %v6826 = vmul.f32 %v6814, %v6793
  %v6827 = vmul.f32 %v6814, %v6795
  %v6828 = vmul.f32 %v6814, %v6797
  %v6829 = vmul.f32 %v6819, %v6799
  %v6830 = vmul.f32 %v6819, %v6801
  %v6831 = vmul.f32 %v6819, %v6803
  %v6832 = vmul.f32 %v6819, %v6805
  %v6833 = vadd.f32 %v6737, %v6821
  %v6834 = vadd.f32 %v6738, %v6822
  %v6835 = vadd.f32 %v6739, %v6823
  %v6836 = vadd.f32 %v6740, %v6824
  %v6837 = vadd.f32 %v6741, %v6825
  %v6838 = vadd.f32 %v6742, %v6826
  %v6839 = vadd.f32 %v6743, %v6827
  %v6840 = vadd.f32 %v6744, %v6828
  %v6841 = vadd.f32 %v6745, %v6829
  %v6842 = vadd.f32 %v6746, %v6830
  %v6843 = vadd.f32 %v6747, %v6831
  %v6844 = vadd.f32 %v6748, %v6832
  %v6845 = vld [vmem:[%s55] sm:$0xff]
  %v6846 = vld [vmem:[%s55 + $0x8] sm:$0xff]
  %v6847 = vld [vmem:[%s55 + $0x10] sm:$0xff]
  %v6848 = vld [vmem:[%s55 + $0x18] sm:$0xff]
  %v6849 = vld [vmem:[%s55 + $0x20] sm:$0xff]
  %v6850 = vld [vmem:[%s55 + $0x28] sm:$0xff]
  %v6851 = vld [vmem:[%s55 + $0x30] sm:$0xff]
  %v6852 = vld [vmem:[%s55 + $0x38] sm:$0xff]
  %v6853 = vld [vmem:[%s55 + $0x40] sm:$0x3]
  %v6854 = vld [vmem:[%s55 + $0x48] sm:$0x3]
  %v6855 = vld [vmem:[%s55 + $0x50] sm:$0x3]
  %v6856 = vld [vmem:[%s55 + $0x58] sm:$0x3]
  %v6857 = vadd.f32 %v6833, %v6845
  %v6858 = vadd.f32 %v6834, %v6846
  %v6859 = vadd.f32 %v6835, %v6847
  %v6860 = vadd.f32 %v6836, %v6848
  %v6861 = vadd.f32 %v6837, %v6849
  %v6862 = vadd.f32 %v6838, %v6850
  %v6863 = vadd.f32 %v6839, %v6851
  %v6864 = vadd.f32 %v6840, %v6852
  %v6865 = vadd.f32 %v6841, %v6853
  %v6866 = vadd.f32 %v6842, %v6854
  %v6867 = vadd.f32 %v6843, %v6855
  %v6868 = vadd.f32 %v6844, %v6856
  %6869 = vst [vmem:[%s59] sm:$0xff] %v6857
  %6870 = vst [vmem:[%s59 + $0x8] sm:$0xff] %v6858
  %6871 = vst [vmem:[%s59 + $0x10] sm:$0xff] %v6859
  %6872 = vst [vmem:[%s59 + $0x18] sm:$0xff] %v6860
  %6873 = vst [vmem:[%s59 + $0x20] sm:$0xff] %v6861
  %6874 = vst [vmem:[%s59 + $0x28] sm:$0xff] %v6862
  %6875 = vst [vmem:[%s59 + $0x30] sm:$0xff] %v6863
  %6876 = vst [vmem:[%s59 + $0x38] sm:$0xff] %v6864
  %6877 = vst [vmem:[%s59 + $0x40] sm:$0x3] %v6865
  %6878 = vst [vmem:[%s59 + $0x48] sm:$0x3] %v6866
  %6879 = vst [vmem:[%s59 + $0x50] sm:$0x3] %v6867
  %6880 = vst [vmem:[%s59 + $0x58] sm:$0x3] %v6868
  // Predicated region
  $region114: #{darknet_forward.1} parent=0 // pred_check
    _
  $region115: #{darknet_forward.1} parent=0 // pred_check_branch
    %6882 = sbr.rel (0) target = $region117
  $region116: #{darknet_forward.1} parent=0 // pred_region
    _
  $region117: #{darknet_forward.1} parent=0 // pred_fallthru
    _
  // Predicated region
  $region118: #{darknet_forward.1} parent=0 // pred_check
    _
  $region119: #{darknet_forward.1} parent=0 // pred_check_branch
    %6884 = sbr.rel (0) target = $region121
  $region120: #{darknet_forward.1} parent=0 // pred_region
    _
  $region121: #{darknet_forward.1} parent=0 // pred_fallthru
    _
  // Predicated region
  $region122: #{darknet_forward.1} parent=0 // pred_check
    _
  $region123: #{darknet_forward.1} parent=0 // pred_check_branch
    %6886 = sbr.rel (0) target = $region125
  $region124: #{darknet_forward.1} parent=0 // pred_region
    _
  $region125: #{darknet_forward.1} parent=0 // pred_fallthru
    _
  // Predicated region
  $region126: #{darknet_forward.1} parent=0 // pred_check
    _
  $region127: #{darknet_forward.1} parent=0 // pred_check_branch
    %6888 = sbr.rel (0) target = $region129
  $region128: #{darknet_forward.1} parent=0 // pred_region
    _
  $region129: #{darknet_forward.1} parent=0 // pred_fallthru
    _

</llo_original>
